<compile_context>
chip_gen: v7x
topology: tpu7x:2x2x1
jax: 0.10.0
libtpu: 0.0.40
codegen_flags: <defaults>
</compile_context>

<pallas_src>
import jax
import jax.numpy as jnp
from jax import lax
from jax.experimental import pallas as pl
from jax.experimental.pallas import tpu as pltpu

K_NEIGHBORS = 64          # matches max_num_neighbors=64 in the PyTorch module
NEG_BIG = -3e38           # finite "masked" value (avoids -inf propagation)


# -----------------------------------------------------------------------------
# Pallas kernel: PointConv local-nn + masked max aggregation
#   feats_ref  : (Fin, K*tile_m) bf16, K-major edge order inside the tile
#   counts_ref : (1, tile_m) int32, valid-neighbor count per center (prefix mask)
#   w*_ref     : (C_out, C_in) bf16 pre-transposed weights, b*_ref: (C_out, 1) f32
#   out_ref    : (C_out, tile_m) f32
# -----------------------------------------------------------------------------
def pointconv_kernel(feats_ref, counts_ref,
                     w1_ref, b1_ref, w2_ref, b2_ref, w3_ref, b3_ref,
                     out_ref):
    f = feats_ref[...]                                            # (Fin, K*tm) bf16
    h = jnp.dot(w1_ref[...], f, preferred_element_type=jnp.float32) + b1_ref[...]
    h = jnp.maximum(h, 0.0).astype(jnp.bfloat16)
    h = jnp.dot(w2_ref[...], h, preferred_element_type=jnp.float32) + b2_ref[...]
    h = jnp.maximum(h, 0.0).astype(jnp.bfloat16)
    h = jnp.dot(w3_ref[...], h, preferred_element_type=jnp.float32) + b3_ref[...]

    cout, tm = out_ref.shape
    k_total = h.shape[-1] // tm
    counts = counts_ref[...]                                      # (1, tm) int32

    # K-major ordering: neighbor slice k is the lane-aligned columns
    # [k*tm, (k+1)*tm). Rebuild the prefix-valid mask from the counts and do a
    # masked tree-max on the VPU (zero cross-lane XLU traffic).
    slices = [jnp.where(counts > k, h[:, k * tm:(k + 1) * tm], NEG_BIG)
              for k in range(k_total)]
    while len(slices) > 1:
        nxt = [jnp.maximum(a, b) for a, b in zip(slices[0::2], slices[1::2])]
        if len(slices) % 2:
            nxt.append(slices[-1])
        slices = nxt
    red = slices[0]                                               # (Cout, tm) f32

    # centers with zero valid neighbors -> 0 (scatter-max empty-target fill)
    out_ref[...] = jnp.where(counts > 0, red, 0.0)


def _round8(v):
    return ((v + 7) // 8) * 8


def pointconv_pallas(feats_t, counts, params, *, tile_m):
    Fin, E = feats_t.shape
    K = K_NEIGHBORS
    assert E % K == 0
    M_pad = E // K
    assert M_pad % tile_m == 0
    w1t, b1, w2t, b2, w3t, b3 = params
    H1, H2, Cout = w1t.shape[0], w2t.shape[0], w3t.shape[0]
    te = tile_m * K

    # VMEM footprint estimate: double-buffered streams + f32 intermediates,
    # 2x headroom, clamped to [16 MiB, 32 MiB] (never the whole v7x 64 MiB/TC,
    # always above v5e's 16 MiB scoped default).
    est = (2 * _round8(Fin) * te * 2            # feats double-buffer (bf16)
           + 2 * 8 * tile_m * 4                 # counts double-buffer
           + 2 * _round8(Cout) * tile_m * 4     # out double-buffer
           + (_round8(H1) + _round8(H2) + _round8(Cout)) * te * 4)
    vmem_limit = int(min(32 * 1024 * 1024, max(16 * 1024 * 1024, 2 * est)))

    flops = 2 * E * (Fin * H1 + H1 * H2 + H2 * Cout)
    bytes_accessed = (Fin * E * 2 + M_pad * 4 + Cout * M_pad * 4
                      + (H1 * Fin + H2 * H1 + Cout * H2) * 2
                      + (H1 + H2 + Cout) * 4)

    # NOTE: weight/bias index_maps are constant so Pallas does not re-DMA them
    # per step; single-buffering them (pipeline_mode) was judged not worth the
    # lowering risk for the tiny VMEM it would save.
    out = pl.pallas_call(
        pointconv_kernel,
        out_shape=jax.ShapeDtypeStruct((Cout, M_pad), jnp.float32),
        grid_spec=pltpu.PrefetchScalarGridSpec(
            num_scalar_prefetch=0,
            grid=(M_pad // tile_m,),
            in_specs=[
                pl.BlockSpec((Fin, te),    lambda i: (0, i)),   # edges of tile i
                pl.BlockSpec((1, tile_m),  lambda i: (0, i)),   # neighbor counts
                pl.BlockSpec((H1, Fin),    lambda i: (0, 0)),
                pl.BlockSpec((H1, 1),      lambda i: (0, 0)),
                pl.BlockSpec((H2, H1),     lambda i: (0, 0)),
                pl.BlockSpec((H2, 1),      lambda i: (0, 0)),
                pl.BlockSpec((Cout, H2),   lambda i: (0, 0)),
                pl.BlockSpec((Cout, 1),    lambda i: (0, 0)),
            ],
            out_specs=pl.BlockSpec((Cout, tile_m), lambda i: (0, i)),
        ),
        compiler_params=pltpu.CompilerParams(
            dimension_semantics=("parallel",),
            vmem_limit_bytes=vmem_limit),
        cost_estimate=pl.CostEstimate(flops=flops, transcendentals=0,
                                      bytes_accessed=bytes_accessed),
    )(feats_t, counts, w1t, b1, w2t, b2, w3t, b3)
    return out                                              # (Cout, M_pad)


def _pick_tile_m(M, requested):
    """tile_m multiple of 128, as large as requested, but keep >=2 grid steps
    when the problem allows it (megacore sharding on v7x)."""
    t = max(128, (requested // 128) * 128)
    while t > 128 and pl.cdiv(M, t) < 2:
        t -= 128
    return t


# -----------------------------------------------------------------------------
# Glue: farthest point sampling (per batch element, deterministic start=0)
# -----------------------------------------------------------------------------
def fps_batched(pos_b, n_sample):
    B, Nper, _ = pos_b.shape

    def fps_one(p):
        def body(i, state):
            mind, idxs = state
            last = idxs[i - 1]
            d = jnp.sum((p - p[last]) ** 2, axis=-1)
            mind = jnp.minimum(mind, d)
            nxt = jnp.argmax(mind).astype(jnp.int32)
            return mind, idxs.at[i].set(nxt)

        mind0 = jnp.sum((p - p[0]) ** 2, axis=-1)          # start point = index 0
        idxs0 = jnp.zeros((n_sample,), jnp.int32)
        _, idxs = lax.fori_loop(1, n_sample, body, (mind0, idxs0))
        return idxs

    local = jax.vmap(fps_one)(pos_b)                        # (B, n_sample)
    offs = (jnp.arange(B, dtype=jnp.int32) * Nper)[:, None]
    return (local + offs).reshape(-1)                       # global indices (M,)


# -----------------------------------------------------------------------------
# Glue: brute-force radius search -> dense (M, K) neighbor table + valid mask
# (the mask is prefix-valid by construction: sorted valid indices come first)
# -----------------------------------------------------------------------------
def radius_neighbors(pos, batch, centers_pos, centers_batch, r, max_k):
    N = pos.shape[0]
    d2 = jnp.sum((centers_pos[:, None, :] - pos[None, :, :]) ** 2, axis=-1)
    valid = (d2 <= r * r) & (centers_batch[:, None] == batch[None, :])
    key = jnp.where(valid, jnp.arange(N, dtype=jnp.int32)[None, :], N)
    order = jnp.sort(key, axis=1)[:, :max_k]                # first <=K valid indices
    mask = order < N                                        # (M, K) bool, prefix-valid
    nbr = jnp.where(mask, order, 0)
    return nbr, mask


# -----------------------------------------------------------------------------
# SAModule.forward equivalent
# -----------------------------------------------------------------------------
def sa_module_forward(x, pos, batch, params, *, ratio, r, B, Nper,
                      max_k=K_NEIGHBORS, tile_m=256):
    n_sample = int(ratio * Nper)
    idx = fps_batched(pos.reshape(B, Nper, 3), n_sample)    # fps(pos, batch, ratio)
    centers_pos = pos[idx]                                  # pos[idx]
    centers_batch = batch[idx]                              # batch[idx]
    nbr, mask = radius_neighbors(pos, batch, centers_pos, centers_batch, r, max_k)

    M = idx.shape[0]
    tile_m = _pick_tile_m(M, tile_m)
    n_tiles = pl.cdiv(M, tile_m)
    M_pad = n_tiles * tile_m

    # bf16 point tables *before* the gather (halves gather traffic); relative
    # positions in bf16 feed a bf16 matmul anyway.
    x_bf = x.astype(jnp.bfloat16)
    pos_bf = pos.astype(jnp.bfloat16)

    # per-edge features:  cat([x_j, pos_j - pos_i])
    x_j = x_bf[nbr]                                          # (M, K, F)  bf16
    rel = pos_bf[nbr] - pos_bf[idx][:, None, :]              # (M, K, 3)  bf16
    feats = jnp.concatenate([x_j, rel], axis=-1)             # (M, K, Fin) bf16
    Fin = feats.shape[-1]
    feats = jnp.pad(feats, ((0, M_pad - M), (0, 0), (0, 0)))

    # channels-first, K-major inside every tile of tile_m centers:
    #   (M_pad, K, Fin) -> (Fin, n_tiles, K, tile_m) -> (Fin, M_pad*K)
    feats_t = (feats.reshape(n_tiles, tile_m, max_k, Fin)
                    .transpose(3, 0, 2, 1)
                    .reshape(Fin, M_pad * max_k))

    # one int32 count per center replaces the old per-edge f32 bias stream
    counts = mask.sum(axis=-1).astype(jnp.int32)             # (M,)
    counts = jnp.pad(counts, (0, M_pad - M)).reshape(1, M_pad)

    out_t = pointconv_pallas(feats_t, counts, params, tile_m=tile_m)
    out_x = out_t.T[:M]                                      # (M, Cout)
    return out_x, centers_pos, centers_batch


# -----------------------------------------------------------------------------
# Deterministic parameter init for the local nn: Lin-ReLU-Lin-ReLU-Lin
# (weights pre-transposed to (C_out, C_in) bf16; biases (C_out, 1) f32)
# -----------------------------------------------------------------------------
def init_params(key, fin, h1, h2, cout):
    ks = jax.random.split(key, 6)
    w1t = (jax.random.normal(ks[0], (h1, fin), jnp.float32) * 0.1).astype(jnp.bfloat16)
    b1 = jax.random.normal(ks[1], (h1, 1), jnp.float32) * 0.01
    w2t = (jax.random.normal(ks[2], (h2, h1), jnp.float32) * 0.1).astype(jnp.bfloat16)
    b2 = jax.random.normal(ks[3], (h2, 1), jnp.float32) * 0.01
    w3t = (jax.random.normal(ks[4], (cout, h2), jnp.float32) * 0.1).astype(jnp.bfloat16)
    b3 = jax.random.normal(ks[5], (cout, 1), jnp.float32) * 0.01
    return (w1t, b1, w2t, b2, w3t, b3)


if __name__ == "__main__":
    key = jax.random.PRNGKey(0)
    B, Nper, F = 2, 192, 4         # 2 point clouds, 192 points each, 4 features
    ratio, r = 0.5, 0.5            # -> M = 192 centers, padded to 256 (2 tiles)
    H1, H2, Cout = 16, 16, 32

    k_pos, k_x, k_w = jax.random.split(key, 3)
    pos = jax.random.uniform(k_pos, (B * Nper, 3), jnp.float32)
    x = jax.random.normal(k_x, (B * Nper, F), jnp.float32)
    batch = jnp.repeat(jnp.arange(B, dtype=jnp.int32), Nper)

    params = init_params(k_w, F + 3, H1, H2, Cout)

    out_x, out_pos, out_batch = sa_module_forward(
        x, pos, batch, params, ratio=ratio, r=r, B=B, Nper=Nper)
    jax.block_until_ready((out_x, out_pos, out_batch))

    M = int(ratio * Nper) * B
    assert out_x.shape == (M, Cout)
    assert out_pos.shape == (M, 3)
    assert out_batch.shape == (M,)
    assert bool(jnp.all(jnp.isfinite(out_x)))
    assert bool(jnp.max(jnp.abs(out_x)) < 1e30)   # no masked -3e38 leaked through
    print("KERNEL_OK")
</pallas_src>

<mosaic_0001>
module attributes {stable_mosaic.version = 11 : i64} {
  func.func @pointconv_kernel(%arg0: i32, %arg1: memref<7x8192xbf16, #tpu.memory_space<vmem>>, %arg2: memref<1x128xi32, #tpu.memory_space<vmem>>, %arg3: memref<16x7xbf16, #tpu.memory_space<vmem>>, %arg4: memref<16x1xf32, #tpu.memory_space<vmem>>, %arg5: memref<16x16xbf16, #tpu.memory_space<vmem>>, %arg6: memref<16x1xf32, #tpu.memory_space<vmem>>, %arg7: memref<32x16xbf16, #tpu.memory_space<vmem>>, %arg8: memref<32x1xf32, #tpu.memory_space<vmem>>, %arg9: memref<32x128xf32, #tpu.memory_space<vmem>>) attributes {dimension_semantics = [#tpu.dimension_semantics<parallel>], iteration_bounds = array<i64: 2>, scalar_prefetch = 0 : i64, scratch_operands = 0 : i64, tpu.core_type = #tpu.core_type<tc>, window_params = [{transform_indices = @transform_0, window_bounds = array<i64: 7, 8192>}, {transform_indices = @transform_1, window_bounds = array<i64: 1, 128>}, {pipeline_mode = #tpu.pipeline_mode<synchronous>, transform_indices = @transform_2, window_bounds = array<i64: 16, 7>}, {pipeline_mode = #tpu.pipeline_mode<synchronous>, transform_indices = @transform_3, window_bounds = array<i64: 16, 1>}, {pipeline_mode = #tpu.pipeline_mode<synchronous>, transform_indices = @transform_4, window_bounds = array<i64: 16, 16>}, {pipeline_mode = #tpu.pipeline_mode<synchronous>, transform_indices = @transform_5, window_bounds = array<i64: 16, 1>}, {pipeline_mode = #tpu.pipeline_mode<synchronous>, transform_indices = @transform_6, window_bounds = array<i64: 32, 16>}, {pipeline_mode = #tpu.pipeline_mode<synchronous>, transform_indices = @transform_7, window_bounds = array<i64: 32, 1>}, {transform_indices = @transform_8, window_bounds = array<i64: 32, 128>}]} {
    %c0 = arith.constant 0 : index
    %c0_0 = arith.constant 0 : index
    %0 = vector.load %arg1[%c0, %c0_0] : memref<7x8192xbf16, #tpu.memory_space<vmem>>, vector<7x8192xbf16>
    %c0_1 = arith.constant 0 : index
    %c0_2 = arith.constant 0 : index
    %1 = vector.load %arg3[%c0_1, %c0_2] : memref<16x7xbf16, #tpu.memory_space<vmem>>, vector<16x7xbf16>
    %cst = arith.constant dense<0.000000e+00> : vector<16x8192xf32>
    %2 = tpu.matmul %1, %0, %cst {dimension_numbers = #tpu.dot_dimension_numbers<[1], [0], [0], [1], [0, 0, 1, 1], [], []>} : vector<16x7xbf16>, vector<7x8192xbf16>, vector<16x8192xf32> -> vector<16x8192xf32>
    %c0_3 = arith.constant 0 : index
    %c0_4 = arith.constant 0 : index
    %3 = vector.load %arg4[%c0_3, %c0_4] : memref<16x1xf32, #tpu.memory_space<vmem>>, vector<16x1xf32>
    %4 = vector.broadcast %3 : vector<16x1xf32> to vector<16x8192xf32>
    %5 = arith.addf %2, %4 : vector<16x8192xf32>
    %cst_5 = arith.constant 0.000000e+00 : f32
    %6 = vector.broadcast %cst_5 : f32 to vector<16x8192xf32>
    %7 = arith.maximumf %5, %6 : vector<16x8192xf32>
    %8 = arith.truncf %7 : vector<16x8192xf32> to vector<16x8192xbf16>
    %c0_6 = arith.constant 0 : index
    %c0_7 = arith.constant 0 : index
    %9 = vector.load %arg5[%c0_6, %c0_7] : memref<16x16xbf16, #tpu.memory_space<vmem>>, vector<16x16xbf16>
    %cst_8 = arith.constant dense<0.000000e+00> : vector<16x8192xf32>
    %10 = tpu.matmul %9, %8, %cst_8 {dimension_numbers = #tpu.dot_dimension_numbers<[1], [0], [0], [1], [0, 0, 1, 1], [], []>} : vector<16x16xbf16>, vector<16x8192xbf16>, vector<16x8192xf32> -> vector<16x8192xf32>
    %c0_9 = arith.constant 0 : index
    %c0_10 = arith.constant 0 : index
    %11 = vector.load %arg6[%c0_9, %c0_10] : memref<16x1xf32, #tpu.memory_space<vmem>>, vector<16x1xf32>
    %12 = vector.broadcast %11 : vector<16x1xf32> to vector<16x8192xf32>
    %13 = arith.addf %10, %12 : vector<16x8192xf32>
    %cst_11 = arith.constant 0.000000e+00 : f32
    %14 = vector.broadcast %cst_11 : f32 to vector<16x8192xf32>
    %15 = arith.maximumf %13, %14 : vector<16x8192xf32>
    %16 = arith.truncf %15 : vector<16x8192xf32> to vector<16x8192xbf16>
    %c0_12 = arith.constant 0 : index
    %c0_13 = arith.constant 0 : index
    %17 = vector.load %arg7[%c0_12, %c0_13] : memref<32x16xbf16, #tpu.memory_space<vmem>>, vector<32x16xbf16>
    %cst_14 = arith.constant dense<0.000000e+00> : vector<32x8192xf32>
    %18 = tpu.matmul %17, %16, %cst_14 {dimension_numbers = #tpu.dot_dimension_numbers<[1], [0], [0], [1], [0, 0, 1, 1], [], []>} : vector<32x16xbf16>, vector<16x8192xbf16>, vector<32x8192xf32> -> vector<32x8192xf32>
    %c0_15 = arith.constant 0 : index
    %c0_16 = arith.constant 0 : index
    %19 = vector.load %arg8[%c0_15, %c0_16] : memref<32x1xf32, #tpu.memory_space<vmem>>, vector<32x1xf32>
    %20 = vector.broadcast %19 : vector<32x1xf32> to vector<32x8192xf32>
    %21 = arith.addf %18, %20 : vector<32x8192xf32>
    %c0_17 = arith.constant 0 : index
    %c0_18 = arith.constant 0 : index
    %22 = vector.load %arg2[%c0_17, %c0_18] : memref<1x128xi32, #tpu.memory_space<vmem>>, vector<1x128xi32>
    %c0_i32 = arith.constant 0 : i32
    %23 = vector.broadcast %c0_i32 : i32 to vector<1x128xi32>
    %24 = arith.cmpi sgt, %22, %23 : vector<1x128xi32>
    %25 = vector.extract_strided_slice %21 {offsets = [0, 0], sizes = [32, 128], strides = [1, 1]} : vector<32x8192xf32> to vector<32x128xf32>
    %cst_19 = arith.constant -3.000000e+38 : f32
    %26 = vector.shape_cast %24 : vector<1x128xi1> to vector<1x128xi1>
    %27 = vector.broadcast %26 : vector<1x128xi1> to vector<32x128xi1>
    %28 = vector.broadcast %cst_19 : f32 to vector<32x128xf32>
    %29 = arith.select %27, %25, %28 : vector<32x128xi1>, vector<32x128xf32>
    %c1_i32 = arith.constant 1 : i32
    %30 = vector.broadcast %c1_i32 : i32 to vector<1x128xi32>
    %31 = arith.cmpi sgt, %22, %30 : vector<1x128xi32>
    %32 = vector.extract_strided_slice %21 {offsets = [0, 128], sizes = [32, 128], strides = [1, 1]} : vector<32x8192xf32> to vector<32x128xf32>
    %cst_20 = arith.constant -3.000000e+38 : f32
    %33 = vector.shape_cast %31 : vector<1x128xi1> to vector<1x128xi1>
    %34 = vector.broadcast %33 : vector<1x128xi1> to vector<32x128xi1>
    %35 = vector.broadcast %cst_20 : f32 to vector<32x128xf32>
    %36 = arith.select %34, %32, %35 : vector<32x128xi1>, vector<32x128xf32>
    %c2_i32 = arith.constant 2 : i32
    %37 = vector.broadcast %c2_i32 : i32 to vector<1x128xi32>
    %38 = arith.cmpi sgt, %22, %37 : vector<1x128xi32>
    %39 = vector.extract_strided_slice %21 {offsets = [0, 256], sizes = [32, 128], strides = [1, 1]} : vector<32x8192xf32> to vector<32x128xf32>
    %cst_21 = arith.constant -3.000000e+38 : f32
    %40 = vector.shape_cast %38 : vector<1x128xi1> to vector<1x128xi1>
    %41 = vector.broadcast %40 : vector<1x128xi1> to vector<32x128xi1>
    %42 = vector.broadcast %cst_21 : f32 to vector<32x128xf32>
    %43 = arith.select %41, %39, %42 : vector<32x128xi1>, vector<32x128xf32>
    %c3_i32 = arith.constant 3 : i32
    %44 = vector.broadcast %c3_i32 : i32 to vector<1x128xi32>
    %45 = arith.cmpi sgt, %22, %44 : vector<1x128xi32>
    %46 = vector.extract_strided_slice %21 {offsets = [0, 384], sizes = [32, 128], strides = [1, 1]} : vector<32x8192xf32> to vector<32x128xf32>
    %cst_22 = arith.constant -3.000000e+38 : f32
    %47 = vector.shape_cast %45 : vector<1x128xi1> to vector<1x128xi1>
    %48 = vector.broadcast %47 : vector<1x128xi1> to vector<32x128xi1>
    %49 = vector.broadcast %cst_22 : f32 to vector<32x128xf32>
    %50 = arith.select %48, %46, %49 : vector<32x128xi1>, vector<32x128xf32>
    %c4_i32 = arith.constant 4 : i32
    %51 = vector.broadcast %c4_i32 : i32 to vector<1x128xi32>
    %52 = arith.cmpi sgt, %22, %51 : vector<1x128xi32>
    %53 = vector.extract_strided_slice %21 {offsets = [0, 512], sizes = [32, 128], strides = [1, 1]} : vector<32x8192xf32> to vector<32x128xf32>
    %cst_23 = arith.constant -3.000000e+38 : f32
    %54 = vector.shape_cast %52 : vector<1x128xi1> to vector<1x128xi1>
    %55 = vector.broadcast %54 : vector<1x128xi1> to vector<32x128xi1>
    %56 = vector.broadcast %cst_23 : f32 to vector<32x128xf32>
    %57 = arith.select %55, %53, %56 : vector<32x128xi1>, vector<32x128xf32>
    %c5_i32 = arith.constant 5 : i32
    %58 = vector.broadcast %c5_i32 : i32 to vector<1x128xi32>
    %59 = arith.cmpi sgt, %22, %58 : vector<1x128xi32>
    %60 = vector.extract_strided_slice %21 {offsets = [0, 640], sizes = [32, 128], strides = [1, 1]} : vector<32x8192xf32> to vector<32x128xf32>
    %cst_24 = arith.constant -3.000000e+38 : f32
    %61 = vector.shape_cast %59 : vector<1x128xi1> to vector<1x128xi1>
    %62 = vector.broadcast %61 : vector<1x128xi1> to vector<32x128xi1>
    %63 = vector.broadcast %cst_24 : f32 to vector<32x128xf32>
    %64 = arith.select %62, %60, %63 : vector<32x128xi1>, vector<32x128xf32>
    %c6_i32 = arith.constant 6 : i32
    %65 = vector.broadcast %c6_i32 : i32 to vector<1x128xi32>
    %66 = arith.cmpi sgt, %22, %65 : vector<1x128xi32>
    %67 = vector.extract_strided_slice %21 {offsets = [0, 768], sizes = [32, 128], strides = [1, 1]} : vector<32x8192xf32> to vector<32x128xf32>
    %cst_25 = arith.constant -3.000000e+38 : f32
    %68 = vector.shape_cast %66 : vector<1x128xi1> to vector<1x128xi1>
    %69 = vector.broadcast %68 : vector<1x128xi1> to vector<32x128xi1>
    %70 = vector.broadcast %cst_25 : f32 to vector<32x128xf32>
    %71 = arith.select %69, %67, %70 : vector<32x128xi1>, vector<32x128xf32>
    %c7_i32 = arith.constant 7 : i32
    %72 = vector.broadcast %c7_i32 : i32 to vector<1x128xi32>
    %73 = arith.cmpi sgt, %22, %72 : vector<1x128xi32>
    %74 = vector.extract_strided_slice %21 {offsets = [0, 896], sizes = [32, 128], strides = [1, 1]} : vector<32x8192xf32> to vector<32x128xf32>
    %cst_26 = arith.constant -3.000000e+38 : f32
    %75 = vector.shape_cast %73 : vector<1x128xi1> to vector<1x128xi1>
    %76 = vector.broadcast %75 : vector<1x128xi1> to vector<32x128xi1>
    %77 = vector.broadcast %cst_26 : f32 to vector<32x128xf32>
    %78 = arith.select %76, %74, %77 : vector<32x128xi1>, vector<32x128xf32>
    %c8_i32 = arith.constant 8 : i32
    %79 = vector.broadcast %c8_i32 : i32 to vector<1x128xi32>
    %80 = arith.cmpi sgt, %22, %79 : vector<1x128xi32>
    %81 = vector.extract_strided_slice %21 {offsets = [0, 1024], sizes = [32, 128], strides = [1, 1]} : vector<32x8192xf32> to vector<32x128xf32>
    %cst_27 = arith.constant -3.000000e+38 : f32
    %82 = vector.shape_cast %80 : vector<1x128xi1> to vector<1x128xi1>
    %83 = vector.broadcast %82 : vector<1x128xi1> to vector<32x128xi1>
    %84 = vector.broadcast %cst_27 : f32 to vector<32x128xf32>
    %85 = arith.select %83, %81, %84 : vector<32x128xi1>, vector<32x128xf32>
    %c9_i32 = arith.constant 9 : i32
    %86 = vector.broadcast %c9_i32 : i32 to vector<1x128xi32>
    %87 = arith.cmpi sgt, %22, %86 : vector<1x128xi32>
    %88 = vector.extract_strided_slice %21 {offsets = [0, 1152], sizes = [32, 128], strides = [1, 1]} : vector<32x8192xf32> to vector<32x128xf32>
    %cst_28 = arith.constant -3.000000e+38 : f32
    %89 = vector.shape_cast %87 : vector<1x128xi1> to vector<1x128xi1>
    %90 = vector.broadcast %89 : vector<1x128xi1> to vector<32x128xi1>
    %91 = vector.broadcast %cst_28 : f32 to vector<32x128xf32>
    %92 = arith.select %90, %88, %91 : vector<32x128xi1>, vector<32x128xf32>
    %c10_i32 = arith.constant 10 : i32
    %93 = vector.broadcast %c10_i32 : i32 to vector<1x128xi32>
    %94 = arith.cmpi sgt, %22, %93 : vector<1x128xi32>
    %95 = vector.extract_strided_slice %21 {offsets = [0, 1280], sizes = [32, 128], strides = [1, 1]} : vector<32x8192xf32> to vector<32x128xf32>
    %cst_29 = arith.constant -3.000000e+38 : f32
    %96 = vector.shape_cast %94 : vector<1x128xi1> to vector<1x128xi1>
    %97 = vector.broadcast %96 : vector<1x128xi1> to vector<32x128xi1>
    %98 = vector.broadcast %cst_29 : f32 to vector<32x128xf32>
    %99 = arith.select %97, %95, %98 : vector<32x128xi1>, vector<32x128xf32>
    %c11_i32 = arith.constant 11 : i32
    %100 = vector.broadcast %c11_i32 : i32 to vector<1x128xi32>
    %101 = arith.cmpi sgt, %22, %100 : vector<1x128xi32>
    %102 = vector.extract_strided_slice %21 {offsets = [0, 1408], sizes = [32, 128], strides = [1, 1]} : vector<32x8192xf32> to vector<32x128xf32>
    %cst_30 = arith.constant -3.000000e+38 : f32
    %103 = vector.shape_cast %101 : vector<1x128xi1> to vector<1x128xi1>
    %104 = vector.broadcast %103 : vector<1x128xi1> to vector<32x128xi1>
    %105 = vector.broadcast %cst_30 : f32 to vector<32x128xf32>
    %106 = arith.select %104, %102, %105 : vector<32x128xi1>, vector<32x128xf32>
    %c12_i32 = arith.constant 12 : i32
    %107 = vector.broadcast %c12_i32 : i32 to vector<1x128xi32>
    %108 = arith.cmpi sgt, %22, %107 : vector<1x128xi32>
    %109 = vector.extract_strided_slice %21 {offsets = [0, 1536], sizes = [32, 128], strides = [1, 1]} : vector<32x8192xf32> to vector<32x128xf32>
    %cst_31 = arith.constant -3.000000e+38 : f32
    %110 = vector.shape_cast %108 : vector<1x128xi1> to vector<1x128xi1>
    %111 = vector.broadcast %110 : vector<1x128xi1> to vector<32x128xi1>
    %112 = vector.broadcast %cst_31 : f32 to vector<32x128xf32>
    %113 = arith.select %111, %109, %112 : vector<32x128xi1>, vector<32x128xf32>
    %c13_i32 = arith.constant 13 : i32
    %114 = vector.broadcast %c13_i32 : i32 to vector<1x128xi32>
    %115 = arith.cmpi sgt, %22, %114 : vector<1x128xi32>
    %116 = vector.extract_strided_slice %21 {offsets = [0, 1664], sizes = [32, 128], strides = [1, 1]} : vector<32x8192xf32> to vector<32x128xf32>
    %cst_32 = arith.constant -3.000000e+38 : f32
    %117 = vector.shape_cast %115 : vector<1x128xi1> to vector<1x128xi1>
    %118 = vector.broadcast %117 : vector<1x128xi1> to vector<32x128xi1>
    %119 = vector.broadcast %cst_32 : f32 to vector<32x128xf32>
    %120 = arith.select %118, %116, %119 : vector<32x128xi1>, vector<32x128xf32>
    %c14_i32 = arith.constant 14 : i32
    %121 = vector.broadcast %c14_i32 : i32 to vector<1x128xi32>
    %122 = arith.cmpi sgt, %22, %121 : vector<1x128xi32>
    %123 = vector.extract_strided_slice %21 {offsets = [0, 1792], sizes = [32, 128], strides = [1, 1]} : vector<32x8192xf32> to vector<32x128xf32>
    %cst_33 = arith.constant -3.000000e+38 : f32
    %124 = vector.shape_cast %122 : vector<1x128xi1> to vector<1x128xi1>
    %125 = vector.broadcast %124 : vector<1x128xi1> to vector<32x128xi1>
    %126 = vector.broadcast %cst_33 : f32 to vector<32x128xf32>
    %127 = arith.select %125, %123, %126 : vector<32x128xi1>, vector<32x128xf32>
    %c15_i32 = arith.constant 15 : i32
    %128 = vector.broadcast %c15_i32 : i32 to vector<1x128xi32>
    %129 = arith.cmpi sgt, %22, %128 : vector<1x128xi32>
    %130 = vector.extract_strided_slice %21 {offsets = [0, 1920], sizes = [32, 128], strides = [1, 1]} : vector<32x8192xf32> to vector<32x128xf32>
    %cst_34 = arith.constant -3.000000e+38 : f32
    %131 = vector.shape_cast %129 : vector<1x128xi1> to vector<1x128xi1>
    %132 = vector.broadcast %131 : vector<1x128xi1> to vector<32x128xi1>
    %133 = vector.broadcast %cst_34 : f32 to vector<32x128xf32>
    %134 = arith.select %132, %130, %133 : vector<32x128xi1>, vector<32x128xf32>
    %c16_i32 = arith.constant 16 : i32
    %135 = vector.broadcast %c16_i32 : i32 to vector<1x128xi32>
    %136 = arith.cmpi sgt, %22, %135 : vector<1x128xi32>
    %137 = vector.extract_strided_slice %21 {offsets = [0, 2048], sizes = [32, 128], strides = [1, 1]} : vector<32x8192xf32> to vector<32x128xf32>
    %cst_35 = arith.constant -3.000000e+38 : f32
    %138 = vector.shape_cast %136 : vector<1x128xi1> to vector<1x128xi1>
    %139 = vector.broadcast %138 : vector<1x128xi1> to vector<32x128xi1>
    %140 = vector.broadcast %cst_35 : f32 to vector<32x128xf32>
    %141 = arith.select %139, %137, %140 : vector<32x128xi1>, vector<32x128xf32>
    %c17_i32 = arith.constant 17 : i32
    %142 = vector.broadcast %c17_i32 : i32 to vector<1x128xi32>
    %143 = arith.cmpi sgt, %22, %142 : vector<1x128xi32>
    %144 = vector.extract_strided_slice %21 {offsets = [0, 2176], sizes = [32, 128], strides = [1, 1]} : vector<32x8192xf32> to vector<32x128xf32>
    %cst_36 = arith.constant -3.000000e+38 : f32
    %145 = vector.shape_cast %143 : vector<1x128xi1> to vector<1x128xi1>
    %146 = vector.broadcast %145 : vector<1x128xi1> to vector<32x128xi1>
    %147 = vector.broadcast %cst_36 : f32 to vector<32x128xf32>
    %148 = arith.select %146, %144, %147 : vector<32x128xi1>, vector<32x128xf32>
    %c18_i32 = arith.constant 18 : i32
    %149 = vector.broadcast %c18_i32 : i32 to vector<1x128xi32>
    %150 = arith.cmpi sgt, %22, %149 : vector<1x128xi32>
    %151 = vector.extract_strided_slice %21 {offsets = [0, 2304], sizes = [32, 128], strides = [1, 1]} : vector<32x8192xf32> to vector<32x128xf32>
    %cst_37 = arith.constant -3.000000e+38 : f32
    %152 = vector.shape_cast %150 : vector<1x128xi1> to vector<1x128xi1>
    %153 = vector.broadcast %152 : vector<1x128xi1> to vector<32x128xi1>
    %154 = vector.broadcast %cst_37 : f32 to vector<32x128xf32>
    %155 = arith.select %153, %151, %154 : vector<32x128xi1>, vector<32x128xf32>
    %c19_i32 = arith.constant 19 : i32
    %156 = vector.broadcast %c19_i32 : i32 to vector<1x128xi32>
    %157 = arith.cmpi sgt, %22, %156 : vector<1x128xi32>
    %158 = vector.extract_strided_slice %21 {offsets = [0, 2432], sizes = [32, 128], strides = [1, 1]} : vector<32x8192xf32> to vector<32x128xf32>
    %cst_38 = arith.constant -3.000000e+38 : f32
    %159 = vector.shape_cast %157 : vector<1x128xi1> to vector<1x128xi1>
    %160 = vector.broadcast %159 : vector<1x128xi1> to vector<32x128xi1>
    %161 = vector.broadcast %cst_38 : f32 to vector<32x128xf32>
    %162 = arith.select %160, %158, %161 : vector<32x128xi1>, vector<32x128xf32>
    %c20_i32 = arith.constant 20 : i32
    %163 = vector.broadcast %c20_i32 : i32 to vector<1x128xi32>
    %164 = arith.cmpi sgt, %22, %163 : vector<1x128xi32>
    %165 = vector.extract_strided_slice %21 {offsets = [0, 2560], sizes = [32, 128], strides = [1, 1]} : vector<32x8192xf32> to vector<32x128xf32>
    %cst_39 = arith.constant -3.000000e+38 : f32
    %166 = vector.shape_cast %164 : vector<1x128xi1> to vector<1x128xi1>
    %167 = vector.broadcast %166 : vector<1x128xi1> to vector<32x128xi1>
    %168 = vector.broadcast %cst_39 : f32 to vector<32x128xf32>
    %169 = arith.select %167, %165, %168 : vector<32x128xi1>, vector<32x128xf32>
    %c21_i32 = arith.constant 21 : i32
    %170 = vector.broadcast %c21_i32 : i32 to vector<1x128xi32>
    %171 = arith.cmpi sgt, %22, %170 : vector<1x128xi32>
    %172 = vector.extract_strided_slice %21 {offsets = [0, 2688], sizes = [32, 128], strides = [1, 1]} : vector<32x8192xf32> to vector<32x128xf32>
    %cst_40 = arith.constant -3.000000e+38 : f32
    %173 = vector.shape_cast %171 : vector<1x128xi1> to vector<1x128xi1>
    %174 = vector.broadcast %173 : vector<1x128xi1> to vector<32x128xi1>
    %175 = vector.broadcast %cst_40 : f32 to vector<32x128xf32>
    %176 = arith.select %174, %172, %175 : vector<32x128xi1>, vector<32x128xf32>
    %c22_i32 = arith.constant 22 : i32
    %177 = vector.broadcast %c22_i32 : i32 to vector<1x128xi32>
    %178 = arith.cmpi sgt, %22, %177 : vector<1x128xi32>
    %179 = vector.extract_strided_slice %21 {offsets = [0, 2816], sizes = [32, 128], strides = [1, 1]} : vector<32x8192xf32> to vector<32x128xf32>
    %cst_41 = arith.constant -3.000000e+38 : f32
    %180 = vector.shape_cast %178 : vector<1x128xi1> to vector<1x128xi1>
    %181 = vector.broadcast %180 : vector<1x128xi1> to vector<32x128xi1>
    %182 = vector.broadcast %cst_41 : f32 to vector<32x128xf32>
    %183 = arith.select %181, %179, %182 : vector<32x128xi1>, vector<32x128xf32>
    %c23_i32 = arith.constant 23 : i32
    %184 = vector.broadcast %c23_i32 : i32 to vector<1x128xi32>
    %185 = arith.cmpi sgt, %22, %184 : vector<1x128xi32>
    %186 = vector.extract_strided_slice %21 {offsets = [0, 2944], sizes = [32, 128], strides = [1, 1]} : vector<32x8192xf32> to vector<32x128xf32>
    %cst_42 = arith.constant -3.000000e+38 : f32
    %187 = vector.shape_cast %185 : vector<1x128xi1> to vector<1x128xi1>
    %188 = vector.broadcast %187 : vector<1x128xi1> to vector<32x128xi1>
    %189 = vector.broadcast %cst_42 : f32 to vector<32x128xf32>
    %190 = arith.select %188, %186, %189 : vector<32x128xi1>, vector<32x128xf32>
    %c24_i32 = arith.constant 24 : i32
    %191 = vector.broadcast %c24_i32 : i32 to vector<1x128xi32>
    %192 = arith.cmpi sgt, %22, %191 : vector<1x128xi32>
    %193 = vector.extract_strided_slice %21 {offsets = [0, 3072], sizes = [32, 128], strides = [1, 1]} : vector<32x8192xf32> to vector<32x128xf32>
    %cst_43 = arith.constant -3.000000e+38 : f32
    %194 = vector.shape_cast %192 : vector<1x128xi1> to vector<1x128xi1>
    %195 = vector.broadcast %194 : vector<1x128xi1> to vector<32x128xi1>
    %196 = vector.broadcast %cst_43 : f32 to vector<32x128xf32>
    %197 = arith.select %195, %193, %196 : vector<32x128xi1>, vector<32x128xf32>
    %c25_i32 = arith.constant 25 : i32
    %198 = vector.broadcast %c25_i32 : i32 to vector<1x128xi32>
    %199 = arith.cmpi sgt, %22, %198 : vector<1x128xi32>
    %200 = vector.extract_strided_slice %21 {offsets = [0, 3200], sizes = [32, 128], strides = [1, 1]} : vector<32x8192xf32> to vector<32x128xf32>
    %cst_44 = arith.constant -3.000000e+38 : f32
    %201 = vector.shape_cast %199 : vector<1x128xi1> to vector<1x128xi1>
    %202 = vector.broadcast %201 : vector<1x128xi1> to vector<32x128xi1>
    %203 = vector.broadcast %cst_44 : f32 to vector<32x128xf32>
    %204 = arith.select %202, %200, %203 : vector<32x128xi1>, vector<32x128xf32>
    %c26_i32 = arith.constant 26 : i32
    %205 = vector.broadcast %c26_i32 : i32 to vector<1x128xi32>
    %206 = arith.cmpi sgt, %22, %205 : vector<1x128xi32>
    %207 = vector.extract_strided_slice %21 {offsets = [0, 3328], sizes = [32, 128], strides = [1, 1]} : vector<32x8192xf32> to vector<32x128xf32>
    %cst_45 = arith.constant -3.000000e+38 : f32
    %208 = vector.shape_cast %206 : vector<1x128xi1> to vector<1x128xi1>
    %209 = vector.broadcast %208 : vector<1x128xi1> to vector<32x128xi1>
    %210 = vector.broadcast %cst_45 : f32 to vector<32x128xf32>
    %211 = arith.select %209, %207, %210 : vector<32x128xi1>, vector<32x128xf32>
    %c27_i32 = arith.constant 27 : i32
    %212 = vector.broadcast %c27_i32 : i32 to vector<1x128xi32>
    %213 = arith.cmpi sgt, %22, %212 : vector<1x128xi32>
    %214 = vector.extract_strided_slice %21 {offsets = [0, 3456], sizes = [32, 128], strides = [1, 1]} : vector<32x8192xf32> to vector<32x128xf32>
    %cst_46 = arith.constant -3.000000e+38 : f32
    %215 = vector.shape_cast %213 : vector<1x128xi1> to vector<1x128xi1>
    %216 = vector.broadcast %215 : vector<1x128xi1> to vector<32x128xi1>
    %217 = vector.broadcast %cst_46 : f32 to vector<32x128xf32>
    %218 = arith.select %216, %214, %217 : vector<32x128xi1>, vector<32x128xf32>
    %c28_i32 = arith.constant 28 : i32
    %219 = vector.broadcast %c28_i32 : i32 to vector<1x128xi32>
    %220 = arith.cmpi sgt, %22, %219 : vector<1x128xi32>
    %221 = vector.extract_strided_slice %21 {offsets = [0, 3584], sizes = [32, 128], strides = [1, 1]} : vector<32x8192xf32> to vector<32x128xf32>
    %cst_47 = arith.constant -3.000000e+38 : f32
    %222 = vector.shape_cast %220 : vector<1x128xi1> to vector<1x128xi1>
    %223 = vector.broadcast %222 : vector<1x128xi1> to vector<32x128xi1>
    %224 = vector.broadcast %cst_47 : f32 to vector<32x128xf32>
    %225 = arith.select %223, %221, %224 : vector<32x128xi1>, vector<32x128xf32>
    %c29_i32 = arith.constant 29 : i32
    %226 = vector.broadcast %c29_i32 : i32 to vector<1x128xi32>
    %227 = arith.cmpi sgt, %22, %226 : vector<1x128xi32>
    %228 = vector.extract_strided_slice %21 {offsets = [0, 3712], sizes = [32, 128], strides = [1, 1]} : vector<32x8192xf32> to vector<32x128xf32>
    %cst_48 = arith.constant -3.000000e+38 : f32
    %229 = vector.shape_cast %227 : vector<1x128xi1> to vector<1x128xi1>
    %230 = vector.broadcast %229 : vector<1x128xi1> to vector<32x128xi1>
    %231 = vector.broadcast %cst_48 : f32 to vector<32x128xf32>
    %232 = arith.select %230, %228, %231 : vector<32x128xi1>, vector<32x128xf32>
    %c30_i32 = arith.constant 30 : i32
    %233 = vector.broadcast %c30_i32 : i32 to vector<1x128xi32>
    %234 = arith.cmpi sgt, %22, %233 : vector<1x128xi32>
    %235 = vector.extract_strided_slice %21 {offsets = [0, 3840], sizes = [32, 128], strides = [1, 1]} : vector<32x8192xf32> to vector<32x128xf32>
    %cst_49 = arith.constant -3.000000e+38 : f32
    %236 = vector.shape_cast %234 : vector<1x128xi1> to vector<1x128xi1>
    %237 = vector.broadcast %236 : vector<1x128xi1> to vector<32x128xi1>
    %238 = vector.broadcast %cst_49 : f32 to vector<32x128xf32>
    %239 = arith.select %237, %235, %238 : vector<32x128xi1>, vector<32x128xf32>
    %c31_i32 = arith.constant 31 : i32
    %240 = vector.broadcast %c31_i32 : i32 to vector<1x128xi32>
    %241 = arith.cmpi sgt, %22, %240 : vector<1x128xi32>
    %242 = vector.extract_strided_slice %21 {offsets = [0, 3968], sizes = [32, 128], strides = [1, 1]} : vector<32x8192xf32> to vector<32x128xf32>
    %cst_50 = arith.constant -3.000000e+38 : f32
    %243 = vector.shape_cast %241 : vector<1x128xi1> to vector<1x128xi1>
    %244 = vector.broadcast %243 : vector<1x128xi1> to vector<32x128xi1>
    %245 = vector.broadcast %cst_50 : f32 to vector<32x128xf32>
    %246 = arith.select %244, %242, %245 : vector<32x128xi1>, vector<32x128xf32>
    %c32_i32 = arith.constant 32 : i32
    %247 = vector.broadcast %c32_i32 : i32 to vector<1x128xi32>
    %248 = arith.cmpi sgt, %22, %247 : vector<1x128xi32>
    %249 = vector.extract_strided_slice %21 {offsets = [0, 4096], sizes = [32, 128], strides = [1, 1]} : vector<32x8192xf32> to vector<32x128xf32>
    %cst_51 = arith.constant -3.000000e+38 : f32
    %250 = vector.shape_cast %248 : vector<1x128xi1> to vector<1x128xi1>
    %251 = vector.broadcast %250 : vector<1x128xi1> to vector<32x128xi1>
    %252 = vector.broadcast %cst_51 : f32 to vector<32x128xf32>
    %253 = arith.select %251, %249, %252 : vector<32x128xi1>, vector<32x128xf32>
    %c33_i32 = arith.constant 33 : i32
    %254 = vector.broadcast %c33_i32 : i32 to vector<1x128xi32>
    %255 = arith.cmpi sgt, %22, %254 : vector<1x128xi32>
    %256 = vector.extract_strided_slice %21 {offsets = [0, 4224], sizes = [32, 128], strides = [1, 1]} : vector<32x8192xf32> to vector<32x128xf32>
    %cst_52 = arith.constant -3.000000e+38 : f32
    %257 = vector.shape_cast %255 : vector<1x128xi1> to vector<1x128xi1>
    %258 = vector.broadcast %257 : vector<1x128xi1> to vector<32x128xi1>
    %259 = vector.broadcast %cst_52 : f32 to vector<32x128xf32>
    %260 = arith.select %258, %256, %259 : vector<32x128xi1>, vector<32x128xf32>
    %c34_i32 = arith.constant 34 : i32
    %261 = vector.broadcast %c34_i32 : i32 to vector<1x128xi32>
    %262 = arith.cmpi sgt, %22, %261 : vector<1x128xi32>
    %263 = vector.extract_strided_slice %21 {offsets = [0, 4352], sizes = [32, 128], strides = [1, 1]} : vector<32x8192xf32> to vector<32x128xf32>
    %cst_53 = arith.constant -3.000000e+38 : f32
    %264 = vector.shape_cast %262 : vector<1x128xi1> to vector<1x128xi1>
    %265 = vector.broadcast %264 : vector<1x128xi1> to vector<32x128xi1>
    %266 = vector.broadcast %cst_53 : f32 to vector<32x128xf32>
    %267 = arith.select %265, %263, %266 : vector<32x128xi1>, vector<32x128xf32>
    %c35_i32 = arith.constant 35 : i32
    %268 = vector.broadcast %c35_i32 : i32 to vector<1x128xi32>
    %269 = arith.cmpi sgt, %22, %268 : vector<1x128xi32>
    %270 = vector.extract_strided_slice %21 {offsets = [0, 4480], sizes = [32, 128], strides = [1, 1]} : vector<32x8192xf32> to vector<32x128xf32>
    %cst_54 = arith.constant -3.000000e+38 : f32
    %271 = vector.shape_cast %269 : vector<1x128xi1> to vector<1x128xi1>
    %272 = vector.broadcast %271 : vector<1x128xi1> to vector<32x128xi1>
    %273 = vector.broadcast %cst_54 : f32 to vector<32x128xf32>
    %274 = arith.select %272, %270, %273 : vector<32x128xi1>, vector<32x128xf32>
    %c36_i32 = arith.constant 36 : i32
    %275 = vector.broadcast %c36_i32 : i32 to vector<1x128xi32>
    %276 = arith.cmpi sgt, %22, %275 : vector<1x128xi32>
    %277 = vector.extract_strided_slice %21 {offsets = [0, 4608], sizes = [32, 128], strides = [1, 1]} : vector<32x8192xf32> to vector<32x128xf32>
    %cst_55 = arith.constant -3.000000e+38 : f32
    %278 = vector.shape_cast %276 : vector<1x128xi1> to vector<1x128xi1>
    %279 = vector.broadcast %278 : vector<1x128xi1> to vector<32x128xi1>
    %280 = vector.broadcast %cst_55 : f32 to vector<32x128xf32>
    %281 = arith.select %279, %277, %280 : vector<32x128xi1>, vector<32x128xf32>
    %c37_i32 = arith.constant 37 : i32
    %282 = vector.broadcast %c37_i32 : i32 to vector<1x128xi32>
    %283 = arith.cmpi sgt, %22, %282 : vector<1x128xi32>
    %284 = vector.extract_strided_slice %21 {offsets = [0, 4736], sizes = [32, 128], strides = [1, 1]} : vector<32x8192xf32> to vector<32x128xf32>
    %cst_56 = arith.constant -3.000000e+38 : f32
    %285 = vector.shape_cast %283 : vector<1x128xi1> to vector<1x128xi1>
    %286 = vector.broadcast %285 : vector<1x128xi1> to vector<32x128xi1>
    %287 = vector.broadcast %cst_56 : f32 to vector<32x128xf32>
    %288 = arith.select %286, %284, %287 : vector<32x128xi1>, vector<32x128xf32>
    %c38_i32 = arith.constant 38 : i32
    %289 = vector.broadcast %c38_i32 : i32 to vector<1x128xi32>
    %290 = arith.cmpi sgt, %22, %289 : vector<1x128xi32>
    %291 = vector.extract_strided_slice %21 {offsets = [0, 4864], sizes = [32, 128], strides = [1, 1]} : vector<32x8192xf32> to vector<32x128xf32>
    %cst_57 = arith.constant -3.000000e+38 : f32
    %292 = vector.shape_cast %290 : vector<1x128xi1> to vector<1x128xi1>
    %293 = vector.broadcast %292 : vector<1x128xi1> to vector<32x128xi1>
    %294 = vector.broadcast %cst_57 : f32 to vector<32x128xf32>
    %295 = arith.select %293, %291, %294 : vector<32x128xi1>, vector<32x128xf32>
    %c39_i32 = arith.constant 39 : i32
    %296 = vector.broadcast %c39_i32 : i32 to vector<1x128xi32>
    %297 = arith.cmpi sgt, %22, %296 : vector<1x128xi32>
    %298 = vector.extract_strided_slice %21 {offsets = [0, 4992], sizes = [32, 128], strides = [1, 1]} : vector<32x8192xf32> to vector<32x128xf32>
    %cst_58 = arith.constant -3.000000e+38 : f32
    %299 = vector.shape_cast %297 : vector<1x128xi1> to vector<1x128xi1>
    %300 = vector.broadcast %299 : vector<1x128xi1> to vector<32x128xi1>
    %301 = vector.broadcast %cst_58 : f32 to vector<32x128xf32>
    %302 = arith.select %300, %298, %301 : vector<32x128xi1>, vector<32x128xf32>
    %c40_i32 = arith.constant 40 : i32
    %303 = vector.broadcast %c40_i32 : i32 to vector<1x128xi32>
    %304 = arith.cmpi sgt, %22, %303 : vector<1x128xi32>
    %305 = vector.extract_strided_slice %21 {offsets = [0, 5120], sizes = [32, 128], strides = [1, 1]} : vector<32x8192xf32> to vector<32x128xf32>
    %cst_59 = arith.constant -3.000000e+38 : f32
    %306 = vector.shape_cast %304 : vector<1x128xi1> to vector<1x128xi1>
    %307 = vector.broadcast %306 : vector<1x128xi1> to vector<32x128xi1>
    %308 = vector.broadcast %cst_59 : f32 to vector<32x128xf32>
    %309 = arith.select %307, %305, %308 : vector<32x128xi1>, vector<32x128xf32>
    %c41_i32 = arith.constant 41 : i32
    %310 = vector.broadcast %c41_i32 : i32 to vector<1x128xi32>
    %311 = arith.cmpi sgt, %22, %310 : vector<1x128xi32>
    %312 = vector.extract_strided_slice %21 {offsets = [0, 5248], sizes = [32, 128], strides = [1, 1]} : vector<32x8192xf32> to vector<32x128xf32>
    %cst_60 = arith.constant -3.000000e+38 : f32
    %313 = vector.shape_cast %311 : vector<1x128xi1> to vector<1x128xi1>
    %314 = vector.broadcast %313 : vector<1x128xi1> to vector<32x128xi1>
    %315 = vector.broadcast %cst_60 : f32 to vector<32x128xf32>
    %316 = arith.select %314, %312, %315 : vector<32x128xi1>, vector<32x128xf32>
    %c42_i32 = arith.constant 42 : i32
    %317 = vector.broadcast %c42_i32 : i32 to vector<1x128xi32>
    %318 = arith.cmpi sgt, %22, %317 : vector<1x128xi32>
    %319 = vector.extract_strided_slice %21 {offsets = [0, 5376], sizes = [32, 128], strides = [1, 1]} : vector<32x8192xf32> to vector<32x128xf32>
    %cst_61 = arith.constant -3.000000e+38 : f32
    %320 = vector.shape_cast %318 : vector<1x128xi1> to vector<1x128xi1>
    %321 = vector.broadcast %320 : vector<1x128xi1> to vector<32x128xi1>
    %322 = vector.broadcast %cst_61 : f32 to vector<32x128xf32>
    %323 = arith.select %321, %319, %322 : vector<32x128xi1>, vector<32x128xf32>
    %c43_i32 = arith.constant 43 : i32
    %324 = vector.broadcast %c43_i32 : i32 to vector<1x128xi32>
    %325 = arith.cmpi sgt, %22, %324 : vector<1x128xi32>
    %326 = vector.extract_strided_slice %21 {offsets = [0, 5504], sizes = [32, 128], strides = [1, 1]} : vector<32x8192xf32> to vector<32x128xf32>
    %cst_62 = arith.constant -3.000000e+38 : f32
    %327 = vector.shape_cast %325 : vector<1x128xi1> to vector<1x128xi1>
    %328 = vector.broadcast %327 : vector<1x128xi1> to vector<32x128xi1>
    %329 = vector.broadcast %cst_62 : f32 to vector<32x128xf32>
    %330 = arith.select %328, %326, %329 : vector<32x128xi1>, vector<32x128xf32>
    %c44_i32 = arith.constant 44 : i32
    %331 = vector.broadcast %c44_i32 : i32 to vector<1x128xi32>
    %332 = arith.cmpi sgt, %22, %331 : vector<1x128xi32>
    %333 = vector.extract_strided_slice %21 {offsets = [0, 5632], sizes = [32, 128], strides = [1, 1]} : vector<32x8192xf32> to vector<32x128xf32>
    %cst_63 = arith.constant -3.000000e+38 : f32
    %334 = vector.shape_cast %332 : vector<1x128xi1> to vector<1x128xi1>
    %335 = vector.broadcast %334 : vector<1x128xi1> to vector<32x128xi1>
    %336 = vector.broadcast %cst_63 : f32 to vector<32x128xf32>
    %337 = arith.select %335, %333, %336 : vector<32x128xi1>, vector<32x128xf32>
    %c45_i32 = arith.constant 45 : i32
    %338 = vector.broadcast %c45_i32 : i32 to vector<1x128xi32>
    %339 = arith.cmpi sgt, %22, %338 : vector<1x128xi32>
    %340 = vector.extract_strided_slice %21 {offsets = [0, 5760], sizes = [32, 128], strides = [1, 1]} : vector<32x8192xf32> to vector<32x128xf32>
    %cst_64 = arith.constant -3.000000e+38 : f32
    %341 = vector.shape_cast %339 : vector<1x128xi1> to vector<1x128xi1>
    %342 = vector.broadcast %341 : vector<1x128xi1> to vector<32x128xi1>
    %343 = vector.broadcast %cst_64 : f32 to vector<32x128xf32>
    %344 = arith.select %342, %340, %343 : vector<32x128xi1>, vector<32x128xf32>
    %c46_i32 = arith.constant 46 : i32
    %345 = vector.broadcast %c46_i32 : i32 to vector<1x128xi32>
    %346 = arith.cmpi sgt, %22, %345 : vector<1x128xi32>
    %347 = vector.extract_strided_slice %21 {offsets = [0, 5888], sizes = [32, 128], strides = [1, 1]} : vector<32x8192xf32> to vector<32x128xf32>
    %cst_65 = arith.constant -3.000000e+38 : f32
    %348 = vector.shape_cast %346 : vector<1x128xi1> to vector<1x128xi1>
    %349 = vector.broadcast %348 : vector<1x128xi1> to vector<32x128xi1>
    %350 = vector.broadcast %cst_65 : f32 to vector<32x128xf32>
    %351 = arith.select %349, %347, %350 : vector<32x128xi1>, vector<32x128xf32>
    %c47_i32 = arith.constant 47 : i32
    %352 = vector.broadcast %c47_i32 : i32 to vector<1x128xi32>
    %353 = arith.cmpi sgt, %22, %352 : vector<1x128xi32>
    %354 = vector.extract_strided_slice %21 {offsets = [0, 6016], sizes = [32, 128], strides = [1, 1]} : vector<32x8192xf32> to vector<32x128xf32>
    %cst_66 = arith.constant -3.000000e+38 : f32
    %355 = vector.shape_cast %353 : vector<1x128xi1> to vector<1x128xi1>
    %356 = vector.broadcast %355 : vector<1x128xi1> to vector<32x128xi1>
    %357 = vector.broadcast %cst_66 : f32 to vector<32x128xf32>
    %358 = arith.select %356, %354, %357 : vector<32x128xi1>, vector<32x128xf32>
    %c48_i32 = arith.constant 48 : i32
    %359 = vector.broadcast %c48_i32 : i32 to vector<1x128xi32>
    %360 = arith.cmpi sgt, %22, %359 : vector<1x128xi32>
    %361 = vector.extract_strided_slice %21 {offsets = [0, 6144], sizes = [32, 128], strides = [1, 1]} : vector<32x8192xf32> to vector<32x128xf32>
    %cst_67 = arith.constant -3.000000e+38 : f32
    %362 = vector.shape_cast %360 : vector<1x128xi1> to vector<1x128xi1>
    %363 = vector.broadcast %362 : vector<1x128xi1> to vector<32x128xi1>
    %364 = vector.broadcast %cst_67 : f32 to vector<32x128xf32>
    %365 = arith.select %363, %361, %364 : vector<32x128xi1>, vector<32x128xf32>
    %c49_i32 = arith.constant 49 : i32
    %366 = vector.broadcast %c49_i32 : i32 to vector<1x128xi32>
    %367 = arith.cmpi sgt, %22, %366 : vector<1x128xi32>
    %368 = vector.extract_strided_slice %21 {offsets = [0, 6272], sizes = [32, 128], strides = [1, 1]} : vector<32x8192xf32> to vector<32x128xf32>
    %cst_68 = arith.constant -3.000000e+38 : f32
    %369 = vector.shape_cast %367 : vector<1x128xi1> to vector<1x128xi1>
    %370 = vector.broadcast %369 : vector<1x128xi1> to vector<32x128xi1>
    %371 = vector.broadcast %cst_68 : f32 to vector<32x128xf32>
    %372 = arith.select %370, %368, %371 : vector<32x128xi1>, vector<32x128xf32>
    %c50_i32 = arith.constant 50 : i32
    %373 = vector.broadcast %c50_i32 : i32 to vector<1x128xi32>
    %374 = arith.cmpi sgt, %22, %373 : vector<1x128xi32>
    %375 = vector.extract_strided_slice %21 {offsets = [0, 6400], sizes = [32, 128], strides = [1, 1]} : vector<32x8192xf32> to vector<32x128xf32>
    %cst_69 = arith.constant -3.000000e+38 : f32
    %376 = vector.shape_cast %374 : vector<1x128xi1> to vector<1x128xi1>
    %377 = vector.broadcast %376 : vector<1x128xi1> to vector<32x128xi1>
    %378 = vector.broadcast %cst_69 : f32 to vector<32x128xf32>
    %379 = arith.select %377, %375, %378 : vector<32x128xi1>, vector<32x128xf32>
    %c51_i32 = arith.constant 51 : i32
    %380 = vector.broadcast %c51_i32 : i32 to vector<1x128xi32>
    %381 = arith.cmpi sgt, %22, %380 : vector<1x128xi32>
    %382 = vector.extract_strided_slice %21 {offsets = [0, 6528], sizes = [32, 128], strides = [1, 1]} : vector<32x8192xf32> to vector<32x128xf32>
    %cst_70 = arith.constant -3.000000e+38 : f32
    %383 = vector.shape_cast %381 : vector<1x128xi1> to vector<1x128xi1>
    %384 = vector.broadcast %383 : vector<1x128xi1> to vector<32x128xi1>
    %385 = vector.broadcast %cst_70 : f32 to vector<32x128xf32>
    %386 = arith.select %384, %382, %385 : vector<32x128xi1>, vector<32x128xf32>
    %c52_i32 = arith.constant 52 : i32
    %387 = vector.broadcast %c52_i32 : i32 to vector<1x128xi32>
    %388 = arith.cmpi sgt, %22, %387 : vector<1x128xi32>
    %389 = vector.extract_strided_slice %21 {offsets = [0, 6656], sizes = [32, 128], strides = [1, 1]} : vector<32x8192xf32> to vector<32x128xf32>
    %cst_71 = arith.constant -3.000000e+38 : f32
    %390 = vector.shape_cast %388 : vector<1x128xi1> to vector<1x128xi1>
    %391 = vector.broadcast %390 : vector<1x128xi1> to vector<32x128xi1>
    %392 = vector.broadcast %cst_71 : f32 to vector<32x128xf32>
    %393 = arith.select %391, %389, %392 : vector<32x128xi1>, vector<32x128xf32>
    %c53_i32 = arith.constant 53 : i32
    %394 = vector.broadcast %c53_i32 : i32 to vector<1x128xi32>
    %395 = arith.cmpi sgt, %22, %394 : vector<1x128xi32>
    %396 = vector.extract_strided_slice %21 {offsets = [0, 6784], sizes = [32, 128], strides = [1, 1]} : vector<32x8192xf32> to vector<32x128xf32>
    %cst_72 = arith.constant -3.000000e+38 : f32
    %397 = vector.shape_cast %395 : vector<1x128xi1> to vector<1x128xi1>
    %398 = vector.broadcast %397 : vector<1x128xi1> to vector<32x128xi1>
    %399 = vector.broadcast %cst_72 : f32 to vector<32x128xf32>
    %400 = arith.select %398, %396, %399 : vector<32x128xi1>, vector<32x128xf32>
    %c54_i32 = arith.constant 54 : i32
    %401 = vector.broadcast %c54_i32 : i32 to vector<1x128xi32>
    %402 = arith.cmpi sgt, %22, %401 : vector<1x128xi32>
    %403 = vector.extract_strided_slice %21 {offsets = [0, 6912], sizes = [32, 128], strides = [1, 1]} : vector<32x8192xf32> to vector<32x128xf32>
    %cst_73 = arith.constant -3.000000e+38 : f32
    %404 = vector.shape_cast %402 : vector<1x128xi1> to vector<1x128xi1>
    %405 = vector.broadcast %404 : vector<1x128xi1> to vector<32x128xi1>
    %406 = vector.broadcast %cst_73 : f32 to vector<32x128xf32>
    %407 = arith.select %405, %403, %406 : vector<32x128xi1>, vector<32x128xf32>
    %c55_i32 = arith.constant 55 : i32
    %408 = vector.broadcast %c55_i32 : i32 to vector<1x128xi32>
    %409 = arith.cmpi sgt, %22, %408 : vector<1x128xi32>
    %410 = vector.extract_strided_slice %21 {offsets = [0, 7040], sizes = [32, 128], strides = [1, 1]} : vector<32x8192xf32> to vector<32x128xf32>
    %cst_74 = arith.constant -3.000000e+38 : f32
    %411 = vector.shape_cast %409 : vector<1x128xi1> to vector<1x128xi1>
    %412 = vector.broadcast %411 : vector<1x128xi1> to vector<32x128xi1>
    %413 = vector.broadcast %cst_74 : f32 to vector<32x128xf32>
    %414 = arith.select %412, %410, %413 : vector<32x128xi1>, vector<32x128xf32>
    %c56_i32 = arith.constant 56 : i32
    %415 = vector.broadcast %c56_i32 : i32 to vector<1x128xi32>
    %416 = arith.cmpi sgt, %22, %415 : vector<1x128xi32>
    %417 = vector.extract_strided_slice %21 {offsets = [0, 7168], sizes = [32, 128], strides = [1, 1]} : vector<32x8192xf32> to vector<32x128xf32>
    %cst_75 = arith.constant -3.000000e+38 : f32
    %418 = vector.shape_cast %416 : vector<1x128xi1> to vector<1x128xi1>
    %419 = vector.broadcast %418 : vector<1x128xi1> to vector<32x128xi1>
    %420 = vector.broadcast %cst_75 : f32 to vector<32x128xf32>
    %421 = arith.select %419, %417, %420 : vector<32x128xi1>, vector<32x128xf32>
    %c57_i32 = arith.constant 57 : i32
    %422 = vector.broadcast %c57_i32 : i32 to vector<1x128xi32>
    %423 = arith.cmpi sgt, %22, %422 : vector<1x128xi32>
    %424 = vector.extract_strided_slice %21 {offsets = [0, 7296], sizes = [32, 128], strides = [1, 1]} : vector<32x8192xf32> to vector<32x128xf32>
    %cst_76 = arith.constant -3.000000e+38 : f32
    %425 = vector.shape_cast %423 : vector<1x128xi1> to vector<1x128xi1>
    %426 = vector.broadcast %425 : vector<1x128xi1> to vector<32x128xi1>
    %427 = vector.broadcast %cst_76 : f32 to vector<32x128xf32>
    %428 = arith.select %426, %424, %427 : vector<32x128xi1>, vector<32x128xf32>
    %c58_i32 = arith.constant 58 : i32
    %429 = vector.broadcast %c58_i32 : i32 to vector<1x128xi32>
    %430 = arith.cmpi sgt, %22, %429 : vector<1x128xi32>
    %431 = vector.extract_strided_slice %21 {offsets = [0, 7424], sizes = [32, 128], strides = [1, 1]} : vector<32x8192xf32> to vector<32x128xf32>
    %cst_77 = arith.constant -3.000000e+38 : f32
    %432 = vector.shape_cast %430 : vector<1x128xi1> to vector<1x128xi1>
    %433 = vector.broadcast %432 : vector<1x128xi1> to vector<32x128xi1>
    %434 = vector.broadcast %cst_77 : f32 to vector<32x128xf32>
    %435 = arith.select %433, %431, %434 : vector<32x128xi1>, vector<32x128xf32>
    %c59_i32 = arith.constant 59 : i32
    %436 = vector.broadcast %c59_i32 : i32 to vector<1x128xi32>
    %437 = arith.cmpi sgt, %22, %436 : vector<1x128xi32>
    %438 = vector.extract_strided_slice %21 {offsets = [0, 7552], sizes = [32, 128], strides = [1, 1]} : vector<32x8192xf32> to vector<32x128xf32>
    %cst_78 = arith.constant -3.000000e+38 : f32
    %439 = vector.shape_cast %437 : vector<1x128xi1> to vector<1x128xi1>
    %440 = vector.broadcast %439 : vector<1x128xi1> to vector<32x128xi1>
    %441 = vector.broadcast %cst_78 : f32 to vector<32x128xf32>
    %442 = arith.select %440, %438, %441 : vector<32x128xi1>, vector<32x128xf32>
    %c60_i32 = arith.constant 60 : i32
    %443 = vector.broadcast %c60_i32 : i32 to vector<1x128xi32>
    %444 = arith.cmpi sgt, %22, %443 : vector<1x128xi32>
    %445 = vector.extract_strided_slice %21 {offsets = [0, 7680], sizes = [32, 128], strides = [1, 1]} : vector<32x8192xf32> to vector<32x128xf32>
    %cst_79 = arith.constant -3.000000e+38 : f32
    %446 = vector.shape_cast %444 : vector<1x128xi1> to vector<1x128xi1>
    %447 = vector.broadcast %446 : vector<1x128xi1> to vector<32x128xi1>
    %448 = vector.broadcast %cst_79 : f32 to vector<32x128xf32>
    %449 = arith.select %447, %445, %448 : vector<32x128xi1>, vector<32x128xf32>
    %c61_i32 = arith.constant 61 : i32
    %450 = vector.broadcast %c61_i32 : i32 to vector<1x128xi32>
    %451 = arith.cmpi sgt, %22, %450 : vector<1x128xi32>
    %452 = vector.extract_strided_slice %21 {offsets = [0, 7808], sizes = [32, 128], strides = [1, 1]} : vector<32x8192xf32> to vector<32x128xf32>
    %cst_80 = arith.constant -3.000000e+38 : f32
    %453 = vector.shape_cast %451 : vector<1x128xi1> to vector<1x128xi1>
    %454 = vector.broadcast %453 : vector<1x128xi1> to vector<32x128xi1>
    %455 = vector.broadcast %cst_80 : f32 to vector<32x128xf32>
    %456 = arith.select %454, %452, %455 : vector<32x128xi1>, vector<32x128xf32>
    %c62_i32 = arith.constant 62 : i32
    %457 = vector.broadcast %c62_i32 : i32 to vector<1x128xi32>
    %458 = arith.cmpi sgt, %22, %457 : vector<1x128xi32>
    %459 = vector.extract_strided_slice %21 {offsets = [0, 7936], sizes = [32, 128], strides = [1, 1]} : vector<32x8192xf32> to vector<32x128xf32>
    %cst_81 = arith.constant -3.000000e+38 : f32
    %460 = vector.shape_cast %458 : vector<1x128xi1> to vector<1x128xi1>
    %461 = vector.broadcast %460 : vector<1x128xi1> to vector<32x128xi1>
    %462 = vector.broadcast %cst_81 : f32 to vector<32x128xf32>
    %463 = arith.select %461, %459, %462 : vector<32x128xi1>, vector<32x128xf32>
    %c63_i32 = arith.constant 63 : i32
    %464 = vector.broadcast %c63_i32 : i32 to vector<1x128xi32>
    %465 = arith.cmpi sgt, %22, %464 : vector<1x128xi32>
    %466 = vector.extract_strided_slice %21 {offsets = [0, 8064], sizes = [32, 128], strides = [1, 1]} : vector<32x8192xf32> to vector<32x128xf32>
    %cst_82 = arith.constant -3.000000e+38 : f32
    %467 = vector.shape_cast %465 : vector<1x128xi1> to vector<1x128xi1>
    %468 = vector.broadcast %467 : vector<1x128xi1> to vector<32x128xi1>
    %469 = vector.broadcast %cst_82 : f32 to vector<32x128xf32>
    %470 = arith.select %468, %466, %469 : vector<32x128xi1>, vector<32x128xf32>
    %471 = arith.maximumf %29, %36 : vector<32x128xf32>
    %472 = arith.maximumf %43, %50 : vector<32x128xf32>
    %473 = arith.maximumf %57, %64 : vector<32x128xf32>
    %474 = arith.maximumf %71, %78 : vector<32x128xf32>
    %475 = arith.maximumf %85, %92 : vector<32x128xf32>
    %476 = arith.maximumf %99, %106 : vector<32x128xf32>
    %477 = arith.maximumf %113, %120 : vector<32x128xf32>
    %478 = arith.maximumf %127, %134 : vector<32x128xf32>
    %479 = arith.maximumf %141, %148 : vector<32x128xf32>
    %480 = arith.maximumf %155, %162 : vector<32x128xf32>
    %481 = arith.maximumf %169, %176 : vector<32x128xf32>
    %482 = arith.maximumf %183, %190 : vector<32x128xf32>
    %483 = arith.maximumf %197, %204 : vector<32x128xf32>
    %484 = arith.maximumf %211, %218 : vector<32x128xf32>
    %485 = arith.maximumf %225, %232 : vector<32x128xf32>
    %486 = arith.maximumf %239, %246 : vector<32x128xf32>
    %487 = arith.maximumf %253, %260 : vector<32x128xf32>
    %488 = arith.maximumf %267, %274 : vector<32x128xf32>
    %489 = arith.maximumf %281, %288 : vector<32x128xf32>
    %490 = arith.maximumf %295, %302 : vector<32x128xf32>
    %491 = arith.maximumf %309, %316 : vector<32x128xf32>
    %492 = arith.maximumf %323, %330 : vector<32x128xf32>
    %493 = arith.maximumf %337, %344 : vector<32x128xf32>
    %494 = arith.maximumf %351, %358 : vector<32x128xf32>
    %495 = arith.maximumf %365, %372 : vector<32x128xf32>
    %496 = arith.maximumf %379, %386 : vector<32x128xf32>
    %497 = arith.maximumf %393, %400 : vector<32x128xf32>
    %498 = arith.maximumf %407, %414 : vector<32x128xf32>
    %499 = arith.maximumf %421, %428 : vector<32x128xf32>
    %500 = arith.maximumf %435, %442 : vector<32x128xf32>
    %501 = arith.maximumf %449, %456 : vector<32x128xf32>
    %502 = arith.maximumf %463, %470 : vector<32x128xf32>
    %503 = arith.maximumf %471, %472 : vector<32x128xf32>
    %504 = arith.maximumf %473, %474 : vector<32x128xf32>
    %505 = arith.maximumf %475, %476 : vector<32x128xf32>
    %506 = arith.maximumf %477, %478 : vector<32x128xf32>
    %507 = arith.maximumf %479, %480 : vector<32x128xf32>
    %508 = arith.maximumf %481, %482 : vector<32x128xf32>
    %509 = arith.maximumf %483, %484 : vector<32x128xf32>
    %510 = arith.maximumf %485, %486 : vector<32x128xf32>
    %511 = arith.maximumf %487, %488 : vector<32x128xf32>
    %512 = arith.maximumf %489, %490 : vector<32x128xf32>
    %513 = arith.maximumf %491, %492 : vector<32x128xf32>
    %514 = arith.maximumf %493, %494 : vector<32x128xf32>
    %515 = arith.maximumf %495, %496 : vector<32x128xf32>
    %516 = arith.maximumf %497, %498 : vector<32x128xf32>
    %517 = arith.maximumf %499, %500 : vector<32x128xf32>
    %518 = arith.maximumf %501, %502 : vector<32x128xf32>
    %519 = arith.maximumf %503, %504 : vector<32x128xf32>
    %520 = arith.maximumf %505, %506 : vector<32x128xf32>
    %521 = arith.maximumf %507, %508 : vector<32x128xf32>
    %522 = arith.maximumf %509, %510 : vector<32x128xf32>
    %523 = arith.maximumf %511, %512 : vector<32x128xf32>
    %524 = arith.maximumf %513, %514 : vector<32x128xf32>
    %525 = arith.maximumf %515, %516 : vector<32x128xf32>
    %526 = arith.maximumf %517, %518 : vector<32x128xf32>
    %527 = arith.maximumf %519, %520 : vector<32x128xf32>
    %528 = arith.maximumf %521, %522 : vector<32x128xf32>
    %529 = arith.maximumf %523, %524 : vector<32x128xf32>
    %530 = arith.maximumf %525, %526 : vector<32x128xf32>
    %531 = arith.maximumf %527, %528 : vector<32x128xf32>
    %532 = arith.maximumf %529, %530 : vector<32x128xf32>
    %533 = arith.maximumf %531, %532 : vector<32x128xf32>
    %c0_i32_83 = arith.constant 0 : i32
    %534 = vector.broadcast %c0_i32_83 : i32 to vector<1x128xi32>
    %535 = arith.cmpi sgt, %22, %534 : vector<1x128xi32>
    %cst_84 = arith.constant 0.000000e+00 : f32
    %536 = vector.shape_cast %535 : vector<1x128xi1> to vector<1x128xi1>
    %537 = vector.broadcast %536 : vector<1x128xi1> to vector<32x128xi1>
    %538 = vector.broadcast %cst_84 : f32 to vector<32x128xf32>
    %539 = arith.select %537, %533, %538 : vector<32x128xi1>, vector<32x128xf32>
    %c0_85 = arith.constant 0 : index
    %c0_86 = arith.constant 0 : index
    %540 = vector.load %arg9[%c0_85, %c0_86] : memref<32x128xf32, #tpu.memory_space<vmem>>, vector<32x128xf32>
    tpu.vector_store %arg9[%c0_85, %c0_86], %539 {strides = array<i32>} : memref<32x128xf32, #tpu.memory_space<vmem>>, vector<32x128xf32>,
    return
  }
  func.func @transform_0(%arg0: i32) -> (i32, i32) {
    %c0_i32 = arith.constant 0 : i32
    %c0_i32_0 = arith.constant 0 : i32
    return %c0_i32, %arg0 : i32, i32
  }
  func.func @transform_1(%arg0: i32) -> (i32, i32) {
    %c0_i32 = arith.constant 0 : i32
    %c0_i32_0 = arith.constant 0 : i32
    return %c0_i32, %arg0 : i32, i32
  }
  func.func @transform_2(%arg0: i32) -> (i32, i32) {
    %c0_i32 = arith.constant 0 : i32
    %c0_i32_0 = arith.constant 0 : i32
    %c0_i32_1 = arith.constant 0 : i32
    return %c0_i32, %c0_i32_0 : i32, i32
  }
  func.func @transform_3(%arg0: i32) -> (i32, i32) {
    %c0_i32 = arith.constant 0 : i32
    %c0_i32_0 = arith.constant 0 : i32
    %c0_i32_1 = arith.constant 0 : i32
    return %c0_i32, %c0_i32_0 : i32, i32
  }
  func.func @transform_4(%arg0: i32) -> (i32, i32) {
    %c0_i32 = arith.constant 0 : i32
    %c0_i32_0 = arith.constant 0 : i32
    %c0_i32_1 = arith.constant 0 : i32
    return %c0_i32, %c0_i32_0 : i32, i32
  }
  func.func @transform_5(%arg0: i32) -> (i32, i32) {
    %c0_i32 = arith.constant 0 : i32
    %c0_i32_0 = arith.constant 0 : i32
    %c0_i32_1 = arith.constant 0 : i32
    return %c0_i32, %c0_i32_0 : i32, i32
  }
  func.func @transform_6(%arg0: i32) -> (i32, i32) {
    %c0_i32 = arith.constant 0 : i32
    %c0_i32_0 = arith.constant 0 : i32
    %c0_i32_1 = arith.constant 0 : i32
    return %c0_i32, %c0_i32_0 : i32, i32
  }
  func.func @transform_7(%arg0: i32) -> (i32, i32) {
    %c0_i32 = arith.constant 0 : i32
    %c0_i32_0 = arith.constant 0 : i32
    %c0_i32_1 = arith.constant 0 : i32
    return %c0_i32, %c0_i32_0 : i32, i32
  }
  func.func @transform_8(%arg0: i32) -> (i32, i32) {
    %c0_i32 = arith.constant 0 : i32
    %c0_i32_0 = arith.constant 0 : i32
    return %c0_i32, %arg0 : i32, i32
  }
}

</mosaic_0001>

<llo_original>
// kernel: tpu_custom_call.1
$region0: #{tpu_custom_call.1}
  #allocation0 [shape = 'u32[]', space=smem, size = 0x4, offset = 0x4, fixed_abs, tag = 'smem constant byte address 0x4 - core index']
  #allocation1 [shape = 'u32[144,128]{1,0:T(1,128)}', space=vmem, size = 0x12000, scoped, tag = 'internal scratch']
  %s0 = inlined_call_operand.hbm [shape: bf16[7,16384], index: 0, kind: input, shape index: {}]
  %s1 = inlined_call_operand.vmem [shape: s32[1,256], index: 1, kind: input, shape index: {}]
  %s2 = inlined_call_operand.vmem [shape: bf16[16,7], index: 2, kind: input, shape index: {}]
  %s3 = inlined_call_operand.vmem [shape: f32[16,1], index: 3, kind: input, shape index: {}]
  %s4 = inlined_call_operand.vmem [shape: bf16[16,16], index: 4, kind: input, shape index: {}]
  %s5 = inlined_call_operand.vmem [shape: f32[16,1], index: 5, kind: input, shape index: {}]
  %s6 = inlined_call_operand.vmem [shape: bf16[32,16], index: 6, kind: input, shape index: {}]
  %s7 = inlined_call_operand.vmem [shape: f32[32,1], index: 7, kind: input, shape index: {}]
  %s8 = inlined_call_operand.hbm [shape: f32[32,256], index: 8, kind: output, shape index: {}]
  %s9 = sld [smem:[#allocation0]]
  $region69: #{tpu_custom_call.1} parent=0
    _
  %s11 = ssub.s32 1, %s9
  %s12 = scalar_select 0, %s11, %s9
  $region1: #{tpu_custom_call.1} parent=0
    #allocation2 [shape = 'u8[262144]{0}', space=vmem, size = 0x40000, scoped, tag = 'input window, operand 0']
    #allocation3 [shape = 's32[2]{0}', space=sflag, size = 0x8, scoped, tag = 'scoped memory for tpu_custom_call.1']
    #allocation4 [shape = 's32[2]{0}', space=sflag, size = 0x8, scoped, tag = 'scoped memory for tpu_custom_call.1']
    #allocation5 [shape = 'u8[32768]{0}', space=vmem, size = 0x8000, scoped, tag = 'output window, operand 0']
    %13 = vsyncpa [#allocation3], 0
    %s14 = scalar_lea.sflag [#allocation3], 1
    %15 = vsyncpa %s14, 0
    %16 = vsyncpa [#allocation4], 0
    %s17 = scalar_lea.sflag [#allocation4], 1
    %18 = vsyncpa %s17, 0
    loop: start=0, step=1, limit=4
    $region2: #{tpu_custom_call.1} parent=1 // loop_pre_header
      _
    $region3: #{tpu_custom_call.1} parent=1 // loop_header
      %s20 = sphi 0, %s24
      %p21 = scmp.ge.s32.totalorder %s20, 4
      %s30 = sphi 0, %s32
      %s33 = sphi 0, %s30
      %s34 = sphi 0, %s33
      %s50 = sphi 0, %s34
      %s56 = sphi 0, %s58
      %s59 = sphi 0, %s56
      %s60 = sphi 0, %s59
      %s76 = sphi 0, %s60
      %s80 = sphi 0, %s80
      %s82 = sphi 0, %s80
      %s83 = sphi 0, %s82
      %s97 = sphi 0, %s83
      %s101 = sphi 0, %s101
      %s103 = sphi 0, %s101
      %s104 = sphi 0, %s103
      %s118 = sphi 0, %s104
      %s122 = sphi 0, %s122
      %s124 = sphi 0, %s122
      %s125 = sphi 0, %s124
      %s139 = sphi 0, %s125
      %s143 = sphi 0, %s143
      %s145 = sphi 0, %s143
      %s146 = sphi 0, %s145
      %s160 = sphi 0, %s146
      %s164 = sphi 0, %s164
      %s166 = sphi 0, %s164
      %s167 = sphi 0, %s166
      %s181 = sphi 0, %s167
      %s185 = sphi 0, %s185
      %s187 = sphi 0, %s185
      %s188 = sphi 0, %s187
      %s202 = sphi 0, %s188
      %s208 = sphi 0, %s210
      %s211 = sphi 0, %s208
      %s212 = sphi 0, %s211
      %s228 = sphi 0, %s212
    $region4: #{tpu_custom_call.1} parent=1 // loop_header_branch
      %23 = sbr.rel (%p21) target = $region8
    $region5: #{tpu_custom_call.1} parent=1 // loop_body
      %s25 = ssub.s32 %s20, 1
      %s26 = ssub.s32 %s20, 2
      %s27 = sadd.s32 %s20, 1
      %s28 = ssub.s32 %s20, %s27
      %p29 = scmp.eq.s32.totalorder %s28, 0
      %s31 = sadd.s32 %s30, 1
      %s32 = scalar_select %p29, %s30, %s31
      %p35 = pneg %p29
      %p36 = scmp.eq.s32.totalorder %s20, 1
      %p37 = por %p35, %p36
      %p38 = scmp.ne.s32.totalorder %s30, %s33
      %p39 = scmp.eq.s32.totalorder %s20, 0
      %p40 = por %p38, %p39
      %p41 = scmp.ne.s32.totalorder %s30, %s33
      %p42 = scmp.eq.s32.totalorder %s25, 1
      %p43 = por %p41, %p42
      %p44 = scmp.ne.s32.totalorder %s33, %s34
      %p45 = scmp.eq.s32.totalorder %s25, 0
      %p46 = por %p44, %p45
      %p47 = scmp.ne.s32.totalorder %s33, %s34
      %p48 = scmp.eq.s32.totalorder %s26, 1
      %p49 = por %p47, %p48
      %p51 = scmp.ne.s32.totalorder %s34, %s50
      %p52 = scmp.eq.s32.totalorder %s26, 0
      %p53 = por %p51, %p52
      %s54 = ssub.s32 %s20, %s27
      %p55 = scmp.eq.s32.totalorder %s54, 0
      %s57 = sadd.s32 %s56, 1
      %s58 = scalar_select %p55, %s56, %s57
      %p61 = pneg %p55
      %p62 = scmp.eq.s32.totalorder %s20, 1
      %p63 = por %p61, %p62
      %p64 = scmp.ne.s32.totalorder %s56, %s59
      %p65 = scmp.eq.s32.totalorder %s20, 0
      %p66 = por %p64, %p65
      %p67 = scmp.ne.s32.totalorder %s56, %s59
      %p68 = scmp.eq.s32.totalorder %s25, 1
      %p69 = por %p67, %p68
      %p70 = scmp.ne.s32.totalorder %s59, %s60
      %p71 = scmp.eq.s32.totalorder %s25, 0
      %p72 = por %p70, %p71
      %p73 = scmp.ne.s32.totalorder %s59, %s60
      %p74 = scmp.eq.s32.totalorder %s26, 1
      %p75 = por %p73, %p74
      %p77 = scmp.ne.s32.totalorder %s60, %s76
      %p78 = scmp.eq.s32.totalorder %s26, 0
      %p79 = por %p77, %p78
      %s81 = sadd.s32 %s80, 1
      %p84 = scmp.eq.s32.totalorder %s20, 1
      %p85 = scmp.ne.s32.totalorder %s80, %s82
      %p86 = scmp.eq.s32.totalorder %s20, 0
      %p87 = por %p85, %p86
      %p88 = scmp.ne.s32.totalorder %s80, %s82
      %p89 = scmp.eq.s32.totalorder %s25, 1
      %p90 = por %p88, %p89
      %p91 = scmp.ne.s32.totalorder %s82, %s83
      %p92 = scmp.eq.s32.totalorder %s25, 0
      %p93 = por %p91, %p92
      %p94 = scmp.ne.s32.totalorder %s82, %s83
      %p95 = scmp.eq.s32.totalorder %s26, 1
      %p96 = por %p94, %p95
      %p98 = scmp.ne.s32.totalorder %s83, %s97
      %p99 = scmp.eq.s32.totalorder %s26, 0
      %p100 = por %p98, %p99
      %s102 = sadd.s32 %s101, 1
      %p105 = scmp.eq.s32.totalorder %s20, 1
      %p106 = scmp.ne.s32.totalorder %s101, %s103
      %p107 = scmp.eq.s32.totalorder %s20, 0
      %p108 = por %p106, %p107
      %p109 = scmp.ne.s32.totalorder %s101, %s103
      %p110 = scmp.eq.s32.totalorder %s25, 1
      %p111 = por %p109, %p110
      %p112 = scmp.ne.s32.totalorder %s103, %s104
      %p113 = scmp.eq.s32.totalorder %s25, 0
      %p114 = por %p112, %p113
      %p115 = scmp.ne.s32.totalorder %s103, %s104
      %p116 = scmp.eq.s32.totalorder %s26, 1
      %p117 = por %p115, %p116
      %p119 = scmp.ne.s32.totalorder %s104, %s118
      %p120 = scmp.eq.s32.totalorder %s26, 0
      %p121 = por %p119, %p120
      %s123 = sadd.s32 %s122, 1
      %p126 = scmp.eq.s32.totalorder %s20, 1
      %p127 = scmp.ne.s32.totalorder %s122, %s124
      %p128 = scmp.eq.s32.totalorder %s20, 0
      %p129 = por %p127, %p128
      %p130 = scmp.ne.s32.totalorder %s122, %s124
      %p131 = scmp.eq.s32.totalorder %s25, 1
      %p132 = por %p130, %p131
      %p133 = scmp.ne.s32.totalorder %s124, %s125
      %p134 = scmp.eq.s32.totalorder %s25, 0
      %p135 = por %p133, %p134
      %p136 = scmp.ne.s32.totalorder %s124, %s125
      %p137 = scmp.eq.s32.totalorder %s26, 1
      %p138 = por %p136, %p137
      %p140 = scmp.ne.s32.totalorder %s125, %s139
      %p141 = scmp.eq.s32.totalorder %s26, 0
      %p142 = por %p140, %p141
      %s144 = sadd.s32 %s143, 1
      %p147 = scmp.eq.s32.totalorder %s20, 1
      %p148 = scmp.ne.s32.totalorder %s143, %s145
      %p149 = scmp.eq.s32.totalorder %s20, 0
      %p150 = por %p148, %p149
      %p151 = scmp.ne.s32.totalorder %s143, %s145
      %p152 = scmp.eq.s32.totalorder %s25, 1
      %p153 = por %p151, %p152
      %p154 = scmp.ne.s32.totalorder %s145, %s146
      %p155 = scmp.eq.s32.totalorder %s25, 0
      %p156 = por %p154, %p155
      %p157 = scmp.ne.s32.totalorder %s145, %s146
      %p158 = scmp.eq.s32.totalorder %s26, 1
      %p159 = por %p157, %p158
      %p161 = scmp.ne.s32.totalorder %s146, %s160
      %p162 = scmp.eq.s32.totalorder %s26, 0
      %p163 = por %p161, %p162
      %s165 = sadd.s32 %s164, 1
      %p168 = scmp.eq.s32.totalorder %s20, 1
      %p169 = scmp.ne.s32.totalorder %s164, %s166
      %p170 = scmp.eq.s32.totalorder %s20, 0
      %p171 = por %p169, %p170
      %p172 = scmp.ne.s32.totalorder %s164, %s166
      %p173 = scmp.eq.s32.totalorder %s25, 1
      %p174 = por %p172, %p173
      %p175 = scmp.ne.s32.totalorder %s166, %s167
      %p176 = scmp.eq.s32.totalorder %s25, 0
      %p177 = por %p175, %p176
      %p178 = scmp.ne.s32.totalorder %s166, %s167
      %p179 = scmp.eq.s32.totalorder %s26, 1
      %p180 = por %p178, %p179
      %p182 = scmp.ne.s32.totalorder %s167, %s181
      %p183 = scmp.eq.s32.totalorder %s26, 0
      %p184 = por %p182, %p183
      %s186 = sadd.s32 %s185, 1
      %p189 = scmp.eq.s32.totalorder %s20, 1
      %p190 = scmp.ne.s32.totalorder %s185, %s187
      %p191 = scmp.eq.s32.totalorder %s20, 0
      %p192 = por %p190, %p191
      %p193 = scmp.ne.s32.totalorder %s185, %s187
      %p194 = scmp.eq.s32.totalorder %s25, 1
      %p195 = por %p193, %p194
      %p196 = scmp.ne.s32.totalorder %s187, %s188
      %p197 = scmp.eq.s32.totalorder %s25, 0
      %p198 = por %p196, %p197
      %p199 = scmp.ne.s32.totalorder %s187, %s188
      %p200 = scmp.eq.s32.totalorder %s26, 1
      %p201 = por %p199, %p200
      %p203 = scmp.ne.s32.totalorder %s188, %s202
      %p204 = scmp.eq.s32.totalorder %s26, 0
      %p205 = por %p203, %p204
      %s206 = ssub.s32 %s20, %s27
      %p207 = scmp.eq.s32.totalorder %s206, 0
      %s209 = sadd.s32 %s208, 1
      %s210 = scalar_select %p207, %s208, %s209
      %p213 = pneg %p207
      %p214 = scmp.eq.s32.totalorder %s20, 1
      %p215 = por %p213, %p214
      %p216 = scmp.ne.s32.totalorder %s208, %s211
      %p217 = scmp.eq.s32.totalorder %s20, 0
      %p218 = por %p216, %p217
      %p219 = scmp.ne.s32.totalorder %s208, %s211
      %p220 = scmp.eq.s32.totalorder %s25, 1
      %p221 = por %p219, %p220
      %p222 = scmp.ne.s32.totalorder %s211, %s212
      %p223 = scmp.eq.s32.totalorder %s25, 0
      %p224 = por %p222, %p223
      %p225 = scmp.ne.s32.totalorder %s211, %s212
      %p226 = scmp.eq.s32.totalorder %s26, 1
      %p227 = por %p225, %p226
      %p229 = scmp.ne.s32.totalorder %s212, %s228
      %p230 = scmp.eq.s32.totalorder %s26, 0
      %p231 = por %p229, %p230
      %p232 = scmp.le.s32.totalorder 1, %s20
      %p233 = scmp.lt.s32.totalorder %s20, 3
      %p234 = pnand %p232, %p233
      %p235 = pneg %p234
      // Predicated region
      $region9: #{tpu_custom_call.1} parent=5 // pred_check
        _
      $region10: #{tpu_custom_call.1} parent=5 // pred_check_branch
        %237 = sbr.rel (%p234) target = $region12
      $region11: #{tpu_custom_call.1} parent=5 // pred_region
        %s238 = ssub.s32 %s20, 1
        // Predicated region
        $region13: #{tpu_custom_call.1} parent=11 // pred_check
          %p239 = pneg %p93
        $region14: #{tpu_custom_call.1} parent=11 // pred_check_branch
          %241 = sbr.rel (%p239) target = $region16
        $region15: #{tpu_custom_call.1} parent=11 // pred_region
          _
        $region16: #{tpu_custom_call.1} parent=11 // pred_fallthru
          _
        // Predicated region
        $region17: #{tpu_custom_call.1} parent=11 // pred_check
          %p242 = pneg %p114
        $region18: #{tpu_custom_call.1} parent=11 // pred_check_branch
          %244 = sbr.rel (%p242) target = $region20
        $region19: #{tpu_custom_call.1} parent=11 // pred_region
          _
        $region20: #{tpu_custom_call.1} parent=11 // pred_fallthru
          _
        // Predicated region
        $region21: #{tpu_custom_call.1} parent=11 // pred_check
          %p245 = pneg %p135
        $region22: #{tpu_custom_call.1} parent=11 // pred_check_branch
          %247 = sbr.rel (%p245) target = $region24
        $region23: #{tpu_custom_call.1} parent=11 // pred_region
          _
        $region24: #{tpu_custom_call.1} parent=11 // pred_fallthru
          _
        // Predicated region
        $region25: #{tpu_custom_call.1} parent=11 // pred_check
          %p248 = pneg %p156
        $region26: #{tpu_custom_call.1} parent=11 // pred_check_branch
          %250 = sbr.rel (%p248) target = $region28
        $region27: #{tpu_custom_call.1} parent=11 // pred_region
          _
        $region28: #{tpu_custom_call.1} parent=11 // pred_fallthru
          _
        // Predicated region
        $region29: #{tpu_custom_call.1} parent=11 // pred_check
          %p251 = pneg %p177
        $region30: #{tpu_custom_call.1} parent=11 // pred_check_branch
          %253 = sbr.rel (%p251) target = $region32
        $region31: #{tpu_custom_call.1} parent=11 // pred_region
          _
        $region32: #{tpu_custom_call.1} parent=11 // pred_fallthru
          _
        // Predicated region
        $region33: #{tpu_custom_call.1} parent=11 // pred_check
          %p254 = pneg %p198
        $region34: #{tpu_custom_call.1} parent=11 // pred_check_branch
          %256 = sbr.rel (%p254) target = $region36
        $region35: #{tpu_custom_call.1} parent=11 // pred_region
          _
        $region36: #{tpu_custom_call.1} parent=11 // pred_fallthru
          _
      $region12: #{tpu_custom_call.1} parent=5 // pred_fallthru
        _
      %p257 = scmp.lt.s32.totalorder %s20, 2
      // Predicated region
      $region37: #{tpu_custom_call.1} parent=5 // pred_check
        %p258 = pneg %p257
      $region38: #{tpu_custom_call.1} parent=5 // pred_check_branch
        %260 = sbr.rel (%p258) target = $region40
      $region39: #{tpu_custom_call.1} parent=5 // pred_region
        // Predicated region
        $region41: #{tpu_custom_call.1} parent=39 // pred_check
          %p261 = pneg %p40
        $region42: #{tpu_custom_call.1} parent=39 // pred_check_branch
          %263 = sbr.rel (%p261) target = $region44
        $region43: #{tpu_custom_call.1} parent=39 // pred_region
          %s264 = sand.u32 %s30, 1
          %s265 = scalar_lea.sflag [#allocation3], %s264
          %s266 = sand.u32 %s30, 1
          %s267 = smul.addr %s266, 256
          %s268 = scalar_lea.vmem [#allocation2], %s267
          %s269 = smul.u32 64, %s20
          %s271 = ssub.s32 4096, 4096
          %272 = vsyncadd %s265, %s271
          %s273 = smul.addr %s269, 64
          %s274 = scalar_lea.hbm %s0, %s273
          %s276 = sshll.u32 %s268, 4
          %s277 = int_to_ptr.vmem [resolvable:$true] %s276
          %279 = dma.hbm_to_vmem [thread:$0]  %s274, 4096, %s277, %s265
        $region44: #{tpu_custom_call.1} parent=39 // pred_fallthru
          _
        // Predicated region
        $region45: #{tpu_custom_call.1} parent=39 // pred_check
          %p280 = pneg %p66
        $region46: #{tpu_custom_call.1} parent=39 // pred_check_branch
          %282 = sbr.rel (%p280) target = $region48
        $region47: #{tpu_custom_call.1} parent=39 // pred_region
          %p283 = scmp.lt.s32.totalorder %s20, 1
          %s284 = scalar_select %p283, %s20, 1
          %s285 = scalar_lea.vmem %s1, %s284
        $region48: #{tpu_custom_call.1} parent=39 // pred_fallthru
          _
      $region40: #{tpu_custom_call.1} parent=5 // pred_fallthru
        _
      %p286 = scmp.le.s32.totalorder 1, %s20
      %p287 = scmp.lt.s32.totalorder %s20, 3
      %p288 = pnand %p286, %p287
      %p289 = pneg %p288
      // Predicated region
      $region49: #{tpu_custom_call.1} parent=5 // pred_check
        _
      $region50: #{tpu_custom_call.1} parent=5 // pred_check_branch
        %291 = sbr.rel (%p288) target = $region52
      $region51: #{tpu_custom_call.1} parent=5 // pred_region
        %s292 = ssub.s32 %s20, 1
        %s293 = sand.u32 %s33, 1
        %s294 = scalar_lea.sflag [#allocation3], %s293
        %s295 = sand.u32 %s33, 1
        %s296 = smul.addr %s295, 256
        %s297 = scalar_lea.vmem [#allocation2], %s296
        // Predicated region
        $region53: #{tpu_custom_call.1} parent=51 // pred_check
          %p298 = pneg %p46
        $region54: #{tpu_custom_call.1} parent=51 // pred_check_branch
          %300 = sbr.rel (%p298) target = $region56
        $region55: #{tpu_custom_call.1} parent=51 // pred_region
          %301 = dma.done %s294, 4096
        $region56: #{tpu_custom_call.1} parent=51 // pred_fallthru
          _
        %s302 = sand.u32 %s33, 1
        %s303 = scalar_lea.sflag [#allocation3], %s302
        %s304 = sand.u32 %s33, 1
        %s305 = smul.addr %s304, 256
        %s306 = scalar_lea.vmem [#allocation2], %s305
        %p307 = pneg %p46
        %p308 = pneg %p43
        %p309 = scmp.lt.s32.totalorder %s25, 1
        %s310 = scalar_select %p309, %s25, 1
        %s311 = scalar_lea.vmem %s1, %s310
        %p312 = pneg %p72
        %p313 = pneg %p69
        %p314 = pneg %p93
        %p315 = pneg %p90
        %p316 = pneg %p114
        %p317 = pneg %p111
        %p318 = pneg %p135
        %p319 = pneg %p132
        %p320 = pneg %p156
        %p321 = pneg %p153
        %p322 = pneg %p177
        %p323 = pneg %p174
        %p324 = pneg %p198
        %p325 = pneg %p195
        %p326 = pneg %p224
        %p327 = pneg %p221
        %s328 = sand.u32 %s211, 1
        %s329 = scalar_lea.sflag [#allocation4], %s328
        %s330 = sand.u32 %s211, 1
        %s331 = smul.addr %s330, 32
        %s332 = scalar_lea.vmem [#allocation5], %s331
        %s333 = smul.u32 64, %s25
        %p334 = scmp.lt.s32.totalorder %s25, 1
        %s335 = scalar_select %p334, %s25, 1
        %s336 = scalar_lea.vmem %s1, %s335
        %v338 = vld [vmem:[%s297] sm:$0xff]
        %v339 = vld [vmem:[%s297 + $0x8] sm:$0xff]
        %v340 = vld [vmem:[%s297 + $0x10] sm:$0xff]
        %v341 = vld [vmem:[%s297 + $0x18] sm:$0xff]
        %v342 = vld [vmem:[%s297 + $0x20] sm:$0xff]
        %v343 = vld [vmem:[%s297 + $0x28] sm:$0xff]
        %v344 = vld [vmem:[%s297 + $0x30] sm:$0xff]
        %v345 = vld [vmem:[%s297 + $0x38] sm:$0xff]
        %v346 = vld [vmem:[%s297 + $0x40] sm:$0xff]
        %v347 = vld [vmem:[%s297 + $0x48] sm:$0xff]
        %v348 = vld [vmem:[%s297 + $0x50] sm:$0xff]
        %v349 = vld [vmem:[%s297 + $0x58] sm:$0xff]
        %v350 = vld [vmem:[%s297 + $0x60] sm:$0xff]
        %v351 = vld [vmem:[%s297 + $0x68] sm:$0xff]
        %v352 = vld [vmem:[%s297 + $0x70] sm:$0xff]
        %v353 = vld [vmem:[%s297 + $0x78] sm:$0xff]
        %v354 = vld [vmem:[%s297 + $0x80] sm:$0xff]
        %v355 = vld [vmem:[%s297 + $0x88] sm:$0xff]
        %v356 = vld [vmem:[%s297 + $0x90] sm:$0xff]
        %v357 = vld [vmem:[%s297 + $0x98] sm:$0xff]
        %v358 = vld [vmem:[%s297 + $0xa0] sm:$0xff]
        %v359 = vld [vmem:[%s297 + $0xa8] sm:$0xff]
        %v360 = vld [vmem:[%s297 + $0xb0] sm:$0xff]
        %v361 = vld [vmem:[%s297 + $0xb8] sm:$0xff]
        %v362 = vld [vmem:[%s297 + $0xc0] sm:$0xff]
        %v363 = vld [vmem:[%s297 + $0xc8] sm:$0xff]
        %v364 = vld [vmem:[%s297 + $0xd0] sm:$0xff]
        %v365 = vld [vmem:[%s297 + $0xd8] sm:$0xff]
        %v366 = vld [vmem:[%s297 + $0xe0] sm:$0xff]
        %v367 = vld [vmem:[%s297 + $0xe8] sm:$0xff]
        %v368 = vld [vmem:[%s297 + $0xf0] sm:$0xff]
        %v369 = vld [vmem:[%s297 + $0xf8] sm:$0xff]
        %v370 = vld [vmem:[%s2] sm:$0xf]
        %v371 = vld [vmem:[%s2 + $0x4] sm:$0xf]
        %v372 = vld [vmem:[%s3] sm:$0xff]
        %v373 = vld [vmem:[%s3 + $0x8] sm:$0xff]
        %375 = vset.pattern.permute.xlu0 0
        %376 = vperm.xlu0 %375, %v372
        %v377 = vpop.permute.xlu0 %376
        %380 = vset.pattern.permute.xlu0 0
        %381 = vperm.xlu0 %380, %v373
        %v382 = vpop.permute.xlu0 %381
        %v386 = vunpack.c.l.b16 %v370
        %v387 = vunpack.c.l.b16 %v371
        %v388 = vpack.c.b16 %v387, %v386
        %v421 = vunpack.c.l.b16 %v338
        %v422 = vunpack.c.h.b16 %v338
        %v423 = vunpack.c.l.b16 %v339
        %v424 = vunpack.c.h.b16 %v339
        %v425 = vunpack.c.l.b16 %v340
        %v426 = vunpack.c.h.b16 %v340
        %v427 = vunpack.c.l.b16 %v341
        %v428 = vunpack.c.h.b16 %v341
        %v429 = vunpack.c.l.b16 %v342
        %v430 = vunpack.c.h.b16 %v342
        %v431 = vunpack.c.l.b16 %v343
        %v432 = vunpack.c.h.b16 %v343
        %v433 = vunpack.c.l.b16 %v344
        %v434 = vunpack.c.h.b16 %v344
        %v435 = vunpack.c.l.b16 %v345
        %v436 = vunpack.c.h.b16 %v345
        %v437 = vunpack.c.l.b16 %v346
        %v438 = vunpack.c.h.b16 %v346
        %v439 = vunpack.c.l.b16 %v347
        %v440 = vunpack.c.h.b16 %v347
        %v441 = vunpack.c.l.b16 %v348
        %v442 = vunpack.c.h.b16 %v348
        %v443 = vunpack.c.l.b16 %v349
        %v444 = vunpack.c.h.b16 %v349
        %v445 = vunpack.c.l.b16 %v350
        %v446 = vunpack.c.h.b16 %v350
        %v447 = vunpack.c.l.b16 %v351
        %v448 = vunpack.c.h.b16 %v351
        %v449 = vunpack.c.l.b16 %v352
        %v450 = vunpack.c.h.b16 %v352
        %v451 = vunpack.c.l.b16 %v353
        %v452 = vunpack.c.h.b16 %v353
        %v453 = vunpack.c.l.b16 %v354
        %v454 = vunpack.c.h.b16 %v354
        %v455 = vunpack.c.l.b16 %v355
        %v456 = vunpack.c.h.b16 %v355
        %v457 = vunpack.c.l.b16 %v356
        %v458 = vunpack.c.h.b16 %v356
        %v459 = vunpack.c.l.b16 %v357
        %v460 = vunpack.c.h.b16 %v357
        %v461 = vunpack.c.l.b16 %v358
        %v462 = vunpack.c.h.b16 %v358
        %v463 = vunpack.c.l.b16 %v359
        %v464 = vunpack.c.h.b16 %v359
        %v465 = vunpack.c.l.b16 %v360
        %v466 = vunpack.c.h.b16 %v360
        %v467 = vunpack.c.l.b16 %v361
        %v468 = vunpack.c.h.b16 %v361
        %v469 = vunpack.c.l.b16 %v362
        %v470 = vunpack.c.h.b16 %v362
        %v471 = vunpack.c.l.b16 %v363
        %v472 = vunpack.c.h.b16 %v363
        %v473 = vunpack.c.l.b16 %v364
        %v474 = vunpack.c.h.b16 %v364
        %v475 = vunpack.c.l.b16 %v365
        %v476 = vunpack.c.h.b16 %v365
        %v477 = vunpack.c.l.b16 %v366
        %v478 = vunpack.c.h.b16 %v366
        %v479 = vunpack.c.l.b16 %v367
        %v480 = vunpack.c.h.b16 %v367
        %v481 = vunpack.c.l.b16 %v368
        %v482 = vunpack.c.h.b16 %v368
        %v483 = vunpack.c.l.b16 %v369
        %v484 = vunpack.c.h.b16 %v369
        %v485 = vpack.c.b16 %v421, %v421
        %v486 = vpack.c.b16 %v422, %v422
        %v487 = vpack.c.b16 %v423, %v423
        %v488 = vpack.c.b16 %v424, %v424
        %v489 = vpack.c.b16 %v425, %v425
        %v490 = vpack.c.b16 %v426, %v426
        %v491 = vpack.c.b16 %v427, %v427
        %v492 = vpack.c.b16 %v428, %v428
        %v493 = vpack.c.b16 %v429, %v429
        %v494 = vpack.c.b16 %v430, %v430
        %v495 = vpack.c.b16 %v431, %v431
        %v496 = vpack.c.b16 %v432, %v432
        %v497 = vpack.c.b16 %v433, %v433
        %v498 = vpack.c.b16 %v434, %v434
        %v499 = vpack.c.b16 %v435, %v435
        %v500 = vpack.c.b16 %v436, %v436
        %v501 = vpack.c.b16 %v437, %v437
        %v502 = vpack.c.b16 %v438, %v438
        %v503 = vpack.c.b16 %v439, %v439
        %v504 = vpack.c.b16 %v440, %v440
        %v505 = vpack.c.b16 %v441, %v441
        %v506 = vpack.c.b16 %v442, %v442
        %v507 = vpack.c.b16 %v443, %v443
        %v508 = vpack.c.b16 %v444, %v444
        %v509 = vpack.c.b16 %v445, %v445
        %v510 = vpack.c.b16 %v446, %v446
        %v511 = vpack.c.b16 %v447, %v447
        %v512 = vpack.c.b16 %v448, %v448
        %v513 = vpack.c.b16 %v449, %v449
        %v514 = vpack.c.b16 %v450, %v450
        %v515 = vpack.c.b16 %v451, %v451
        %v516 = vpack.c.b16 %v452, %v452
        %v517 = vpack.c.b16 %v453, %v453
        %v518 = vpack.c.b16 %v454, %v454
        %v519 = vpack.c.b16 %v455, %v455
        %v520 = vpack.c.b16 %v456, %v456
        %v521 = vpack.c.b16 %v457, %v457
        %v522 = vpack.c.b16 %v458, %v458
        %v523 = vpack.c.b16 %v459, %v459
        %v524 = vpack.c.b16 %v460, %v460
        %v525 = vpack.c.b16 %v461, %v461
        %v526 = vpack.c.b16 %v462, %v462
        %v527 = vpack.c.b16 %v463, %v463
        %v528 = vpack.c.b16 %v464, %v464
        %v529 = vpack.c.b16 %v465, %v465
        %v530 = vpack.c.b16 %v466, %v466
        %v531 = vpack.c.b16 %v467, %v467
        %v532 = vpack.c.b16 %v468, %v468
        %v533 = vpack.c.b16 %v469, %v469
        %v534 = vpack.c.b16 %v470, %v470
        %v535 = vpack.c.b16 %v471, %v471
        %v536 = vpack.c.b16 %v472, %v472
        %v537 = vpack.c.b16 %v473, %v473
        %v538 = vpack.c.b16 %v474, %v474
        %v539 = vpack.c.b16 %v475, %v475
        %v540 = vpack.c.b16 %v476, %v476
        %v541 = vpack.c.b16 %v477, %v477
        %v542 = vpack.c.b16 %v478, %v478
        %v543 = vpack.c.b16 %v479, %v479
        %v544 = vpack.c.b16 %v480, %v480
        %v545 = vpack.c.b16 %v481, %v481
        %v546 = vpack.c.b16 %v482, %v482
        %v547 = vpack.c.b16 %v483, %v483
        %v548 = vpack.c.b16 %v484, %v484
        %vm549 = vcmask 56320
        %v551 = vsel %vm549, %v388, 0
        %vm553 = vcmask 1042432
        %vm554 = vcmask 1043456
        %v555 = vsel %vm553, 4294967295, 65535
        %v556 = vsel %vm554, %v555, 0
        %v558 = vand.u32 %v485, %v556
        %v561 = vand.u32 %v486, %v556
        %v564 = vand.u32 %v487, %v556
        %v567 = vand.u32 %v488, %v556
        %v570 = vand.u32 %v489, %v556
        %v573 = vand.u32 %v490, %v556
        %v576 = vand.u32 %v491, %v556
        %v579 = vand.u32 %v492, %v556
        %v582 = vand.u32 %v493, %v556
        %v585 = vand.u32 %v494, %v556
        %v588 = vand.u32 %v495, %v556
        %v591 = vand.u32 %v496, %v556
        %v594 = vand.u32 %v497, %v556
        %v597 = vand.u32 %v498, %v556
        %v600 = vand.u32 %v499, %v556
        %v603 = vand.u32 %v500, %v556
        %v606 = vand.u32 %v501, %v556
        %v609 = vand.u32 %v502, %v556
        %v612 = vand.u32 %v503, %v556
        %v615 = vand.u32 %v504, %v556
        %v618 = vand.u32 %v505, %v556
        %v621 = vand.u32 %v506, %v556
        %v624 = vand.u32 %v507, %v556
        %v627 = vand.u32 %v508, %v556
        %v630 = vand.u32 %v509, %v556
        %v633 = vand.u32 %v510, %v556
        %v636 = vand.u32 %v511, %v556
        %v639 = vand.u32 %v512, %v556
        %v642 = vand.u32 %v513, %v556
        %v645 = vand.u32 %v514, %v556
        %v648 = vand.u32 %v515, %v556
        %v651 = vand.u32 %v516, %v556
        %v654 = vand.u32 %v517, %v556
        %v657 = vand.u32 %v518, %v556
        %v660 = vand.u32 %v519, %v556
        %v663 = vand.u32 %v520, %v556
        %v666 = vand.u32 %v521, %v556
        %v669 = vand.u32 %v522, %v556
        %v672 = vand.u32 %v523, %v556
        %v675 = vand.u32 %v524, %v556
        %v678 = vand.u32 %v525, %v556
        %v681 = vand.u32 %v526, %v556
        %v684 = vand.u32 %v527, %v556
        %v687 = vand.u32 %v528, %v556
        %v690 = vand.u32 %v529, %v556
        %v693 = vand.u32 %v530, %v556
        %v696 = vand.u32 %v531, %v556
        %v699 = vand.u32 %v532, %v556
        %v702 = vand.u32 %v533, %v556
        %v705 = vand.u32 %v534, %v556
        %v708 = vand.u32 %v535, %v556
        %v711 = vand.u32 %v536, %v556
        %v714 = vand.u32 %v537, %v556
        %v717 = vand.u32 %v538, %v556
        %v720 = vand.u32 %v539, %v556
        %v723 = vand.u32 %v540, %v556
        %v726 = vand.u32 %v541, %v556
        %v729 = vand.u32 %v542, %v556
        %v732 = vand.u32 %v543, %v556
        %v735 = vand.u32 %v544, %v556
        %v738 = vand.u32 %v545, %v556
        %v741 = vand.u32 %v546, %v556
        %v744 = vand.u32 %v547, %v556
        %v747 = vand.u32 %v548, %v556
        %749 = vmatprep.subr.bf16.mxu0 %v561
        %750 = vmatpush1.bf16.msra.mxu0 %v558
        %751 = vmatprep.subr.bf16.mxu0 0
        %752 = vmatpush1.bf16.msra.mxu0 0
        %753 = vmatprep.subr.bf16.mxu0 0
        %754 = vmatpush1.bf16.msra.mxu0 0
        %755 = vmatprep.subr.bf16.mxu0 0
        %756 = vmatpush1.bf16.msra.mxu0 0
        %757 = vmatprep.subr.bf16.mxu0 0
        %758 = vmatpush1.bf16.msra.mxu0 0
        %759 = vmatprep.subr.bf16.mxu0 0
        %760 = vmatpush1.bf16.msra.mxu0 0
        %761 = vmatprep.subr.bf16.mxu0 0
        %762 = vmatpush1.bf16.msra.mxu0 0
        %763 = vmatprep.subr.bf16.mxu0 0
        %764 = vmatpush1.bf16.msra.mxu0 0
        %765 = vmatprep.subr.bf16.mxu0 0
        %766 = vmatpush1.bf16.msra.mxu0 0
        %767 = vmatprep.subr.bf16.mxu0 0
        %768 = vmatpush1.bf16.msra.mxu0 0
        %769 = vmatprep.subr.bf16.mxu0 0
        %770 = vmatpush1.bf16.msra.mxu0 0
        %771 = vmatprep.subr.bf16.mxu0 0
        %772 = vmatpush1.bf16.msra.mxu0 0
        %773 = vmatprep.subr.bf16.mxu0 0
        %774 = vmatpush1.bf16.msra.mxu0 0
        %775 = vmatprep.subr.bf16.mxu0 0
        %776 = vmatpush1.bf16.msra.mxu0 0
        %777 = vmatprep.subr.bf16.mxu0 0
        %778 = vmatpush1.bf16.msra.mxu0 0
        %779 = vmatprep.subr.bf16.mxu0 0
        %780 = vmatpush1.bf16.msra.mxu0 0
        %781 = vmatprep.mubr.bf16.mxu0 0
        %782 = vmatmul.mubr.bf16.gmra.mrb[0].mxu0 %v551
        %v783 = vpop.f32.mrb[0].mxu0
        %v784 = vadd.f32 %v377, %v783
        %v785 = vpop.f32.mrb[0].mxu0
        %v786 = vadd.f32 %v377, %v785
        %v787 = vpop.f32.mrb[0].mxu0
        %v788 = vadd.f32 %v382, %v787
        %v789 = vpop.f32.mrb[0].mxu0
        %v790 = vadd.f32 %v382, %v789
        %791 = vdwg.mxu0
        %792 = vmatprep.subr.bf16.mxu0 %v567
        %793 = vmatpush1.bf16.msra.mxu0 %v564
        %794 = vmatprep.subr.bf16.mxu0 0
        %795 = vmatpush1.bf16.msra.mxu0 0
        %796 = vmatprep.subr.bf16.mxu0 0
        %797 = vmatpush1.bf16.msra.mxu0 0
        %798 = vmatprep.subr.bf16.mxu0 0
        %799 = vmatpush1.bf16.msra.mxu0 0
        %800 = vmatprep.subr.bf16.mxu0 0
        %801 = vmatpush1.bf16.msra.mxu0 0
        %802 = vmatprep.subr.bf16.mxu0 0
        %803 = vmatpush1.bf16.msra.mxu0 0
        %804 = vmatprep.subr.bf16.mxu0 0
        %805 = vmatpush1.bf16.msra.mxu0 0
        %806 = vmatprep.subr.bf16.mxu0 0
        %807 = vmatpush1.bf16.msra.mxu0 0
        %808 = vmatprep.subr.bf16.mxu0 0
        %809 = vmatpush1.bf16.msra.mxu0 0
        %810 = vmatprep.subr.bf16.mxu0 0
        %811 = vmatpush1.bf16.msra.mxu0 0
        %812 = vmatprep.subr.bf16.mxu0 0
        %813 = vmatpush1.bf16.msra.mxu0 0
        %814 = vmatprep.subr.bf16.mxu0 0
        %815 = vmatpush1.bf16.msra.mxu0 0
        %816 = vmatprep.subr.bf16.mxu0 0
        %817 = vmatpush1.bf16.msra.mxu0 0
        %818 = vmatprep.subr.bf16.mxu0 0
        %819 = vmatpush1.bf16.msra.mxu0 0
        %820 = vmatprep.subr.bf16.mxu0 0
        %821 = vmatpush1.bf16.msra.mxu0 0
        %822 = vmatprep.subr.bf16.mxu0 0
        %823 = vmatpush1.bf16.msra.mxu0 0
        %824 = vmatprep.mubr.bf16.mxu0 0
        %825 = vmatmul.mubr.bf16.gmra.mrb[0].mxu0 %v551
        %v826 = vpop.f32.mrb[0].mxu0
        %v827 = vadd.f32 %v377, %v826
        %v828 = vpop.f32.mrb[0].mxu0
        %v829 = vadd.f32 %v377, %v828
        %v830 = vpop.f32.mrb[0].mxu0
        %v831 = vadd.f32 %v382, %v830
        %v832 = vpop.f32.mrb[0].mxu0
        %v833 = vadd.f32 %v382, %v832
        %834 = vdwg.mxu0
        %835 = vmatprep.subr.bf16.mxu0 %v573
        %836 = vmatpush1.bf16.msra.mxu0 %v570
        %837 = vmatprep.subr.bf16.mxu0 0
        %838 = vmatpush1.bf16.msra.mxu0 0
        %839 = vmatprep.subr.bf16.mxu0 0
        %840 = vmatpush1.bf16.msra.mxu0 0
        %841 = vmatprep.subr.bf16.mxu0 0
        %842 = vmatpush1.bf16.msra.mxu0 0
        %843 = vmatprep.subr.bf16.mxu0 0
        %844 = vmatpush1.bf16.msra.mxu0 0
        %845 = vmatprep.subr.bf16.mxu0 0
        %846 = vmatpush1.bf16.msra.mxu0 0
        %847 = vmatprep.subr.bf16.mxu0 0
        %848 = vmatpush1.bf16.msra.mxu0 0
        %849 = vmatprep.subr.bf16.mxu0 0
        %850 = vmatpush1.bf16.msra.mxu0 0
        %851 = vmatprep.subr.bf16.mxu0 0
        %852 = vmatpush1.bf16.msra.mxu0 0
        %853 = vmatprep.subr.bf16.mxu0 0
        %854 = vmatpush1.bf16.msra.mxu0 0
        %855 = vmatprep.subr.bf16.mxu0 0
        %856 = vmatpush1.bf16.msra.mxu0 0
        %857 = vmatprep.subr.bf16.mxu0 0
        %858 = vmatpush1.bf16.msra.mxu0 0
        %859 = vmatprep.subr.bf16.mxu0 0
        %860 = vmatpush1.bf16.msra.mxu0 0
        %861 = vmatprep.subr.bf16.mxu0 0
        %862 = vmatpush1.bf16.msra.mxu0 0
        %863 = vmatprep.subr.bf16.mxu0 0
        %864 = vmatpush1.bf16.msra.mxu0 0
        %865 = vmatprep.subr.bf16.mxu0 0
        %866 = vmatpush1.bf16.msra.mxu0 0
        %867 = vmatprep.mubr.bf16.mxu0 0
        %868 = vmatmul.mubr.bf16.gmra.mrb[0].mxu0 %v551
        %v869 = vpop.f32.mrb[0].mxu0
        %v870 = vadd.f32 %v377, %v869
        %v871 = vpop.f32.mrb[0].mxu0
        %v872 = vadd.f32 %v377, %v871
        %v873 = vpop.f32.mrb[0].mxu0
        %v874 = vadd.f32 %v382, %v873
        %v875 = vpop.f32.mrb[0].mxu0
        %v876 = vadd.f32 %v382, %v875
        %877 = vdwg.mxu0
        %878 = vmatprep.subr.bf16.mxu0 %v579
        %879 = vmatpush1.bf16.msra.mxu0 %v576
        %880 = vmatprep.subr.bf16.mxu0 0
        %881 = vmatpush1.bf16.msra.mxu0 0
        %882 = vmatprep.subr.bf16.mxu0 0
        %883 = vmatpush1.bf16.msra.mxu0 0
        %884 = vmatprep.subr.bf16.mxu0 0
        %885 = vmatpush1.bf16.msra.mxu0 0
        %886 = vmatprep.subr.bf16.mxu0 0
        %887 = vmatpush1.bf16.msra.mxu0 0
        %888 = vmatprep.subr.bf16.mxu0 0
        %889 = vmatpush1.bf16.msra.mxu0 0
        %890 = vmatprep.subr.bf16.mxu0 0
        %891 = vmatpush1.bf16.msra.mxu0 0
        %892 = vmatprep.subr.bf16.mxu0 0
        %893 = vmatpush1.bf16.msra.mxu0 0
        %894 = vmatprep.subr.bf16.mxu0 0
        %895 = vmatpush1.bf16.msra.mxu0 0
        %896 = vmatprep.subr.bf16.mxu0 0
        %897 = vmatpush1.bf16.msra.mxu0 0
        %898 = vmatprep.subr.bf16.mxu0 0
        %899 = vmatpush1.bf16.msra.mxu0 0
        %900 = vmatprep.subr.bf16.mxu0 0
        %901 = vmatpush1.bf16.msra.mxu0 0
        %902 = vmatprep.subr.bf16.mxu0 0
        %903 = vmatpush1.bf16.msra.mxu0 0
        %904 = vmatprep.subr.bf16.mxu0 0
        %905 = vmatpush1.bf16.msra.mxu0 0
        %906 = vmatprep.subr.bf16.mxu0 0
        %907 = vmatpush1.bf16.msra.mxu0 0
        %908 = vmatprep.subr.bf16.mxu0 0
        %909 = vmatpush1.bf16.msra.mxu0 0
        %910 = vmatprep.mubr.bf16.mxu0 0
        %911 = vmatmul.mubr.bf16.gmra.mrb[0].mxu0 %v551
        %v912 = vpop.f32.mrb[0].mxu0
        %v913 = vadd.f32 %v377, %v912
        %v914 = vpop.f32.mrb[0].mxu0
        %v915 = vadd.f32 %v377, %v914
        %v916 = vpop.f32.mrb[0].mxu0
        %v917 = vadd.f32 %v382, %v916
        %v918 = vpop.f32.mrb[0].mxu0
        %v919 = vadd.f32 %v382, %v918
        %920 = vdwg.mxu0
        %921 = vmatprep.subr.bf16.mxu0 %v585
        %922 = vmatpush1.bf16.msra.mxu0 %v582
        %923 = vmatprep.subr.bf16.mxu0 0
        %924 = vmatpush1.bf16.msra.mxu0 0
        %925 = vmatprep.subr.bf16.mxu0 0
        %926 = vmatpush1.bf16.msra.mxu0 0
        %927 = vmatprep.subr.bf16.mxu0 0
        %928 = vmatpush1.bf16.msra.mxu0 0
        %929 = vmatprep.subr.bf16.mxu0 0
        %930 = vmatpush1.bf16.msra.mxu0 0
        %931 = vmatprep.subr.bf16.mxu0 0
        %932 = vmatpush1.bf16.msra.mxu0 0
        %933 = vmatprep.subr.bf16.mxu0 0
        %934 = vmatpush1.bf16.msra.mxu0 0
        %935 = vmatprep.subr.bf16.mxu0 0
        %936 = vmatpush1.bf16.msra.mxu0 0
        %937 = vmatprep.subr.bf16.mxu0 0
        %938 = vmatpush1.bf16.msra.mxu0 0
        %939 = vmatprep.subr.bf16.mxu0 0
        %940 = vmatpush1.bf16.msra.mxu0 0
        %941 = vmatprep.subr.bf16.mxu0 0
        %942 = vmatpush1.bf16.msra.mxu0 0
        %943 = vmatprep.subr.bf16.mxu0 0
        %944 = vmatpush1.bf16.msra.mxu0 0
        %945 = vmatprep.subr.bf16.mxu0 0
        %946 = vmatpush1.bf16.msra.mxu0 0
        %947 = vmatprep.subr.bf16.mxu0 0
        %948 = vmatpush1.bf16.msra.mxu0 0
        %949 = vmatprep.subr.bf16.mxu0 0
        %950 = vmatpush1.bf16.msra.mxu0 0
        %951 = vmatprep.subr.bf16.mxu0 0
        %952 = vmatpush1.bf16.msra.mxu0 0
        %953 = vmatprep.mubr.bf16.mxu0 0
        %954 = vmatmul.mubr.bf16.gmra.mrb[0].mxu0 %v551
        %v955 = vpop.f32.mrb[0].mxu0
        %v956 = vadd.f32 %v377, %v955
        %v957 = vpop.f32.mrb[0].mxu0
        %v958 = vadd.f32 %v377, %v957
        %v959 = vpop.f32.mrb[0].mxu0
        %v960 = vadd.f32 %v382, %v959
        %v961 = vpop.f32.mrb[0].mxu0
        %v962 = vadd.f32 %v382, %v961
        %963 = vdwg.mxu0
        %964 = vmatprep.subr.bf16.mxu0 %v591
        %965 = vmatpush1.bf16.msra.mxu0 %v588
        %966 = vmatprep.subr.bf16.mxu0 0
        %967 = vmatpush1.bf16.msra.mxu0 0
        %968 = vmatprep.subr.bf16.mxu0 0
        %969 = vmatpush1.bf16.msra.mxu0 0
        %970 = vmatprep.subr.bf16.mxu0 0
        %971 = vmatpush1.bf16.msra.mxu0 0
        %972 = vmatprep.subr.bf16.mxu0 0
        %973 = vmatpush1.bf16.msra.mxu0 0
        %974 = vmatprep.subr.bf16.mxu0 0
        %975 = vmatpush1.bf16.msra.mxu0 0
        %976 = vmatprep.subr.bf16.mxu0 0
        %977 = vmatpush1.bf16.msra.mxu0 0
        %978 = vmatprep.subr.bf16.mxu0 0
        %979 = vmatpush1.bf16.msra.mxu0 0
        %980 = vmatprep.subr.bf16.mxu0 0
        %981 = vmatpush1.bf16.msra.mxu0 0
        %982 = vmatprep.subr.bf16.mxu0 0
        %983 = vmatpush1.bf16.msra.mxu0 0
        %984 = vmatprep.subr.bf16.mxu0 0
        %985 = vmatpush1.bf16.msra.mxu0 0
        %986 = vmatprep.subr.bf16.mxu0 0
        %987 = vmatpush1.bf16.msra.mxu0 0
        %988 = vmatprep.subr.bf16.mxu0 0
        %989 = vmatpush1.bf16.msra.mxu0 0
        %990 = vmatprep.subr.bf16.mxu0 0
        %991 = vmatpush1.bf16.msra.mxu0 0
        %992 = vmatprep.subr.bf16.mxu0 0
        %993 = vmatpush1.bf16.msra.mxu0 0
        %994 = vmatprep.subr.bf16.mxu0 0
        %995 = vmatpush1.bf16.msra.mxu0 0
        %996 = vmatprep.mubr.bf16.mxu0 0
        %997 = vmatmul.mubr.bf16.gmra.mrb[0].mxu0 %v551
        %v998 = vpop.f32.mrb[0].mxu0
        %v999 = vadd.f32 %v377, %v998
        %v1000 = vpop.f32.mrb[0].mxu0
        %v1001 = vadd.f32 %v377, %v1000
        %v1002 = vpop.f32.mrb[0].mxu0
        %v1003 = vadd.f32 %v382, %v1002
        %v1004 = vpop.f32.mrb[0].mxu0
        %v1005 = vadd.f32 %v382, %v1004
        %1006 = vdwg.mxu0
        %1007 = vmatprep.subr.bf16.mxu0 %v597
        %1008 = vmatpush1.bf16.msra.mxu0 %v594
        %1009 = vmatprep.subr.bf16.mxu0 0
        %1010 = vmatpush1.bf16.msra.mxu0 0
        %1011 = vmatprep.subr.bf16.mxu0 0
        %1012 = vmatpush1.bf16.msra.mxu0 0
        %1013 = vmatprep.subr.bf16.mxu0 0
        %1014 = vmatpush1.bf16.msra.mxu0 0
        %1015 = vmatprep.subr.bf16.mxu0 0
        %1016 = vmatpush1.bf16.msra.mxu0 0
        %1017 = vmatprep.subr.bf16.mxu0 0
        %1018 = vmatpush1.bf16.msra.mxu0 0
        %1019 = vmatprep.subr.bf16.mxu0 0
        %1020 = vmatpush1.bf16.msra.mxu0 0
        %1021 = vmatprep.subr.bf16.mxu0 0
        %1022 = vmatpush1.bf16.msra.mxu0 0
        %1023 = vmatprep.subr.bf16.mxu0 0
        %1024 = vmatpush1.bf16.msra.mxu0 0
        %1025 = vmatprep.subr.bf16.mxu0 0
        %1026 = vmatpush1.bf16.msra.mxu0 0
        %1027 = vmatprep.subr.bf16.mxu0 0
        %1028 = vmatpush1.bf16.msra.mxu0 0
        %1029 = vmatprep.subr.bf16.mxu0 0
        %1030 = vmatpush1.bf16.msra.mxu0 0
        %1031 = vmatprep.subr.bf16.mxu0 0
        %1032 = vmatpush1.bf16.msra.mxu0 0
        %1033 = vmatprep.subr.bf16.mxu0 0
        %1034 = vmatpush1.bf16.msra.mxu0 0
        %1035 = vmatprep.subr.bf16.mxu0 0
        %1036 = vmatpush1.bf16.msra.mxu0 0
        %1037 = vmatprep.subr.bf16.mxu0 0
        %1038 = vmatpush1.bf16.msra.mxu0 0
        %1039 = vmatprep.mubr.bf16.mxu0 0
        %1040 = vmatmul.mubr.bf16.gmra.mrb[0].mxu0 %v551
        %v1041 = vpop.f32.mrb[0].mxu0
        %v1042 = vadd.f32 %v377, %v1041
        %v1043 = vpop.f32.mrb[0].mxu0
        %v1044 = vadd.f32 %v377, %v1043
        %v1045 = vpop.f32.mrb[0].mxu0
        %v1046 = vadd.f32 %v382, %v1045
        %v1047 = vpop.f32.mrb[0].mxu0
        %v1048 = vadd.f32 %v382, %v1047
        %1049 = vdwg.mxu0
        %1050 = vmatprep.subr.bf16.mxu0 %v603
        %1051 = vmatpush1.bf16.msra.mxu0 %v600
        %1052 = vmatprep.subr.bf16.mxu0 0
        %1053 = vmatpush1.bf16.msra.mxu0 0
        %1054 = vmatprep.subr.bf16.mxu0 0
        %1055 = vmatpush1.bf16.msra.mxu0 0
        %1056 = vmatprep.subr.bf16.mxu0 0
        %1057 = vmatpush1.bf16.msra.mxu0 0
        %1058 = vmatprep.subr.bf16.mxu0 0
        %1059 = vmatpush1.bf16.msra.mxu0 0
        %1060 = vmatprep.subr.bf16.mxu0 0
        %1061 = vmatpush1.bf16.msra.mxu0 0
        %1062 = vmatprep.subr.bf16.mxu0 0
        %1063 = vmatpush1.bf16.msra.mxu0 0
        %1064 = vmatprep.subr.bf16.mxu0 0
        %1065 = vmatpush1.bf16.msra.mxu0 0
        %1066 = vmatprep.subr.bf16.mxu0 0
        %1067 = vmatpush1.bf16.msra.mxu0 0
        %1068 = vmatprep.subr.bf16.mxu0 0
        %1069 = vmatpush1.bf16.msra.mxu0 0
        %1070 = vmatprep.subr.bf16.mxu0 0
        %1071 = vmatpush1.bf16.msra.mxu0 0
        %1072 = vmatprep.subr.bf16.mxu0 0
        %1073 = vmatpush1.bf16.msra.mxu0 0
        %1074 = vmatprep.subr.bf16.mxu0 0
        %1075 = vmatpush1.bf16.msra.mxu0 0
        %1076 = vmatprep.subr.bf16.mxu0 0
        %1077 = vmatpush1.bf16.msra.mxu0 0
        %1078 = vmatprep.subr.bf16.mxu0 0
        %1079 = vmatpush1.bf16.msra.mxu0 0
        %1080 = vmatprep.subr.bf16.mxu0 0
        %1081 = vmatpush1.bf16.msra.mxu0 0
        %1082 = vmatprep.mubr.bf16.mxu0 0
        %1083 = vmatmul.mubr.bf16.gmra.mrb[0].mxu0 %v551
        %v1084 = vpop.f32.mrb[0].mxu0
        %v1085 = vadd.f32 %v377, %v1084
        %v1086 = vpop.f32.mrb[0].mxu0
        %v1087 = vadd.f32 %v377, %v1086
        %v1088 = vpop.f32.mrb[0].mxu0
        %v1089 = vadd.f32 %v382, %v1088
        %v1090 = vpop.f32.mrb[0].mxu0
        %v1091 = vadd.f32 %v382, %v1090
        %1092 = vdwg.mxu0
        %1093 = vmatprep.subr.bf16.mxu0 %v609
        %1094 = vmatpush1.bf16.msra.mxu0 %v606
        %1095 = vmatprep.subr.bf16.mxu0 0
        %1096 = vmatpush1.bf16.msra.mxu0 0
        %1097 = vmatprep.subr.bf16.mxu0 0
        %1098 = vmatpush1.bf16.msra.mxu0 0
        %1099 = vmatprep.subr.bf16.mxu0 0
        %1100 = vmatpush1.bf16.msra.mxu0 0
        %1101 = vmatprep.subr.bf16.mxu0 0
        %1102 = vmatpush1.bf16.msra.mxu0 0
        %1103 = vmatprep.subr.bf16.mxu0 0
        %1104 = vmatpush1.bf16.msra.mxu0 0
        %1105 = vmatprep.subr.bf16.mxu0 0
        %1106 = vmatpush1.bf16.msra.mxu0 0
        %1107 = vmatprep.subr.bf16.mxu0 0
        %1108 = vmatpush1.bf16.msra.mxu0 0
        %1109 = vmatprep.subr.bf16.mxu0 0
        %1110 = vmatpush1.bf16.msra.mxu0 0
        %1111 = vmatprep.subr.bf16.mxu0 0
        %1112 = vmatpush1.bf16.msra.mxu0 0
        %1113 = vmatprep.subr.bf16.mxu0 0
        %1114 = vmatpush1.bf16.msra.mxu0 0
        %1115 = vmatprep.subr.bf16.mxu0 0
        %1116 = vmatpush1.bf16.msra.mxu0 0
        %1117 = vmatprep.subr.bf16.mxu0 0
        %1118 = vmatpush1.bf16.msra.mxu0 0
        %1119 = vmatprep.subr.bf16.mxu0 0
        %1120 = vmatpush1.bf16.msra.mxu0 0
        %1121 = vmatprep.subr.bf16.mxu0 0
        %1122 = vmatpush1.bf16.msra.mxu0 0
        %1123 = vmatprep.subr.bf16.mxu0 0
        %1124 = vmatpush1.bf16.msra.mxu0 0
        %1125 = vmatprep.mubr.bf16.mxu0 0
        %1126 = vmatmul.mubr.bf16.gmra.mrb[0].mxu0 %v551
        %v1127 = vpop.f32.mrb[0].mxu0
        %v1128 = vadd.f32 %v377, %v1127
        %v1129 = vpop.f32.mrb[0].mxu0
        %v1130 = vadd.f32 %v377, %v1129
        %v1131 = vpop.f32.mrb[0].mxu0
        %v1132 = vadd.f32 %v382, %v1131
        %v1133 = vpop.f32.mrb[0].mxu0
        %v1134 = vadd.f32 %v382, %v1133
        %1135 = vdwg.mxu0
        %1136 = vmatprep.subr.bf16.mxu0 %v615
        %1137 = vmatpush1.bf16.msra.mxu0 %v612
        %1138 = vmatprep.subr.bf16.mxu0 0
        %1139 = vmatpush1.bf16.msra.mxu0 0
        %1140 = vmatprep.subr.bf16.mxu0 0
        %1141 = vmatpush1.bf16.msra.mxu0 0
        %1142 = vmatprep.subr.bf16.mxu0 0
        %1143 = vmatpush1.bf16.msra.mxu0 0
        %1144 = vmatprep.subr.bf16.mxu0 0
        %1145 = vmatpush1.bf16.msra.mxu0 0
        %1146 = vmatprep.subr.bf16.mxu0 0
        %1147 = vmatpush1.bf16.msra.mxu0 0
        %1148 = vmatprep.subr.bf16.mxu0 0
        %1149 = vmatpush1.bf16.msra.mxu0 0
        %1150 = vmatprep.subr.bf16.mxu0 0
        %1151 = vmatpush1.bf16.msra.mxu0 0
        %1152 = vmatprep.subr.bf16.mxu0 0
        %1153 = vmatpush1.bf16.msra.mxu0 0
        %1154 = vmatprep.subr.bf16.mxu0 0
        %1155 = vmatpush1.bf16.msra.mxu0 0
        %1156 = vmatprep.subr.bf16.mxu0 0
        %1157 = vmatpush1.bf16.msra.mxu0 0
        %1158 = vmatprep.subr.bf16.mxu0 0
        %1159 = vmatpush1.bf16.msra.mxu0 0
        %1160 = vmatprep.subr.bf16.mxu0 0
        %1161 = vmatpush1.bf16.msra.mxu0 0
        %1162 = vmatprep.subr.bf16.mxu0 0
        %1163 = vmatpush1.bf16.msra.mxu0 0
        %1164 = vmatprep.subr.bf16.mxu0 0
        %1165 = vmatpush1.bf16.msra.mxu0 0
        %1166 = vmatprep.subr.bf16.mxu0 0
        %1167 = vmatpush1.bf16.msra.mxu0 0
        %1168 = vmatprep.mubr.bf16.mxu0 0
        %1169 = vmatmul.mubr.bf16.gmra.mrb[0].mxu0 %v551
        %v1170 = vpop.f32.mrb[0].mxu0
        %v1171 = vadd.f32 %v377, %v1170
        %v1172 = vpop.f32.mrb[0].mxu0
        %v1173 = vadd.f32 %v377, %v1172
        %v1174 = vpop.f32.mrb[0].mxu0
        %v1175 = vadd.f32 %v382, %v1174
        %v1176 = vpop.f32.mrb[0].mxu0
        %v1177 = vadd.f32 %v382, %v1176
        %1178 = vdwg.mxu0
        %1179 = vmatprep.subr.bf16.mxu0 %v621
        %1180 = vmatpush1.bf16.msra.mxu0 %v618
        %1181 = vmatprep.subr.bf16.mxu0 0
        %1182 = vmatpush1.bf16.msra.mxu0 0
        %1183 = vmatprep.subr.bf16.mxu0 0
        %1184 = vmatpush1.bf16.msra.mxu0 0
        %1185 = vmatprep.subr.bf16.mxu0 0
        %1186 = vmatpush1.bf16.msra.mxu0 0
        %1187 = vmatprep.subr.bf16.mxu0 0
        %1188 = vmatpush1.bf16.msra.mxu0 0
        %1189 = vmatprep.subr.bf16.mxu0 0
        %1190 = vmatpush1.bf16.msra.mxu0 0
        %1191 = vmatprep.subr.bf16.mxu0 0
        %1192 = vmatpush1.bf16.msra.mxu0 0
        %1193 = vmatprep.subr.bf16.mxu0 0
        %1194 = vmatpush1.bf16.msra.mxu0 0
        %1195 = vmatprep.subr.bf16.mxu0 0
        %1196 = vmatpush1.bf16.msra.mxu0 0
        %1197 = vmatprep.subr.bf16.mxu0 0
        %1198 = vmatpush1.bf16.msra.mxu0 0
        %1199 = vmatprep.subr.bf16.mxu0 0
        %1200 = vmatpush1.bf16.msra.mxu0 0
        %1201 = vmatprep.subr.bf16.mxu0 0
        %1202 = vmatpush1.bf16.msra.mxu0 0
        %1203 = vmatprep.subr.bf16.mxu0 0
        %1204 = vmatpush1.bf16.msra.mxu0 0
        %1205 = vmatprep.subr.bf16.mxu0 0
        %1206 = vmatpush1.bf16.msra.mxu0 0
        %1207 = vmatprep.subr.bf16.mxu0 0
        %1208 = vmatpush1.bf16.msra.mxu0 0
        %1209 = vmatprep.subr.bf16.mxu0 0
        %1210 = vmatpush1.bf16.msra.mxu0 0
        %1211 = vmatprep.mubr.bf16.mxu0 0
        %1212 = vmatmul.mubr.bf16.gmra.mrb[0].mxu0 %v551
        %v1213 = vpop.f32.mrb[0].mxu0
        %v1214 = vadd.f32 %v377, %v1213
        %v1215 = vpop.f32.mrb[0].mxu0
        %v1216 = vadd.f32 %v377, %v1215
        %v1217 = vpop.f32.mrb[0].mxu0
        %v1218 = vadd.f32 %v382, %v1217
        %v1219 = vpop.f32.mrb[0].mxu0
        %v1220 = vadd.f32 %v382, %v1219
        %1221 = vdwg.mxu0
        %1222 = vmatprep.subr.bf16.mxu0 %v627
        %1223 = vmatpush1.bf16.msra.mxu0 %v624
        %1224 = vmatprep.subr.bf16.mxu0 0
        %1225 = vmatpush1.bf16.msra.mxu0 0
        %1226 = vmatprep.subr.bf16.mxu0 0
        %1227 = vmatpush1.bf16.msra.mxu0 0
        %1228 = vmatprep.subr.bf16.mxu0 0
        %1229 = vmatpush1.bf16.msra.mxu0 0
        %1230 = vmatprep.subr.bf16.mxu0 0
        %1231 = vmatpush1.bf16.msra.mxu0 0
        %1232 = vmatprep.subr.bf16.mxu0 0
        %1233 = vmatpush1.bf16.msra.mxu0 0
        %1234 = vmatprep.subr.bf16.mxu0 0
        %1235 = vmatpush1.bf16.msra.mxu0 0
        %1236 = vmatprep.subr.bf16.mxu0 0
        %1237 = vmatpush1.bf16.msra.mxu0 0
        %1238 = vmatprep.subr.bf16.mxu0 0
        %1239 = vmatpush1.bf16.msra.mxu0 0
        %1240 = vmatprep.subr.bf16.mxu0 0
        %1241 = vmatpush1.bf16.msra.mxu0 0
        %1242 = vmatprep.subr.bf16.mxu0 0
        %1243 = vmatpush1.bf16.msra.mxu0 0
        %1244 = vmatprep.subr.bf16.mxu0 0
        %1245 = vmatpush1.bf16.msra.mxu0 0
        %1246 = vmatprep.subr.bf16.mxu0 0
        %1247 = vmatpush1.bf16.msra.mxu0 0
        %1248 = vmatprep.subr.bf16.mxu0 0
        %1249 = vmatpush1.bf16.msra.mxu0 0
        %1250 = vmatprep.subr.bf16.mxu0 0
        %1251 = vmatpush1.bf16.msra.mxu0 0
        %1252 = vmatprep.subr.bf16.mxu0 0
        %1253 = vmatpush1.bf16.msra.mxu0 0
        %1254 = vmatprep.mubr.bf16.mxu0 0
        %1255 = vmatmul.mubr.bf16.gmra.mrb[0].mxu0 %v551
        %v1256 = vpop.f32.mrb[0].mxu0
        %v1257 = vadd.f32 %v377, %v1256
        %v1258 = vpop.f32.mrb[0].mxu0
        %v1259 = vadd.f32 %v377, %v1258
        %v1260 = vpop.f32.mrb[0].mxu0
        %v1261 = vadd.f32 %v382, %v1260
        %v1262 = vpop.f32.mrb[0].mxu0
        %v1263 = vadd.f32 %v382, %v1262
        %1264 = vdwg.mxu0
        %1265 = vmatprep.subr.bf16.mxu0 %v633
        %1266 = vmatpush1.bf16.msra.mxu0 %v630
        %1267 = vmatprep.subr.bf16.mxu0 0
        %1268 = vmatpush1.bf16.msra.mxu0 0
        %1269 = vmatprep.subr.bf16.mxu0 0
        %1270 = vmatpush1.bf16.msra.mxu0 0
        %1271 = vmatprep.subr.bf16.mxu0 0
        %1272 = vmatpush1.bf16.msra.mxu0 0
        %1273 = vmatprep.subr.bf16.mxu0 0
        %1274 = vmatpush1.bf16.msra.mxu0 0
        %1275 = vmatprep.subr.bf16.mxu0 0
        %1276 = vmatpush1.bf16.msra.mxu0 0
        %1277 = vmatprep.subr.bf16.mxu0 0
        %1278 = vmatpush1.bf16.msra.mxu0 0
        %1279 = vmatprep.subr.bf16.mxu0 0
        %1280 = vmatpush1.bf16.msra.mxu0 0
        %1281 = vmatprep.subr.bf16.mxu0 0
        %1282 = vmatpush1.bf16.msra.mxu0 0
        %1283 = vmatprep.subr.bf16.mxu0 0
        %1284 = vmatpush1.bf16.msra.mxu0 0
        %1285 = vmatprep.subr.bf16.mxu0 0
        %1286 = vmatpush1.bf16.msra.mxu0 0
        %1287 = vmatprep.subr.bf16.mxu0 0
        %1288 = vmatpush1.bf16.msra.mxu0 0
        %1289 = vmatprep.subr.bf16.mxu0 0
        %1290 = vmatpush1.bf16.msra.mxu0 0
        %1291 = vmatprep.subr.bf16.mxu0 0
        %1292 = vmatpush1.bf16.msra.mxu0 0
        %1293 = vmatprep.subr.bf16.mxu0 0
        %1294 = vmatpush1.bf16.msra.mxu0 0
        %1295 = vmatprep.subr.bf16.mxu0 0
        %1296 = vmatpush1.bf16.msra.mxu0 0
        %1297 = vmatprep.mubr.bf16.mxu0 0
        %1298 = vmatmul.mubr.bf16.gmra.mrb[0].mxu0 %v551
        %v1299 = vpop.f32.mrb[0].mxu0
        %v1300 = vadd.f32 %v377, %v1299
        %v1301 = vpop.f32.mrb[0].mxu0
        %v1302 = vadd.f32 %v377, %v1301
        %v1303 = vpop.f32.mrb[0].mxu0
        %v1304 = vadd.f32 %v382, %v1303
        %v1305 = vpop.f32.mrb[0].mxu0
        %v1306 = vadd.f32 %v382, %v1305
        %1307 = vdwg.mxu0
        %1308 = vmatprep.subr.bf16.mxu0 %v639
        %1309 = vmatpush1.bf16.msra.mxu0 %v636
        %1310 = vmatprep.subr.bf16.mxu0 0
        %1311 = vmatpush1.bf16.msra.mxu0 0
        %1312 = vmatprep.subr.bf16.mxu0 0
        %1313 = vmatpush1.bf16.msra.mxu0 0
        %1314 = vmatprep.subr.bf16.mxu0 0
        %1315 = vmatpush1.bf16.msra.mxu0 0
        %1316 = vmatprep.subr.bf16.mxu0 0
        %1317 = vmatpush1.bf16.msra.mxu0 0
        %1318 = vmatprep.subr.bf16.mxu0 0
        %1319 = vmatpush1.bf16.msra.mxu0 0
        %1320 = vmatprep.subr.bf16.mxu0 0
        %1321 = vmatpush1.bf16.msra.mxu0 0
        %1322 = vmatprep.subr.bf16.mxu0 0
        %1323 = vmatpush1.bf16.msra.mxu0 0
        %1324 = vmatprep.subr.bf16.mxu0 0
        %1325 = vmatpush1.bf16.msra.mxu0 0
        %1326 = vmatprep.subr.bf16.mxu0 0
        %1327 = vmatpush1.bf16.msra.mxu0 0
        %1328 = vmatprep.subr.bf16.mxu0 0
        %1329 = vmatpush1.bf16.msra.mxu0 0
        %1330 = vmatprep.subr.bf16.mxu0 0
        %1331 = vmatpush1.bf16.msra.mxu0 0
        %1332 = vmatprep.subr.bf16.mxu0 0
        %1333 = vmatpush1.bf16.msra.mxu0 0
        %1334 = vmatprep.subr.bf16.mxu0 0
        %1335 = vmatpush1.bf16.msra.mxu0 0
        %1336 = vmatprep.subr.bf16.mxu0 0
        %1337 = vmatpush1.bf16.msra.mxu0 0
        %1338 = vmatprep.subr.bf16.mxu0 0
        %1339 = vmatpush1.bf16.msra.mxu0 0
        %1340 = vmatprep.mubr.bf16.mxu0 0
        %1341 = vmatmul.mubr.bf16.gmra.mrb[0].mxu0 %v551
        %v1342 = vpop.f32.mrb[0].mxu0
        %v1343 = vadd.f32 %v377, %v1342
        %v1344 = vpop.f32.mrb[0].mxu0
        %v1345 = vadd.f32 %v377, %v1344
        %v1346 = vpop.f32.mrb[0].mxu0
        %v1347 = vadd.f32 %v382, %v1346
        %v1348 = vpop.f32.mrb[0].mxu0
        %v1349 = vadd.f32 %v382, %v1348
        %1350 = vdwg.mxu0
        %1351 = vmatprep.subr.bf16.mxu0 %v645
        %1352 = vmatpush1.bf16.msra.mxu0 %v642
        %1353 = vmatprep.subr.bf16.mxu0 0
        %1354 = vmatpush1.bf16.msra.mxu0 0
        %1355 = vmatprep.subr.bf16.mxu0 0
        %1356 = vmatpush1.bf16.msra.mxu0 0
        %1357 = vmatprep.subr.bf16.mxu0 0
        %1358 = vmatpush1.bf16.msra.mxu0 0
        %1359 = vmatprep.subr.bf16.mxu0 0
        %1360 = vmatpush1.bf16.msra.mxu0 0
        %1361 = vmatprep.subr.bf16.mxu0 0
        %1362 = vmatpush1.bf16.msra.mxu0 0
        %1363 = vmatprep.subr.bf16.mxu0 0
        %1364 = vmatpush1.bf16.msra.mxu0 0
        %1365 = vmatprep.subr.bf16.mxu0 0
        %1366 = vmatpush1.bf16.msra.mxu0 0
        %1367 = vmatprep.subr.bf16.mxu0 0
        %1368 = vmatpush1.bf16.msra.mxu0 0
        %1369 = vmatprep.subr.bf16.mxu0 0
        %1370 = vmatpush1.bf16.msra.mxu0 0
        %1371 = vmatprep.subr.bf16.mxu0 0
        %1372 = vmatpush1.bf16.msra.mxu0 0
        %1373 = vmatprep.subr.bf16.mxu0 0
        %1374 = vmatpush1.bf16.msra.mxu0 0
        %1375 = vmatprep.subr.bf16.mxu0 0
        %1376 = vmatpush1.bf16.msra.mxu0 0
        %1377 = vmatprep.subr.bf16.mxu0 0
        %1378 = vmatpush1.bf16.msra.mxu0 0
        %1379 = vmatprep.subr.bf16.mxu0 0
        %1380 = vmatpush1.bf16.msra.mxu0 0
        %1381 = vmatprep.subr.bf16.mxu0 0
        %1382 = vmatpush1.bf16.msra.mxu0 0
        %1383 = vmatprep.mubr.bf16.mxu0 0
        %1384 = vmatmul.mubr.bf16.gmra.mrb[0].mxu0 %v551
        %v1385 = vpop.f32.mrb[0].mxu0
        %v1386 = vadd.f32 %v377, %v1385
        %v1387 = vpop.f32.mrb[0].mxu0
        %v1388 = vadd.f32 %v377, %v1387
        %v1389 = vpop.f32.mrb[0].mxu0
        %v1390 = vadd.f32 %v382, %v1389
        %v1391 = vpop.f32.mrb[0].mxu0
        %v1392 = vadd.f32 %v382, %v1391
        %1393 = vdwg.mxu0
        %1394 = vmatprep.subr.bf16.mxu0 %v651
        %1395 = vmatpush1.bf16.msra.mxu0 %v648
        %1396 = vmatprep.subr.bf16.mxu0 0
        %1397 = vmatpush1.bf16.msra.mxu0 0
        %1398 = vmatprep.subr.bf16.mxu0 0
        %1399 = vmatpush1.bf16.msra.mxu0 0
        %1400 = vmatprep.subr.bf16.mxu0 0
        %1401 = vmatpush1.bf16.msra.mxu0 0
        %1402 = vmatprep.subr.bf16.mxu0 0
        %1403 = vmatpush1.bf16.msra.mxu0 0
        %1404 = vmatprep.subr.bf16.mxu0 0
        %1405 = vmatpush1.bf16.msra.mxu0 0
        %1406 = vmatprep.subr.bf16.mxu0 0
        %1407 = vmatpush1.bf16.msra.mxu0 0
        %1408 = vmatprep.subr.bf16.mxu0 0
        %1409 = vmatpush1.bf16.msra.mxu0 0
        %1410 = vmatprep.subr.bf16.mxu0 0
        %1411 = vmatpush1.bf16.msra.mxu0 0
        %1412 = vmatprep.subr.bf16.mxu0 0
        %1413 = vmatpush1.bf16.msra.mxu0 0
        %1414 = vmatprep.subr.bf16.mxu0 0
        %1415 = vmatpush1.bf16.msra.mxu0 0
        %1416 = vmatprep.subr.bf16.mxu0 0
        %1417 = vmatpush1.bf16.msra.mxu0 0
        %1418 = vmatprep.subr.bf16.mxu0 0
        %1419 = vmatpush1.bf16.msra.mxu0 0
        %1420 = vmatprep.subr.bf16.mxu0 0
        %1421 = vmatpush1.bf16.msra.mxu0 0
        %1422 = vmatprep.subr.bf16.mxu0 0
        %1423 = vmatpush1.bf16.msra.mxu0 0
        %1424 = vmatprep.subr.bf16.mxu0 0
        %1425 = vmatpush1.bf16.msra.mxu0 0
        %1426 = vmatprep.mubr.bf16.mxu0 0
        %1427 = vmatmul.mubr.bf16.gmra.mrb[0].mxu0 %v551
        %v1428 = vpop.f32.mrb[0].mxu0
        %v1429 = vadd.f32 %v377, %v1428
        %v1430 = vpop.f32.mrb[0].mxu0
        %v1431 = vadd.f32 %v377, %v1430
        %v1432 = vpop.f32.mrb[0].mxu0
        %v1433 = vadd.f32 %v382, %v1432
        %v1434 = vpop.f32.mrb[0].mxu0
        %v1435 = vadd.f32 %v382, %v1434
        %1436 = vdwg.mxu0
        %1437 = vmatprep.subr.bf16.mxu0 %v657
        %1438 = vmatpush1.bf16.msra.mxu0 %v654
        %1439 = vmatprep.subr.bf16.mxu0 0
        %1440 = vmatpush1.bf16.msra.mxu0 0
        %1441 = vmatprep.subr.bf16.mxu0 0
        %1442 = vmatpush1.bf16.msra.mxu0 0
        %1443 = vmatprep.subr.bf16.mxu0 0
        %1444 = vmatpush1.bf16.msra.mxu0 0
        %1445 = vmatprep.subr.bf16.mxu0 0
        %1446 = vmatpush1.bf16.msra.mxu0 0
        %1447 = vmatprep.subr.bf16.mxu0 0
        %1448 = vmatpush1.bf16.msra.mxu0 0
        %1449 = vmatprep.subr.bf16.mxu0 0
        %1450 = vmatpush1.bf16.msra.mxu0 0
        %1451 = vmatprep.subr.bf16.mxu0 0
        %1452 = vmatpush1.bf16.msra.mxu0 0
        %1453 = vmatprep.subr.bf16.mxu0 0
        %1454 = vmatpush1.bf16.msra.mxu0 0
        %1455 = vmatprep.subr.bf16.mxu0 0
        %1456 = vmatpush1.bf16.msra.mxu0 0
        %1457 = vmatprep.subr.bf16.mxu0 0
        %1458 = vmatpush1.bf16.msra.mxu0 0
        %1459 = vmatprep.subr.bf16.mxu0 0
        %1460 = vmatpush1.bf16.msra.mxu0 0
        %1461 = vmatprep.subr.bf16.mxu0 0
        %1462 = vmatpush1.bf16.msra.mxu0 0
        %1463 = vmatprep.subr.bf16.mxu0 0
        %1464 = vmatpush1.bf16.msra.mxu0 0
        %1465 = vmatprep.subr.bf16.mxu0 0
        %1466 = vmatpush1.bf16.msra.mxu0 0
        %1467 = vmatprep.subr.bf16.mxu0 0
        %1468 = vmatpush1.bf16.msra.mxu0 0
        %1469 = vmatprep.mubr.bf16.mxu0 0
        %1470 = vmatmul.mubr.bf16.gmra.mrb[0].mxu0 %v551
        %v1471 = vpop.f32.mrb[0].mxu0
        %v1472 = vadd.f32 %v377, %v1471
        %v1473 = vpop.f32.mrb[0].mxu0
        %v1474 = vadd.f32 %v377, %v1473
        %v1475 = vpop.f32.mrb[0].mxu0
        %v1476 = vadd.f32 %v382, %v1475
        %v1477 = vpop.f32.mrb[0].mxu0
        %v1478 = vadd.f32 %v382, %v1477
        %1479 = vdwg.mxu0
        %1480 = vmatprep.subr.bf16.mxu0 %v663
        %1481 = vmatpush1.bf16.msra.mxu0 %v660
        %1482 = vmatprep.subr.bf16.mxu0 0
        %1483 = vmatpush1.bf16.msra.mxu0 0
        %1484 = vmatprep.subr.bf16.mxu0 0
        %1485 = vmatpush1.bf16.msra.mxu0 0
        %1486 = vmatprep.subr.bf16.mxu0 0
        %1487 = vmatpush1.bf16.msra.mxu0 0
        %1488 = vmatprep.subr.bf16.mxu0 0
        %1489 = vmatpush1.bf16.msra.mxu0 0
        %1490 = vmatprep.subr.bf16.mxu0 0
        %1491 = vmatpush1.bf16.msra.mxu0 0
        %1492 = vmatprep.subr.bf16.mxu0 0
        %1493 = vmatpush1.bf16.msra.mxu0 0
        %1494 = vmatprep.subr.bf16.mxu0 0
        %1495 = vmatpush1.bf16.msra.mxu0 0
        %1496 = vmatprep.subr.bf16.mxu0 0
        %1497 = vmatpush1.bf16.msra.mxu0 0
        %1498 = vmatprep.subr.bf16.mxu0 0
        %1499 = vmatpush1.bf16.msra.mxu0 0
        %1500 = vmatprep.subr.bf16.mxu0 0
        %1501 = vmatpush1.bf16.msra.mxu0 0
        %1502 = vmatprep.subr.bf16.mxu0 0
        %1503 = vmatpush1.bf16.msra.mxu0 0
        %1504 = vmatprep.subr.bf16.mxu0 0
        %1505 = vmatpush1.bf16.msra.mxu0 0
        %1506 = vmatprep.subr.bf16.mxu0 0
        %1507 = vmatpush1.bf16.msra.mxu0 0
        %1508 = vmatprep.subr.bf16.mxu0 0
        %1509 = vmatpush1.bf16.msra.mxu0 0
        %1510 = vmatprep.subr.bf16.mxu0 0
        %1511 = vmatpush1.bf16.msra.mxu0 0
        %1512 = vmatprep.mubr.bf16.mxu0 0
        %1513 = vmatmul.mubr.bf16.gmra.mrb[0].mxu0 %v551
        %v1514 = vpop.f32.mrb[0].mxu0
        %v1515 = vadd.f32 %v377, %v1514
        %v1516 = vpop.f32.mrb[0].mxu0
        %v1517 = vadd.f32 %v377, %v1516
        %v1518 = vpop.f32.mrb[0].mxu0
        %v1519 = vadd.f32 %v382, %v1518
        %v1520 = vpop.f32.mrb[0].mxu0
        %v1521 = vadd.f32 %v382, %v1520
        %1522 = vdwg.mxu0
        %1523 = vmatprep.subr.bf16.mxu0 %v669
        %1524 = vmatpush1.bf16.msra.mxu0 %v666
        %1525 = vmatprep.subr.bf16.mxu0 0
        %1526 = vmatpush1.bf16.msra.mxu0 0
        %1527 = vmatprep.subr.bf16.mxu0 0
        %1528 = vmatpush1.bf16.msra.mxu0 0
        %1529 = vmatprep.subr.bf16.mxu0 0
        %1530 = vmatpush1.bf16.msra.mxu0 0
        %1531 = vmatprep.subr.bf16.mxu0 0
        %1532 = vmatpush1.bf16.msra.mxu0 0
        %1533 = vmatprep.subr.bf16.mxu0 0
        %1534 = vmatpush1.bf16.msra.mxu0 0
        %1535 = vmatprep.subr.bf16.mxu0 0
        %1536 = vmatpush1.bf16.msra.mxu0 0
        %1537 = vmatprep.subr.bf16.mxu0 0
        %1538 = vmatpush1.bf16.msra.mxu0 0
        %1539 = vmatprep.subr.bf16.mxu0 0
        %1540 = vmatpush1.bf16.msra.mxu0 0
        %1541 = vmatprep.subr.bf16.mxu0 0
        %1542 = vmatpush1.bf16.msra.mxu0 0
        %1543 = vmatprep.subr.bf16.mxu0 0
        %1544 = vmatpush1.bf16.msra.mxu0 0
        %1545 = vmatprep.subr.bf16.mxu0 0
        %1546 = vmatpush1.bf16.msra.mxu0 0
        %1547 = vmatprep.subr.bf16.mxu0 0
        %1548 = vmatpush1.bf16.msra.mxu0 0
        %1549 = vmatprep.subr.bf16.mxu0 0
        %1550 = vmatpush1.bf16.msra.mxu0 0
        %1551 = vmatprep.subr.bf16.mxu0 0
        %1552 = vmatpush1.bf16.msra.mxu0 0
        %1553 = vmatprep.subr.bf16.mxu0 0
        %1554 = vmatpush1.bf16.msra.mxu0 0
        %1555 = vmatprep.mubr.bf16.mxu0 0
        %1556 = vmatmul.mubr.bf16.gmra.mrb[0].mxu0 %v551
        %v1557 = vpop.f32.mrb[0].mxu0
        %v1558 = vadd.f32 %v377, %v1557
        %v1559 = vpop.f32.mrb[0].mxu0
        %v1560 = vadd.f32 %v377, %v1559
        %v1561 = vpop.f32.mrb[0].mxu0
        %v1562 = vadd.f32 %v382, %v1561
        %v1563 = vpop.f32.mrb[0].mxu0
        %v1564 = vadd.f32 %v382, %v1563
        %1565 = vdwg.mxu0
        %1566 = vmatprep.subr.bf16.mxu0 %v675
        %1567 = vmatpush1.bf16.msra.mxu0 %v672
        %1568 = vmatprep.subr.bf16.mxu0 0
        %1569 = vmatpush1.bf16.msra.mxu0 0
        %1570 = vmatprep.subr.bf16.mxu0 0
        %1571 = vmatpush1.bf16.msra.mxu0 0
        %1572 = vmatprep.subr.bf16.mxu0 0
        %1573 = vmatpush1.bf16.msra.mxu0 0
        %1574 = vmatprep.subr.bf16.mxu0 0
        %1575 = vmatpush1.bf16.msra.mxu0 0
        %1576 = vmatprep.subr.bf16.mxu0 0
        %1577 = vmatpush1.bf16.msra.mxu0 0
        %1578 = vmatprep.subr.bf16.mxu0 0
        %1579 = vmatpush1.bf16.msra.mxu0 0
        %1580 = vmatprep.subr.bf16.mxu0 0
        %1581 = vmatpush1.bf16.msra.mxu0 0
        %1582 = vmatprep.subr.bf16.mxu0 0
        %1583 = vmatpush1.bf16.msra.mxu0 0
        %1584 = vmatprep.subr.bf16.mxu0 0
        %1585 = vmatpush1.bf16.msra.mxu0 0
        %1586 = vmatprep.subr.bf16.mxu0 0
        %1587 = vmatpush1.bf16.msra.mxu0 0
        %1588 = vmatprep.subr.bf16.mxu0 0
        %1589 = vmatpush1.bf16.msra.mxu0 0
        %1590 = vmatprep.subr.bf16.mxu0 0
        %1591 = vmatpush1.bf16.msra.mxu0 0
        %1592 = vmatprep.subr.bf16.mxu0 0
        %1593 = vmatpush1.bf16.msra.mxu0 0
        %1594 = vmatprep.subr.bf16.mxu0 0
        %1595 = vmatpush1.bf16.msra.mxu0 0
        %1596 = vmatprep.subr.bf16.mxu0 0
        %1597 = vmatpush1.bf16.msra.mxu0 0
        %1598 = vmatprep.mubr.bf16.mxu0 0
        %1599 = vmatmul.mubr.bf16.gmra.mrb[0].mxu0 %v551
        %v1600 = vpop.f32.mrb[0].mxu0
        %v1601 = vadd.f32 %v377, %v1600
        %v1602 = vpop.f32.mrb[0].mxu0
        %v1603 = vadd.f32 %v377, %v1602
        %v1604 = vpop.f32.mrb[0].mxu0
        %v1605 = vadd.f32 %v382, %v1604
        %v1606 = vpop.f32.mrb[0].mxu0
        %v1607 = vadd.f32 %v382, %v1606
        %1608 = vdwg.mxu0
        %1609 = vmatprep.subr.bf16.mxu0 %v681
        %1610 = vmatpush1.bf16.msra.mxu0 %v678
        %1611 = vmatprep.subr.bf16.mxu0 0
        %1612 = vmatpush1.bf16.msra.mxu0 0
        %1613 = vmatprep.subr.bf16.mxu0 0
        %1614 = vmatpush1.bf16.msra.mxu0 0
        %1615 = vmatprep.subr.bf16.mxu0 0
        %1616 = vmatpush1.bf16.msra.mxu0 0
        %1617 = vmatprep.subr.bf16.mxu0 0
        %1618 = vmatpush1.bf16.msra.mxu0 0
        %1619 = vmatprep.subr.bf16.mxu0 0
        %1620 = vmatpush1.bf16.msra.mxu0 0
        %1621 = vmatprep.subr.bf16.mxu0 0
        %1622 = vmatpush1.bf16.msra.mxu0 0
        %1623 = vmatprep.subr.bf16.mxu0 0
        %1624 = vmatpush1.bf16.msra.mxu0 0
        %1625 = vmatprep.subr.bf16.mxu0 0
        %1626 = vmatpush1.bf16.msra.mxu0 0
        %1627 = vmatprep.subr.bf16.mxu0 0
        %1628 = vmatpush1.bf16.msra.mxu0 0
        %1629 = vmatprep.subr.bf16.mxu0 0
        %1630 = vmatpush1.bf16.msra.mxu0 0
        %1631 = vmatprep.subr.bf16.mxu0 0
        %1632 = vmatpush1.bf16.msra.mxu0 0
        %1633 = vmatprep.subr.bf16.mxu0 0
        %1634 = vmatpush1.bf16.msra.mxu0 0
        %1635 = vmatprep.subr.bf16.mxu0 0
        %1636 = vmatpush1.bf16.msra.mxu0 0
        %1637 = vmatprep.subr.bf16.mxu0 0
        %1638 = vmatpush1.bf16.msra.mxu0 0
        %1639 = vmatprep.subr.bf16.mxu0 0
        %1640 = vmatpush1.bf16.msra.mxu0 0
        %1641 = vmatprep.mubr.bf16.mxu0 0
        %1642 = vmatmul.mubr.bf16.gmra.mrb[0].mxu0 %v551
        %v1643 = vpop.f32.mrb[0].mxu0
        %v1644 = vadd.f32 %v377, %v1643
        %v1645 = vpop.f32.mrb[0].mxu0
        %v1646 = vadd.f32 %v377, %v1645
        %v1647 = vpop.f32.mrb[0].mxu0
        %v1648 = vadd.f32 %v382, %v1647
        %v1649 = vpop.f32.mrb[0].mxu0
        %v1650 = vadd.f32 %v382, %v1649
        %1651 = vdwg.mxu0
        %1652 = vmatprep.subr.bf16.mxu0 %v687
        %1653 = vmatpush1.bf16.msra.mxu0 %v684
        %1654 = vmatprep.subr.bf16.mxu0 0
        %1655 = vmatpush1.bf16.msra.mxu0 0
        %1656 = vmatprep.subr.bf16.mxu0 0
        %1657 = vmatpush1.bf16.msra.mxu0 0
        %1658 = vmatprep.subr.bf16.mxu0 0
        %1659 = vmatpush1.bf16.msra.mxu0 0
        %1660 = vmatprep.subr.bf16.mxu0 0
        %1661 = vmatpush1.bf16.msra.mxu0 0
        %1662 = vmatprep.subr.bf16.mxu0 0
        %1663 = vmatpush1.bf16.msra.mxu0 0
        %1664 = vmatprep.subr.bf16.mxu0 0
        %1665 = vmatpush1.bf16.msra.mxu0 0
        %1666 = vmatprep.subr.bf16.mxu0 0
        %1667 = vmatpush1.bf16.msra.mxu0 0
        %1668 = vmatprep.subr.bf16.mxu0 0
        %1669 = vmatpush1.bf16.msra.mxu0 0
        %1670 = vmatprep.subr.bf16.mxu0 0
        %1671 = vmatpush1.bf16.msra.mxu0 0
        %1672 = vmatprep.subr.bf16.mxu0 0
        %1673 = vmatpush1.bf16.msra.mxu0 0
        %1674 = vmatprep.subr.bf16.mxu0 0
        %1675 = vmatpush1.bf16.msra.mxu0 0
        %1676 = vmatprep.subr.bf16.mxu0 0
        %1677 = vmatpush1.bf16.msra.mxu0 0
        %1678 = vmatprep.subr.bf16.mxu0 0
        %1679 = vmatpush1.bf16.msra.mxu0 0
        %1680 = vmatprep.subr.bf16.mxu0 0
        %1681 = vmatpush1.bf16.msra.mxu0 0
        %1682 = vmatprep.subr.bf16.mxu0 0
        %1683 = vmatpush1.bf16.msra.mxu0 0
        %1684 = vmatprep.mubr.bf16.mxu0 0
        %1685 = vmatmul.mubr.bf16.gmra.mrb[0].mxu0 %v551
        %v1686 = vpop.f32.mrb[0].mxu0
        %v1687 = vadd.f32 %v377, %v1686
        %v1688 = vpop.f32.mrb[0].mxu0
        %v1689 = vadd.f32 %v377, %v1688
        %v1690 = vpop.f32.mrb[0].mxu0
        %v1691 = vadd.f32 %v382, %v1690
        %v1692 = vpop.f32.mrb[0].mxu0
        %v1693 = vadd.f32 %v382, %v1692
        %1694 = vdwg.mxu0
        %1695 = vmatprep.subr.bf16.mxu0 %v693
        %1696 = vmatpush1.bf16.msra.mxu0 %v690
        %1697 = vmatprep.subr.bf16.mxu0 0
        %1698 = vmatpush1.bf16.msra.mxu0 0
        %1699 = vmatprep.subr.bf16.mxu0 0
        %1700 = vmatpush1.bf16.msra.mxu0 0
        %1701 = vmatprep.subr.bf16.mxu0 0
        %1702 = vmatpush1.bf16.msra.mxu0 0
        %1703 = vmatprep.subr.bf16.mxu0 0
        %1704 = vmatpush1.bf16.msra.mxu0 0
        %1705 = vmatprep.subr.bf16.mxu0 0
        %1706 = vmatpush1.bf16.msra.mxu0 0
        %1707 = vmatprep.subr.bf16.mxu0 0
        %1708 = vmatpush1.bf16.msra.mxu0 0
        %1709 = vmatprep.subr.bf16.mxu0 0
        %1710 = vmatpush1.bf16.msra.mxu0 0
        %1711 = vmatprep.subr.bf16.mxu0 0
        %1712 = vmatpush1.bf16.msra.mxu0 0
        %1713 = vmatprep.subr.bf16.mxu0 0
        %1714 = vmatpush1.bf16.msra.mxu0 0
        %1715 = vmatprep.subr.bf16.mxu0 0
        %1716 = vmatpush1.bf16.msra.mxu0 0
        %1717 = vmatprep.subr.bf16.mxu0 0
        %1718 = vmatpush1.bf16.msra.mxu0 0
        %1719 = vmatprep.subr.bf16.mxu0 0
        %1720 = vmatpush1.bf16.msra.mxu0 0
        %1721 = vmatprep.subr.bf16.mxu0 0
        %1722 = vmatpush1.bf16.msra.mxu0 0
        %1723 = vmatprep.subr.bf16.mxu0 0
        %1724 = vmatpush1.bf16.msra.mxu0 0
        %1725 = vmatprep.subr.bf16.mxu0 0
        %1726 = vmatpush1.bf16.msra.mxu0 0
        %1727 = vmatprep.mubr.bf16.mxu0 0
        %1728 = vmatmul.mubr.bf16.gmra.mrb[0].mxu0 %v551
        %v1729 = vpop.f32.mrb[0].mxu0
        %v1730 = vadd.f32 %v377, %v1729
        %v1731 = vpop.f32.mrb[0].mxu0
        %v1732 = vadd.f32 %v377, %v1731
        %v1733 = vpop.f32.mrb[0].mxu0
        %v1734 = vadd.f32 %v382, %v1733
        %v1735 = vpop.f32.mrb[0].mxu0
        %v1736 = vadd.f32 %v382, %v1735
        %1737 = vdwg.mxu0
        %1738 = vmatprep.subr.bf16.mxu0 %v699
        %1739 = vmatpush1.bf16.msra.mxu0 %v696
        %1740 = vmatprep.subr.bf16.mxu0 0
        %1741 = vmatpush1.bf16.msra.mxu0 0
        %1742 = vmatprep.subr.bf16.mxu0 0
        %1743 = vmatpush1.bf16.msra.mxu0 0
        %1744 = vmatprep.subr.bf16.mxu0 0
        %1745 = vmatpush1.bf16.msra.mxu0 0
        %1746 = vmatprep.subr.bf16.mxu0 0
        %1747 = vmatpush1.bf16.msra.mxu0 0
        %1748 = vmatprep.subr.bf16.mxu0 0
        %1749 = vmatpush1.bf16.msra.mxu0 0
        %1750 = vmatprep.subr.bf16.mxu0 0
        %1751 = vmatpush1.bf16.msra.mxu0 0
        %1752 = vmatprep.subr.bf16.mxu0 0
        %1753 = vmatpush1.bf16.msra.mxu0 0
        %1754 = vmatprep.subr.bf16.mxu0 0
        %1755 = vmatpush1.bf16.msra.mxu0 0
        %1756 = vmatprep.subr.bf16.mxu0 0
        %1757 = vmatpush1.bf16.msra.mxu0 0
        %1758 = vmatprep.subr.bf16.mxu0 0
        %1759 = vmatpush1.bf16.msra.mxu0 0
        %1760 = vmatprep.subr.bf16.mxu0 0
        %1761 = vmatpush1.bf16.msra.mxu0 0
        %1762 = vmatprep.subr.bf16.mxu0 0
        %1763 = vmatpush1.bf16.msra.mxu0 0
        %1764 = vmatprep.subr.bf16.mxu0 0
        %1765 = vmatpush1.bf16.msra.mxu0 0
        %1766 = vmatprep.subr.bf16.mxu0 0
        %1767 = vmatpush1.bf16.msra.mxu0 0
        %1768 = vmatprep.subr.bf16.mxu0 0
        %1769 = vmatpush1.bf16.msra.mxu0 0
        %1770 = vmatprep.mubr.bf16.mxu0 0
        %1771 = vmatmul.mubr.bf16.gmra.mrb[0].mxu0 %v551
        %v1772 = vpop.f32.mrb[0].mxu0
        %v1773 = vadd.f32 %v377, %v1772
        %v1774 = vpop.f32.mrb[0].mxu0
        %v1775 = vadd.f32 %v377, %v1774
        %v1776 = vpop.f32.mrb[0].mxu0
        %v1777 = vadd.f32 %v382, %v1776
        %v1778 = vpop.f32.mrb[0].mxu0
        %v1779 = vadd.f32 %v382, %v1778
        %1780 = vdwg.mxu0
        %1781 = vmatprep.subr.bf16.mxu0 %v705
        %1782 = vmatpush1.bf16.msra.mxu0 %v702
        %1783 = vmatprep.subr.bf16.mxu0 0
        %1784 = vmatpush1.bf16.msra.mxu0 0
        %1785 = vmatprep.subr.bf16.mxu0 0
        %1786 = vmatpush1.bf16.msra.mxu0 0
        %1787 = vmatprep.subr.bf16.mxu0 0
        %1788 = vmatpush1.bf16.msra.mxu0 0
        %1789 = vmatprep.subr.bf16.mxu0 0
        %1790 = vmatpush1.bf16.msra.mxu0 0
        %1791 = vmatprep.subr.bf16.mxu0 0
        %1792 = vmatpush1.bf16.msra.mxu0 0
        %1793 = vmatprep.subr.bf16.mxu0 0
        %1794 = vmatpush1.bf16.msra.mxu0 0
        %1795 = vmatprep.subr.bf16.mxu0 0
        %1796 = vmatpush1.bf16.msra.mxu0 0
        %1797 = vmatprep.subr.bf16.mxu0 0
        %1798 = vmatpush1.bf16.msra.mxu0 0
        %1799 = vmatprep.subr.bf16.mxu0 0
        %1800 = vmatpush1.bf16.msra.mxu0 0
        %1801 = vmatprep.subr.bf16.mxu0 0
        %1802 = vmatpush1.bf16.msra.mxu0 0
        %1803 = vmatprep.subr.bf16.mxu0 0
        %1804 = vmatpush1.bf16.msra.mxu0 0
        %1805 = vmatprep.subr.bf16.mxu0 0
        %1806 = vmatpush1.bf16.msra.mxu0 0
        %1807 = vmatprep.subr.bf16.mxu0 0
        %1808 = vmatpush1.bf16.msra.mxu0 0
        %1809 = vmatprep.subr.bf16.mxu0 0
        %1810 = vmatpush1.bf16.msra.mxu0 0
        %1811 = vmatprep.subr.bf16.mxu0 0
        %1812 = vmatpush1.bf16.msra.mxu0 0
        %1813 = vmatprep.mubr.bf16.mxu0 0
        %1814 = vmatmul.mubr.bf16.gmra.mrb[0].mxu0 %v551
        %v1815 = vpop.f32.mrb[0].mxu0
        %v1816 = vadd.f32 %v377, %v1815
        %v1817 = vpop.f32.mrb[0].mxu0
        %v1818 = vadd.f32 %v377, %v1817
        %v1819 = vpop.f32.mrb[0].mxu0
        %v1820 = vadd.f32 %v382, %v1819
        %v1821 = vpop.f32.mrb[0].mxu0
        %v1822 = vadd.f32 %v382, %v1821
        %1823 = vdwg.mxu0
        %1824 = vmatprep.subr.bf16.mxu0 %v711
        %1825 = vmatpush1.bf16.msra.mxu0 %v708
        %1826 = vmatprep.subr.bf16.mxu0 0
        %1827 = vmatpush1.bf16.msra.mxu0 0
        %1828 = vmatprep.subr.bf16.mxu0 0
        %1829 = vmatpush1.bf16.msra.mxu0 0
        %1830 = vmatprep.subr.bf16.mxu0 0
        %1831 = vmatpush1.bf16.msra.mxu0 0
        %1832 = vmatprep.subr.bf16.mxu0 0
        %1833 = vmatpush1.bf16.msra.mxu0 0
        %1834 = vmatprep.subr.bf16.mxu0 0
        %1835 = vmatpush1.bf16.msra.mxu0 0
        %1836 = vmatprep.subr.bf16.mxu0 0
        %1837 = vmatpush1.bf16.msra.mxu0 0
        %1838 = vmatprep.subr.bf16.mxu0 0
        %1839 = vmatpush1.bf16.msra.mxu0 0
        %1840 = vmatprep.subr.bf16.mxu0 0
        %1841 = vmatpush1.bf16.msra.mxu0 0
        %1842 = vmatprep.subr.bf16.mxu0 0
        %1843 = vmatpush1.bf16.msra.mxu0 0
        %1844 = vmatprep.subr.bf16.mxu0 0
        %1845 = vmatpush1.bf16.msra.mxu0 0
        %1846 = vmatprep.subr.bf16.mxu0 0
        %1847 = vmatpush1.bf16.msra.mxu0 0
        %1848 = vmatprep.subr.bf16.mxu0 0
        %1849 = vmatpush1.bf16.msra.mxu0 0
        %1850 = vmatprep.subr.bf16.mxu0 0
        %1851 = vmatpush1.bf16.msra.mxu0 0
        %1852 = vmatprep.subr.bf16.mxu0 0
        %1853 = vmatpush1.bf16.msra.mxu0 0
        %1854 = vmatprep.subr.bf16.mxu0 0
        %1855 = vmatpush1.bf16.msra.mxu0 0
        %1856 = vmatprep.mubr.bf16.mxu0 0
        %1857 = vmatmul.mubr.bf16.gmra.mrb[0].mxu0 %v551
        %v1858 = vpop.f32.mrb[0].mxu0
        %v1859 = vadd.f32 %v377, %v1858
        %v1860 = vpop.f32.mrb[0].mxu0
        %v1861 = vadd.f32 %v377, %v1860
        %v1862 = vpop.f32.mrb[0].mxu0
        %v1863 = vadd.f32 %v382, %v1862
        %v1864 = vpop.f32.mrb[0].mxu0
        %v1865 = vadd.f32 %v382, %v1864
        %1866 = vdwg.mxu0
        %1867 = vmatprep.subr.bf16.mxu0 %v717
        %1868 = vmatpush1.bf16.msra.mxu0 %v714
        %1869 = vmatprep.subr.bf16.mxu0 0
        %1870 = vmatpush1.bf16.msra.mxu0 0
        %1871 = vmatprep.subr.bf16.mxu0 0
        %1872 = vmatpush1.bf16.msra.mxu0 0
        %1873 = vmatprep.subr.bf16.mxu0 0
        %1874 = vmatpush1.bf16.msra.mxu0 0
        %1875 = vmatprep.subr.bf16.mxu0 0
        %1876 = vmatpush1.bf16.msra.mxu0 0
        %1877 = vmatprep.subr.bf16.mxu0 0
        %1878 = vmatpush1.bf16.msra.mxu0 0
        %1879 = vmatprep.subr.bf16.mxu0 0
        %1880 = vmatpush1.bf16.msra.mxu0 0
        %1881 = vmatprep.subr.bf16.mxu0 0
        %1882 = vmatpush1.bf16.msra.mxu0 0
        %1883 = vmatprep.subr.bf16.mxu0 0
        %1884 = vmatpush1.bf16.msra.mxu0 0
        %1885 = vmatprep.subr.bf16.mxu0 0
        %1886 = vmatpush1.bf16.msra.mxu0 0
        %1887 = vmatprep.subr.bf16.mxu0 0
        %1888 = vmatpush1.bf16.msra.mxu0 0
        %1889 = vmatprep.subr.bf16.mxu0 0
        %1890 = vmatpush1.bf16.msra.mxu0 0
        %1891 = vmatprep.subr.bf16.mxu0 0
        %1892 = vmatpush1.bf16.msra.mxu0 0
        %1893 = vmatprep.subr.bf16.mxu0 0
        %1894 = vmatpush1.bf16.msra.mxu0 0
        %1895 = vmatprep.subr.bf16.mxu0 0
        %1896 = vmatpush1.bf16.msra.mxu0 0
        %1897 = vmatprep.subr.bf16.mxu0 0
        %1898 = vmatpush1.bf16.msra.mxu0 0
        %1899 = vmatprep.mubr.bf16.mxu0 0
        %1900 = vmatmul.mubr.bf16.gmra.mrb[0].mxu0 %v551
        %v1901 = vpop.f32.mrb[0].mxu0
        %v1902 = vadd.f32 %v377, %v1901
        %v1903 = vpop.f32.mrb[0].mxu0
        %v1904 = vadd.f32 %v377, %v1903
        %v1905 = vpop.f32.mrb[0].mxu0
        %v1906 = vadd.f32 %v382, %v1905
        %v1907 = vpop.f32.mrb[0].mxu0
        %v1908 = vadd.f32 %v382, %v1907
        %1909 = vdwg.mxu0
        %1910 = vmatprep.subr.bf16.mxu0 %v723
        %1911 = vmatpush1.bf16.msra.mxu0 %v720
        %1912 = vmatprep.subr.bf16.mxu0 0
        %1913 = vmatpush1.bf16.msra.mxu0 0
        %1914 = vmatprep.subr.bf16.mxu0 0
        %1915 = vmatpush1.bf16.msra.mxu0 0
        %1916 = vmatprep.subr.bf16.mxu0 0
        %1917 = vmatpush1.bf16.msra.mxu0 0
        %1918 = vmatprep.subr.bf16.mxu0 0
        %1919 = vmatpush1.bf16.msra.mxu0 0
        %1920 = vmatprep.subr.bf16.mxu0 0
        %1921 = vmatpush1.bf16.msra.mxu0 0
        %1922 = vmatprep.subr.bf16.mxu0 0
        %1923 = vmatpush1.bf16.msra.mxu0 0
        %1924 = vmatprep.subr.bf16.mxu0 0
        %1925 = vmatpush1.bf16.msra.mxu0 0
        %1926 = vmatprep.subr.bf16.mxu0 0
        %1927 = vmatpush1.bf16.msra.mxu0 0
        %1928 = vmatprep.subr.bf16.mxu0 0
        %1929 = vmatpush1.bf16.msra.mxu0 0
        %1930 = vmatprep.subr.bf16.mxu0 0
        %1931 = vmatpush1.bf16.msra.mxu0 0
        %1932 = vmatprep.subr.bf16.mxu0 0
        %1933 = vmatpush1.bf16.msra.mxu0 0
        %1934 = vmatprep.subr.bf16.mxu0 0
        %1935 = vmatpush1.bf16.msra.mxu0 0
        %1936 = vmatprep.subr.bf16.mxu0 0
        %1937 = vmatpush1.bf16.msra.mxu0 0
        %1938 = vmatprep.subr.bf16.mxu0 0
        %1939 = vmatpush1.bf16.msra.mxu0 0
        %1940 = vmatprep.subr.bf16.mxu0 0
        %1941 = vmatpush1.bf16.msra.mxu0 0
        %1942 = vmatprep.mubr.bf16.mxu0 0
        %1943 = vmatmul.mubr.bf16.gmra.mrb[0].mxu0 %v551
        %v1944 = vpop.f32.mrb[0].mxu0
        %v1945 = vadd.f32 %v377, %v1944
        %v1946 = vpop.f32.mrb[0].mxu0
        %v1947 = vadd.f32 %v377, %v1946
        %v1948 = vpop.f32.mrb[0].mxu0
        %v1949 = vadd.f32 %v382, %v1948
        %v1950 = vpop.f32.mrb[0].mxu0
        %v1951 = vadd.f32 %v382, %v1950
        %1952 = vdwg.mxu0
        %1953 = vmatprep.subr.bf16.mxu0 %v729
        %1954 = vmatpush1.bf16.msra.mxu0 %v726
        %1955 = vmatprep.subr.bf16.mxu0 0
        %1956 = vmatpush1.bf16.msra.mxu0 0
        %1957 = vmatprep.subr.bf16.mxu0 0
        %1958 = vmatpush1.bf16.msra.mxu0 0
        %1959 = vmatprep.subr.bf16.mxu0 0
        %1960 = vmatpush1.bf16.msra.mxu0 0
        %1961 = vmatprep.subr.bf16.mxu0 0
        %1962 = vmatpush1.bf16.msra.mxu0 0
        %1963 = vmatprep.subr.bf16.mxu0 0
        %1964 = vmatpush1.bf16.msra.mxu0 0
        %1965 = vmatprep.subr.bf16.mxu0 0
        %1966 = vmatpush1.bf16.msra.mxu0 0
        %1967 = vmatprep.subr.bf16.mxu0 0
        %1968 = vmatpush1.bf16.msra.mxu0 0
        %1969 = vmatprep.subr.bf16.mxu0 0
        %1970 = vmatpush1.bf16.msra.mxu0 0
        %1971 = vmatprep.subr.bf16.mxu0 0
        %1972 = vmatpush1.bf16.msra.mxu0 0
        %1973 = vmatprep.subr.bf16.mxu0 0
        %1974 = vmatpush1.bf16.msra.mxu0 0
        %1975 = vmatprep.subr.bf16.mxu0 0
        %1976 = vmatpush1.bf16.msra.mxu0 0
        %1977 = vmatprep.subr.bf16.mxu0 0
        %1978 = vmatpush1.bf16.msra.mxu0 0
        %1979 = vmatprep.subr.bf16.mxu0 0
        %1980 = vmatpush1.bf16.msra.mxu0 0
        %1981 = vmatprep.subr.bf16.mxu0 0
        %1982 = vmatpush1.bf16.msra.mxu0 0
        %1983 = vmatprep.subr.bf16.mxu0 0
        %1984 = vmatpush1.bf16.msra.mxu0 0
        %1985 = vmatprep.mubr.bf16.mxu0 0
        %1986 = vmatmul.mubr.bf16.gmra.mrb[0].mxu0 %v551
        %v1987 = vpop.f32.mrb[0].mxu0
        %v1988 = vadd.f32 %v377, %v1987
        %v1989 = vpop.f32.mrb[0].mxu0
        %v1990 = vadd.f32 %v377, %v1989
        %v1991 = vpop.f32.mrb[0].mxu0
        %v1992 = vadd.f32 %v382, %v1991
        %v1993 = vpop.f32.mrb[0].mxu0
        %v1994 = vadd.f32 %v382, %v1993
        %1995 = vdwg.mxu0
        %1996 = vmatprep.subr.bf16.mxu0 %v735
        %1997 = vmatpush1.bf16.msra.mxu0 %v732
        %1998 = vmatprep.subr.bf16.mxu0 0
        %1999 = vmatpush1.bf16.msra.mxu0 0
        %2000 = vmatprep.subr.bf16.mxu0 0
        %2001 = vmatpush1.bf16.msra.mxu0 0
        %2002 = vmatprep.subr.bf16.mxu0 0
        %2003 = vmatpush1.bf16.msra.mxu0 0
        %2004 = vmatprep.subr.bf16.mxu0 0
        %2005 = vmatpush1.bf16.msra.mxu0 0
        %2006 = vmatprep.subr.bf16.mxu0 0
        %2007 = vmatpush1.bf16.msra.mxu0 0
        %2008 = vmatprep.subr.bf16.mxu0 0
        %2009 = vmatpush1.bf16.msra.mxu0 0
        %2010 = vmatprep.subr.bf16.mxu0 0
        %2011 = vmatpush1.bf16.msra.mxu0 0
        %2012 = vmatprep.subr.bf16.mxu0 0
        %2013 = vmatpush1.bf16.msra.mxu0 0
        %2014 = vmatprep.subr.bf16.mxu0 0
        %2015 = vmatpush1.bf16.msra.mxu0 0
        %2016 = vmatprep.subr.bf16.mxu0 0
        %2017 = vmatpush1.bf16.msra.mxu0 0
        %2018 = vmatprep.subr.bf16.mxu0 0
        %2019 = vmatpush1.bf16.msra.mxu0 0
        %2020 = vmatprep.subr.bf16.mxu0 0
        %2021 = vmatpush1.bf16.msra.mxu0 0
        %2022 = vmatprep.subr.bf16.mxu0 0
        %2023 = vmatpush1.bf16.msra.mxu0 0
        %2024 = vmatprep.subr.bf16.mxu0 0
        %2025 = vmatpush1.bf16.msra.mxu0 0
        %2026 = vmatprep.subr.bf16.mxu0 0
        %2027 = vmatpush1.bf16.msra.mxu0 0
        %2028 = vmatprep.mubr.bf16.mxu0 0
        %2029 = vmatmul.mubr.bf16.gmra.mrb[0].mxu0 %v551
        %v2030 = vpop.f32.mrb[0].mxu0
        %v2031 = vadd.f32 %v377, %v2030
        %v2032 = vpop.f32.mrb[0].mxu0
        %v2033 = vadd.f32 %v377, %v2032
        %v2034 = vpop.f32.mrb[0].mxu0
        %v2035 = vadd.f32 %v382, %v2034
        %v2036 = vpop.f32.mrb[0].mxu0
        %v2037 = vadd.f32 %v382, %v2036
        %2038 = vdwg.mxu0
        %2039 = vmatprep.subr.bf16.mxu0 %v741
        %2040 = vmatpush1.bf16.msra.mxu0 %v738
        %2041 = vmatprep.subr.bf16.mxu0 0
        %2042 = vmatpush1.bf16.msra.mxu0 0
        %2043 = vmatprep.subr.bf16.mxu0 0
        %2044 = vmatpush1.bf16.msra.mxu0 0
        %2045 = vmatprep.subr.bf16.mxu0 0
        %2046 = vmatpush1.bf16.msra.mxu0 0
        %2047 = vmatprep.subr.bf16.mxu0 0
        %2048 = vmatpush1.bf16.msra.mxu0 0
        %2049 = vmatprep.subr.bf16.mxu0 0
        %2050 = vmatpush1.bf16.msra.mxu0 0
        %2051 = vmatprep.subr.bf16.mxu0 0
        %2052 = vmatpush1.bf16.msra.mxu0 0
        %2053 = vmatprep.subr.bf16.mxu0 0
        %2054 = vmatpush1.bf16.msra.mxu0 0
        %2055 = vmatprep.subr.bf16.mxu0 0
        %2056 = vmatpush1.bf16.msra.mxu0 0
        %2057 = vmatprep.subr.bf16.mxu0 0
        %2058 = vmatpush1.bf16.msra.mxu0 0
        %2059 = vmatprep.subr.bf16.mxu0 0
        %2060 = vmatpush1.bf16.msra.mxu0 0
        %2061 = vmatprep.subr.bf16.mxu0 0
        %2062 = vmatpush1.bf16.msra.mxu0 0
        %2063 = vmatprep.subr.bf16.mxu0 0
        %2064 = vmatpush1.bf16.msra.mxu0 0
        %2065 = vmatprep.subr.bf16.mxu0 0
        %2066 = vmatpush1.bf16.msra.mxu0 0
        %2067 = vmatprep.subr.bf16.mxu0 0
        %2068 = vmatpush1.bf16.msra.mxu0 0
        %2069 = vmatprep.subr.bf16.mxu0 0
        %2070 = vmatpush1.bf16.msra.mxu0 0
        %2071 = vmatprep.mubr.bf16.mxu0 0
        %2072 = vmatmul.mubr.bf16.gmra.mrb[0].mxu0 %v551
        %v2073 = vpop.f32.mrb[0].mxu0
        %v2074 = vadd.f32 %v377, %v2073
        %v2075 = vpop.f32.mrb[0].mxu0
        %v2076 = vadd.f32 %v377, %v2075
        %v2077 = vpop.f32.mrb[0].mxu0
        %v2078 = vadd.f32 %v382, %v2077
        %v2079 = vpop.f32.mrb[0].mxu0
        %v2080 = vadd.f32 %v382, %v2079
        %2081 = vdwg.mxu0
        %2082 = vmatprep.subr.bf16.mxu0 %v747
        %2083 = vmatpush1.bf16.msra.mxu0 %v744
        %2084 = vmatprep.subr.bf16.mxu0 0
        %2085 = vmatpush1.bf16.msra.mxu0 0
        %2086 = vmatprep.subr.bf16.mxu0 0
        %2087 = vmatpush1.bf16.msra.mxu0 0
        %2088 = vmatprep.subr.bf16.mxu0 0
        %2089 = vmatpush1.bf16.msra.mxu0 0
        %2090 = vmatprep.subr.bf16.mxu0 0
        %2091 = vmatpush1.bf16.msra.mxu0 0
        %2092 = vmatprep.subr.bf16.mxu0 0
        %2093 = vmatpush1.bf16.msra.mxu0 0
        %2094 = vmatprep.subr.bf16.mxu0 0
        %2095 = vmatpush1.bf16.msra.mxu0 0
        %2096 = vmatprep.subr.bf16.mxu0 0
        %2097 = vmatpush1.bf16.msra.mxu0 0
        %2098 = vmatprep.subr.bf16.mxu0 0
        %2099 = vmatpush1.bf16.msra.mxu0 0
        %2100 = vmatprep.subr.bf16.mxu0 0
        %2101 = vmatpush1.bf16.msra.mxu0 0
        %2102 = vmatprep.subr.bf16.mxu0 0
        %2103 = vmatpush1.bf16.msra.mxu0 0
        %2104 = vmatprep.subr.bf16.mxu0 0
        %2105 = vmatpush1.bf16.msra.mxu0 0
        %2106 = vmatprep.subr.bf16.mxu0 0
        %2107 = vmatpush1.bf16.msra.mxu0 0
        %2108 = vmatprep.subr.bf16.mxu0 0
        %2109 = vmatpush1.bf16.msra.mxu0 0
        %2110 = vmatprep.subr.bf16.mxu0 0
        %2111 = vmatpush1.bf16.msra.mxu0 0
        %2112 = vmatprep.subr.bf16.mxu0 0
        %2113 = vmatpush1.bf16.msra.mxu0 0
        %2114 = vmatprep.mubr.bf16.mxu0 0
        %2115 = vmatmul.mubr.bf16.gmra.mrb[0].mxu0 %v551
        %v2116 = vpop.f32.mrb[0].mxu0
        %v2117 = vadd.f32 %v377, %v2116
        %v2118 = vpop.f32.mrb[0].mxu0
        %v2119 = vadd.f32 %v377, %v2118
        %v2120 = vpop.f32.mrb[0].mxu0
        %v2121 = vadd.f32 %v382, %v2120
        %v2122 = vpop.f32.mrb[0].mxu0
        %v2123 = vadd.f32 %v382, %v2122
        %2124 = vdwg.mxu0
        %v2125 = vmax.f32 %v784, 0.0
        %v2126 = vmax.f32 %v786, 0.0
        %v2127 = vmax.f32 %v827, 0.0
        %v2128 = vmax.f32 %v829, 0.0
        %v2129 = vmax.f32 %v870, 0.0
        %v2130 = vmax.f32 %v872, 0.0
        %v2131 = vmax.f32 %v913, 0.0
        %v2132 = vmax.f32 %v915, 0.0
        %v2133 = vmax.f32 %v956, 0.0
        %v2134 = vmax.f32 %v958, 0.0
        %v2135 = vmax.f32 %v999, 0.0
        %v2136 = vmax.f32 %v1001, 0.0
        %v2137 = vmax.f32 %v1042, 0.0
        %v2138 = vmax.f32 %v1044, 0.0
        %v2139 = vmax.f32 %v1085, 0.0
        %v2140 = vmax.f32 %v1087, 0.0
        %v2141 = vmax.f32 %v1128, 0.0
        %v2142 = vmax.f32 %v1130, 0.0
        %v2143 = vmax.f32 %v1171, 0.0
        %v2144 = vmax.f32 %v1173, 0.0
        %v2145 = vmax.f32 %v1214, 0.0
        %v2146 = vmax.f32 %v1216, 0.0
        %v2147 = vmax.f32 %v1257, 0.0
        %v2148 = vmax.f32 %v1259, 0.0
        %v2149 = vmax.f32 %v1300, 0.0
        %v2150 = vmax.f32 %v1302, 0.0
        %v2151 = vmax.f32 %v1343, 0.0
        %v2152 = vmax.f32 %v1345, 0.0
        %v2153 = vmax.f32 %v1386, 0.0
        %v2154 = vmax.f32 %v1388, 0.0
        %v2155 = vmax.f32 %v1429, 0.0
        %v2156 = vmax.f32 %v1431, 0.0
        %v2157 = vmax.f32 %v1472, 0.0
        %v2158 = vmax.f32 %v1474, 0.0
        %v2159 = vmax.f32 %v1515, 0.0
        %v2160 = vmax.f32 %v1517, 0.0
        %v2161 = vmax.f32 %v1558, 0.0
        %v2162 = vmax.f32 %v1560, 0.0
        %v2163 = vmax.f32 %v1601, 0.0
        %v2164 = vmax.f32 %v1603, 0.0
        %v2165 = vmax.f32 %v1644, 0.0
        %v2166 = vmax.f32 %v1646, 0.0
        %v2167 = vmax.f32 %v1687, 0.0
        %v2168 = vmax.f32 %v1689, 0.0
        %v2169 = vmax.f32 %v1730, 0.0
        %v2170 = vmax.f32 %v1732, 0.0
        %v2171 = vmax.f32 %v1773, 0.0
        %v2172 = vmax.f32 %v1775, 0.0
        %v2173 = vmax.f32 %v1816, 0.0
        %v2174 = vmax.f32 %v1818, 0.0
        %v2175 = vmax.f32 %v1859, 0.0
        %v2176 = vmax.f32 %v1861, 0.0
        %v2177 = vmax.f32 %v1902, 0.0
        %v2178 = vmax.f32 %v1904, 0.0
        %v2179 = vmax.f32 %v1945, 0.0
        %v2180 = vmax.f32 %v1947, 0.0
        %v2181 = vmax.f32 %v1988, 0.0
        %v2182 = vmax.f32 %v1990, 0.0
        %v2183 = vmax.f32 %v2031, 0.0
        %v2184 = vmax.f32 %v2033, 0.0
        %v2185 = vmax.f32 %v2074, 0.0
        %v2186 = vmax.f32 %v2076, 0.0
        %v2187 = vmax.f32 %v2117, 0.0
        %v2188 = vmax.f32 %v2119, 0.0
        %v2189 = vmax.f32 %v788, 0.0
        %v2190 = vmax.f32 %v790, 0.0
        %v2191 = vmax.f32 %v831, 0.0
        %v2192 = vmax.f32 %v833, 0.0
        %v2193 = vmax.f32 %v874, 0.0
        %v2194 = vmax.f32 %v876, 0.0
        %v2195 = vmax.f32 %v917, 0.0
        %v2196 = vmax.f32 %v919, 0.0
        %v2197 = vmax.f32 %v960, 0.0
        %v2198 = vmax.f32 %v962, 0.0
        %v2199 = vmax.f32 %v1003, 0.0
        %v2200 = vmax.f32 %v1005, 0.0
        %v2201 = vmax.f32 %v1046, 0.0
        %v2202 = vmax.f32 %v1048, 0.0
        %v2203 = vmax.f32 %v1089, 0.0
        %v2204 = vmax.f32 %v1091, 0.0
        %v2205 = vmax.f32 %v1132, 0.0
        %v2206 = vmax.f32 %v1134, 0.0
        %v2207 = vmax.f32 %v1175, 0.0
        %v2208 = vmax.f32 %v1177, 0.0
        %v2209 = vmax.f32 %v1218, 0.0
        %v2210 = vmax.f32 %v1220, 0.0
        %v2211 = vmax.f32 %v1261, 0.0
        %v2212 = vmax.f32 %v1263, 0.0
        %v2213 = vmax.f32 %v1304, 0.0
        %v2214 = vmax.f32 %v1306, 0.0
        %v2215 = vmax.f32 %v1347, 0.0
        %v2216 = vmax.f32 %v1349, 0.0
        %v2217 = vmax.f32 %v1390, 0.0
        %v2218 = vmax.f32 %v1392, 0.0
        %v2219 = vmax.f32 %v1433, 0.0
        %v2220 = vmax.f32 %v1435, 0.0
        %v2221 = vmax.f32 %v1476, 0.0
        %v2222 = vmax.f32 %v1478, 0.0
        %v2223 = vmax.f32 %v1519, 0.0
        %v2224 = vmax.f32 %v1521, 0.0
        %v2225 = vmax.f32 %v1562, 0.0
        %v2226 = vmax.f32 %v1564, 0.0
        %v2227 = vmax.f32 %v1605, 0.0
        %v2228 = vmax.f32 %v1607, 0.0
        %v2229 = vmax.f32 %v1648, 0.0
        %v2230 = vmax.f32 %v1650, 0.0
        %v2231 = vmax.f32 %v1691, 0.0
        %v2232 = vmax.f32 %v1693, 0.0
        %v2233 = vmax.f32 %v1734, 0.0
        %v2234 = vmax.f32 %v1736, 0.0
        %v2235 = vmax.f32 %v1777, 0.0
        %v2236 = vmax.f32 %v1779, 0.0
        %v2237 = vmax.f32 %v1820, 0.0
        %v2238 = vmax.f32 %v1822, 0.0
        %v2239 = vmax.f32 %v1863, 0.0
        %v2240 = vmax.f32 %v1865, 0.0
        %v2241 = vmax.f32 %v1906, 0.0
        %v2242 = vmax.f32 %v1908, 0.0
        %v2243 = vmax.f32 %v1949, 0.0
        %v2244 = vmax.f32 %v1951, 0.0
        %v2245 = vmax.f32 %v1992, 0.0
        %v2246 = vmax.f32 %v1994, 0.0
        %v2247 = vmax.f32 %v2035, 0.0
        %v2248 = vmax.f32 %v2037, 0.0
        %v2249 = vmax.f32 %v2078, 0.0
        %v2250 = vmax.f32 %v2080, 0.0
        %v2251 = vmax.f32 %v2121, 0.0
        %v2252 = vmax.f32 %v2123, 0.0
        %v2253 = vpack.c.bf16 %v2189, %v2125
        %v2254 = vpack.c.bf16 %v2190, %v2126
        %v2255 = vpack.c.bf16 %v2191, %v2127
        %v2256 = vpack.c.bf16 %v2192, %v2128
        %v2257 = vpack.c.bf16 %v2193, %v2129
        %v2258 = vpack.c.bf16 %v2194, %v2130
        %v2259 = vpack.c.bf16 %v2195, %v2131
        %v2260 = vpack.c.bf16 %v2196, %v2132
        %v2261 = vpack.c.bf16 %v2197, %v2133
        %v2262 = vpack.c.bf16 %v2198, %v2134
        %v2263 = vpack.c.bf16 %v2199, %v2135
        %v2264 = vpack.c.bf16 %v2200, %v2136
        %v2265 = vpack.c.bf16 %v2201, %v2137
        %v2266 = vpack.c.bf16 %v2202, %v2138
        %v2267 = vpack.c.bf16 %v2203, %v2139
        %v2268 = vpack.c.bf16 %v2204, %v2140
        %v2269 = vpack.c.bf16 %v2205, %v2141
        %v2270 = vpack.c.bf16 %v2206, %v2142
        %v2271 = vpack.c.bf16 %v2207, %v2143
        %v2272 = vpack.c.bf16 %v2208, %v2144
        %v2273 = vpack.c.bf16 %v2209, %v2145
        %v2274 = vpack.c.bf16 %v2210, %v2146
        %v2275 = vpack.c.bf16 %v2211, %v2147
        %v2276 = vpack.c.bf16 %v2212, %v2148
        %v2277 = vpack.c.bf16 %v2213, %v2149
        %v2278 = vpack.c.bf16 %v2214, %v2150
        %v2279 = vpack.c.bf16 %v2215, %v2151
        %v2280 = vpack.c.bf16 %v2216, %v2152
        %v2281 = vpack.c.bf16 %v2217, %v2153
        %v2282 = vpack.c.bf16 %v2218, %v2154
        %v2283 = vpack.c.bf16 %v2219, %v2155
        %v2284 = vpack.c.bf16 %v2220, %v2156
        %v2285 = vpack.c.bf16 %v2221, %v2157
        %v2286 = vpack.c.bf16 %v2222, %v2158
        %v2287 = vpack.c.bf16 %v2223, %v2159
        %v2288 = vpack.c.bf16 %v2224, %v2160
        %v2289 = vpack.c.bf16 %v2225, %v2161
        %v2290 = vpack.c.bf16 %v2226, %v2162
        %v2291 = vpack.c.bf16 %v2227, %v2163
        %v2292 = vpack.c.bf16 %v2228, %v2164
        %v2293 = vpack.c.bf16 %v2229, %v2165
        %v2294 = vpack.c.bf16 %v2230, %v2166
        %v2295 = vpack.c.bf16 %v2231, %v2167
        %v2296 = vpack.c.bf16 %v2232, %v2168
        %v2297 = vpack.c.bf16 %v2233, %v2169
        %v2298 = vpack.c.bf16 %v2234, %v2170
        %v2299 = vpack.c.bf16 %v2235, %v2171
        %v2300 = vpack.c.bf16 %v2236, %v2172
        %v2301 = vpack.c.bf16 %v2237, %v2173
        %v2302 = vpack.c.bf16 %v2238, %v2174
        %v2303 = vpack.c.bf16 %v2239, %v2175
        %v2304 = vpack.c.bf16 %v2240, %v2176
        %v2305 = vpack.c.bf16 %v2241, %v2177
        %v2306 = vpack.c.bf16 %v2242, %v2178
        %v2307 = vpack.c.bf16 %v2243, %v2179
        %v2308 = vpack.c.bf16 %v2244, %v2180
        %v2309 = vpack.c.bf16 %v2245, %v2181
        %v2310 = vpack.c.bf16 %v2246, %v2182
        %v2311 = vpack.c.bf16 %v2247, %v2183
        %v2312 = vpack.c.bf16 %v2248, %v2184
        %v2313 = vpack.c.bf16 %v2249, %v2185
        %v2314 = vpack.c.bf16 %v2250, %v2186
        %v2315 = vpack.c.bf16 %v2251, %v2187
        %v2316 = vpack.c.bf16 %v2252, %v2188
        %v2317 = vld [vmem:[%s4] sm:$0xf]
        %v2318 = vld [vmem:[%s4 + $0x4] sm:$0xf]
        %v2319 = vld [vmem:[%s5] sm:$0xff]
        %v2320 = vld [vmem:[%s5 + $0x8] sm:$0xff]
        %2322 = vset.pattern.permute.xlu0 0
        %2323 = vperm.xlu0 %2322, %v2319
        %v2324 = vpop.permute.xlu0 %2323
        %2327 = vset.pattern.permute.xlu0 0
        %2328 = vperm.xlu0 %2327, %v2320
        %v2329 = vpop.permute.xlu0 %2328
        %v2333 = vunpack.c.l.b16 %v2317
        %v2334 = vunpack.c.l.b16 %v2318
        %v2335 = vpack.c.b16 %v2334, %v2333
        %vm2336 = vcmask 130048
        %v2338 = vsel %vm2336, %v2335, 0
        %2340 = vmatprep.subr.bf16.mxu0 %v2254
        %2341 = vmatpush1.bf16.msra.mxu0 %v2253
        %2342 = vmatprep.subr.bf16.mxu0 0
        %2343 = vmatpush1.bf16.msra.mxu0 0
        %2344 = vmatprep.subr.bf16.mxu0 0
        %2345 = vmatpush1.bf16.msra.mxu0 0
        %2346 = vmatprep.subr.bf16.mxu0 0
        %2347 = vmatpush1.bf16.msra.mxu0 0
        %2348 = vmatprep.subr.bf16.mxu0 0
        %2349 = vmatpush1.bf16.msra.mxu0 0
        %2350 = vmatprep.subr.bf16.mxu0 0
        %2351 = vmatpush1.bf16.msra.mxu0 0
        %2352 = vmatprep.subr.bf16.mxu0 0
        %2353 = vmatpush1.bf16.msra.mxu0 0
        %2354 = vmatprep.subr.bf16.mxu0 0
        %2355 = vmatpush1.bf16.msra.mxu0 0
        %2356 = vmatprep.subr.bf16.mxu0 0
        %2357 = vmatpush1.bf16.msra.mxu0 0
        %2358 = vmatprep.subr.bf16.mxu0 0
        %2359 = vmatpush1.bf16.msra.mxu0 0
        %2360 = vmatprep.subr.bf16.mxu0 0
        %2361 = vmatpush1.bf16.msra.mxu0 0
        %2362 = vmatprep.subr.bf16.mxu0 0
        %2363 = vmatpush1.bf16.msra.mxu0 0
        %2364 = vmatprep.subr.bf16.mxu0 0
        %2365 = vmatpush1.bf16.msra.mxu0 0
        %2366 = vmatprep.subr.bf16.mxu0 0
        %2367 = vmatpush1.bf16.msra.mxu0 0
        %2368 = vmatprep.subr.bf16.mxu0 0
        %2369 = vmatpush1.bf16.msra.mxu0 0
        %2370 = vmatprep.subr.bf16.mxu0 0
        %2371 = vmatpush1.bf16.msra.mxu0 0
        %2372 = vmatprep.mubr.bf16.mxu0 0
        %2373 = vmatmul.mubr.bf16.gmra.mrb[0].mxu0 %v2338
        %v2374 = vpop.f32.mrb[0].mxu0
        %v2375 = vadd.f32 %v2324, %v2374
        %v2376 = vpop.f32.mrb[0].mxu0
        %v2377 = vadd.f32 %v2324, %v2376
        %v2378 = vpop.f32.mrb[0].mxu0
        %v2379 = vadd.f32 %v2329, %v2378
        %v2380 = vpop.f32.mrb[0].mxu0
        %v2381 = vadd.f32 %v2329, %v2380
        %2382 = vdwg.mxu0
        %2383 = vmatprep.subr.bf16.mxu0 %v2256
        %2384 = vmatpush1.bf16.msra.mxu0 %v2255
        %2385 = vmatprep.subr.bf16.mxu0 0
        %2386 = vmatpush1.bf16.msra.mxu0 0
        %2387 = vmatprep.subr.bf16.mxu0 0
        %2388 = vmatpush1.bf16.msra.mxu0 0
        %2389 = vmatprep.subr.bf16.mxu0 0
        %2390 = vmatpush1.bf16.msra.mxu0 0
        %2391 = vmatprep.subr.bf16.mxu0 0
        %2392 = vmatpush1.bf16.msra.mxu0 0
        %2393 = vmatprep.subr.bf16.mxu0 0
        %2394 = vmatpush1.bf16.msra.mxu0 0
        %2395 = vmatprep.subr.bf16.mxu0 0
        %2396 = vmatpush1.bf16.msra.mxu0 0
        %2397 = vmatprep.subr.bf16.mxu0 0
        %2398 = vmatpush1.bf16.msra.mxu0 0
        %2399 = vmatprep.subr.bf16.mxu0 0
        %2400 = vmatpush1.bf16.msra.mxu0 0
        %2401 = vmatprep.subr.bf16.mxu0 0
        %2402 = vmatpush1.bf16.msra.mxu0 0
        %2403 = vmatprep.subr.bf16.mxu0 0
        %2404 = vmatpush1.bf16.msra.mxu0 0
        %2405 = vmatprep.subr.bf16.mxu0 0
        %2406 = vmatpush1.bf16.msra.mxu0 0
        %2407 = vmatprep.subr.bf16.mxu0 0
        %2408 = vmatpush1.bf16.msra.mxu0 0
        %2409 = vmatprep.subr.bf16.mxu0 0
        %2410 = vmatpush1.bf16.msra.mxu0 0
        %2411 = vmatprep.subr.bf16.mxu0 0
        %2412 = vmatpush1.bf16.msra.mxu0 0
        %2413 = vmatprep.subr.bf16.mxu0 0
        %2414 = vmatpush1.bf16.msra.mxu0 0
        %2415 = vmatprep.mubr.bf16.mxu0 0
        %2416 = vmatmul.mubr.bf16.gmra.mrb[0].mxu0 %v2338
        %v2417 = vpop.f32.mrb[0].mxu0
        %v2418 = vadd.f32 %v2324, %v2417
        %v2419 = vpop.f32.mrb[0].mxu0
        %v2420 = vadd.f32 %v2324, %v2419
        %v2421 = vpop.f32.mrb[0].mxu0
        %v2422 = vadd.f32 %v2329, %v2421
        %v2423 = vpop.f32.mrb[0].mxu0
        %v2424 = vadd.f32 %v2329, %v2423
        %2425 = vdwg.mxu0
        %2426 = vmatprep.subr.bf16.mxu0 %v2258
        %2427 = vmatpush1.bf16.msra.mxu0 %v2257
        %2428 = vmatprep.subr.bf16.mxu0 0
        %2429 = vmatpush1.bf16.msra.mxu0 0
        %2430 = vmatprep.subr.bf16.mxu0 0
        %2431 = vmatpush1.bf16.msra.mxu0 0
        %2432 = vmatprep.subr.bf16.mxu0 0
        %2433 = vmatpush1.bf16.msra.mxu0 0
        %2434 = vmatprep.subr.bf16.mxu0 0
        %2435 = vmatpush1.bf16.msra.mxu0 0
        %2436 = vmatprep.subr.bf16.mxu0 0
        %2437 = vmatpush1.bf16.msra.mxu0 0
        %2438 = vmatprep.subr.bf16.mxu0 0
        %2439 = vmatpush1.bf16.msra.mxu0 0
        %2440 = vmatprep.subr.bf16.mxu0 0
        %2441 = vmatpush1.bf16.msra.mxu0 0
        %2442 = vmatprep.subr.bf16.mxu0 0
        %2443 = vmatpush1.bf16.msra.mxu0 0
        %2444 = vmatprep.subr.bf16.mxu0 0
        %2445 = vmatpush1.bf16.msra.mxu0 0
        %2446 = vmatprep.subr.bf16.mxu0 0
        %2447 = vmatpush1.bf16.msra.mxu0 0
        %2448 = vmatprep.subr.bf16.mxu0 0
        %2449 = vmatpush1.bf16.msra.mxu0 0
        %2450 = vmatprep.subr.bf16.mxu0 0
        %2451 = vmatpush1.bf16.msra.mxu0 0
        %2452 = vmatprep.subr.bf16.mxu0 0
        %2453 = vmatpush1.bf16.msra.mxu0 0
        %2454 = vmatprep.subr.bf16.mxu0 0
        %2455 = vmatpush1.bf16.msra.mxu0 0
        %2456 = vmatprep.subr.bf16.mxu0 0
        %2457 = vmatpush1.bf16.msra.mxu0 0
        %2458 = vmatprep.mubr.bf16.mxu0 0
        %2459 = vmatmul.mubr.bf16.gmra.mrb[0].mxu0 %v2338
        %v2460 = vpop.f32.mrb[0].mxu0
        %v2461 = vadd.f32 %v2324, %v2460
        %v2462 = vpop.f32.mrb[0].mxu0
        %v2463 = vadd.f32 %v2324, %v2462
        %v2464 = vpop.f32.mrb[0].mxu0
        %v2465 = vadd.f32 %v2329, %v2464
        %v2466 = vpop.f32.mrb[0].mxu0
        %v2467 = vadd.f32 %v2329, %v2466
        %2468 = vdwg.mxu0
        %2469 = vmatprep.subr.bf16.mxu0 %v2260
        %2470 = vmatpush1.bf16.msra.mxu0 %v2259
        %2471 = vmatprep.subr.bf16.mxu0 0
        %2472 = vmatpush1.bf16.msra.mxu0 0
        %2473 = vmatprep.subr.bf16.mxu0 0
        %2474 = vmatpush1.bf16.msra.mxu0 0
        %2475 = vmatprep.subr.bf16.mxu0 0
        %2476 = vmatpush1.bf16.msra.mxu0 0
        %2477 = vmatprep.subr.bf16.mxu0 0
        %2478 = vmatpush1.bf16.msra.mxu0 0
        %2479 = vmatprep.subr.bf16.mxu0 0
        %2480 = vmatpush1.bf16.msra.mxu0 0
        %2481 = vmatprep.subr.bf16.mxu0 0
        %2482 = vmatpush1.bf16.msra.mxu0 0
        %2483 = vmatprep.subr.bf16.mxu0 0
        %2484 = vmatpush1.bf16.msra.mxu0 0
        %2485 = vmatprep.subr.bf16.mxu0 0
        %2486 = vmatpush1.bf16.msra.mxu0 0
        %2487 = vmatprep.subr.bf16.mxu0 0
        %2488 = vmatpush1.bf16.msra.mxu0 0
        %2489 = vmatprep.subr.bf16.mxu0 0
        %2490 = vmatpush1.bf16.msra.mxu0 0
        %2491 = vmatprep.subr.bf16.mxu0 0
        %2492 = vmatpush1.bf16.msra.mxu0 0
        %2493 = vmatprep.subr.bf16.mxu0 0
        %2494 = vmatpush1.bf16.msra.mxu0 0
        %2495 = vmatprep.subr.bf16.mxu0 0
        %2496 = vmatpush1.bf16.msra.mxu0 0
        %2497 = vmatprep.subr.bf16.mxu0 0
        %2498 = vmatpush1.bf16.msra.mxu0 0
        %2499 = vmatprep.subr.bf16.mxu0 0
        %2500 = vmatpush1.bf16.msra.mxu0 0
        %2501 = vmatprep.mubr.bf16.mxu0 0
        %2502 = vmatmul.mubr.bf16.gmra.mrb[0].mxu0 %v2338
        %v2503 = vpop.f32.mrb[0].mxu0
        %v2504 = vadd.f32 %v2324, %v2503
        %v2505 = vpop.f32.mrb[0].mxu0
        %v2506 = vadd.f32 %v2324, %v2505
        %v2507 = vpop.f32.mrb[0].mxu0
        %v2508 = vadd.f32 %v2329, %v2507
        %v2509 = vpop.f32.mrb[0].mxu0
        %v2510 = vadd.f32 %v2329, %v2509
        %2511 = vdwg.mxu0
        %2512 = vmatprep.subr.bf16.mxu0 %v2262
        %2513 = vmatpush1.bf16.msra.mxu0 %v2261
        %2514 = vmatprep.subr.bf16.mxu0 0
        %2515 = vmatpush1.bf16.msra.mxu0 0
        %2516 = vmatprep.subr.bf16.mxu0 0
        %2517 = vmatpush1.bf16.msra.mxu0 0
        %2518 = vmatprep.subr.bf16.mxu0 0
        %2519 = vmatpush1.bf16.msra.mxu0 0
        %2520 = vmatprep.subr.bf16.mxu0 0
        %2521 = vmatpush1.bf16.msra.mxu0 0
        %2522 = vmatprep.subr.bf16.mxu0 0
        %2523 = vmatpush1.bf16.msra.mxu0 0
        %2524 = vmatprep.subr.bf16.mxu0 0
        %2525 = vmatpush1.bf16.msra.mxu0 0
        %2526 = vmatprep.subr.bf16.mxu0 0
        %2527 = vmatpush1.bf16.msra.mxu0 0
        %2528 = vmatprep.subr.bf16.mxu0 0
        %2529 = vmatpush1.bf16.msra.mxu0 0
        %2530 = vmatprep.subr.bf16.mxu0 0
        %2531 = vmatpush1.bf16.msra.mxu0 0
        %2532 = vmatprep.subr.bf16.mxu0 0
        %2533 = vmatpush1.bf16.msra.mxu0 0
        %2534 = vmatprep.subr.bf16.mxu0 0
        %2535 = vmatpush1.bf16.msra.mxu0 0
        %2536 = vmatprep.subr.bf16.mxu0 0
        %2537 = vmatpush1.bf16.msra.mxu0 0
        %2538 = vmatprep.subr.bf16.mxu0 0
        %2539 = vmatpush1.bf16.msra.mxu0 0
        %2540 = vmatprep.subr.bf16.mxu0 0
        %2541 = vmatpush1.bf16.msra.mxu0 0
        %2542 = vmatprep.subr.bf16.mxu0 0
        %2543 = vmatpush1.bf16.msra.mxu0 0
        %2544 = vmatprep.mubr.bf16.mxu0 0
        %2545 = vmatmul.mubr.bf16.gmra.mrb[0].mxu0 %v2338
        %v2546 = vpop.f32.mrb[0].mxu0
        %v2547 = vadd.f32 %v2324, %v2546
        %v2548 = vpop.f32.mrb[0].mxu0
        %v2549 = vadd.f32 %v2324, %v2548
        %v2550 = vpop.f32.mrb[0].mxu0
        %v2551 = vadd.f32 %v2329, %v2550
        %v2552 = vpop.f32.mrb[0].mxu0
        %v2553 = vadd.f32 %v2329, %v2552
        %2554 = vdwg.mxu0
        %2555 = vmatprep.subr.bf16.mxu0 %v2264
        %2556 = vmatpush1.bf16.msra.mxu0 %v2263
        %2557 = vmatprep.subr.bf16.mxu0 0
        %2558 = vmatpush1.bf16.msra.mxu0 0
        %2559 = vmatprep.subr.bf16.mxu0 0
        %2560 = vmatpush1.bf16.msra.mxu0 0
        %2561 = vmatprep.subr.bf16.mxu0 0
        %2562 = vmatpush1.bf16.msra.mxu0 0
        %2563 = vmatprep.subr.bf16.mxu0 0
        %2564 = vmatpush1.bf16.msra.mxu0 0
        %2565 = vmatprep.subr.bf16.mxu0 0
        %2566 = vmatpush1.bf16.msra.mxu0 0
        %2567 = vmatprep.subr.bf16.mxu0 0
        %2568 = vmatpush1.bf16.msra.mxu0 0
        %2569 = vmatprep.subr.bf16.mxu0 0
        %2570 = vmatpush1.bf16.msra.mxu0 0
        %2571 = vmatprep.subr.bf16.mxu0 0
        %2572 = vmatpush1.bf16.msra.mxu0 0
        %2573 = vmatprep.subr.bf16.mxu0 0
        %2574 = vmatpush1.bf16.msra.mxu0 0
        %2575 = vmatprep.subr.bf16.mxu0 0
        %2576 = vmatpush1.bf16.msra.mxu0 0
        %2577 = vmatprep.subr.bf16.mxu0 0
        %2578 = vmatpush1.bf16.msra.mxu0 0
        %2579 = vmatprep.subr.bf16.mxu0 0
        %2580 = vmatpush1.bf16.msra.mxu0 0
        %2581 = vmatprep.subr.bf16.mxu0 0
        %2582 = vmatpush1.bf16.msra.mxu0 0
        %2583 = vmatprep.subr.bf16.mxu0 0
        %2584 = vmatpush1.bf16.msra.mxu0 0
        %2585 = vmatprep.subr.bf16.mxu0 0
        %2586 = vmatpush1.bf16.msra.mxu0 0
        %2587 = vmatprep.mubr.bf16.mxu0 0
        %2588 = vmatmul.mubr.bf16.gmra.mrb[0].mxu0 %v2338
        %v2589 = vpop.f32.mrb[0].mxu0
        %v2590 = vadd.f32 %v2324, %v2589
        %v2591 = vpop.f32.mrb[0].mxu0
        %v2592 = vadd.f32 %v2324, %v2591
        %v2593 = vpop.f32.mrb[0].mxu0
        %v2594 = vadd.f32 %v2329, %v2593
        %v2595 = vpop.f32.mrb[0].mxu0
        %v2596 = vadd.f32 %v2329, %v2595
        %2597 = vdwg.mxu0
        %2598 = vmatprep.subr.bf16.mxu0 %v2266
        %2599 = vmatpush1.bf16.msra.mxu0 %v2265
        %2600 = vmatprep.subr.bf16.mxu0 0
        %2601 = vmatpush1.bf16.msra.mxu0 0
        %2602 = vmatprep.subr.bf16.mxu0 0
        %2603 = vmatpush1.bf16.msra.mxu0 0
        %2604 = vmatprep.subr.bf16.mxu0 0
        %2605 = vmatpush1.bf16.msra.mxu0 0
        %2606 = vmatprep.subr.bf16.mxu0 0
        %2607 = vmatpush1.bf16.msra.mxu0 0
        %2608 = vmatprep.subr.bf16.mxu0 0
        %2609 = vmatpush1.bf16.msra.mxu0 0
        %2610 = vmatprep.subr.bf16.mxu0 0
        %2611 = vmatpush1.bf16.msra.mxu0 0
        %2612 = vmatprep.subr.bf16.mxu0 0
        %2613 = vmatpush1.bf16.msra.mxu0 0
        %2614 = vmatprep.subr.bf16.mxu0 0
        %2615 = vmatpush1.bf16.msra.mxu0 0
        %2616 = vmatprep.subr.bf16.mxu0 0
        %2617 = vmatpush1.bf16.msra.mxu0 0
        %2618 = vmatprep.subr.bf16.mxu0 0
        %2619 = vmatpush1.bf16.msra.mxu0 0
        %2620 = vmatprep.subr.bf16.mxu0 0
        %2621 = vmatpush1.bf16.msra.mxu0 0
        %2622 = vmatprep.subr.bf16.mxu0 0
        %2623 = vmatpush1.bf16.msra.mxu0 0
        %2624 = vmatprep.subr.bf16.mxu0 0
        %2625 = vmatpush1.bf16.msra.mxu0 0
        %2626 = vmatprep.subr.bf16.mxu0 0
        %2627 = vmatpush1.bf16.msra.mxu0 0
        %2628 = vmatprep.subr.bf16.mxu0 0
        %2629 = vmatpush1.bf16.msra.mxu0 0
        %2630 = vmatprep.mubr.bf16.mxu0 0
        %2631 = vmatmul.mubr.bf16.gmra.mrb[0].mxu0 %v2338
        %v2632 = vpop.f32.mrb[0].mxu0
        %v2633 = vadd.f32 %v2324, %v2632
        %v2634 = vpop.f32.mrb[0].mxu0
        %v2635 = vadd.f32 %v2324, %v2634
        %v2636 = vpop.f32.mrb[0].mxu0
        %v2637 = vadd.f32 %v2329, %v2636
        %v2638 = vpop.f32.mrb[0].mxu0
        %v2639 = vadd.f32 %v2329, %v2638
        %2640 = vdwg.mxu0
        %2641 = vmatprep.subr.bf16.mxu0 %v2268
        %2642 = vmatpush1.bf16.msra.mxu0 %v2267
        %2643 = vmatprep.subr.bf16.mxu0 0
        %2644 = vmatpush1.bf16.msra.mxu0 0
        %2645 = vmatprep.subr.bf16.mxu0 0
        %2646 = vmatpush1.bf16.msra.mxu0 0
        %2647 = vmatprep.subr.bf16.mxu0 0
        %2648 = vmatpush1.bf16.msra.mxu0 0
        %2649 = vmatprep.subr.bf16.mxu0 0
        %2650 = vmatpush1.bf16.msra.mxu0 0
        %2651 = vmatprep.subr.bf16.mxu0 0
        %2652 = vmatpush1.bf16.msra.mxu0 0
        %2653 = vmatprep.subr.bf16.mxu0 0
        %2654 = vmatpush1.bf16.msra.mxu0 0
        %2655 = vmatprep.subr.bf16.mxu0 0
        %2656 = vmatpush1.bf16.msra.mxu0 0
        %2657 = vmatprep.subr.bf16.mxu0 0
        %2658 = vmatpush1.bf16.msra.mxu0 0
        %2659 = vmatprep.subr.bf16.mxu0 0
        %2660 = vmatpush1.bf16.msra.mxu0 0
        %2661 = vmatprep.subr.bf16.mxu0 0
        %2662 = vmatpush1.bf16.msra.mxu0 0
        %2663 = vmatprep.subr.bf16.mxu0 0
        %2664 = vmatpush1.bf16.msra.mxu0 0
        %2665 = vmatprep.subr.bf16.mxu0 0
        %2666 = vmatpush1.bf16.msra.mxu0 0
        %2667 = vmatprep.subr.bf16.mxu0 0
        %2668 = vmatpush1.bf16.msra.mxu0 0
        %2669 = vmatprep.subr.bf16.mxu0 0
        %2670 = vmatpush1.bf16.msra.mxu0 0
        %2671 = vmatprep.subr.bf16.mxu0 0
        %2672 = vmatpush1.bf16.msra.mxu0 0
        %2673 = vmatprep.mubr.bf16.mxu0 0
        %2674 = vmatmul.mubr.bf16.gmra.mrb[0].mxu0 %v2338
        %v2675 = vpop.f32.mrb[0].mxu0
        %v2676 = vadd.f32 %v2324, %v2675
        %v2677 = vpop.f32.mrb[0].mxu0
        %v2678 = vadd.f32 %v2324, %v2677
        %v2679 = vpop.f32.mrb[0].mxu0
        %v2680 = vadd.f32 %v2329, %v2679
        %v2681 = vpop.f32.mrb[0].mxu0
        %v2682 = vadd.f32 %v2329, %v2681
        %2683 = vdwg.mxu0
        %2684 = vmatprep.subr.bf16.mxu0 %v2270
        %2685 = vmatpush1.bf16.msra.mxu0 %v2269
        %2686 = vmatprep.subr.bf16.mxu0 0
        %2687 = vmatpush1.bf16.msra.mxu0 0
        %2688 = vmatprep.subr.bf16.mxu0 0
        %2689 = vmatpush1.bf16.msra.mxu0 0
        %2690 = vmatprep.subr.bf16.mxu0 0
        %2691 = vmatpush1.bf16.msra.mxu0 0
        %2692 = vmatprep.subr.bf16.mxu0 0
        %2693 = vmatpush1.bf16.msra.mxu0 0
        %2694 = vmatprep.subr.bf16.mxu0 0
        %2695 = vmatpush1.bf16.msra.mxu0 0
        %2696 = vmatprep.subr.bf16.mxu0 0
        %2697 = vmatpush1.bf16.msra.mxu0 0
        %2698 = vmatprep.subr.bf16.mxu0 0
        %2699 = vmatpush1.bf16.msra.mxu0 0
        %2700 = vmatprep.subr.bf16.mxu0 0
        %2701 = vmatpush1.bf16.msra.mxu0 0
        %2702 = vmatprep.subr.bf16.mxu0 0
        %2703 = vmatpush1.bf16.msra.mxu0 0
        %2704 = vmatprep.subr.bf16.mxu0 0
        %2705 = vmatpush1.bf16.msra.mxu0 0
        %2706 = vmatprep.subr.bf16.mxu0 0
        %2707 = vmatpush1.bf16.msra.mxu0 0
        %2708 = vmatprep.subr.bf16.mxu0 0
        %2709 = vmatpush1.bf16.msra.mxu0 0
        %2710 = vmatprep.subr.bf16.mxu0 0
        %2711 = vmatpush1.bf16.msra.mxu0 0
        %2712 = vmatprep.subr.bf16.mxu0 0
        %2713 = vmatpush1.bf16.msra.mxu0 0
        %2714 = vmatprep.subr.bf16.mxu0 0
        %2715 = vmatpush1.bf16.msra.mxu0 0
        %2716 = vmatprep.mubr.bf16.mxu0 0
        %2717 = vmatmul.mubr.bf16.gmra.mrb[0].mxu0 %v2338
        %v2718 = vpop.f32.mrb[0].mxu0
        %v2719 = vadd.f32 %v2324, %v2718
        %v2720 = vpop.f32.mrb[0].mxu0
        %v2721 = vadd.f32 %v2324, %v2720
        %v2722 = vpop.f32.mrb[0].mxu0
        %v2723 = vadd.f32 %v2329, %v2722
        %v2724 = vpop.f32.mrb[0].mxu0
        %v2725 = vadd.f32 %v2329, %v2724
        %2726 = vdwg.mxu0
        %2727 = vmatprep.subr.bf16.mxu0 %v2272
        %2728 = vmatpush1.bf16.msra.mxu0 %v2271
        %2729 = vmatprep.subr.bf16.mxu0 0
        %2730 = vmatpush1.bf16.msra.mxu0 0
        %2731 = vmatprep.subr.bf16.mxu0 0
        %2732 = vmatpush1.bf16.msra.mxu0 0
        %2733 = vmatprep.subr.bf16.mxu0 0
        %2734 = vmatpush1.bf16.msra.mxu0 0
        %2735 = vmatprep.subr.bf16.mxu0 0
        %2736 = vmatpush1.bf16.msra.mxu0 0
        %2737 = vmatprep.subr.bf16.mxu0 0
        %2738 = vmatpush1.bf16.msra.mxu0 0
        %2739 = vmatprep.subr.bf16.mxu0 0
        %2740 = vmatpush1.bf16.msra.mxu0 0
        %2741 = vmatprep.subr.bf16.mxu0 0
        %2742 = vmatpush1.bf16.msra.mxu0 0
        %2743 = vmatprep.subr.bf16.mxu0 0
        %2744 = vmatpush1.bf16.msra.mxu0 0
        %2745 = vmatprep.subr.bf16.mxu0 0
        %2746 = vmatpush1.bf16.msra.mxu0 0
        %2747 = vmatprep.subr.bf16.mxu0 0
        %2748 = vmatpush1.bf16.msra.mxu0 0
        %2749 = vmatprep.subr.bf16.mxu0 0
        %2750 = vmatpush1.bf16.msra.mxu0 0
        %2751 = vmatprep.subr.bf16.mxu0 0
        %2752 = vmatpush1.bf16.msra.mxu0 0
        %2753 = vmatprep.subr.bf16.mxu0 0
        %2754 = vmatpush1.bf16.msra.mxu0 0
        %2755 = vmatprep.subr.bf16.mxu0 0
        %2756 = vmatpush1.bf16.msra.mxu0 0
        %2757 = vmatprep.subr.bf16.mxu0 0
        %2758 = vmatpush1.bf16.msra.mxu0 0
        %2759 = vmatprep.mubr.bf16.mxu0 0
        %2760 = vmatmul.mubr.bf16.gmra.mrb[0].mxu0 %v2338
        %v2761 = vpop.f32.mrb[0].mxu0
        %v2762 = vadd.f32 %v2324, %v2761
        %v2763 = vpop.f32.mrb[0].mxu0
        %v2764 = vadd.f32 %v2324, %v2763
        %v2765 = vpop.f32.mrb[0].mxu0
        %v2766 = vadd.f32 %v2329, %v2765
        %v2767 = vpop.f32.mrb[0].mxu0
        %v2768 = vadd.f32 %v2329, %v2767
        %2769 = vdwg.mxu0
        %2770 = vmatprep.subr.bf16.mxu0 %v2274
        %2771 = vmatpush1.bf16.msra.mxu0 %v2273
        %2772 = vmatprep.subr.bf16.mxu0 0
        %2773 = vmatpush1.bf16.msra.mxu0 0
        %2774 = vmatprep.subr.bf16.mxu0 0
        %2775 = vmatpush1.bf16.msra.mxu0 0
        %2776 = vmatprep.subr.bf16.mxu0 0
        %2777 = vmatpush1.bf16.msra.mxu0 0
        %2778 = vmatprep.subr.bf16.mxu0 0
        %2779 = vmatpush1.bf16.msra.mxu0 0
        %2780 = vmatprep.subr.bf16.mxu0 0
        %2781 = vmatpush1.bf16.msra.mxu0 0
        %2782 = vmatprep.subr.bf16.mxu0 0
        %2783 = vmatpush1.bf16.msra.mxu0 0
        %2784 = vmatprep.subr.bf16.mxu0 0
        %2785 = vmatpush1.bf16.msra.mxu0 0
        %2786 = vmatprep.subr.bf16.mxu0 0
        %2787 = vmatpush1.bf16.msra.mxu0 0
        %2788 = vmatprep.subr.bf16.mxu0 0
        %2789 = vmatpush1.bf16.msra.mxu0 0
        %2790 = vmatprep.subr.bf16.mxu0 0
        %2791 = vmatpush1.bf16.msra.mxu0 0
        %2792 = vmatprep.subr.bf16.mxu0 0
        %2793 = vmatpush1.bf16.msra.mxu0 0
        %2794 = vmatprep.subr.bf16.mxu0 0
        %2795 = vmatpush1.bf16.msra.mxu0 0
        %2796 = vmatprep.subr.bf16.mxu0 0
        %2797 = vmatpush1.bf16.msra.mxu0 0
        %2798 = vmatprep.subr.bf16.mxu0 0
        %2799 = vmatpush1.bf16.msra.mxu0 0
        %2800 = vmatprep.subr.bf16.mxu0 0
        %2801 = vmatpush1.bf16.msra.mxu0 0
        %2802 = vmatprep.mubr.bf16.mxu0 0
        %2803 = vmatmul.mubr.bf16.gmra.mrb[0].mxu0 %v2338
        %v2804 = vpop.f32.mrb[0].mxu0
        %v2805 = vadd.f32 %v2324, %v2804
        %v2806 = vpop.f32.mrb[0].mxu0
        %v2807 = vadd.f32 %v2324, %v2806
        %v2808 = vpop.f32.mrb[0].mxu0
        %v2809 = vadd.f32 %v2329, %v2808
        %v2810 = vpop.f32.mrb[0].mxu0
        %v2811 = vadd.f32 %v2329, %v2810
        %2812 = vdwg.mxu0
        %2813 = vmatprep.subr.bf16.mxu0 %v2276
        %2814 = vmatpush1.bf16.msra.mxu0 %v2275
        %2815 = vmatprep.subr.bf16.mxu0 0
        %2816 = vmatpush1.bf16.msra.mxu0 0
        %2817 = vmatprep.subr.bf16.mxu0 0
        %2818 = vmatpush1.bf16.msra.mxu0 0
        %2819 = vmatprep.subr.bf16.mxu0 0
        %2820 = vmatpush1.bf16.msra.mxu0 0
        %2821 = vmatprep.subr.bf16.mxu0 0
        %2822 = vmatpush1.bf16.msra.mxu0 0
        %2823 = vmatprep.subr.bf16.mxu0 0
        %2824 = vmatpush1.bf16.msra.mxu0 0
        %2825 = vmatprep.subr.bf16.mxu0 0
        %2826 = vmatpush1.bf16.msra.mxu0 0
        %2827 = vmatprep.subr.bf16.mxu0 0
        %2828 = vmatpush1.bf16.msra.mxu0 0
        %2829 = vmatprep.subr.bf16.mxu0 0
        %2830 = vmatpush1.bf16.msra.mxu0 0
        %2831 = vmatprep.subr.bf16.mxu0 0
        %2832 = vmatpush1.bf16.msra.mxu0 0
        %2833 = vmatprep.subr.bf16.mxu0 0
        %2834 = vmatpush1.bf16.msra.mxu0 0
        %2835 = vmatprep.subr.bf16.mxu0 0
        %2836 = vmatpush1.bf16.msra.mxu0 0
        %2837 = vmatprep.subr.bf16.mxu0 0
        %2838 = vmatpush1.bf16.msra.mxu0 0
        %2839 = vmatprep.subr.bf16.mxu0 0
        %2840 = vmatpush1.bf16.msra.mxu0 0
        %2841 = vmatprep.subr.bf16.mxu0 0
        %2842 = vmatpush1.bf16.msra.mxu0 0
        %2843 = vmatprep.subr.bf16.mxu0 0
        %2844 = vmatpush1.bf16.msra.mxu0 0
        %2845 = vmatprep.mubr.bf16.mxu0 0
        %2846 = vmatmul.mubr.bf16.gmra.mrb[0].mxu0 %v2338
        %v2847 = vpop.f32.mrb[0].mxu0
        %v2848 = vadd.f32 %v2324, %v2847
        %v2849 = vpop.f32.mrb[0].mxu0
        %v2850 = vadd.f32 %v2324, %v2849
        %v2851 = vpop.f32.mrb[0].mxu0
        %v2852 = vadd.f32 %v2329, %v2851
        %v2853 = vpop.f32.mrb[0].mxu0
        %v2854 = vadd.f32 %v2329, %v2853
        %2855 = vdwg.mxu0
        %2856 = vmatprep.subr.bf16.mxu0 %v2278
        %2857 = vmatpush1.bf16.msra.mxu0 %v2277
        %2858 = vmatprep.subr.bf16.mxu0 0
        %2859 = vmatpush1.bf16.msra.mxu0 0
        %2860 = vmatprep.subr.bf16.mxu0 0
        %2861 = vmatpush1.bf16.msra.mxu0 0
        %2862 = vmatprep.subr.bf16.mxu0 0
        %2863 = vmatpush1.bf16.msra.mxu0 0
        %2864 = vmatprep.subr.bf16.mxu0 0
        %2865 = vmatpush1.bf16.msra.mxu0 0
        %2866 = vmatprep.subr.bf16.mxu0 0
        %2867 = vmatpush1.bf16.msra.mxu0 0
        %2868 = vmatprep.subr.bf16.mxu0 0
        %2869 = vmatpush1.bf16.msra.mxu0 0
        %2870 = vmatprep.subr.bf16.mxu0 0
        %2871 = vmatpush1.bf16.msra.mxu0 0
        %2872 = vmatprep.subr.bf16.mxu0 0
        %2873 = vmatpush1.bf16.msra.mxu0 0
        %2874 = vmatprep.subr.bf16.mxu0 0
        %2875 = vmatpush1.bf16.msra.mxu0 0
        %2876 = vmatprep.subr.bf16.mxu0 0
        %2877 = vmatpush1.bf16.msra.mxu0 0
        %2878 = vmatprep.subr.bf16.mxu0 0
        %2879 = vmatpush1.bf16.msra.mxu0 0
        %2880 = vmatprep.subr.bf16.mxu0 0
        %2881 = vmatpush1.bf16.msra.mxu0 0
        %2882 = vmatprep.subr.bf16.mxu0 0
        %2883 = vmatpush1.bf16.msra.mxu0 0
        %2884 = vmatprep.subr.bf16.mxu0 0
        %2885 = vmatpush1.bf16.msra.mxu0 0
        %2886 = vmatprep.subr.bf16.mxu0 0
        %2887 = vmatpush1.bf16.msra.mxu0 0
        %2888 = vmatprep.mubr.bf16.mxu0 0
        %2889 = vmatmul.mubr.bf16.gmra.mrb[0].mxu0 %v2338
        %v2890 = vpop.f32.mrb[0].mxu0
        %v2891 = vadd.f32 %v2324, %v2890
        %v2892 = vpop.f32.mrb[0].mxu0
        %v2893 = vadd.f32 %v2324, %v2892
        %v2894 = vpop.f32.mrb[0].mxu0
        %v2895 = vadd.f32 %v2329, %v2894
        %v2896 = vpop.f32.mrb[0].mxu0
        %v2897 = vadd.f32 %v2329, %v2896
        %2898 = vdwg.mxu0
        %2899 = vmatprep.subr.bf16.mxu0 %v2280
        %2900 = vmatpush1.bf16.msra.mxu0 %v2279
        %2901 = vmatprep.subr.bf16.mxu0 0
        %2902 = vmatpush1.bf16.msra.mxu0 0
        %2903 = vmatprep.subr.bf16.mxu0 0
        %2904 = vmatpush1.bf16.msra.mxu0 0
        %2905 = vmatprep.subr.bf16.mxu0 0
        %2906 = vmatpush1.bf16.msra.mxu0 0
        %2907 = vmatprep.subr.bf16.mxu0 0
        %2908 = vmatpush1.bf16.msra.mxu0 0
        %2909 = vmatprep.subr.bf16.mxu0 0
        %2910 = vmatpush1.bf16.msra.mxu0 0
        %2911 = vmatprep.subr.bf16.mxu0 0
        %2912 = vmatpush1.bf16.msra.mxu0 0
        %2913 = vmatprep.subr.bf16.mxu0 0
        %2914 = vmatpush1.bf16.msra.mxu0 0
        %2915 = vmatprep.subr.bf16.mxu0 0
        %2916 = vmatpush1.bf16.msra.mxu0 0
        %2917 = vmatprep.subr.bf16.mxu0 0
        %2918 = vmatpush1.bf16.msra.mxu0 0
        %2919 = vmatprep.subr.bf16.mxu0 0
        %2920 = vmatpush1.bf16.msra.mxu0 0
        %2921 = vmatprep.subr.bf16.mxu0 0
        %2922 = vmatpush1.bf16.msra.mxu0 0
        %2923 = vmatprep.subr.bf16.mxu0 0
        %2924 = vmatpush1.bf16.msra.mxu0 0
        %2925 = vmatprep.subr.bf16.mxu0 0
        %2926 = vmatpush1.bf16.msra.mxu0 0
        %2927 = vmatprep.subr.bf16.mxu0 0
        %2928 = vmatpush1.bf16.msra.mxu0 0
        %2929 = vmatprep.subr.bf16.mxu0 0
        %2930 = vmatpush1.bf16.msra.mxu0 0
        %2931 = vmatprep.mubr.bf16.mxu0 0
        %2932 = vmatmul.mubr.bf16.gmra.mrb[0].mxu0 %v2338
        %v2933 = vpop.f32.mrb[0].mxu0
        %v2934 = vadd.f32 %v2324, %v2933
        %v2935 = vpop.f32.mrb[0].mxu0
        %v2936 = vadd.f32 %v2324, %v2935
        %v2937 = vpop.f32.mrb[0].mxu0
        %v2938 = vadd.f32 %v2329, %v2937
        %v2939 = vpop.f32.mrb[0].mxu0
        %v2940 = vadd.f32 %v2329, %v2939
        %2941 = vdwg.mxu0
        %2942 = vmatprep.subr.bf16.mxu0 %v2282
        %2943 = vmatpush1.bf16.msra.mxu0 %v2281
        %2944 = vmatprep.subr.bf16.mxu0 0
        %2945 = vmatpush1.bf16.msra.mxu0 0
        %2946 = vmatprep.subr.bf16.mxu0 0
        %2947 = vmatpush1.bf16.msra.mxu0 0
        %2948 = vmatprep.subr.bf16.mxu0 0
        %2949 = vmatpush1.bf16.msra.mxu0 0
        %2950 = vmatprep.subr.bf16.mxu0 0
        %2951 = vmatpush1.bf16.msra.mxu0 0
        %2952 = vmatprep.subr.bf16.mxu0 0
        %2953 = vmatpush1.bf16.msra.mxu0 0
        %2954 = vmatprep.subr.bf16.mxu0 0
        %2955 = vmatpush1.bf16.msra.mxu0 0
        %2956 = vmatprep.subr.bf16.mxu0 0
        %2957 = vmatpush1.bf16.msra.mxu0 0
        %2958 = vmatprep.subr.bf16.mxu0 0
        %2959 = vmatpush1.bf16.msra.mxu0 0
        %2960 = vmatprep.subr.bf16.mxu0 0
        %2961 = vmatpush1.bf16.msra.mxu0 0
        %2962 = vmatprep.subr.bf16.mxu0 0
        %2963 = vmatpush1.bf16.msra.mxu0 0
        %2964 = vmatprep.subr.bf16.mxu0 0
        %2965 = vmatpush1.bf16.msra.mxu0 0
        %2966 = vmatprep.subr.bf16.mxu0 0
        %2967 = vmatpush1.bf16.msra.mxu0 0
        %2968 = vmatprep.subr.bf16.mxu0 0
        %2969 = vmatpush1.bf16.msra.mxu0 0
        %2970 = vmatprep.subr.bf16.mxu0 0
        %2971 = vmatpush1.bf16.msra.mxu0 0
        %2972 = vmatprep.subr.bf16.mxu0 0
        %2973 = vmatpush1.bf16.msra.mxu0 0
        %2974 = vmatprep.mubr.bf16.mxu0 0
        %2975 = vmatmul.mubr.bf16.gmra.mrb[0].mxu0 %v2338
        %v2976 = vpop.f32.mrb[0].mxu0
        %v2977 = vadd.f32 %v2324, %v2976
        %v2978 = vpop.f32.mrb[0].mxu0
        %v2979 = vadd.f32 %v2324, %v2978
        %v2980 = vpop.f32.mrb[0].mxu0
        %v2981 = vadd.f32 %v2329, %v2980
        %v2982 = vpop.f32.mrb[0].mxu0
        %v2983 = vadd.f32 %v2329, %v2982
        %2984 = vdwg.mxu0
        %2985 = vmatprep.subr.bf16.mxu0 %v2284
        %2986 = vmatpush1.bf16.msra.mxu0 %v2283
        %2987 = vmatprep.subr.bf16.mxu0 0
        %2988 = vmatpush1.bf16.msra.mxu0 0
        %2989 = vmatprep.subr.bf16.mxu0 0
        %2990 = vmatpush1.bf16.msra.mxu0 0
        %2991 = vmatprep.subr.bf16.mxu0 0
        %2992 = vmatpush1.bf16.msra.mxu0 0
        %2993 = vmatprep.subr.bf16.mxu0 0
        %2994 = vmatpush1.bf16.msra.mxu0 0
        %2995 = vmatprep.subr.bf16.mxu0 0
        %2996 = vmatpush1.bf16.msra.mxu0 0
        %2997 = vmatprep.subr.bf16.mxu0 0
        %2998 = vmatpush1.bf16.msra.mxu0 0
        %2999 = vmatprep.subr.bf16.mxu0 0
        %3000 = vmatpush1.bf16.msra.mxu0 0
        %3001 = vmatprep.subr.bf16.mxu0 0
        %3002 = vmatpush1.bf16.msra.mxu0 0
        %3003 = vmatprep.subr.bf16.mxu0 0
        %3004 = vmatpush1.bf16.msra.mxu0 0
        %3005 = vmatprep.subr.bf16.mxu0 0
        %3006 = vmatpush1.bf16.msra.mxu0 0
        %3007 = vmatprep.subr.bf16.mxu0 0
        %3008 = vmatpush1.bf16.msra.mxu0 0
        %3009 = vmatprep.subr.bf16.mxu0 0
        %3010 = vmatpush1.bf16.msra.mxu0 0
        %3011 = vmatprep.subr.bf16.mxu0 0
        %3012 = vmatpush1.bf16.msra.mxu0 0
        %3013 = vmatprep.subr.bf16.mxu0 0
        %3014 = vmatpush1.bf16.msra.mxu0 0
        %3015 = vmatprep.subr.bf16.mxu0 0
        %3016 = vmatpush1.bf16.msra.mxu0 0
        %3017 = vmatprep.mubr.bf16.mxu0 0
        %3018 = vmatmul.mubr.bf16.gmra.mrb[0].mxu0 %v2338
        %v3019 = vpop.f32.mrb[0].mxu0
        %v3020 = vadd.f32 %v2324, %v3019
        %v3021 = vpop.f32.mrb[0].mxu0
        %v3022 = vadd.f32 %v2324, %v3021
        %v3023 = vpop.f32.mrb[0].mxu0
        %v3024 = vadd.f32 %v2329, %v3023
        %v3025 = vpop.f32.mrb[0].mxu0
        %v3026 = vadd.f32 %v2329, %v3025
        %3027 = vdwg.mxu0
        %3028 = vmatprep.subr.bf16.mxu0 %v2286
        %3029 = vmatpush1.bf16.msra.mxu0 %v2285
        %3030 = vmatprep.subr.bf16.mxu0 0
        %3031 = vmatpush1.bf16.msra.mxu0 0
        %3032 = vmatprep.subr.bf16.mxu0 0
        %3033 = vmatpush1.bf16.msra.mxu0 0
        %3034 = vmatprep.subr.bf16.mxu0 0
        %3035 = vmatpush1.bf16.msra.mxu0 0
        %3036 = vmatprep.subr.bf16.mxu0 0
        %3037 = vmatpush1.bf16.msra.mxu0 0
        %3038 = vmatprep.subr.bf16.mxu0 0
        %3039 = vmatpush1.bf16.msra.mxu0 0
        %3040 = vmatprep.subr.bf16.mxu0 0
        %3041 = vmatpush1.bf16.msra.mxu0 0
        %3042 = vmatprep.subr.bf16.mxu0 0
        %3043 = vmatpush1.bf16.msra.mxu0 0
        %3044 = vmatprep.subr.bf16.mxu0 0
        %3045 = vmatpush1.bf16.msra.mxu0 0
        %3046 = vmatprep.subr.bf16.mxu0 0
        %3047 = vmatpush1.bf16.msra.mxu0 0
        %3048 = vmatprep.subr.bf16.mxu0 0
        %3049 = vmatpush1.bf16.msra.mxu0 0
        %3050 = vmatprep.subr.bf16.mxu0 0
        %3051 = vmatpush1.bf16.msra.mxu0 0
        %3052 = vmatprep.subr.bf16.mxu0 0
        %3053 = vmatpush1.bf16.msra.mxu0 0
        %3054 = vmatprep.subr.bf16.mxu0 0
        %3055 = vmatpush1.bf16.msra.mxu0 0
        %3056 = vmatprep.subr.bf16.mxu0 0
        %3057 = vmatpush1.bf16.msra.mxu0 0
        %3058 = vmatprep.subr.bf16.mxu0 0
        %3059 = vmatpush1.bf16.msra.mxu0 0
        %3060 = vmatprep.mubr.bf16.mxu0 0
        %3061 = vmatmul.mubr.bf16.gmra.mrb[0].mxu0 %v2338
        %v3062 = vpop.f32.mrb[0].mxu0
        %v3063 = vadd.f32 %v2324, %v3062
        %v3064 = vpop.f32.mrb[0].mxu0
        %v3065 = vadd.f32 %v2324, %v3064
        %v3066 = vpop.f32.mrb[0].mxu0
        %v3067 = vadd.f32 %v2329, %v3066
        %v3068 = vpop.f32.mrb[0].mxu0
        %v3069 = vadd.f32 %v2329, %v3068
        %3070 = vdwg.mxu0
        %3071 = vmatprep.subr.bf16.mxu0 %v2288
        %3072 = vmatpush1.bf16.msra.mxu0 %v2287
        %3073 = vmatprep.subr.bf16.mxu0 0
        %3074 = vmatpush1.bf16.msra.mxu0 0
        %3075 = vmatprep.subr.bf16.mxu0 0
        %3076 = vmatpush1.bf16.msra.mxu0 0
        %3077 = vmatprep.subr.bf16.mxu0 0
        %3078 = vmatpush1.bf16.msra.mxu0 0
        %3079 = vmatprep.subr.bf16.mxu0 0
        %3080 = vmatpush1.bf16.msra.mxu0 0
        %3081 = vmatprep.subr.bf16.mxu0 0
        %3082 = vmatpush1.bf16.msra.mxu0 0
        %3083 = vmatprep.subr.bf16.mxu0 0
        %3084 = vmatpush1.bf16.msra.mxu0 0
        %3085 = vmatprep.subr.bf16.mxu0 0
        %3086 = vmatpush1.bf16.msra.mxu0 0
        %3087 = vmatprep.subr.bf16.mxu0 0
        %3088 = vmatpush1.bf16.msra.mxu0 0
        %3089 = vmatprep.subr.bf16.mxu0 0
        %3090 = vmatpush1.bf16.msra.mxu0 0
        %3091 = vmatprep.subr.bf16.mxu0 0
        %3092 = vmatpush1.bf16.msra.mxu0 0
        %3093 = vmatprep.subr.bf16.mxu0 0
        %3094 = vmatpush1.bf16.msra.mxu0 0
        %3095 = vmatprep.subr.bf16.mxu0 0
        %3096 = vmatpush1.bf16.msra.mxu0 0
        %3097 = vmatprep.subr.bf16.mxu0 0
        %3098 = vmatpush1.bf16.msra.mxu0 0
        %3099 = vmatprep.subr.bf16.mxu0 0
        %3100 = vmatpush1.bf16.msra.mxu0 0
        %3101 = vmatprep.subr.bf16.mxu0 0
        %3102 = vmatpush1.bf16.msra.mxu0 0
        %3103 = vmatprep.mubr.bf16.mxu0 0
        %3104 = vmatmul.mubr.bf16.gmra.mrb[0].mxu0 %v2338
        %v3105 = vpop.f32.mrb[0].mxu0
        %v3106 = vadd.f32 %v2324, %v3105
        %v3107 = vpop.f32.mrb[0].mxu0
        %v3108 = vadd.f32 %v2324, %v3107
        %v3109 = vpop.f32.mrb[0].mxu0
        %v3110 = vadd.f32 %v2329, %v3109
        %v3111 = vpop.f32.mrb[0].mxu0
        %v3112 = vadd.f32 %v2329, %v3111
        %3113 = vdwg.mxu0
        %3114 = vmatprep.subr.bf16.mxu0 %v2290
        %3115 = vmatpush1.bf16.msra.mxu0 %v2289
        %3116 = vmatprep.subr.bf16.mxu0 0
        %3117 = vmatpush1.bf16.msra.mxu0 0
        %3118 = vmatprep.subr.bf16.mxu0 0
        %3119 = vmatpush1.bf16.msra.mxu0 0
        %3120 = vmatprep.subr.bf16.mxu0 0
        %3121 = vmatpush1.bf16.msra.mxu0 0
        %3122 = vmatprep.subr.bf16.mxu0 0
        %3123 = vmatpush1.bf16.msra.mxu0 0
        %3124 = vmatprep.subr.bf16.mxu0 0
        %3125 = vmatpush1.bf16.msra.mxu0 0
        %3126 = vmatprep.subr.bf16.mxu0 0
        %3127 = vmatpush1.bf16.msra.mxu0 0
        %3128 = vmatprep.subr.bf16.mxu0 0
        %3129 = vmatpush1.bf16.msra.mxu0 0
        %3130 = vmatprep.subr.bf16.mxu0 0
        %3131 = vmatpush1.bf16.msra.mxu0 0
        %3132 = vmatprep.subr.bf16.mxu0 0
        %3133 = vmatpush1.bf16.msra.mxu0 0
        %3134 = vmatprep.subr.bf16.mxu0 0
        %3135 = vmatpush1.bf16.msra.mxu0 0
        %3136 = vmatprep.subr.bf16.mxu0 0
        %3137 = vmatpush1.bf16.msra.mxu0 0
        %3138 = vmatprep.subr.bf16.mxu0 0
        %3139 = vmatpush1.bf16.msra.mxu0 0
        %3140 = vmatprep.subr.bf16.mxu0 0
        %3141 = vmatpush1.bf16.msra.mxu0 0
        %3142 = vmatprep.subr.bf16.mxu0 0
        %3143 = vmatpush1.bf16.msra.mxu0 0
        %3144 = vmatprep.subr.bf16.mxu0 0
        %3145 = vmatpush1.bf16.msra.mxu0 0
        %3146 = vmatprep.mubr.bf16.mxu0 0
        %3147 = vmatmul.mubr.bf16.gmra.mrb[0].mxu0 %v2338
        %v3148 = vpop.f32.mrb[0].mxu0
        %v3149 = vadd.f32 %v2324, %v3148
        %v3150 = vpop.f32.mrb[0].mxu0
        %v3151 = vadd.f32 %v2324, %v3150
        %v3152 = vpop.f32.mrb[0].mxu0
        %v3153 = vadd.f32 %v2329, %v3152
        %v3154 = vpop.f32.mrb[0].mxu0
        %v3155 = vadd.f32 %v2329, %v3154
        %3156 = vdwg.mxu0
        %3157 = vmatprep.subr.bf16.mxu0 %v2292
        %3158 = vmatpush1.bf16.msra.mxu0 %v2291
        %3159 = vmatprep.subr.bf16.mxu0 0
        %3160 = vmatpush1.bf16.msra.mxu0 0
        %3161 = vmatprep.subr.bf16.mxu0 0
        %3162 = vmatpush1.bf16.msra.mxu0 0
        %3163 = vmatprep.subr.bf16.mxu0 0
        %3164 = vmatpush1.bf16.msra.mxu0 0
        %3165 = vmatprep.subr.bf16.mxu0 0
        %3166 = vmatpush1.bf16.msra.mxu0 0
        %3167 = vmatprep.subr.bf16.mxu0 0
        %3168 = vmatpush1.bf16.msra.mxu0 0
        %3169 = vmatprep.subr.bf16.mxu0 0
        %3170 = vmatpush1.bf16.msra.mxu0 0
        %3171 = vmatprep.subr.bf16.mxu0 0
        %3172 = vmatpush1.bf16.msra.mxu0 0
        %3173 = vmatprep.subr.bf16.mxu0 0
        %3174 = vmatpush1.bf16.msra.mxu0 0
        %3175 = vmatprep.subr.bf16.mxu0 0
        %3176 = vmatpush1.bf16.msra.mxu0 0
        %3177 = vmatprep.subr.bf16.mxu0 0
        %3178 = vmatpush1.bf16.msra.mxu0 0
        %3179 = vmatprep.subr.bf16.mxu0 0
        %3180 = vmatpush1.bf16.msra.mxu0 0
        %3181 = vmatprep.subr.bf16.mxu0 0
        %3182 = vmatpush1.bf16.msra.mxu0 0
        %3183 = vmatprep.subr.bf16.mxu0 0
        %3184 = vmatpush1.bf16.msra.mxu0 0
        %3185 = vmatprep.subr.bf16.mxu0 0
        %3186 = vmatpush1.bf16.msra.mxu0 0
        %3187 = vmatprep.subr.bf16.mxu0 0
        %3188 = vmatpush1.bf16.msra.mxu0 0
        %3189 = vmatprep.mubr.bf16.mxu0 0
        %3190 = vmatmul.mubr.bf16.gmra.mrb[0].mxu0 %v2338
        %v3191 = vpop.f32.mrb[0].mxu0
        %v3192 = vadd.f32 %v2324, %v3191
        %v3193 = vpop.f32.mrb[0].mxu0
        %v3194 = vadd.f32 %v2324, %v3193
        %v3195 = vpop.f32.mrb[0].mxu0
        %v3196 = vadd.f32 %v2329, %v3195
        %v3197 = vpop.f32.mrb[0].mxu0
        %v3198 = vadd.f32 %v2329, %v3197
        %3199 = vdwg.mxu0
        %3200 = vmatprep.subr.bf16.mxu0 %v2294
        %3201 = vmatpush1.bf16.msra.mxu0 %v2293
        %3202 = vmatprep.subr.bf16.mxu0 0
        %3203 = vmatpush1.bf16.msra.mxu0 0
        %3204 = vmatprep.subr.bf16.mxu0 0
        %3205 = vmatpush1.bf16.msra.mxu0 0
        %3206 = vmatprep.subr.bf16.mxu0 0
        %3207 = vmatpush1.bf16.msra.mxu0 0
        %3208 = vmatprep.subr.bf16.mxu0 0
        %3209 = vmatpush1.bf16.msra.mxu0 0
        %3210 = vmatprep.subr.bf16.mxu0 0
        %3211 = vmatpush1.bf16.msra.mxu0 0
        %3212 = vmatprep.subr.bf16.mxu0 0
        %3213 = vmatpush1.bf16.msra.mxu0 0
        %3214 = vmatprep.subr.bf16.mxu0 0
        %3215 = vmatpush1.bf16.msra.mxu0 0
        %3216 = vmatprep.subr.bf16.mxu0 0
        %3217 = vmatpush1.bf16.msra.mxu0 0
        %3218 = vmatprep.subr.bf16.mxu0 0
        %3219 = vmatpush1.bf16.msra.mxu0 0
        %3220 = vmatprep.subr.bf16.mxu0 0
        %3221 = vmatpush1.bf16.msra.mxu0 0
        %3222 = vmatprep.subr.bf16.mxu0 0
        %3223 = vmatpush1.bf16.msra.mxu0 0
        %3224 = vmatprep.subr.bf16.mxu0 0
        %3225 = vmatpush1.bf16.msra.mxu0 0
        %3226 = vmatprep.subr.bf16.mxu0 0
        %3227 = vmatpush1.bf16.msra.mxu0 0
        %3228 = vmatprep.subr.bf16.mxu0 0
        %3229 = vmatpush1.bf16.msra.mxu0 0
        %3230 = vmatprep.subr.bf16.mxu0 0
        %3231 = vmatpush1.bf16.msra.mxu0 0
        %3232 = vmatprep.mubr.bf16.mxu0 0
        %3233 = vmatmul.mubr.bf16.gmra.mrb[0].mxu0 %v2338
        %v3234 = vpop.f32.mrb[0].mxu0
        %v3235 = vadd.f32 %v2324, %v3234
        %v3236 = vpop.f32.mrb[0].mxu0
        %v3237 = vadd.f32 %v2324, %v3236
        %v3238 = vpop.f32.mrb[0].mxu0
        %v3239 = vadd.f32 %v2329, %v3238
        %v3240 = vpop.f32.mrb[0].mxu0
        %v3241 = vadd.f32 %v2329, %v3240
        %3242 = vdwg.mxu0
        %3243 = vmatprep.subr.bf16.mxu0 %v2296
        %3244 = vmatpush1.bf16.msra.mxu0 %v2295
        %3245 = vmatprep.subr.bf16.mxu0 0
        %3246 = vmatpush1.bf16.msra.mxu0 0
        %3247 = vmatprep.subr.bf16.mxu0 0
        %3248 = vmatpush1.bf16.msra.mxu0 0
        %3249 = vmatprep.subr.bf16.mxu0 0
        %3250 = vmatpush1.bf16.msra.mxu0 0
        %3251 = vmatprep.subr.bf16.mxu0 0
        %3252 = vmatpush1.bf16.msra.mxu0 0
        %3253 = vmatprep.subr.bf16.mxu0 0
        %3254 = vmatpush1.bf16.msra.mxu0 0
        %3255 = vmatprep.subr.bf16.mxu0 0
        %3256 = vmatpush1.bf16.msra.mxu0 0
        %3257 = vmatprep.subr.bf16.mxu0 0
        %3258 = vmatpush1.bf16.msra.mxu0 0
        %3259 = vmatprep.subr.bf16.mxu0 0
        %3260 = vmatpush1.bf16.msra.mxu0 0
        %3261 = vmatprep.subr.bf16.mxu0 0
        %3262 = vmatpush1.bf16.msra.mxu0 0
        %3263 = vmatprep.subr.bf16.mxu0 0
        %3264 = vmatpush1.bf16.msra.mxu0 0
        %3265 = vmatprep.subr.bf16.mxu0 0
        %3266 = vmatpush1.bf16.msra.mxu0 0
        %3267 = vmatprep.subr.bf16.mxu0 0
        %3268 = vmatpush1.bf16.msra.mxu0 0
        %3269 = vmatprep.subr.bf16.mxu0 0
        %3270 = vmatpush1.bf16.msra.mxu0 0
        %3271 = vmatprep.subr.bf16.mxu0 0
        %3272 = vmatpush1.bf16.msra.mxu0 0
        %3273 = vmatprep.subr.bf16.mxu0 0
        %3274 = vmatpush1.bf16.msra.mxu0 0
        %3275 = vmatprep.mubr.bf16.mxu0 0
        %3276 = vmatmul.mubr.bf16.gmra.mrb[0].mxu0 %v2338
        %v3277 = vpop.f32.mrb[0].mxu0
        %v3278 = vadd.f32 %v2324, %v3277
        %v3279 = vpop.f32.mrb[0].mxu0
        %v3280 = vadd.f32 %v2324, %v3279
        %v3281 = vpop.f32.mrb[0].mxu0
        %v3282 = vadd.f32 %v2329, %v3281
        %v3283 = vpop.f32.mrb[0].mxu0
        %v3284 = vadd.f32 %v2329, %v3283
        %3285 = vdwg.mxu0
        %3286 = vmatprep.subr.bf16.mxu0 %v2298
        %3287 = vmatpush1.bf16.msra.mxu0 %v2297
        %3288 = vmatprep.subr.bf16.mxu0 0
        %3289 = vmatpush1.bf16.msra.mxu0 0
        %3290 = vmatprep.subr.bf16.mxu0 0
        %3291 = vmatpush1.bf16.msra.mxu0 0
        %3292 = vmatprep.subr.bf16.mxu0 0
        %3293 = vmatpush1.bf16.msra.mxu0 0
        %3294 = vmatprep.subr.bf16.mxu0 0
        %3295 = vmatpush1.bf16.msra.mxu0 0
        %3296 = vmatprep.subr.bf16.mxu0 0
        %3297 = vmatpush1.bf16.msra.mxu0 0
        %3298 = vmatprep.subr.bf16.mxu0 0
        %3299 = vmatpush1.bf16.msra.mxu0 0
        %3300 = vmatprep.subr.bf16.mxu0 0
        %3301 = vmatpush1.bf16.msra.mxu0 0
        %3302 = vmatprep.subr.bf16.mxu0 0
        %3303 = vmatpush1.bf16.msra.mxu0 0
        %3304 = vmatprep.subr.bf16.mxu0 0
        %3305 = vmatpush1.bf16.msra.mxu0 0
        %3306 = vmatprep.subr.bf16.mxu0 0
        %3307 = vmatpush1.bf16.msra.mxu0 0
        %3308 = vmatprep.subr.bf16.mxu0 0
        %3309 = vmatpush1.bf16.msra.mxu0 0
        %3310 = vmatprep.subr.bf16.mxu0 0
        %3311 = vmatpush1.bf16.msra.mxu0 0
        %3312 = vmatprep.subr.bf16.mxu0 0
        %3313 = vmatpush1.bf16.msra.mxu0 0
        %3314 = vmatprep.subr.bf16.mxu0 0
        %3315 = vmatpush1.bf16.msra.mxu0 0
        %3316 = vmatprep.subr.bf16.mxu0 0
        %3317 = vmatpush1.bf16.msra.mxu0 0
        %3318 = vmatprep.mubr.bf16.mxu0 0
        %3319 = vmatmul.mubr.bf16.gmra.mrb[0].mxu0 %v2338
        %v3320 = vpop.f32.mrb[0].mxu0
        %v3321 = vadd.f32 %v2324, %v3320
        %v3322 = vpop.f32.mrb[0].mxu0
        %v3323 = vadd.f32 %v2324, %v3322
        %v3324 = vpop.f32.mrb[0].mxu0
        %v3325 = vadd.f32 %v2329, %v3324
        %v3326 = vpop.f32.mrb[0].mxu0
        %v3327 = vadd.f32 %v2329, %v3326
        %3328 = vdwg.mxu0
        %3329 = vmatprep.subr.bf16.mxu0 %v2300
        %3330 = vmatpush1.bf16.msra.mxu0 %v2299
        %3331 = vmatprep.subr.bf16.mxu0 0
        %3332 = vmatpush1.bf16.msra.mxu0 0
        %3333 = vmatprep.subr.bf16.mxu0 0
        %3334 = vmatpush1.bf16.msra.mxu0 0
        %3335 = vmatprep.subr.bf16.mxu0 0
        %3336 = vmatpush1.bf16.msra.mxu0 0
        %3337 = vmatprep.subr.bf16.mxu0 0
        %3338 = vmatpush1.bf16.msra.mxu0 0
        %3339 = vmatprep.subr.bf16.mxu0 0
        %3340 = vmatpush1.bf16.msra.mxu0 0
        %3341 = vmatprep.subr.bf16.mxu0 0
        %3342 = vmatpush1.bf16.msra.mxu0 0
        %3343 = vmatprep.subr.bf16.mxu0 0
        %3344 = vmatpush1.bf16.msra.mxu0 0
        %3345 = vmatprep.subr.bf16.mxu0 0
        %3346 = vmatpush1.bf16.msra.mxu0 0
        %3347 = vmatprep.subr.bf16.mxu0 0
        %3348 = vmatpush1.bf16.msra.mxu0 0
        %3349 = vmatprep.subr.bf16.mxu0 0
        %3350 = vmatpush1.bf16.msra.mxu0 0
        %3351 = vmatprep.subr.bf16.mxu0 0
        %3352 = vmatpush1.bf16.msra.mxu0 0
        %3353 = vmatprep.subr.bf16.mxu0 0
        %3354 = vmatpush1.bf16.msra.mxu0 0
        %3355 = vmatprep.subr.bf16.mxu0 0
        %3356 = vmatpush1.bf16.msra.mxu0 0
        %3357 = vmatprep.subr.bf16.mxu0 0
        %3358 = vmatpush1.bf16.msra.mxu0 0
        %3359 = vmatprep.subr.bf16.mxu0 0
        %3360 = vmatpush1.bf16.msra.mxu0 0
        %3361 = vmatprep.mubr.bf16.mxu0 0
        %3362 = vmatmul.mubr.bf16.gmra.mrb[0].mxu0 %v2338
        %v3363 = vpop.f32.mrb[0].mxu0
        %v3364 = vadd.f32 %v2324, %v3363
        %v3365 = vpop.f32.mrb[0].mxu0
        %v3366 = vadd.f32 %v2324, %v3365
        %v3367 = vpop.f32.mrb[0].mxu0
        %v3368 = vadd.f32 %v2329, %v3367
        %v3369 = vpop.f32.mrb[0].mxu0
        %v3370 = vadd.f32 %v2329, %v3369
        %3371 = vdwg.mxu0
        %3372 = vmatprep.subr.bf16.mxu0 %v2302
        %3373 = vmatpush1.bf16.msra.mxu0 %v2301
        %3374 = vmatprep.subr.bf16.mxu0 0
        %3375 = vmatpush1.bf16.msra.mxu0 0
        %3376 = vmatprep.subr.bf16.mxu0 0
        %3377 = vmatpush1.bf16.msra.mxu0 0
        %3378 = vmatprep.subr.bf16.mxu0 0
        %3379 = vmatpush1.bf16.msra.mxu0 0
        %3380 = vmatprep.subr.bf16.mxu0 0
        %3381 = vmatpush1.bf16.msra.mxu0 0
        %3382 = vmatprep.subr.bf16.mxu0 0
        %3383 = vmatpush1.bf16.msra.mxu0 0
        %3384 = vmatprep.subr.bf16.mxu0 0
        %3385 = vmatpush1.bf16.msra.mxu0 0
        %3386 = vmatprep.subr.bf16.mxu0 0
        %3387 = vmatpush1.bf16.msra.mxu0 0
        %3388 = vmatprep.subr.bf16.mxu0 0
        %3389 = vmatpush1.bf16.msra.mxu0 0
        %3390 = vmatprep.subr.bf16.mxu0 0
        %3391 = vmatpush1.bf16.msra.mxu0 0
        %3392 = vmatprep.subr.bf16.mxu0 0
        %3393 = vmatpush1.bf16.msra.mxu0 0
        %3394 = vmatprep.subr.bf16.mxu0 0
        %3395 = vmatpush1.bf16.msra.mxu0 0
        %3396 = vmatprep.subr.bf16.mxu0 0
        %3397 = vmatpush1.bf16.msra.mxu0 0
        %3398 = vmatprep.subr.bf16.mxu0 0
        %3399 = vmatpush1.bf16.msra.mxu0 0
        %3400 = vmatprep.subr.bf16.mxu0 0
        %3401 = vmatpush1.bf16.msra.mxu0 0
        %3402 = vmatprep.subr.bf16.mxu0 0
        %3403 = vmatpush1.bf16.msra.mxu0 0
        %3404 = vmatprep.mubr.bf16.mxu0 0
        %3405 = vmatmul.mubr.bf16.gmra.mrb[0].mxu0 %v2338
        %v3406 = vpop.f32.mrb[0].mxu0
        %v3407 = vadd.f32 %v2324, %v3406
        %v3408 = vpop.f32.mrb[0].mxu0
        %v3409 = vadd.f32 %v2324, %v3408
        %v3410 = vpop.f32.mrb[0].mxu0
        %v3411 = vadd.f32 %v2329, %v3410
        %v3412 = vpop.f32.mrb[0].mxu0
        %v3413 = vadd.f32 %v2329, %v3412
        %3414 = vdwg.mxu0
        %3415 = vmatprep.subr.bf16.mxu0 %v2304
        %3416 = vmatpush1.bf16.msra.mxu0 %v2303
        %3417 = vmatprep.subr.bf16.mxu0 0
        %3418 = vmatpush1.bf16.msra.mxu0 0
        %3419 = vmatprep.subr.bf16.mxu0 0
        %3420 = vmatpush1.bf16.msra.mxu0 0
        %3421 = vmatprep.subr.bf16.mxu0 0
        %3422 = vmatpush1.bf16.msra.mxu0 0
        %3423 = vmatprep.subr.bf16.mxu0 0
        %3424 = vmatpush1.bf16.msra.mxu0 0
        %3425 = vmatprep.subr.bf16.mxu0 0
        %3426 = vmatpush1.bf16.msra.mxu0 0
        %3427 = vmatprep.subr.bf16.mxu0 0
        %3428 = vmatpush1.bf16.msra.mxu0 0
        %3429 = vmatprep.subr.bf16.mxu0 0
        %3430 = vmatpush1.bf16.msra.mxu0 0
        %3431 = vmatprep.subr.bf16.mxu0 0
        %3432 = vmatpush1.bf16.msra.mxu0 0
        %3433 = vmatprep.subr.bf16.mxu0 0
        %3434 = vmatpush1.bf16.msra.mxu0 0
        %3435 = vmatprep.subr.bf16.mxu0 0
        %3436 = vmatpush1.bf16.msra.mxu0 0
        %3437 = vmatprep.subr.bf16.mxu0 0
        %3438 = vmatpush1.bf16.msra.mxu0 0
        %3439 = vmatprep.subr.bf16.mxu0 0
        %3440 = vmatpush1.bf16.msra.mxu0 0
        %3441 = vmatprep.subr.bf16.mxu0 0
        %3442 = vmatpush1.bf16.msra.mxu0 0
        %3443 = vmatprep.subr.bf16.mxu0 0
        %3444 = vmatpush1.bf16.msra.mxu0 0
        %3445 = vmatprep.subr.bf16.mxu0 0
        %3446 = vmatpush1.bf16.msra.mxu0 0
        %3447 = vmatprep.mubr.bf16.mxu0 0
        %3448 = vmatmul.mubr.bf16.gmra.mrb[0].mxu0 %v2338
        %v3449 = vpop.f32.mrb[0].mxu0
        %v3450 = vadd.f32 %v2324, %v3449
        %v3451 = vpop.f32.mrb[0].mxu0
        %v3452 = vadd.f32 %v2324, %v3451
        %v3453 = vpop.f32.mrb[0].mxu0
        %v3454 = vadd.f32 %v2329, %v3453
        %v3455 = vpop.f32.mrb[0].mxu0
        %v3456 = vadd.f32 %v2329, %v3455
        %3457 = vdwg.mxu0
        %3458 = vmatprep.subr.bf16.mxu0 %v2306
        %3459 = vmatpush1.bf16.msra.mxu0 %v2305
        %3460 = vmatprep.subr.bf16.mxu0 0
        %3461 = vmatpush1.bf16.msra.mxu0 0
        %3462 = vmatprep.subr.bf16.mxu0 0
        %3463 = vmatpush1.bf16.msra.mxu0 0
        %3464 = vmatprep.subr.bf16.mxu0 0
        %3465 = vmatpush1.bf16.msra.mxu0 0
        %3466 = vmatprep.subr.bf16.mxu0 0
        %3467 = vmatpush1.bf16.msra.mxu0 0
        %3468 = vmatprep.subr.bf16.mxu0 0
        %3469 = vmatpush1.bf16.msra.mxu0 0
        %3470 = vmatprep.subr.bf16.mxu0 0
        %3471 = vmatpush1.bf16.msra.mxu0 0
        %3472 = vmatprep.subr.bf16.mxu0 0
        %3473 = vmatpush1.bf16.msra.mxu0 0
        %3474 = vmatprep.subr.bf16.mxu0 0
        %3475 = vmatpush1.bf16.msra.mxu0 0
        %3476 = vmatprep.subr.bf16.mxu0 0
        %3477 = vmatpush1.bf16.msra.mxu0 0
        %3478 = vmatprep.subr.bf16.mxu0 0
        %3479 = vmatpush1.bf16.msra.mxu0 0
        %3480 = vmatprep.subr.bf16.mxu0 0
        %3481 = vmatpush1.bf16.msra.mxu0 0
        %3482 = vmatprep.subr.bf16.mxu0 0
        %3483 = vmatpush1.bf16.msra.mxu0 0
        %3484 = vmatprep.subr.bf16.mxu0 0
        %3485 = vmatpush1.bf16.msra.mxu0 0
        %3486 = vmatprep.subr.bf16.mxu0 0
        %3487 = vmatpush1.bf16.msra.mxu0 0
        %3488 = vmatprep.subr.bf16.mxu0 0
        %3489 = vmatpush1.bf16.msra.mxu0 0
        %3490 = vmatprep.mubr.bf16.mxu0 0
        %3491 = vmatmul.mubr.bf16.gmra.mrb[0].mxu0 %v2338
        %v3492 = vpop.f32.mrb[0].mxu0
        %v3493 = vadd.f32 %v2324, %v3492
        %v3494 = vpop.f32.mrb[0].mxu0
        %v3495 = vadd.f32 %v2324, %v3494
        %v3496 = vpop.f32.mrb[0].mxu0
        %v3497 = vadd.f32 %v2329, %v3496
        %v3498 = vpop.f32.mrb[0].mxu0
        %v3499 = vadd.f32 %v2329, %v3498
        %3500 = vdwg.mxu0
        %3501 = vmatprep.subr.bf16.mxu0 %v2308
        %3502 = vmatpush1.bf16.msra.mxu0 %v2307
        %3503 = vmatprep.subr.bf16.mxu0 0
        %3504 = vmatpush1.bf16.msra.mxu0 0
        %3505 = vmatprep.subr.bf16.mxu0 0
        %3506 = vmatpush1.bf16.msra.mxu0 0
        %3507 = vmatprep.subr.bf16.mxu0 0
        %3508 = vmatpush1.bf16.msra.mxu0 0
        %3509 = vmatprep.subr.bf16.mxu0 0
        %3510 = vmatpush1.bf16.msra.mxu0 0
        %3511 = vmatprep.subr.bf16.mxu0 0
        %3512 = vmatpush1.bf16.msra.mxu0 0
        %3513 = vmatprep.subr.bf16.mxu0 0
        %3514 = vmatpush1.bf16.msra.mxu0 0
        %3515 = vmatprep.subr.bf16.mxu0 0
        %3516 = vmatpush1.bf16.msra.mxu0 0
        %3517 = vmatprep.subr.bf16.mxu0 0
        %3518 = vmatpush1.bf16.msra.mxu0 0
        %3519 = vmatprep.subr.bf16.mxu0 0
        %3520 = vmatpush1.bf16.msra.mxu0 0
        %3521 = vmatprep.subr.bf16.mxu0 0
        %3522 = vmatpush1.bf16.msra.mxu0 0
        %3523 = vmatprep.subr.bf16.mxu0 0
        %3524 = vmatpush1.bf16.msra.mxu0 0
        %3525 = vmatprep.subr.bf16.mxu0 0
        %3526 = vmatpush1.bf16.msra.mxu0 0
        %3527 = vmatprep.subr.bf16.mxu0 0
        %3528 = vmatpush1.bf16.msra.mxu0 0
        %3529 = vmatprep.subr.bf16.mxu0 0
        %3530 = vmatpush1.bf16.msra.mxu0 0
        %3531 = vmatprep.subr.bf16.mxu0 0
        %3532 = vmatpush1.bf16.msra.mxu0 0
        %3533 = vmatprep.mubr.bf16.mxu0 0
        %3534 = vmatmul.mubr.bf16.gmra.mrb[0].mxu0 %v2338
        %v3535 = vpop.f32.mrb[0].mxu0
        %v3536 = vadd.f32 %v2324, %v3535
        %v3537 = vpop.f32.mrb[0].mxu0
        %v3538 = vadd.f32 %v2324, %v3537
        %v3539 = vpop.f32.mrb[0].mxu0
        %v3540 = vadd.f32 %v2329, %v3539
        %v3541 = vpop.f32.mrb[0].mxu0
        %v3542 = vadd.f32 %v2329, %v3541
        %3543 = vdwg.mxu0
        %3544 = vmatprep.subr.bf16.mxu0 %v2310
        %3545 = vmatpush1.bf16.msra.mxu0 %v2309
        %3546 = vmatprep.subr.bf16.mxu0 0
        %3547 = vmatpush1.bf16.msra.mxu0 0
        %3548 = vmatprep.subr.bf16.mxu0 0
        %3549 = vmatpush1.bf16.msra.mxu0 0
        %3550 = vmatprep.subr.bf16.mxu0 0
        %3551 = vmatpush1.bf16.msra.mxu0 0
        %3552 = vmatprep.subr.bf16.mxu0 0
        %3553 = vmatpush1.bf16.msra.mxu0 0
        %3554 = vmatprep.subr.bf16.mxu0 0
        %3555 = vmatpush1.bf16.msra.mxu0 0
        %3556 = vmatprep.subr.bf16.mxu0 0
        %3557 = vmatpush1.bf16.msra.mxu0 0
        %3558 = vmatprep.subr.bf16.mxu0 0
        %3559 = vmatpush1.bf16.msra.mxu0 0
        %3560 = vmatprep.subr.bf16.mxu0 0
        %3561 = vmatpush1.bf16.msra.mxu0 0
        %3562 = vmatprep.subr.bf16.mxu0 0
        %3563 = vmatpush1.bf16.msra.mxu0 0
        %3564 = vmatprep.subr.bf16.mxu0 0
        %3565 = vmatpush1.bf16.msra.mxu0 0
        %3566 = vmatprep.subr.bf16.mxu0 0
        %3567 = vmatpush1.bf16.msra.mxu0 0
        %3568 = vmatprep.subr.bf16.mxu0 0
        %3569 = vmatpush1.bf16.msra.mxu0 0
        %3570 = vmatprep.subr.bf16.mxu0 0
        %3571 = vmatpush1.bf16.msra.mxu0 0
        %3572 = vmatprep.subr.bf16.mxu0 0
        %3573 = vmatpush1.bf16.msra.mxu0 0
        %3574 = vmatprep.subr.bf16.mxu0 0
        %3575 = vmatpush1.bf16.msra.mxu0 0
        %3576 = vmatprep.mubr.bf16.mxu0 0
        %3577 = vmatmul.mubr.bf16.gmra.mrb[0].mxu0 %v2338
        %v3578 = vpop.f32.mrb[0].mxu0
        %v3579 = vadd.f32 %v2324, %v3578
        %v3580 = vpop.f32.mrb[0].mxu0
        %v3581 = vadd.f32 %v2324, %v3580
        %v3582 = vpop.f32.mrb[0].mxu0
        %v3583 = vadd.f32 %v2329, %v3582
        %v3584 = vpop.f32.mrb[0].mxu0
        %v3585 = vadd.f32 %v2329, %v3584
        %3586 = vdwg.mxu0
        %3587 = vmatprep.subr.bf16.mxu0 %v2312
        %3588 = vmatpush1.bf16.msra.mxu0 %v2311
        %3589 = vmatprep.subr.bf16.mxu0 0
        %3590 = vmatpush1.bf16.msra.mxu0 0
        %3591 = vmatprep.subr.bf16.mxu0 0
        %3592 = vmatpush1.bf16.msra.mxu0 0
        %3593 = vmatprep.subr.bf16.mxu0 0
        %3594 = vmatpush1.bf16.msra.mxu0 0
        %3595 = vmatprep.subr.bf16.mxu0 0
        %3596 = vmatpush1.bf16.msra.mxu0 0
        %3597 = vmatprep.subr.bf16.mxu0 0
        %3598 = vmatpush1.bf16.msra.mxu0 0
        %3599 = vmatprep.subr.bf16.mxu0 0
        %3600 = vmatpush1.bf16.msra.mxu0 0
        %3601 = vmatprep.subr.bf16.mxu0 0
        %3602 = vmatpush1.bf16.msra.mxu0 0
        %3603 = vmatprep.subr.bf16.mxu0 0
        %3604 = vmatpush1.bf16.msra.mxu0 0
        %3605 = vmatprep.subr.bf16.mxu0 0
        %3606 = vmatpush1.bf16.msra.mxu0 0
        %3607 = vmatprep.subr.bf16.mxu0 0
        %3608 = vmatpush1.bf16.msra.mxu0 0
        %3609 = vmatprep.subr.bf16.mxu0 0
        %3610 = vmatpush1.bf16.msra.mxu0 0
        %3611 = vmatprep.subr.bf16.mxu0 0
        %3612 = vmatpush1.bf16.msra.mxu0 0
        %3613 = vmatprep.subr.bf16.mxu0 0
        %3614 = vmatpush1.bf16.msra.mxu0 0
        %3615 = vmatprep.subr.bf16.mxu0 0
        %3616 = vmatpush1.bf16.msra.mxu0 0
        %3617 = vmatprep.subr.bf16.mxu0 0
        %3618 = vmatpush1.bf16.msra.mxu0 0
        %3619 = vmatprep.mubr.bf16.mxu0 0
        %3620 = vmatmul.mubr.bf16.gmra.mrb[0].mxu0 %v2338
        %v3621 = vpop.f32.mrb[0].mxu0
        %v3622 = vadd.f32 %v2324, %v3621
        %v3623 = vpop.f32.mrb[0].mxu0
        %v3624 = vadd.f32 %v2324, %v3623
        %v3625 = vpop.f32.mrb[0].mxu0
        %v3626 = vadd.f32 %v2329, %v3625
        %v3627 = vpop.f32.mrb[0].mxu0
        %v3628 = vadd.f32 %v2329, %v3627
        %3629 = vdwg.mxu0
        %3630 = vmatprep.subr.bf16.mxu0 %v2314
        %3631 = vmatpush1.bf16.msra.mxu0 %v2313
        %3632 = vmatprep.subr.bf16.mxu0 0
        %3633 = vmatpush1.bf16.msra.mxu0 0
        %3634 = vmatprep.subr.bf16.mxu0 0
        %3635 = vmatpush1.bf16.msra.mxu0 0
        %3636 = vmatprep.subr.bf16.mxu0 0
        %3637 = vmatpush1.bf16.msra.mxu0 0
        %3638 = vmatprep.subr.bf16.mxu0 0
        %3639 = vmatpush1.bf16.msra.mxu0 0
        %3640 = vmatprep.subr.bf16.mxu0 0
        %3641 = vmatpush1.bf16.msra.mxu0 0
        %3642 = vmatprep.subr.bf16.mxu0 0
        %3643 = vmatpush1.bf16.msra.mxu0 0
        %3644 = vmatprep.subr.bf16.mxu0 0
        %3645 = vmatpush1.bf16.msra.mxu0 0
        %3646 = vmatprep.subr.bf16.mxu0 0
        %3647 = vmatpush1.bf16.msra.mxu0 0
        %3648 = vmatprep.subr.bf16.mxu0 0
        %3649 = vmatpush1.bf16.msra.mxu0 0
        %3650 = vmatprep.subr.bf16.mxu0 0
        %3651 = vmatpush1.bf16.msra.mxu0 0
        %3652 = vmatprep.subr.bf16.mxu0 0
        %3653 = vmatpush1.bf16.msra.mxu0 0
        %3654 = vmatprep.subr.bf16.mxu0 0
        %3655 = vmatpush1.bf16.msra.mxu0 0
        %3656 = vmatprep.subr.bf16.mxu0 0
        %3657 = vmatpush1.bf16.msra.mxu0 0
        %3658 = vmatprep.subr.bf16.mxu0 0
        %3659 = vmatpush1.bf16.msra.mxu0 0
        %3660 = vmatprep.subr.bf16.mxu0 0
        %3661 = vmatpush1.bf16.msra.mxu0 0
        %3662 = vmatprep.mubr.bf16.mxu0 0
        %3663 = vmatmul.mubr.bf16.gmra.mrb[0].mxu0 %v2338
        %v3664 = vpop.f32.mrb[0].mxu0
        %v3665 = vadd.f32 %v2324, %v3664
        %v3666 = vpop.f32.mrb[0].mxu0
        %v3667 = vadd.f32 %v2324, %v3666
        %v3668 = vpop.f32.mrb[0].mxu0
        %v3669 = vadd.f32 %v2329, %v3668
        %v3670 = vpop.f32.mrb[0].mxu0
        %v3671 = vadd.f32 %v2329, %v3670
        %3672 = vdwg.mxu0
        %3673 = vmatprep.subr.bf16.mxu0 %v2316
        %3674 = vmatpush1.bf16.msra.mxu0 %v2315
        %3675 = vmatprep.subr.bf16.mxu0 0
        %3676 = vmatpush1.bf16.msra.mxu0 0
        %3677 = vmatprep.subr.bf16.mxu0 0
        %3678 = vmatpush1.bf16.msra.mxu0 0
        %3679 = vmatprep.subr.bf16.mxu0 0
        %3680 = vmatpush1.bf16.msra.mxu0 0
        %3681 = vmatprep.subr.bf16.mxu0 0
        %3682 = vmatpush1.bf16.msra.mxu0 0
        %3683 = vmatprep.subr.bf16.mxu0 0
        %3684 = vmatpush1.bf16.msra.mxu0 0
        %3685 = vmatprep.subr.bf16.mxu0 0
        %3686 = vmatpush1.bf16.msra.mxu0 0
        %3687 = vmatprep.subr.bf16.mxu0 0
        %3688 = vmatpush1.bf16.msra.mxu0 0
        %3689 = vmatprep.subr.bf16.mxu0 0
        %3690 = vmatpush1.bf16.msra.mxu0 0
        %3691 = vmatprep.subr.bf16.mxu0 0
        %3692 = vmatpush1.bf16.msra.mxu0 0
        %3693 = vmatprep.subr.bf16.mxu0 0
        %3694 = vmatpush1.bf16.msra.mxu0 0
        %3695 = vmatprep.subr.bf16.mxu0 0
        %3696 = vmatpush1.bf16.msra.mxu0 0
        %3697 = vmatprep.subr.bf16.mxu0 0
        %3698 = vmatpush1.bf16.msra.mxu0 0
        %3699 = vmatprep.subr.bf16.mxu0 0
        %3700 = vmatpush1.bf16.msra.mxu0 0
        %3701 = vmatprep.subr.bf16.mxu0 0
        %3702 = vmatpush1.bf16.msra.mxu0 0
        %3703 = vmatprep.subr.bf16.mxu0 0
        %3704 = vmatpush1.bf16.msra.mxu0 0
        %3705 = vmatprep.mubr.bf16.mxu0 0
        %3706 = vmatmul.mubr.bf16.gmra.mrb[0].mxu0 %v2338
        %v3707 = vpop.f32.mrb[0].mxu0
        %v3708 = vadd.f32 %v2324, %v3707
        %v3709 = vpop.f32.mrb[0].mxu0
        %v3710 = vadd.f32 %v2324, %v3709
        %v3711 = vpop.f32.mrb[0].mxu0
        %v3712 = vadd.f32 %v2329, %v3711
        %v3713 = vpop.f32.mrb[0].mxu0
        %v3714 = vadd.f32 %v2329, %v3713
        %3715 = vdwg.mxu0
        %v3716 = vmax.f32 %v2375, 0.0
        %v3717 = vmax.f32 %v2377, 0.0
        %v3718 = vmax.f32 %v2418, 0.0
        %v3719 = vmax.f32 %v2420, 0.0
        %v3720 = vmax.f32 %v2461, 0.0
        %v3721 = vmax.f32 %v2463, 0.0
        %v3722 = vmax.f32 %v2504, 0.0
        %v3723 = vmax.f32 %v2506, 0.0
        %v3724 = vmax.f32 %v2547, 0.0
        %v3725 = vmax.f32 %v2549, 0.0
        %v3726 = vmax.f32 %v2590, 0.0
        %v3727 = vmax.f32 %v2592, 0.0
        %v3728 = vmax.f32 %v2633, 0.0
        %v3729 = vmax.f32 %v2635, 0.0
        %v3730 = vmax.f32 %v2676, 0.0
        %v3731 = vmax.f32 %v2678, 0.0
        %v3732 = vmax.f32 %v2719, 0.0
        %v3733 = vmax.f32 %v2721, 0.0
        %v3734 = vmax.f32 %v2762, 0.0
        %v3735 = vmax.f32 %v2764, 0.0
        %v3736 = vmax.f32 %v2805, 0.0
        %v3737 = vmax.f32 %v2807, 0.0
        %v3738 = vmax.f32 %v2848, 0.0
        %v3739 = vmax.f32 %v2850, 0.0
        %v3740 = vmax.f32 %v2891, 0.0
        %v3741 = vmax.f32 %v2893, 0.0
        %v3742 = vmax.f32 %v2934, 0.0
        %v3743 = vmax.f32 %v2936, 0.0
        %v3744 = vmax.f32 %v2977, 0.0
        %v3745 = vmax.f32 %v2979, 0.0
        %v3746 = vmax.f32 %v3020, 0.0
        %v3747 = vmax.f32 %v3022, 0.0
        %v3748 = vmax.f32 %v3063, 0.0
        %v3749 = vmax.f32 %v3065, 0.0
        %v3750 = vmax.f32 %v3106, 0.0
        %v3751 = vmax.f32 %v3108, 0.0
        %v3752 = vmax.f32 %v3149, 0.0
        %v3753 = vmax.f32 %v3151, 0.0
        %v3754 = vmax.f32 %v3192, 0.0
        %v3755 = vmax.f32 %v3194, 0.0
        %v3756 = vmax.f32 %v3235, 0.0
        %v3757 = vmax.f32 %v3237, 0.0
        %v3758 = vmax.f32 %v3278, 0.0
        %v3759 = vmax.f32 %v3280, 0.0
        %v3760 = vmax.f32 %v3321, 0.0
        %v3761 = vmax.f32 %v3323, 0.0
        %v3762 = vmax.f32 %v3364, 0.0
        %v3763 = vmax.f32 %v3366, 0.0
        %v3764 = vmax.f32 %v3407, 0.0
        %v3765 = vmax.f32 %v3409, 0.0
        %v3766 = vmax.f32 %v3450, 0.0
        %v3767 = vmax.f32 %v3452, 0.0
        %v3768 = vmax.f32 %v3493, 0.0
        %v3769 = vmax.f32 %v3495, 0.0
        %v3770 = vmax.f32 %v3536, 0.0
        %v3771 = vmax.f32 %v3538, 0.0
        %v3772 = vmax.f32 %v3579, 0.0
        %v3773 = vmax.f32 %v3581, 0.0
        %v3774 = vmax.f32 %v3622, 0.0
        %v3775 = vmax.f32 %v3624, 0.0
        %v3776 = vmax.f32 %v3665, 0.0
        %v3777 = vmax.f32 %v3667, 0.0
        %v3778 = vmax.f32 %v3708, 0.0
        %v3779 = vmax.f32 %v3710, 0.0
        %v3780 = vmax.f32 %v2379, 0.0
        %v3781 = vmax.f32 %v2381, 0.0
        %v3782 = vmax.f32 %v2422, 0.0
        %v3783 = vmax.f32 %v2424, 0.0
        %v3784 = vmax.f32 %v2465, 0.0
        %v3785 = vmax.f32 %v2467, 0.0
        %v3786 = vmax.f32 %v2508, 0.0
        %v3787 = vmax.f32 %v2510, 0.0
        %v3788 = vmax.f32 %v2551, 0.0
        %v3789 = vmax.f32 %v2553, 0.0
        %v3790 = vmax.f32 %v2594, 0.0
        %v3791 = vmax.f32 %v2596, 0.0
        %v3792 = vmax.f32 %v2637, 0.0
        %v3793 = vmax.f32 %v2639, 0.0
        %v3794 = vmax.f32 %v2680, 0.0
        %v3795 = vmax.f32 %v2682, 0.0
        %v3796 = vmax.f32 %v2723, 0.0
        %v3797 = vmax.f32 %v2725, 0.0
        %v3798 = vmax.f32 %v2766, 0.0
        %v3799 = vmax.f32 %v2768, 0.0
        %v3800 = vmax.f32 %v2809, 0.0
        %v3801 = vmax.f32 %v2811, 0.0
        %v3802 = vmax.f32 %v2852, 0.0
        %v3803 = vmax.f32 %v2854, 0.0
        %v3804 = vmax.f32 %v2895, 0.0
        %v3805 = vmax.f32 %v2897, 0.0
        %v3806 = vmax.f32 %v2938, 0.0
        %v3807 = vmax.f32 %v2940, 0.0
        %v3808 = vmax.f32 %v2981, 0.0
        %v3809 = vmax.f32 %v2983, 0.0
        %v3810 = vmax.f32 %v3024, 0.0
        %v3811 = vmax.f32 %v3026, 0.0
        %v3812 = vmax.f32 %v3067, 0.0
        %v3813 = vmax.f32 %v3069, 0.0
        %v3814 = vmax.f32 %v3110, 0.0
        %v3815 = vmax.f32 %v3112, 0.0
        %v3816 = vmax.f32 %v3153, 0.0
        %v3817 = vmax.f32 %v3155, 0.0
        %v3818 = vmax.f32 %v3196, 0.0
        %v3819 = vmax.f32 %v3198, 0.0
        %v3820 = vmax.f32 %v3239, 0.0
        %v3821 = vmax.f32 %v3241, 0.0
        %v3822 = vmax.f32 %v3282, 0.0
        %v3823 = vmax.f32 %v3284, 0.0
        %v3824 = vmax.f32 %v3325, 0.0
        %v3825 = vmax.f32 %v3327, 0.0
        %v3826 = vmax.f32 %v3368, 0.0
        %v3827 = vmax.f32 %v3370, 0.0
        %v3828 = vmax.f32 %v3411, 0.0
        %v3829 = vmax.f32 %v3413, 0.0
        %v3830 = vmax.f32 %v3454, 0.0
        %v3831 = vmax.f32 %v3456, 0.0
        %v3832 = vmax.f32 %v3497, 0.0
        %v3833 = vmax.f32 %v3499, 0.0
        %v3834 = vmax.f32 %v3540, 0.0
        %v3835 = vmax.f32 %v3542, 0.0
        %v3836 = vmax.f32 %v3583, 0.0
        %v3837 = vmax.f32 %v3585, 0.0
        %v3838 = vmax.f32 %v3626, 0.0
        %v3839 = vmax.f32 %v3628, 0.0
        %v3840 = vmax.f32 %v3669, 0.0
        %v3841 = vmax.f32 %v3671, 0.0
        %v3842 = vmax.f32 %v3712, 0.0
        %v3843 = vmax.f32 %v3714, 0.0
        %v3844 = vpack.c.bf16 %v3780, %v3716
        %v3845 = vpack.c.bf16 %v3781, %v3717
        %v3846 = vpack.c.bf16 %v3782, %v3718
        %v3847 = vpack.c.bf16 %v3783, %v3719
        %v3848 = vpack.c.bf16 %v3784, %v3720
        %v3849 = vpack.c.bf16 %v3785, %v3721
        %v3850 = vpack.c.bf16 %v3786, %v3722
        %v3851 = vpack.c.bf16 %v3787, %v3723
        %v3852 = vpack.c.bf16 %v3788, %v3724
        %v3853 = vpack.c.bf16 %v3789, %v3725
        %v3854 = vpack.c.bf16 %v3790, %v3726
        %v3855 = vpack.c.bf16 %v3791, %v3727
        %v3856 = vpack.c.bf16 %v3792, %v3728
        %v3857 = vpack.c.bf16 %v3793, %v3729
        %v3858 = vpack.c.bf16 %v3794, %v3730
        %v3859 = vpack.c.bf16 %v3795, %v3731
        %v3860 = vpack.c.bf16 %v3796, %v3732
        %v3861 = vpack.c.bf16 %v3797, %v3733
        %v3862 = vpack.c.bf16 %v3798, %v3734
        %v3863 = vpack.c.bf16 %v3799, %v3735
        %v3864 = vpack.c.bf16 %v3800, %v3736
        %v3865 = vpack.c.bf16 %v3801, %v3737
        %v3866 = vpack.c.bf16 %v3802, %v3738
        %v3867 = vpack.c.bf16 %v3803, %v3739
        %v3868 = vpack.c.bf16 %v3804, %v3740
        %v3869 = vpack.c.bf16 %v3805, %v3741
        %v3870 = vpack.c.bf16 %v3806, %v3742
        %v3871 = vpack.c.bf16 %v3807, %v3743
        %v3872 = vpack.c.bf16 %v3808, %v3744
        %v3873 = vpack.c.bf16 %v3809, %v3745
        %v3874 = vpack.c.bf16 %v3810, %v3746
        %v3875 = vpack.c.bf16 %v3811, %v3747
        %v3876 = vpack.c.bf16 %v3812, %v3748
        %v3877 = vpack.c.bf16 %v3813, %v3749
        %v3878 = vpack.c.bf16 %v3814, %v3750
        %v3879 = vpack.c.bf16 %v3815, %v3751
        %v3880 = vpack.c.bf16 %v3816, %v3752
        %v3881 = vpack.c.bf16 %v3817, %v3753
        %v3882 = vpack.c.bf16 %v3818, %v3754
        %v3883 = vpack.c.bf16 %v3819, %v3755
        %v3884 = vpack.c.bf16 %v3820, %v3756
        %v3885 = vpack.c.bf16 %v3821, %v3757
        %v3886 = vpack.c.bf16 %v3822, %v3758
        %v3887 = vpack.c.bf16 %v3823, %v3759
        %v3888 = vpack.c.bf16 %v3824, %v3760
        %v3889 = vpack.c.bf16 %v3825, %v3761
        %v3890 = vpack.c.bf16 %v3826, %v3762
        %v3891 = vpack.c.bf16 %v3827, %v3763
        %v3892 = vpack.c.bf16 %v3828, %v3764
        %v3893 = vpack.c.bf16 %v3829, %v3765
        %v3894 = vpack.c.bf16 %v3830, %v3766
        %v3895 = vpack.c.bf16 %v3831, %v3767
        %v3896 = vpack.c.bf16 %v3832, %v3768
        %v3897 = vpack.c.bf16 %v3833, %v3769
        %v3898 = vpack.c.bf16 %v3834, %v3770
        %v3899 = vpack.c.bf16 %v3835, %v3771
        %v3900 = vpack.c.bf16 %v3836, %v3772
        %v3901 = vpack.c.bf16 %v3837, %v3773
        %v3902 = vpack.c.bf16 %v3838, %v3774
        %v3903 = vpack.c.bf16 %v3839, %v3775
        %v3904 = vpack.c.bf16 %v3840, %v3776
        %v3905 = vpack.c.bf16 %v3841, %v3777
        %v3906 = vpack.c.bf16 %v3842, %v3778
        %v3907 = vpack.c.bf16 %v3843, %v3779
        %v3908 = vld [vmem:[%s6] sm:$0xf]
        %v3909 = vld [vmem:[%s6 + $0x4] sm:$0xf]
        %v3910 = vld [vmem:[%s6 + $0x8] sm:$0xf]
        %v3911 = vld [vmem:[%s6 + $0xc] sm:$0xf]
        %v3912 = vld [vmem:[%s7] sm:$0xff]
        %v3913 = vld [vmem:[%s7 + $0x8] sm:$0xff]
        %v3914 = vld [vmem:[%s7 + $0x10] sm:$0xff]
        %v3915 = vld [vmem:[%s7 + $0x18] sm:$0xff]
        %3917 = vset.pattern.permute.xlu0 0
        %3918 = vperm.xlu0 %3917, %v3912
        %v3919 = vpop.permute.xlu0 %3918
        %3922 = vset.pattern.permute.xlu0 0
        %3923 = vperm.xlu0 %3922, %v3913
        %v3924 = vpop.permute.xlu0 %3923
        %3927 = vset.pattern.permute.xlu0 0
        %3928 = vperm.xlu0 %3927, %v3914
        %v3929 = vpop.permute.xlu0 %3928
        %3932 = vset.pattern.permute.xlu0 0
        %3933 = vperm.xlu0 %3932, %v3915
        %v3934 = vpop.permute.xlu0 %3933
        %v3940 = vunpack.c.l.b16 %v3908
        %v3941 = vunpack.c.l.b16 %v3909
        %v3942 = vunpack.c.l.b16 %v3910
        %v3943 = vunpack.c.l.b16 %v3911
        %v3944 = vpack.c.b16 %v3941, %v3940
        %v3945 = vpack.c.b16 %v3943, %v3942
        %v3947 = vsel %vm2336, %v3944, 0
        %v3950 = vsel %vm2336, %v3945, 0
        %3952 = vmatprep.subr.bf16.mxu0 %v3845
        %3953 = vmatpush1.bf16.msra.mxu0 %v3844
        %3954 = vmatprep.subr.bf16.mxu0 0
        %3955 = vmatpush1.bf16.msra.mxu0 0
        %3956 = vmatprep.subr.bf16.mxu0 0
        %3957 = vmatpush1.bf16.msra.mxu0 0
        %3958 = vmatprep.subr.bf16.mxu0 0
        %3959 = vmatpush1.bf16.msra.mxu0 0
        %3960 = vmatprep.subr.bf16.mxu0 0
        %3961 = vmatpush1.bf16.msra.mxu0 0
        %3962 = vmatprep.subr.bf16.mxu0 0
        %3963 = vmatpush1.bf16.msra.mxu0 0
        %3964 = vmatprep.subr.bf16.mxu0 0
        %3965 = vmatpush1.bf16.msra.mxu0 0
        %3966 = vmatprep.subr.bf16.mxu0 0
        %3967 = vmatpush1.bf16.msra.mxu0 0
        %3968 = vmatprep.subr.bf16.mxu0 0
        %3969 = vmatpush1.bf16.msra.mxu0 0
        %3970 = vmatprep.subr.bf16.mxu0 0
        %3971 = vmatpush1.bf16.msra.mxu0 0
        %3972 = vmatprep.subr.bf16.mxu0 0
        %3973 = vmatpush1.bf16.msra.mxu0 0
        %3974 = vmatprep.subr.bf16.mxu0 0
        %3975 = vmatpush1.bf16.msra.mxu0 0
        %3976 = vmatprep.subr.bf16.mxu0 0
        %3977 = vmatpush1.bf16.msra.mxu0 0
        %3978 = vmatprep.subr.bf16.mxu0 0
        %3979 = vmatpush1.bf16.msra.mxu0 0
        %3980 = vmatprep.subr.bf16.mxu0 0
        %3981 = vmatpush1.bf16.msra.mxu0 0
        %3982 = vmatprep.subr.bf16.mxu0 0
        %3983 = vmatpush1.bf16.msra.mxu0 0
        %3984 = vmatprep.mubr.bf16.mxu0 0
        %3985 = vmatmul.mubr.bf16.gmra.mrb[0].mxu0 %v3947
        %v3986 = vpop.f32.mrb[0].mxu0
        %v3987 = vadd.f32 %v3919, %v3986
        %v3988 = vpop.f32.mrb[0].mxu0
        %v3989 = vadd.f32 %v3919, %v3988
        %v3990 = vpop.f32.mrb[0].mxu0
        %v3991 = vadd.f32 %v3924, %v3990
        %v3992 = vpop.f32.mrb[0].mxu0
        %v3993 = vadd.f32 %v3924, %v3992
        %3994 = vmatprep.mubr.bf16.mxu0 0
        %3995 = vmatmul.mubr.bf16.gmra.mrb[0].mxu0 %v3950
        %v3996 = vpop.f32.mrb[0].mxu0
        %v3997 = vadd.f32 %v3929, %v3996
        %v3998 = vpop.f32.mrb[0].mxu0
        %v3999 = vadd.f32 %v3929, %v3998
        %v4000 = vpop.f32.mrb[0].mxu0
        %v4001 = vadd.f32 %v3934, %v4000
        %v4002 = vpop.f32.mrb[0].mxu0
        %v4003 = vadd.f32 %v3934, %v4002
        %4004 = vdwg.mxu0
        %4005 = vmatprep.subr.bf16.mxu0 %v3847
        %4006 = vmatpush1.bf16.msra.mxu0 %v3846
        %4007 = vmatprep.subr.bf16.mxu0 0
        %4008 = vmatpush1.bf16.msra.mxu0 0
        %4009 = vmatprep.subr.bf16.mxu0 0
        %4010 = vmatpush1.bf16.msra.mxu0 0
        %4011 = vmatprep.subr.bf16.mxu0 0
        %4012 = vmatpush1.bf16.msra.mxu0 0
        %4013 = vmatprep.subr.bf16.mxu0 0
        %4014 = vmatpush1.bf16.msra.mxu0 0
        %4015 = vmatprep.subr.bf16.mxu0 0
        %4016 = vmatpush1.bf16.msra.mxu0 0
        %4017 = vmatprep.subr.bf16.mxu0 0
        %4018 = vmatpush1.bf16.msra.mxu0 0
        %4019 = vmatprep.subr.bf16.mxu0 0
        %4020 = vmatpush1.bf16.msra.mxu0 0
        %4021 = vmatprep.subr.bf16.mxu0 0
        %4022 = vmatpush1.bf16.msra.mxu0 0
        %4023 = vmatprep.subr.bf16.mxu0 0
        %4024 = vmatpush1.bf16.msra.mxu0 0
        %4025 = vmatprep.subr.bf16.mxu0 0
        %4026 = vmatpush1.bf16.msra.mxu0 0
        %4027 = vmatprep.subr.bf16.mxu0 0
        %4028 = vmatpush1.bf16.msra.mxu0 0
        %4029 = vmatprep.subr.bf16.mxu0 0
        %4030 = vmatpush1.bf16.msra.mxu0 0
        %4031 = vmatprep.subr.bf16.mxu0 0
        %4032 = vmatpush1.bf16.msra.mxu0 0
        %4033 = vmatprep.subr.bf16.mxu0 0
        %4034 = vmatpush1.bf16.msra.mxu0 0
        %4035 = vmatprep.subr.bf16.mxu0 0
        %4036 = vmatpush1.bf16.msra.mxu0 0
        %4037 = vmatprep.mubr.bf16.mxu0 0
        %4038 = vmatmul.mubr.bf16.gmra.mrb[0].mxu0 %v3947
        %v4039 = vpop.f32.mrb[0].mxu0
        %v4040 = vadd.f32 %v3919, %v4039
        %v4041 = vpop.f32.mrb[0].mxu0
        %v4042 = vadd.f32 %v3919, %v4041
        %v4043 = vpop.f32.mrb[0].mxu0
        %v4044 = vadd.f32 %v3924, %v4043
        %v4045 = vpop.f32.mrb[0].mxu0
        %v4046 = vadd.f32 %v3924, %v4045
        %4047 = vmatprep.mubr.bf16.mxu0 0
        %4048 = vmatmul.mubr.bf16.gmra.mrb[0].mxu0 %v3950
        %v4049 = vpop.f32.mrb[0].mxu0
        %v4050 = vadd.f32 %v3929, %v4049
        %v4051 = vpop.f32.mrb[0].mxu0
        %v4052 = vadd.f32 %v3929, %v4051
        %v4053 = vpop.f32.mrb[0].mxu0
        %v4054 = vadd.f32 %v3934, %v4053
        %v4055 = vpop.f32.mrb[0].mxu0
        %v4056 = vadd.f32 %v3934, %v4055
        %4057 = vdwg.mxu0
        %4058 = vmatprep.subr.bf16.mxu0 %v3849
        %4059 = vmatpush1.bf16.msra.mxu0 %v3848
        %4060 = vmatprep.subr.bf16.mxu0 0
        %4061 = vmatpush1.bf16.msra.mxu0 0
        %4062 = vmatprep.subr.bf16.mxu0 0
        %4063 = vmatpush1.bf16.msra.mxu0 0
        %4064 = vmatprep.subr.bf16.mxu0 0
        %4065 = vmatpush1.bf16.msra.mxu0 0
        %4066 = vmatprep.subr.bf16.mxu0 0
        %4067 = vmatpush1.bf16.msra.mxu0 0
        %4068 = vmatprep.subr.bf16.mxu0 0
        %4069 = vmatpush1.bf16.msra.mxu0 0
        %4070 = vmatprep.subr.bf16.mxu0 0
        %4071 = vmatpush1.bf16.msra.mxu0 0
        %4072 = vmatprep.subr.bf16.mxu0 0
        %4073 = vmatpush1.bf16.msra.mxu0 0
        %4074 = vmatprep.subr.bf16.mxu0 0
        %4075 = vmatpush1.bf16.msra.mxu0 0
        %4076 = vmatprep.subr.bf16.mxu0 0
        %4077 = vmatpush1.bf16.msra.mxu0 0
        %4078 = vmatprep.subr.bf16.mxu0 0
        %4079 = vmatpush1.bf16.msra.mxu0 0
        %4080 = vmatprep.subr.bf16.mxu0 0
        %4081 = vmatpush1.bf16.msra.mxu0 0
        %4082 = vmatprep.subr.bf16.mxu0 0
        %4083 = vmatpush1.bf16.msra.mxu0 0
        %4084 = vmatprep.subr.bf16.mxu0 0
        %4085 = vmatpush1.bf16.msra.mxu0 0
        %4086 = vmatprep.subr.bf16.mxu0 0
        %4087 = vmatpush1.bf16.msra.mxu0 0
        %4088 = vmatprep.subr.bf16.mxu0 0
        %4089 = vmatpush1.bf16.msra.mxu0 0
        %4090 = vmatprep.mubr.bf16.mxu0 0
        %4091 = vmatmul.mubr.bf16.gmra.mrb[0].mxu0 %v3947
        %v4092 = vpop.f32.mrb[0].mxu0
        %v4093 = vadd.f32 %v3919, %v4092
        %v4094 = vpop.f32.mrb[0].mxu0
        %v4095 = vadd.f32 %v3919, %v4094
        %v4096 = vpop.f32.mrb[0].mxu0
        %v4097 = vadd.f32 %v3924, %v4096
        %v4098 = vpop.f32.mrb[0].mxu0
        %v4099 = vadd.f32 %v3924, %v4098
        %4100 = vmatprep.mubr.bf16.mxu0 0
        %4101 = vmatmul.mubr.bf16.gmra.mrb[0].mxu0 %v3950
        %v4102 = vpop.f32.mrb[0].mxu0
        %v4103 = vadd.f32 %v3929, %v4102
        %v4104 = vpop.f32.mrb[0].mxu0
        %v4105 = vadd.f32 %v3929, %v4104
        %v4106 = vpop.f32.mrb[0].mxu0
        %v4107 = vadd.f32 %v3934, %v4106
        %v4108 = vpop.f32.mrb[0].mxu0
        %v4109 = vadd.f32 %v3934, %v4108
        %4110 = vdwg.mxu0
        %4111 = vmatprep.subr.bf16.mxu0 %v3851
        %4112 = vmatpush1.bf16.msra.mxu0 %v3850
        %4113 = vmatprep.subr.bf16.mxu0 0
        %4114 = vmatpush1.bf16.msra.mxu0 0
        %4115 = vmatprep.subr.bf16.mxu0 0
        %4116 = vmatpush1.bf16.msra.mxu0 0
        %4117 = vmatprep.subr.bf16.mxu0 0
        %4118 = vmatpush1.bf16.msra.mxu0 0
        %4119 = vmatprep.subr.bf16.mxu0 0
        %4120 = vmatpush1.bf16.msra.mxu0 0
        %4121 = vmatprep.subr.bf16.mxu0 0
        %4122 = vmatpush1.bf16.msra.mxu0 0
        %4123 = vmatprep.subr.bf16.mxu0 0
        %4124 = vmatpush1.bf16.msra.mxu0 0
        %4125 = vmatprep.subr.bf16.mxu0 0
        %4126 = vmatpush1.bf16.msra.mxu0 0
        %4127 = vmatprep.subr.bf16.mxu0 0
        %4128 = vmatpush1.bf16.msra.mxu0 0
        %4129 = vmatprep.subr.bf16.mxu0 0
        %4130 = vmatpush1.bf16.msra.mxu0 0
        %4131 = vmatprep.subr.bf16.mxu0 0
        %4132 = vmatpush1.bf16.msra.mxu0 0
        %4133 = vmatprep.subr.bf16.mxu0 0
        %4134 = vmatpush1.bf16.msra.mxu0 0
        %4135 = vmatprep.subr.bf16.mxu0 0
        %4136 = vmatpush1.bf16.msra.mxu0 0
        %4137 = vmatprep.subr.bf16.mxu0 0
        %4138 = vmatpush1.bf16.msra.mxu0 0
        %4139 = vmatprep.subr.bf16.mxu0 0
        %4140 = vmatpush1.bf16.msra.mxu0 0
        %4141 = vmatprep.subr.bf16.mxu0 0
        %4142 = vmatpush1.bf16.msra.mxu0 0
        %4143 = vmatprep.mubr.bf16.mxu0 0
        %4144 = vmatmul.mubr.bf16.gmra.mrb[0].mxu0 %v3947
        %v4145 = vpop.f32.mrb[0].mxu0
        %v4146 = vadd.f32 %v3919, %v4145
        %v4147 = vpop.f32.mrb[0].mxu0
        %v4148 = vadd.f32 %v3919, %v4147
        %v4149 = vpop.f32.mrb[0].mxu0
        %v4150 = vadd.f32 %v3924, %v4149
        %v4151 = vpop.f32.mrb[0].mxu0
        %v4152 = vadd.f32 %v3924, %v4151
        %4153 = vmatprep.mubr.bf16.mxu0 0
        %4154 = vmatmul.mubr.bf16.gmra.mrb[0].mxu0 %v3950
        %v4155 = vpop.f32.mrb[0].mxu0
        %v4156 = vadd.f32 %v3929, %v4155
        %v4157 = vpop.f32.mrb[0].mxu0
        %v4158 = vadd.f32 %v3929, %v4157
        %v4159 = vpop.f32.mrb[0].mxu0
        %v4160 = vadd.f32 %v3934, %v4159
        %v4161 = vpop.f32.mrb[0].mxu0
        %v4162 = vadd.f32 %v3934, %v4161
        %4163 = vdwg.mxu0
        %4164 = vmatprep.subr.bf16.mxu0 %v3853
        %4165 = vmatpush1.bf16.msra.mxu0 %v3852
        %4166 = vmatprep.subr.bf16.mxu0 0
        %4167 = vmatpush1.bf16.msra.mxu0 0
        %4168 = vmatprep.subr.bf16.mxu0 0
        %4169 = vmatpush1.bf16.msra.mxu0 0
        %4170 = vmatprep.subr.bf16.mxu0 0
        %4171 = vmatpush1.bf16.msra.mxu0 0
        %4172 = vmatprep.subr.bf16.mxu0 0
        %4173 = vmatpush1.bf16.msra.mxu0 0
        %4174 = vmatprep.subr.bf16.mxu0 0
        %4175 = vmatpush1.bf16.msra.mxu0 0
        %4176 = vmatprep.subr.bf16.mxu0 0
        %4177 = vmatpush1.bf16.msra.mxu0 0
        %4178 = vmatprep.subr.bf16.mxu0 0
        %4179 = vmatpush1.bf16.msra.mxu0 0
        %4180 = vmatprep.subr.bf16.mxu0 0
        %4181 = vmatpush1.bf16.msra.mxu0 0
        %4182 = vmatprep.subr.bf16.mxu0 0
        %4183 = vmatpush1.bf16.msra.mxu0 0
        %4184 = vmatprep.subr.bf16.mxu0 0
        %4185 = vmatpush1.bf16.msra.mxu0 0
        %4186 = vmatprep.subr.bf16.mxu0 0
        %4187 = vmatpush1.bf16.msra.mxu0 0
        %4188 = vmatprep.subr.bf16.mxu0 0
        %4189 = vmatpush1.bf16.msra.mxu0 0
        %4190 = vmatprep.subr.bf16.mxu0 0
        %4191 = vmatpush1.bf16.msra.mxu0 0
        %4192 = vmatprep.subr.bf16.mxu0 0
        %4193 = vmatpush1.bf16.msra.mxu0 0
        %4194 = vmatprep.subr.bf16.mxu0 0
        %4195 = vmatpush1.bf16.msra.mxu0 0
        %4196 = vmatprep.mubr.bf16.mxu0 0
        %4197 = vmatmul.mubr.bf16.gmra.mrb[0].mxu0 %v3947
        %v4198 = vpop.f32.mrb[0].mxu0
        %v4199 = vadd.f32 %v3919, %v4198
        %v4200 = vpop.f32.mrb[0].mxu0
        %v4201 = vadd.f32 %v3919, %v4200
        %v4202 = vpop.f32.mrb[0].mxu0
        %v4203 = vadd.f32 %v3924, %v4202
        %v4204 = vpop.f32.mrb[0].mxu0
        %v4205 = vadd.f32 %v3924, %v4204
        %4206 = vmatprep.mubr.bf16.mxu0 0
        %4207 = vmatmul.mubr.bf16.gmra.mrb[0].mxu0 %v3950
        %v4208 = vpop.f32.mrb[0].mxu0
        %v4209 = vadd.f32 %v3929, %v4208
        %v4210 = vpop.f32.mrb[0].mxu0
        %v4211 = vadd.f32 %v3929, %v4210
        %v4212 = vpop.f32.mrb[0].mxu0
        %v4213 = vadd.f32 %v3934, %v4212
        %v4214 = vpop.f32.mrb[0].mxu0
        %v4215 = vadd.f32 %v3934, %v4214
        %4216 = vdwg.mxu0
        %4217 = vmatprep.subr.bf16.mxu0 %v3855
        %4218 = vmatpush1.bf16.msra.mxu0 %v3854
        %4219 = vmatprep.subr.bf16.mxu0 0
        %4220 = vmatpush1.bf16.msra.mxu0 0
        %4221 = vmatprep.subr.bf16.mxu0 0
        %4222 = vmatpush1.bf16.msra.mxu0 0
        %4223 = vmatprep.subr.bf16.mxu0 0
        %4224 = vmatpush1.bf16.msra.mxu0 0
        %4225 = vmatprep.subr.bf16.mxu0 0
        %4226 = vmatpush1.bf16.msra.mxu0 0
        %4227 = vmatprep.subr.bf16.mxu0 0
        %4228 = vmatpush1.bf16.msra.mxu0 0
        %4229 = vmatprep.subr.bf16.mxu0 0
        %4230 = vmatpush1.bf16.msra.mxu0 0
        %4231 = vmatprep.subr.bf16.mxu0 0
        %4232 = vmatpush1.bf16.msra.mxu0 0
        %4233 = vmatprep.subr.bf16.mxu0 0
        %4234 = vmatpush1.bf16.msra.mxu0 0
        %4235 = vmatprep.subr.bf16.mxu0 0
        %4236 = vmatpush1.bf16.msra.mxu0 0
        %4237 = vmatprep.subr.bf16.mxu0 0
        %4238 = vmatpush1.bf16.msra.mxu0 0
        %4239 = vmatprep.subr.bf16.mxu0 0
        %4240 = vmatpush1.bf16.msra.mxu0 0
        %4241 = vmatprep.subr.bf16.mxu0 0
        %4242 = vmatpush1.bf16.msra.mxu0 0
        %4243 = vmatprep.subr.bf16.mxu0 0
        %4244 = vmatpush1.bf16.msra.mxu0 0
        %4245 = vmatprep.subr.bf16.mxu0 0
        %4246 = vmatpush1.bf16.msra.mxu0 0
        %4247 = vmatprep.subr.bf16.mxu0 0
        %4248 = vmatpush1.bf16.msra.mxu0 0
        %4249 = vmatprep.mubr.bf16.mxu0 0
        %4250 = vmatmul.mubr.bf16.gmra.mrb[0].mxu0 %v3947
        %v4251 = vpop.f32.mrb[0].mxu0
        %v4252 = vadd.f32 %v3919, %v4251
        %v4253 = vpop.f32.mrb[0].mxu0
        %v4254 = vadd.f32 %v3919, %v4253
        %v4255 = vpop.f32.mrb[0].mxu0
        %v4256 = vadd.f32 %v3924, %v4255
        %v4257 = vpop.f32.mrb[0].mxu0
        %v4258 = vadd.f32 %v3924, %v4257
        %4259 = vmatprep.mubr.bf16.mxu0 0
        %4260 = vmatmul.mubr.bf16.gmra.mrb[0].mxu0 %v3950
        %v4261 = vpop.f32.mrb[0].mxu0
        %v4262 = vadd.f32 %v3929, %v4261
        %v4263 = vpop.f32.mrb[0].mxu0
        %v4264 = vadd.f32 %v3929, %v4263
        %v4265 = vpop.f32.mrb[0].mxu0
        %v4266 = vadd.f32 %v3934, %v4265
        %v4267 = vpop.f32.mrb[0].mxu0
        %v4268 = vadd.f32 %v3934, %v4267
        %4269 = vdwg.mxu0
        %4270 = vmatprep.subr.bf16.mxu0 %v3857
        %4271 = vmatpush1.bf16.msra.mxu0 %v3856
        %4272 = vmatprep.subr.bf16.mxu0 0
        %4273 = vmatpush1.bf16.msra.mxu0 0
        %4274 = vmatprep.subr.bf16.mxu0 0
        %4275 = vmatpush1.bf16.msra.mxu0 0
        %4276 = vmatprep.subr.bf16.mxu0 0
        %4277 = vmatpush1.bf16.msra.mxu0 0
        %4278 = vmatprep.subr.bf16.mxu0 0
        %4279 = vmatpush1.bf16.msra.mxu0 0
        %4280 = vmatprep.subr.bf16.mxu0 0
        %4281 = vmatpush1.bf16.msra.mxu0 0
        %4282 = vmatprep.subr.bf16.mxu0 0
        %4283 = vmatpush1.bf16.msra.mxu0 0
        %4284 = vmatprep.subr.bf16.mxu0 0
        %4285 = vmatpush1.bf16.msra.mxu0 0
        %4286 = vmatprep.subr.bf16.mxu0 0
        %4287 = vmatpush1.bf16.msra.mxu0 0
        %4288 = vmatprep.subr.bf16.mxu0 0
        %4289 = vmatpush1.bf16.msra.mxu0 0
        %4290 = vmatprep.subr.bf16.mxu0 0
        %4291 = vmatpush1.bf16.msra.mxu0 0
        %4292 = vmatprep.subr.bf16.mxu0 0
        %4293 = vmatpush1.bf16.msra.mxu0 0
        %4294 = vmatprep.subr.bf16.mxu0 0
        %4295 = vmatpush1.bf16.msra.mxu0 0
        %4296 = vmatprep.subr.bf16.mxu0 0
        %4297 = vmatpush1.bf16.msra.mxu0 0
        %4298 = vmatprep.subr.bf16.mxu0 0
        %4299 = vmatpush1.bf16.msra.mxu0 0
        %4300 = vmatprep.subr.bf16.mxu0 0
        %4301 = vmatpush1.bf16.msra.mxu0 0
        %4302 = vmatprep.mubr.bf16.mxu0 0
        %4303 = vmatmul.mubr.bf16.gmra.mrb[0].mxu0 %v3947
        %v4304 = vpop.f32.mrb[0].mxu0
        %v4305 = vadd.f32 %v3919, %v4304
        %v4306 = vpop.f32.mrb[0].mxu0
        %v4307 = vadd.f32 %v3919, %v4306
        %v4308 = vpop.f32.mrb[0].mxu0
        %v4309 = vadd.f32 %v3924, %v4308
        %v4310 = vpop.f32.mrb[0].mxu0
        %v4311 = vadd.f32 %v3924, %v4310
        %4312 = vmatprep.mubr.bf16.mxu0 0
        %4313 = vmatmul.mubr.bf16.gmra.mrb[0].mxu0 %v3950
        %v4314 = vpop.f32.mrb[0].mxu0
        %v4315 = vadd.f32 %v3929, %v4314
        %v4316 = vpop.f32.mrb[0].mxu0
        %v4317 = vadd.f32 %v3929, %v4316
        %v4318 = vpop.f32.mrb[0].mxu0
        %v4319 = vadd.f32 %v3934, %v4318
        %v4320 = vpop.f32.mrb[0].mxu0
        %v4321 = vadd.f32 %v3934, %v4320
        %4322 = vdwg.mxu0
        %4323 = vmatprep.subr.bf16.mxu0 %v3859
        %4324 = vmatpush1.bf16.msra.mxu0 %v3858
        %4325 = vmatprep.subr.bf16.mxu0 0
        %4326 = vmatpush1.bf16.msra.mxu0 0
        %4327 = vmatprep.subr.bf16.mxu0 0
        %4328 = vmatpush1.bf16.msra.mxu0 0
        %4329 = vmatprep.subr.bf16.mxu0 0
        %4330 = vmatpush1.bf16.msra.mxu0 0
        %4331 = vmatprep.subr.bf16.mxu0 0
        %4332 = vmatpush1.bf16.msra.mxu0 0
        %4333 = vmatprep.subr.bf16.mxu0 0
        %4334 = vmatpush1.bf16.msra.mxu0 0
        %4335 = vmatprep.subr.bf16.mxu0 0
        %4336 = vmatpush1.bf16.msra.mxu0 0
        %4337 = vmatprep.subr.bf16.mxu0 0
        %4338 = vmatpush1.bf16.msra.mxu0 0
        %4339 = vmatprep.subr.bf16.mxu0 0
        %4340 = vmatpush1.bf16.msra.mxu0 0
        %4341 = vmatprep.subr.bf16.mxu0 0
        %4342 = vmatpush1.bf16.msra.mxu0 0
        %4343 = vmatprep.subr.bf16.mxu0 0
        %4344 = vmatpush1.bf16.msra.mxu0 0
        %4345 = vmatprep.subr.bf16.mxu0 0
        %4346 = vmatpush1.bf16.msra.mxu0 0
        %4347 = vmatprep.subr.bf16.mxu0 0
        %4348 = vmatpush1.bf16.msra.mxu0 0
        %4349 = vmatprep.subr.bf16.mxu0 0
        %4350 = vmatpush1.bf16.msra.mxu0 0
        %4351 = vmatprep.subr.bf16.mxu0 0
        %4352 = vmatpush1.bf16.msra.mxu0 0
        %4353 = vmatprep.subr.bf16.mxu0 0
        %4354 = vmatpush1.bf16.msra.mxu0 0
        %4355 = vmatprep.mubr.bf16.mxu0 0
        %4356 = vmatmul.mubr.bf16.gmra.mrb[0].mxu0 %v3947
        %v4357 = vpop.f32.mrb[0].mxu0
        %v4358 = vadd.f32 %v3919, %v4357
        %v4359 = vpop.f32.mrb[0].mxu0
        %v4360 = vadd.f32 %v3919, %v4359
        %v4361 = vpop.f32.mrb[0].mxu0
        %v4362 = vadd.f32 %v3924, %v4361
        %v4363 = vpop.f32.mrb[0].mxu0
        %v4364 = vadd.f32 %v3924, %v4363
        %4365 = vmatprep.mubr.bf16.mxu0 0
        %4366 = vmatmul.mubr.bf16.gmra.mrb[0].mxu0 %v3950
        %v4367 = vpop.f32.mrb[0].mxu0
        %v4368 = vadd.f32 %v3929, %v4367
        %v4369 = vpop.f32.mrb[0].mxu0
        %v4370 = vadd.f32 %v3929, %v4369
        %v4371 = vpop.f32.mrb[0].mxu0
        %v4372 = vadd.f32 %v3934, %v4371
        %v4373 = vpop.f32.mrb[0].mxu0
        %v4374 = vadd.f32 %v3934, %v4373
        %4375 = vdwg.mxu0
        %4376 = vmatprep.subr.bf16.mxu0 %v3861
        %4377 = vmatpush1.bf16.msra.mxu0 %v3860
        %4378 = vmatprep.subr.bf16.mxu0 0
        %4379 = vmatpush1.bf16.msra.mxu0 0
        %4380 = vmatprep.subr.bf16.mxu0 0
        %4381 = vmatpush1.bf16.msra.mxu0 0
        %4382 = vmatprep.subr.bf16.mxu0 0
        %4383 = vmatpush1.bf16.msra.mxu0 0
        %4384 = vmatprep.subr.bf16.mxu0 0
        %4385 = vmatpush1.bf16.msra.mxu0 0
        %4386 = vmatprep.subr.bf16.mxu0 0
        %4387 = vmatpush1.bf16.msra.mxu0 0
        %4388 = vmatprep.subr.bf16.mxu0 0
        %4389 = vmatpush1.bf16.msra.mxu0 0
        %4390 = vmatprep.subr.bf16.mxu0 0
        %4391 = vmatpush1.bf16.msra.mxu0 0
        %4392 = vmatprep.subr.bf16.mxu0 0
        %4393 = vmatpush1.bf16.msra.mxu0 0
        %4394 = vmatprep.subr.bf16.mxu0 0
        %4395 = vmatpush1.bf16.msra.mxu0 0
        %4396 = vmatprep.subr.bf16.mxu0 0
        %4397 = vmatpush1.bf16.msra.mxu0 0
        %4398 = vmatprep.subr.bf16.mxu0 0
        %4399 = vmatpush1.bf16.msra.mxu0 0
        %4400 = vmatprep.subr.bf16.mxu0 0
        %4401 = vmatpush1.bf16.msra.mxu0 0
        %4402 = vmatprep.subr.bf16.mxu0 0
        %4403 = vmatpush1.bf16.msra.mxu0 0
        %4404 = vmatprep.subr.bf16.mxu0 0
        %4405 = vmatpush1.bf16.msra.mxu0 0
        %4406 = vmatprep.subr.bf16.mxu0 0
        %4407 = vmatpush1.bf16.msra.mxu0 0
        %4408 = vmatprep.mubr.bf16.mxu0 0
        %4409 = vmatmul.mubr.bf16.gmra.mrb[0].mxu0 %v3947
        %v4410 = vpop.f32.mrb[0].mxu0
        %v4411 = vadd.f32 %v3919, %v4410
        %v4412 = vpop.f32.mrb[0].mxu0
        %v4413 = vadd.f32 %v3919, %v4412
        %v4414 = vpop.f32.mrb[0].mxu0
        %v4415 = vadd.f32 %v3924, %v4414
        %v4416 = vpop.f32.mrb[0].mxu0
        %v4417 = vadd.f32 %v3924, %v4416
        %4418 = vmatprep.mubr.bf16.mxu0 0
        %4419 = vmatmul.mubr.bf16.gmra.mrb[0].mxu0 %v3950
        %v4420 = vpop.f32.mrb[0].mxu0
        %v4421 = vadd.f32 %v3929, %v4420
        %v4422 = vpop.f32.mrb[0].mxu0
        %v4423 = vadd.f32 %v3929, %v4422
        %v4424 = vpop.f32.mrb[0].mxu0
        %v4425 = vadd.f32 %v3934, %v4424
        %v4426 = vpop.f32.mrb[0].mxu0
        %v4427 = vadd.f32 %v3934, %v4426
        %4428 = vdwg.mxu0
        %4429 = vmatprep.subr.bf16.mxu0 %v3863
        %4430 = vmatpush1.bf16.msra.mxu0 %v3862
        %4431 = vmatprep.subr.bf16.mxu0 0
        %4432 = vmatpush1.bf16.msra.mxu0 0
        %4433 = vmatprep.subr.bf16.mxu0 0
        %4434 = vmatpush1.bf16.msra.mxu0 0
        %4435 = vmatprep.subr.bf16.mxu0 0
        %4436 = vmatpush1.bf16.msra.mxu0 0
        %4437 = vmatprep.subr.bf16.mxu0 0
        %4438 = vmatpush1.bf16.msra.mxu0 0
        %4439 = vmatprep.subr.bf16.mxu0 0
        %4440 = vmatpush1.bf16.msra.mxu0 0
        %4441 = vmatprep.subr.bf16.mxu0 0
        %4442 = vmatpush1.bf16.msra.mxu0 0
        %4443 = vmatprep.subr.bf16.mxu0 0
        %4444 = vmatpush1.bf16.msra.mxu0 0
        %4445 = vmatprep.subr.bf16.mxu0 0
        %4446 = vmatpush1.bf16.msra.mxu0 0
        %4447 = vmatprep.subr.bf16.mxu0 0
        %4448 = vmatpush1.bf16.msra.mxu0 0
        %4449 = vmatprep.subr.bf16.mxu0 0
        %4450 = vmatpush1.bf16.msra.mxu0 0
        %4451 = vmatprep.subr.bf16.mxu0 0
        %4452 = vmatpush1.bf16.msra.mxu0 0
        %4453 = vmatprep.subr.bf16.mxu0 0
        %4454 = vmatpush1.bf16.msra.mxu0 0
        %4455 = vmatprep.subr.bf16.mxu0 0
        %4456 = vmatpush1.bf16.msra.mxu0 0
        %4457 = vmatprep.subr.bf16.mxu0 0
        %4458 = vmatpush1.bf16.msra.mxu0 0
        %4459 = vmatprep.subr.bf16.mxu0 0
        %4460 = vmatpush1.bf16.msra.mxu0 0
        %4461 = vmatprep.mubr.bf16.mxu0 0
        %4462 = vmatmul.mubr.bf16.gmra.mrb[0].mxu0 %v3947
        %v4463 = vpop.f32.mrb[0].mxu0
        %v4464 = vadd.f32 %v3919, %v4463
        %v4465 = vpop.f32.mrb[0].mxu0
        %v4466 = vadd.f32 %v3919, %v4465
        %v4467 = vpop.f32.mrb[0].mxu0
        %v4468 = vadd.f32 %v3924, %v4467
        %v4469 = vpop.f32.mrb[0].mxu0
        %v4470 = vadd.f32 %v3924, %v4469
        %4471 = vmatprep.mubr.bf16.mxu0 0
        %4472 = vmatmul.mubr.bf16.gmra.mrb[0].mxu0 %v3950
        %v4473 = vpop.f32.mrb[0].mxu0
        %v4474 = vadd.f32 %v3929, %v4473
        %v4475 = vpop.f32.mrb[0].mxu0
        %v4476 = vadd.f32 %v3929, %v4475
        %v4477 = vpop.f32.mrb[0].mxu0
        %v4478 = vadd.f32 %v3934, %v4477
        %v4479 = vpop.f32.mrb[0].mxu0
        %v4480 = vadd.f32 %v3934, %v4479
        %4481 = vdwg.mxu0
        %4482 = vmatprep.subr.bf16.mxu0 %v3865
        %4483 = vmatpush1.bf16.msra.mxu0 %v3864
        %4484 = vmatprep.subr.bf16.mxu0 0
        %4485 = vmatpush1.bf16.msra.mxu0 0
        %4486 = vmatprep.subr.bf16.mxu0 0
        %4487 = vmatpush1.bf16.msra.mxu0 0
        %4488 = vmatprep.subr.bf16.mxu0 0
        %4489 = vmatpush1.bf16.msra.mxu0 0
        %4490 = vmatprep.subr.bf16.mxu0 0
        %4491 = vmatpush1.bf16.msra.mxu0 0
        %4492 = vmatprep.subr.bf16.mxu0 0
        %4493 = vmatpush1.bf16.msra.mxu0 0
        %4494 = vmatprep.subr.bf16.mxu0 0
        %4495 = vmatpush1.bf16.msra.mxu0 0
        %4496 = vmatprep.subr.bf16.mxu0 0
        %4497 = vmatpush1.bf16.msra.mxu0 0
        %4498 = vmatprep.subr.bf16.mxu0 0
        %4499 = vmatpush1.bf16.msra.mxu0 0
        %4500 = vmatprep.subr.bf16.mxu0 0
        %4501 = vmatpush1.bf16.msra.mxu0 0
        %4502 = vmatprep.subr.bf16.mxu0 0
        %4503 = vmatpush1.bf16.msra.mxu0 0
        %4504 = vmatprep.subr.bf16.mxu0 0
        %4505 = vmatpush1.bf16.msra.mxu0 0
        %4506 = vmatprep.subr.bf16.mxu0 0
        %4507 = vmatpush1.bf16.msra.mxu0 0
        %4508 = vmatprep.subr.bf16.mxu0 0
        %4509 = vmatpush1.bf16.msra.mxu0 0
        %4510 = vmatprep.subr.bf16.mxu0 0
        %4511 = vmatpush1.bf16.msra.mxu0 0
        %4512 = vmatprep.subr.bf16.mxu0 0
        %4513 = vmatpush1.bf16.msra.mxu0 0
        %4514 = vmatprep.mubr.bf16.mxu0 0
        %4515 = vmatmul.mubr.bf16.gmra.mrb[0].mxu0 %v3947
        %v4516 = vpop.f32.mrb[0].mxu0
        %v4517 = vadd.f32 %v3919, %v4516
        %v4518 = vpop.f32.mrb[0].mxu0
        %v4519 = vadd.f32 %v3919, %v4518
        %v4520 = vpop.f32.mrb[0].mxu0
        %v4521 = vadd.f32 %v3924, %v4520
        %v4522 = vpop.f32.mrb[0].mxu0
        %v4523 = vadd.f32 %v3924, %v4522
        %4524 = vmatprep.mubr.bf16.mxu0 0
        %4525 = vmatmul.mubr.bf16.gmra.mrb[0].mxu0 %v3950
        %v4526 = vpop.f32.mrb[0].mxu0
        %v4527 = vadd.f32 %v3929, %v4526
        %v4528 = vpop.f32.mrb[0].mxu0
        %v4529 = vadd.f32 %v3929, %v4528
        %v4530 = vpop.f32.mrb[0].mxu0
        %v4531 = vadd.f32 %v3934, %v4530
        %v4532 = vpop.f32.mrb[0].mxu0
        %v4533 = vadd.f32 %v3934, %v4532
        %4534 = vdwg.mxu0
        %4535 = vmatprep.subr.bf16.mxu0 %v3867
        %4536 = vmatpush1.bf16.msra.mxu0 %v3866
        %4537 = vmatprep.subr.bf16.mxu0 0
        %4538 = vmatpush1.bf16.msra.mxu0 0
        %4539 = vmatprep.subr.bf16.mxu0 0
        %4540 = vmatpush1.bf16.msra.mxu0 0
        %4541 = vmatprep.subr.bf16.mxu0 0
        %4542 = vmatpush1.bf16.msra.mxu0 0
        %4543 = vmatprep.subr.bf16.mxu0 0
        %4544 = vmatpush1.bf16.msra.mxu0 0
        %4545 = vmatprep.subr.bf16.mxu0 0
        %4546 = vmatpush1.bf16.msra.mxu0 0
        %4547 = vmatprep.subr.bf16.mxu0 0
        %4548 = vmatpush1.bf16.msra.mxu0 0
        %4549 = vmatprep.subr.bf16.mxu0 0
        %4550 = vmatpush1.bf16.msra.mxu0 0
        %4551 = vmatprep.subr.bf16.mxu0 0
        %4552 = vmatpush1.bf16.msra.mxu0 0
        %4553 = vmatprep.subr.bf16.mxu0 0
        %4554 = vmatpush1.bf16.msra.mxu0 0
        %4555 = vmatprep.subr.bf16.mxu0 0
        %4556 = vmatpush1.bf16.msra.mxu0 0
        %4557 = vmatprep.subr.bf16.mxu0 0
        %4558 = vmatpush1.bf16.msra.mxu0 0
        %4559 = vmatprep.subr.bf16.mxu0 0
        %4560 = vmatpush1.bf16.msra.mxu0 0
        %4561 = vmatprep.subr.bf16.mxu0 0
        %4562 = vmatpush1.bf16.msra.mxu0 0
        %4563 = vmatprep.subr.bf16.mxu0 0
        %4564 = vmatpush1.bf16.msra.mxu0 0
        %4565 = vmatprep.subr.bf16.mxu0 0
        %4566 = vmatpush1.bf16.msra.mxu0 0
        %4567 = vmatprep.mubr.bf16.mxu0 0
        %4568 = vmatmul.mubr.bf16.gmra.mrb[0].mxu0 %v3947
        %v4569 = vpop.f32.mrb[0].mxu0
        %v4570 = vadd.f32 %v3919, %v4569
        %v4571 = vpop.f32.mrb[0].mxu0
        %v4572 = vadd.f32 %v3919, %v4571
        %v4573 = vpop.f32.mrb[0].mxu0
        %v4574 = vadd.f32 %v3924, %v4573
        %v4575 = vpop.f32.mrb[0].mxu0
        %v4576 = vadd.f32 %v3924, %v4575
        %4577 = vmatprep.mubr.bf16.mxu0 0
        %4578 = vmatmul.mubr.bf16.gmra.mrb[0].mxu0 %v3950
        %v4579 = vpop.f32.mrb[0].mxu0
        %v4580 = vadd.f32 %v3929, %v4579
        %v4581 = vpop.f32.mrb[0].mxu0
        %v4582 = vadd.f32 %v3929, %v4581
        %v4583 = vpop.f32.mrb[0].mxu0
        %v4584 = vadd.f32 %v3934, %v4583
        %v4585 = vpop.f32.mrb[0].mxu0
        %v4586 = vadd.f32 %v3934, %v4585
        %4587 = vdwg.mxu0
        %4588 = vmatprep.subr.bf16.mxu0 %v3869
        %4589 = vmatpush1.bf16.msra.mxu0 %v3868
        %4590 = vmatprep.subr.bf16.mxu0 0
        %4591 = vmatpush1.bf16.msra.mxu0 0
        %4592 = vmatprep.subr.bf16.mxu0 0
        %4593 = vmatpush1.bf16.msra.mxu0 0
        %4594 = vmatprep.subr.bf16.mxu0 0
        %4595 = vmatpush1.bf16.msra.mxu0 0
        %4596 = vmatprep.subr.bf16.mxu0 0
        %4597 = vmatpush1.bf16.msra.mxu0 0
        %4598 = vmatprep.subr.bf16.mxu0 0
        %4599 = vmatpush1.bf16.msra.mxu0 0
        %4600 = vmatprep.subr.bf16.mxu0 0
        %4601 = vmatpush1.bf16.msra.mxu0 0
        %4602 = vmatprep.subr.bf16.mxu0 0
        %4603 = vmatpush1.bf16.msra.mxu0 0
        %4604 = vmatprep.subr.bf16.mxu0 0
        %4605 = vmatpush1.bf16.msra.mxu0 0
        %4606 = vmatprep.subr.bf16.mxu0 0
        %4607 = vmatpush1.bf16.msra.mxu0 0
        %4608 = vmatprep.subr.bf16.mxu0 0
        %4609 = vmatpush1.bf16.msra.mxu0 0
        %4610 = vmatprep.subr.bf16.mxu0 0
        %4611 = vmatpush1.bf16.msra.mxu0 0
        %4612 = vmatprep.subr.bf16.mxu0 0
        %4613 = vmatpush1.bf16.msra.mxu0 0
        %4614 = vmatprep.subr.bf16.mxu0 0
        %4615 = vmatpush1.bf16.msra.mxu0 0
        %4616 = vmatprep.subr.bf16.mxu0 0
        %4617 = vmatpush1.bf16.msra.mxu0 0
        %4618 = vmatprep.subr.bf16.mxu0 0
        %4619 = vmatpush1.bf16.msra.mxu0 0
        %4620 = vmatprep.mubr.bf16.mxu0 0
        %4621 = vmatmul.mubr.bf16.gmra.mrb[0].mxu0 %v3947
        %v4622 = vpop.f32.mrb[0].mxu0
        %v4623 = vadd.f32 %v3919, %v4622
        %v4624 = vpop.f32.mrb[0].mxu0
        %v4625 = vadd.f32 %v3919, %v4624
        %v4626 = vpop.f32.mrb[0].mxu0
        %v4627 = vadd.f32 %v3924, %v4626
        %v4628 = vpop.f32.mrb[0].mxu0
        %v4629 = vadd.f32 %v3924, %v4628
        %4630 = vmatprep.mubr.bf16.mxu0 0
        %4631 = vmatmul.mubr.bf16.gmra.mrb[0].mxu0 %v3950
        %v4632 = vpop.f32.mrb[0].mxu0
        %v4633 = vadd.f32 %v3929, %v4632
        %v4634 = vpop.f32.mrb[0].mxu0
        %v4635 = vadd.f32 %v3929, %v4634
        %v4636 = vpop.f32.mrb[0].mxu0
        %v4637 = vadd.f32 %v3934, %v4636
        %v4638 = vpop.f32.mrb[0].mxu0
        %v4639 = vadd.f32 %v3934, %v4638
        %4640 = vdwg.mxu0
        %4641 = vmatprep.subr.bf16.mxu0 %v3871
        %4642 = vmatpush1.bf16.msra.mxu0 %v3870
        %4643 = vmatprep.subr.bf16.mxu0 0
        %4644 = vmatpush1.bf16.msra.mxu0 0
        %4645 = vmatprep.subr.bf16.mxu0 0
        %4646 = vmatpush1.bf16.msra.mxu0 0
        %4647 = vmatprep.subr.bf16.mxu0 0
        %4648 = vmatpush1.bf16.msra.mxu0 0
        %4649 = vmatprep.subr.bf16.mxu0 0
        %4650 = vmatpush1.bf16.msra.mxu0 0
        %4651 = vmatprep.subr.bf16.mxu0 0
        %4652 = vmatpush1.bf16.msra.mxu0 0
        %4653 = vmatprep.subr.bf16.mxu0 0
        %4654 = vmatpush1.bf16.msra.mxu0 0
        %4655 = vmatprep.subr.bf16.mxu0 0
        %4656 = vmatpush1.bf16.msra.mxu0 0
        %4657 = vmatprep.subr.bf16.mxu0 0
        %4658 = vmatpush1.bf16.msra.mxu0 0
        %4659 = vmatprep.subr.bf16.mxu0 0
        %4660 = vmatpush1.bf16.msra.mxu0 0
        %4661 = vmatprep.subr.bf16.mxu0 0
        %4662 = vmatpush1.bf16.msra.mxu0 0
        %4663 = vmatprep.subr.bf16.mxu0 0
        %4664 = vmatpush1.bf16.msra.mxu0 0
        %4665 = vmatprep.subr.bf16.mxu0 0
        %4666 = vmatpush1.bf16.msra.mxu0 0
        %4667 = vmatprep.subr.bf16.mxu0 0
        %4668 = vmatpush1.bf16.msra.mxu0 0
        %4669 = vmatprep.subr.bf16.mxu0 0
        %4670 = vmatpush1.bf16.msra.mxu0 0
        %4671 = vmatprep.subr.bf16.mxu0 0
        %4672 = vmatpush1.bf16.msra.mxu0 0
        %4673 = vmatprep.mubr.bf16.mxu0 0
        %4674 = vmatmul.mubr.bf16.gmra.mrb[0].mxu0 %v3947
        %v4675 = vpop.f32.mrb[0].mxu0
        %v4676 = vadd.f32 %v3919, %v4675
        %v4677 = vpop.f32.mrb[0].mxu0
        %v4678 = vadd.f32 %v3919, %v4677
        %v4679 = vpop.f32.mrb[0].mxu0
        %v4680 = vadd.f32 %v3924, %v4679
        %v4681 = vpop.f32.mrb[0].mxu0
        %v4682 = vadd.f32 %v3924, %v4681
        %4683 = vmatprep.mubr.bf16.mxu0 0
        %4684 = vmatmul.mubr.bf16.gmra.mrb[0].mxu0 %v3950
        %v4685 = vpop.f32.mrb[0].mxu0
        %v4686 = vadd.f32 %v3929, %v4685
        %v4687 = vpop.f32.mrb[0].mxu0
        %v4688 = vadd.f32 %v3929, %v4687
        %v4689 = vpop.f32.mrb[0].mxu0
        %v4690 = vadd.f32 %v3934, %v4689
        %v4691 = vpop.f32.mrb[0].mxu0
        %v4692 = vadd.f32 %v3934, %v4691
        %4693 = vdwg.mxu0
        %4694 = vmatprep.subr.bf16.mxu0 %v3873
        %4695 = vmatpush1.bf16.msra.mxu0 %v3872
        %4696 = vmatprep.subr.bf16.mxu0 0
        %4697 = vmatpush1.bf16.msra.mxu0 0
        %4698 = vmatprep.subr.bf16.mxu0 0
        %4699 = vmatpush1.bf16.msra.mxu0 0
        %4700 = vmatprep.subr.bf16.mxu0 0
        %4701 = vmatpush1.bf16.msra.mxu0 0
        %4702 = vmatprep.subr.bf16.mxu0 0
        %4703 = vmatpush1.bf16.msra.mxu0 0
        %4704 = vmatprep.subr.bf16.mxu0 0
        %4705 = vmatpush1.bf16.msra.mxu0 0
        %4706 = vmatprep.subr.bf16.mxu0 0
        %4707 = vmatpush1.bf16.msra.mxu0 0
        %4708 = vmatprep.subr.bf16.mxu0 0
        %4709 = vmatpush1.bf16.msra.mxu0 0
        %4710 = vmatprep.subr.bf16.mxu0 0
        %4711 = vmatpush1.bf16.msra.mxu0 0
        %4712 = vmatprep.subr.bf16.mxu0 0
        %4713 = vmatpush1.bf16.msra.mxu0 0
        %4714 = vmatprep.subr.bf16.mxu0 0
        %4715 = vmatpush1.bf16.msra.mxu0 0
        %4716 = vmatprep.subr.bf16.mxu0 0
        %4717 = vmatpush1.bf16.msra.mxu0 0
        %4718 = vmatprep.subr.bf16.mxu0 0
        %4719 = vmatpush1.bf16.msra.mxu0 0
        %4720 = vmatprep.subr.bf16.mxu0 0
        %4721 = vmatpush1.bf16.msra.mxu0 0
        %4722 = vmatprep.subr.bf16.mxu0 0
        %4723 = vmatpush1.bf16.msra.mxu0 0
        %4724 = vmatprep.subr.bf16.mxu0 0
        %4725 = vmatpush1.bf16.msra.mxu0 0
        %4726 = vmatprep.mubr.bf16.mxu0 0
        %4727 = vmatmul.mubr.bf16.gmra.mrb[0].mxu0 %v3947
        %v4728 = vpop.f32.mrb[0].mxu0
        %v4729 = vadd.f32 %v3919, %v4728
        %v4730 = vpop.f32.mrb[0].mxu0
        %v4731 = vadd.f32 %v3919, %v4730
        %v4732 = vpop.f32.mrb[0].mxu0
        %v4733 = vadd.f32 %v3924, %v4732
        %v4734 = vpop.f32.mrb[0].mxu0
        %v4735 = vadd.f32 %v3924, %v4734
        %4736 = vmatprep.mubr.bf16.mxu0 0
        %4737 = vmatmul.mubr.bf16.gmra.mrb[0].mxu0 %v3950
        %v4738 = vpop.f32.mrb[0].mxu0
        %v4739 = vadd.f32 %v3929, %v4738
        %v4740 = vpop.f32.mrb[0].mxu0
        %v4741 = vadd.f32 %v3929, %v4740
        %v4742 = vpop.f32.mrb[0].mxu0
        %v4743 = vadd.f32 %v3934, %v4742
        %v4744 = vpop.f32.mrb[0].mxu0
        %v4745 = vadd.f32 %v3934, %v4744
        %4746 = vdwg.mxu0
        %4747 = vmatprep.subr.bf16.mxu0 %v3875
        %4748 = vmatpush1.bf16.msra.mxu0 %v3874
        %4749 = vmatprep.subr.bf16.mxu0 0
        %4750 = vmatpush1.bf16.msra.mxu0 0
        %4751 = vmatprep.subr.bf16.mxu0 0
        %4752 = vmatpush1.bf16.msra.mxu0 0
        %4753 = vmatprep.subr.bf16.mxu0 0
        %4754 = vmatpush1.bf16.msra.mxu0 0
        %4755 = vmatprep.subr.bf16.mxu0 0
        %4756 = vmatpush1.bf16.msra.mxu0 0
        %4757 = vmatprep.subr.bf16.mxu0 0
        %4758 = vmatpush1.bf16.msra.mxu0 0
        %4759 = vmatprep.subr.bf16.mxu0 0
        %4760 = vmatpush1.bf16.msra.mxu0 0
        %4761 = vmatprep.subr.bf16.mxu0 0
        %4762 = vmatpush1.bf16.msra.mxu0 0
        %4763 = vmatprep.subr.bf16.mxu0 0
        %4764 = vmatpush1.bf16.msra.mxu0 0
        %4765 = vmatprep.subr.bf16.mxu0 0
        %4766 = vmatpush1.bf16.msra.mxu0 0
        %4767 = vmatprep.subr.bf16.mxu0 0
        %4768 = vmatpush1.bf16.msra.mxu0 0
        %4769 = vmatprep.subr.bf16.mxu0 0
        %4770 = vmatpush1.bf16.msra.mxu0 0
        %4771 = vmatprep.subr.bf16.mxu0 0
        %4772 = vmatpush1.bf16.msra.mxu0 0
        %4773 = vmatprep.subr.bf16.mxu0 0
        %4774 = vmatpush1.bf16.msra.mxu0 0
        %4775 = vmatprep.subr.bf16.mxu0 0
        %4776 = vmatpush1.bf16.msra.mxu0 0
        %4777 = vmatprep.subr.bf16.mxu0 0
        %4778 = vmatpush1.bf16.msra.mxu0 0
        %4779 = vmatprep.mubr.bf16.mxu0 0
        %4780 = vmatmul.mubr.bf16.gmra.mrb[0].mxu0 %v3947
        %v4781 = vpop.f32.mrb[0].mxu0
        %v4782 = vadd.f32 %v3919, %v4781
        %v4783 = vpop.f32.mrb[0].mxu0
        %v4784 = vadd.f32 %v3919, %v4783
        %v4785 = vpop.f32.mrb[0].mxu0
        %v4786 = vadd.f32 %v3924, %v4785
        %v4787 = vpop.f32.mrb[0].mxu0
        %v4788 = vadd.f32 %v3924, %v4787
        %4789 = vmatprep.mubr.bf16.mxu0 0
        %4790 = vmatmul.mubr.bf16.gmra.mrb[0].mxu0 %v3950
        %v4791 = vpop.f32.mrb[0].mxu0
        %v4792 = vadd.f32 %v3929, %v4791
        %v4793 = vpop.f32.mrb[0].mxu0
        %v4794 = vadd.f32 %v3929, %v4793
        %v4795 = vpop.f32.mrb[0].mxu0
        %v4796 = vadd.f32 %v3934, %v4795
        %v4797 = vpop.f32.mrb[0].mxu0
        %v4798 = vadd.f32 %v3934, %v4797
        %4799 = vdwg.mxu0
        %4800 = vmatprep.subr.bf16.mxu0 %v3877
        %4801 = vmatpush1.bf16.msra.mxu0 %v3876
        %4802 = vmatprep.subr.bf16.mxu0 0
        %4803 = vmatpush1.bf16.msra.mxu0 0
        %4804 = vmatprep.subr.bf16.mxu0 0
        %4805 = vmatpush1.bf16.msra.mxu0 0
        %4806 = vmatprep.subr.bf16.mxu0 0
        %4807 = vmatpush1.bf16.msra.mxu0 0
        %4808 = vmatprep.subr.bf16.mxu0 0
        %4809 = vmatpush1.bf16.msra.mxu0 0
        %4810 = vmatprep.subr.bf16.mxu0 0
        %4811 = vmatpush1.bf16.msra.mxu0 0
        %4812 = vmatprep.subr.bf16.mxu0 0
        %4813 = vmatpush1.bf16.msra.mxu0 0
        %4814 = vmatprep.subr.bf16.mxu0 0
        %4815 = vmatpush1.bf16.msra.mxu0 0
        %4816 = vmatprep.subr.bf16.mxu0 0
        %4817 = vmatpush1.bf16.msra.mxu0 0
        %4818 = vmatprep.subr.bf16.mxu0 0
        %4819 = vmatpush1.bf16.msra.mxu0 0
        %4820 = vmatprep.subr.bf16.mxu0 0
        %4821 = vmatpush1.bf16.msra.mxu0 0
        %4822 = vmatprep.subr.bf16.mxu0 0
        %4823 = vmatpush1.bf16.msra.mxu0 0
        %4824 = vmatprep.subr.bf16.mxu0 0
        %4825 = vmatpush1.bf16.msra.mxu0 0
        %4826 = vmatprep.subr.bf16.mxu0 0
        %4827 = vmatpush1.bf16.msra.mxu0 0
        %4828 = vmatprep.subr.bf16.mxu0 0
        %4829 = vmatpush1.bf16.msra.mxu0 0
        %4830 = vmatprep.subr.bf16.mxu0 0
        %4831 = vmatpush1.bf16.msra.mxu0 0
        %4832 = vmatprep.mubr.bf16.mxu0 0
        %4833 = vmatmul.mubr.bf16.gmra.mrb[0].mxu0 %v3947
        %v4834 = vpop.f32.mrb[0].mxu0
        %v4835 = vadd.f32 %v3919, %v4834
        %v4836 = vpop.f32.mrb[0].mxu0
        %v4837 = vadd.f32 %v3919, %v4836
        %v4838 = vpop.f32.mrb[0].mxu0
        %v4839 = vadd.f32 %v3924, %v4838
        %v4840 = vpop.f32.mrb[0].mxu0
        %v4841 = vadd.f32 %v3924, %v4840
        %4842 = vmatprep.mubr.bf16.mxu0 0
        %4843 = vmatmul.mubr.bf16.gmra.mrb[0].mxu0 %v3950
        %v4844 = vpop.f32.mrb[0].mxu0
        %v4845 = vadd.f32 %v3929, %v4844
        %v4846 = vpop.f32.mrb[0].mxu0
        %v4847 = vadd.f32 %v3929, %v4846
        %v4848 = vpop.f32.mrb[0].mxu0
        %v4849 = vadd.f32 %v3934, %v4848
        %v4850 = vpop.f32.mrb[0].mxu0
        %v4851 = vadd.f32 %v3934, %v4850
        %4852 = vdwg.mxu0
        %4853 = vmatprep.subr.bf16.mxu0 %v3879
        %4854 = vmatpush1.bf16.msra.mxu0 %v3878
        %4855 = vmatprep.subr.bf16.mxu0 0
        %4856 = vmatpush1.bf16.msra.mxu0 0
        %4857 = vmatprep.subr.bf16.mxu0 0
        %4858 = vmatpush1.bf16.msra.mxu0 0
        %4859 = vmatprep.subr.bf16.mxu0 0
        %4860 = vmatpush1.bf16.msra.mxu0 0
        %4861 = vmatprep.subr.bf16.mxu0 0
        %4862 = vmatpush1.bf16.msra.mxu0 0
        %4863 = vmatprep.subr.bf16.mxu0 0
        %4864 = vmatpush1.bf16.msra.mxu0 0
        %4865 = vmatprep.subr.bf16.mxu0 0
        %4866 = vmatpush1.bf16.msra.mxu0 0
        %4867 = vmatprep.subr.bf16.mxu0 0
        %4868 = vmatpush1.bf16.msra.mxu0 0
        %4869 = vmatprep.subr.bf16.mxu0 0
        %4870 = vmatpush1.bf16.msra.mxu0 0
        %4871 = vmatprep.subr.bf16.mxu0 0
        %4872 = vmatpush1.bf16.msra.mxu0 0
        %4873 = vmatprep.subr.bf16.mxu0 0
        %4874 = vmatpush1.bf16.msra.mxu0 0
        %4875 = vmatprep.subr.bf16.mxu0 0
        %4876 = vmatpush1.bf16.msra.mxu0 0
        %4877 = vmatprep.subr.bf16.mxu0 0
        %4878 = vmatpush1.bf16.msra.mxu0 0
        %4879 = vmatprep.subr.bf16.mxu0 0
        %4880 = vmatpush1.bf16.msra.mxu0 0
        %4881 = vmatprep.subr.bf16.mxu0 0
        %4882 = vmatpush1.bf16.msra.mxu0 0
        %4883 = vmatprep.subr.bf16.mxu0 0
        %4884 = vmatpush1.bf16.msra.mxu0 0
        %4885 = vmatprep.mubr.bf16.mxu0 0
        %4886 = vmatmul.mubr.bf16.gmra.mrb[0].mxu0 %v3947
        %v4887 = vpop.f32.mrb[0].mxu0
        %v4888 = vadd.f32 %v3919, %v4887
        %v4889 = vpop.f32.mrb[0].mxu0
        %v4890 = vadd.f32 %v3919, %v4889
        %v4891 = vpop.f32.mrb[0].mxu0
        %v4892 = vadd.f32 %v3924, %v4891
        %v4893 = vpop.f32.mrb[0].mxu0
        %v4894 = vadd.f32 %v3924, %v4893
        %4895 = vmatprep.mubr.bf16.mxu0 0
        %4896 = vmatmul.mubr.bf16.gmra.mrb[0].mxu0 %v3950
        %v4897 = vpop.f32.mrb[0].mxu0
        %v4898 = vadd.f32 %v3929, %v4897
        %v4899 = vpop.f32.mrb[0].mxu0
        %v4900 = vadd.f32 %v3929, %v4899
        %v4901 = vpop.f32.mrb[0].mxu0
        %v4902 = vadd.f32 %v3934, %v4901
        %v4903 = vpop.f32.mrb[0].mxu0
        %v4904 = vadd.f32 %v3934, %v4903
        %4905 = vdwg.mxu0
        %4906 = vmatprep.subr.bf16.mxu0 %v3881
        %4907 = vmatpush1.bf16.msra.mxu0 %v3880
        %4908 = vmatprep.subr.bf16.mxu0 0
        %4909 = vmatpush1.bf16.msra.mxu0 0
        %4910 = vmatprep.subr.bf16.mxu0 0
        %4911 = vmatpush1.bf16.msra.mxu0 0
        %4912 = vmatprep.subr.bf16.mxu0 0
        %4913 = vmatpush1.bf16.msra.mxu0 0
        %4914 = vmatprep.subr.bf16.mxu0 0
        %4915 = vmatpush1.bf16.msra.mxu0 0
        %4916 = vmatprep.subr.bf16.mxu0 0
        %4917 = vmatpush1.bf16.msra.mxu0 0
        %4918 = vmatprep.subr.bf16.mxu0 0
        %4919 = vmatpush1.bf16.msra.mxu0 0
        %4920 = vmatprep.subr.bf16.mxu0 0
        %4921 = vmatpush1.bf16.msra.mxu0 0
        %4922 = vmatprep.subr.bf16.mxu0 0
        %4923 = vmatpush1.bf16.msra.mxu0 0
        %4924 = vmatprep.subr.bf16.mxu0 0
        %4925 = vmatpush1.bf16.msra.mxu0 0
        %4926 = vmatprep.subr.bf16.mxu0 0
        %4927 = vmatpush1.bf16.msra.mxu0 0
        %4928 = vmatprep.subr.bf16.mxu0 0
        %4929 = vmatpush1.bf16.msra.mxu0 0
        %4930 = vmatprep.subr.bf16.mxu0 0
        %4931 = vmatpush1.bf16.msra.mxu0 0
        %4932 = vmatprep.subr.bf16.mxu0 0
        %4933 = vmatpush1.bf16.msra.mxu0 0
        %4934 = vmatprep.subr.bf16.mxu0 0
        %4935 = vmatpush1.bf16.msra.mxu0 0
        %4936 = vmatprep.subr.bf16.mxu0 0
        %4937 = vmatpush1.bf16.msra.mxu0 0
        %4938 = vmatprep.mubr.bf16.mxu0 0
        %4939 = vmatmul.mubr.bf16.gmra.mrb[0].mxu0 %v3947
        %v4940 = vpop.f32.mrb[0].mxu0
        %v4941 = vadd.f32 %v3919, %v4940
        %v4942 = vpop.f32.mrb[0].mxu0
        %v4943 = vadd.f32 %v3919, %v4942
        %v4944 = vpop.f32.mrb[0].mxu0
        %v4945 = vadd.f32 %v3924, %v4944
        %v4946 = vpop.f32.mrb[0].mxu0
        %v4947 = vadd.f32 %v3924, %v4946
        %4948 = vmatprep.mubr.bf16.mxu0 0
        %4949 = vmatmul.mubr.bf16.gmra.mrb[0].mxu0 %v3950
        %v4950 = vpop.f32.mrb[0].mxu0
        %v4951 = vadd.f32 %v3929, %v4950
        %v4952 = vpop.f32.mrb[0].mxu0
        %v4953 = vadd.f32 %v3929, %v4952
        %v4954 = vpop.f32.mrb[0].mxu0
        %v4955 = vadd.f32 %v3934, %v4954
        %v4956 = vpop.f32.mrb[0].mxu0
        %v4957 = vadd.f32 %v3934, %v4956
        %4958 = vdwg.mxu0
        %4959 = vmatprep.subr.bf16.mxu0 %v3883
        %4960 = vmatpush1.bf16.msra.mxu0 %v3882
        %4961 = vmatprep.subr.bf16.mxu0 0
        %4962 = vmatpush1.bf16.msra.mxu0 0
        %4963 = vmatprep.subr.bf16.mxu0 0
        %4964 = vmatpush1.bf16.msra.mxu0 0
        %4965 = vmatprep.subr.bf16.mxu0 0
        %4966 = vmatpush1.bf16.msra.mxu0 0
        %4967 = vmatprep.subr.bf16.mxu0 0
        %4968 = vmatpush1.bf16.msra.mxu0 0
        %4969 = vmatprep.subr.bf16.mxu0 0
        %4970 = vmatpush1.bf16.msra.mxu0 0
        %4971 = vmatprep.subr.bf16.mxu0 0
        %4972 = vmatpush1.bf16.msra.mxu0 0
        %4973 = vmatprep.subr.bf16.mxu0 0
        %4974 = vmatpush1.bf16.msra.mxu0 0
        %4975 = vmatprep.subr.bf16.mxu0 0
        %4976 = vmatpush1.bf16.msra.mxu0 0
        %4977 = vmatprep.subr.bf16.mxu0 0
        %4978 = vmatpush1.bf16.msra.mxu0 0
        %4979 = vmatprep.subr.bf16.mxu0 0
        %4980 = vmatpush1.bf16.msra.mxu0 0
        %4981 = vmatprep.subr.bf16.mxu0 0
        %4982 = vmatpush1.bf16.msra.mxu0 0
        %4983 = vmatprep.subr.bf16.mxu0 0
        %4984 = vmatpush1.bf16.msra.mxu0 0
        %4985 = vmatprep.subr.bf16.mxu0 0
        %4986 = vmatpush1.bf16.msra.mxu0 0
        %4987 = vmatprep.subr.bf16.mxu0 0
        %4988 = vmatpush1.bf16.msra.mxu0 0
        %4989 = vmatprep.subr.bf16.mxu0 0
        %4990 = vmatpush1.bf16.msra.mxu0 0
        %4991 = vmatprep.mubr.bf16.mxu0 0
        %4992 = vmatmul.mubr.bf16.gmra.mrb[0].mxu0 %v3947
        %v4993 = vpop.f32.mrb[0].mxu0
        %v4994 = vadd.f32 %v3919, %v4993
        %v4995 = vpop.f32.mrb[0].mxu0
        %v4996 = vadd.f32 %v3919, %v4995
        %v4997 = vpop.f32.mrb[0].mxu0
        %v4998 = vadd.f32 %v3924, %v4997
        %v4999 = vpop.f32.mrb[0].mxu0
        %v5000 = vadd.f32 %v3924, %v4999
        %5001 = vmatprep.mubr.bf16.mxu0 0
        %5002 = vmatmul.mubr.bf16.gmra.mrb[0].mxu0 %v3950
        %v5003 = vpop.f32.mrb[0].mxu0
        %v5004 = vadd.f32 %v3929, %v5003
        %v5005 = vpop.f32.mrb[0].mxu0
        %v5006 = vadd.f32 %v3929, %v5005
        %v5007 = vpop.f32.mrb[0].mxu0
        %v5008 = vadd.f32 %v3934, %v5007
        %v5009 = vpop.f32.mrb[0].mxu0
        %v5010 = vadd.f32 %v3934, %v5009
        %5011 = vdwg.mxu0
        %5012 = vmatprep.subr.bf16.mxu0 %v3885
        %5013 = vmatpush1.bf16.msra.mxu0 %v3884
        %5014 = vmatprep.subr.bf16.mxu0 0
        %5015 = vmatpush1.bf16.msra.mxu0 0
        %5016 = vmatprep.subr.bf16.mxu0 0
        %5017 = vmatpush1.bf16.msra.mxu0 0
        %5018 = vmatprep.subr.bf16.mxu0 0
        %5019 = vmatpush1.bf16.msra.mxu0 0
        %5020 = vmatprep.subr.bf16.mxu0 0
        %5021 = vmatpush1.bf16.msra.mxu0 0
        %5022 = vmatprep.subr.bf16.mxu0 0
        %5023 = vmatpush1.bf16.msra.mxu0 0
        %5024 = vmatprep.subr.bf16.mxu0 0
        %5025 = vmatpush1.bf16.msra.mxu0 0
        %5026 = vmatprep.subr.bf16.mxu0 0
        %5027 = vmatpush1.bf16.msra.mxu0 0
        %5028 = vmatprep.subr.bf16.mxu0 0
        %5029 = vmatpush1.bf16.msra.mxu0 0
        %5030 = vmatprep.subr.bf16.mxu0 0
        %5031 = vmatpush1.bf16.msra.mxu0 0
        %5032 = vmatprep.subr.bf16.mxu0 0
        %5033 = vmatpush1.bf16.msra.mxu0 0
        %5034 = vmatprep.subr.bf16.mxu0 0
        %5035 = vmatpush1.bf16.msra.mxu0 0
        %5036 = vmatprep.subr.bf16.mxu0 0
        %5037 = vmatpush1.bf16.msra.mxu0 0
        %5038 = vmatprep.subr.bf16.mxu0 0
        %5039 = vmatpush1.bf16.msra.mxu0 0
        %5040 = vmatprep.subr.bf16.mxu0 0
        %5041 = vmatpush1.bf16.msra.mxu0 0
        %5042 = vmatprep.subr.bf16.mxu0 0
        %5043 = vmatpush1.bf16.msra.mxu0 0
        %5044 = vmatprep.mubr.bf16.mxu0 0
        %5045 = vmatmul.mubr.bf16.gmra.mrb[0].mxu0 %v3947
        %v5046 = vpop.f32.mrb[0].mxu0
        %v5047 = vadd.f32 %v3919, %v5046
        %v5048 = vpop.f32.mrb[0].mxu0
        %v5049 = vadd.f32 %v3919, %v5048
        %v5050 = vpop.f32.mrb[0].mxu0
        %v5051 = vadd.f32 %v3924, %v5050
        %v5052 = vpop.f32.mrb[0].mxu0
        %v5053 = vadd.f32 %v3924, %v5052
        %5054 = vmatprep.mubr.bf16.mxu0 0
        %5055 = vmatmul.mubr.bf16.gmra.mrb[0].mxu0 %v3950
        %v5056 = vpop.f32.mrb[0].mxu0
        %v5057 = vadd.f32 %v3929, %v5056
        %v5058 = vpop.f32.mrb[0].mxu0
        %v5059 = vadd.f32 %v3929, %v5058
        %v5060 = vpop.f32.mrb[0].mxu0
        %v5061 = vadd.f32 %v3934, %v5060
        %v5062 = vpop.f32.mrb[0].mxu0
        %v5063 = vadd.f32 %v3934, %v5062
        %5064 = vdwg.mxu0
        %5065 = vmatprep.subr.bf16.mxu0 %v3887
        %5066 = vmatpush1.bf16.msra.mxu0 %v3886
        %5067 = vmatprep.subr.bf16.mxu0 0
        %5068 = vmatpush1.bf16.msra.mxu0 0
        %5069 = vmatprep.subr.bf16.mxu0 0
        %5070 = vmatpush1.bf16.msra.mxu0 0
        %5071 = vmatprep.subr.bf16.mxu0 0
        %5072 = vmatpush1.bf16.msra.mxu0 0
        %5073 = vmatprep.subr.bf16.mxu0 0
        %5074 = vmatpush1.bf16.msra.mxu0 0
        %5075 = vmatprep.subr.bf16.mxu0 0
        %5076 = vmatpush1.bf16.msra.mxu0 0
        %5077 = vmatprep.subr.bf16.mxu0 0
        %5078 = vmatpush1.bf16.msra.mxu0 0
        %5079 = vmatprep.subr.bf16.mxu0 0
        %5080 = vmatpush1.bf16.msra.mxu0 0
        %5081 = vmatprep.subr.bf16.mxu0 0
        %5082 = vmatpush1.bf16.msra.mxu0 0
        %5083 = vmatprep.subr.bf16.mxu0 0
        %5084 = vmatpush1.bf16.msra.mxu0 0
        %5085 = vmatprep.subr.bf16.mxu0 0
        %5086 = vmatpush1.bf16.msra.mxu0 0
        %5087 = vmatprep.subr.bf16.mxu0 0
        %5088 = vmatpush1.bf16.msra.mxu0 0
        %5089 = vmatprep.subr.bf16.mxu0 0
        %5090 = vmatpush1.bf16.msra.mxu0 0
        %5091 = vmatprep.subr.bf16.mxu0 0
        %5092 = vmatpush1.bf16.msra.mxu0 0
        %5093 = vmatprep.subr.bf16.mxu0 0
        %5094 = vmatpush1.bf16.msra.mxu0 0
        %5095 = vmatprep.subr.bf16.mxu0 0
        %5096 = vmatpush1.bf16.msra.mxu0 0
        %5097 = vmatprep.mubr.bf16.mxu0 0
        %5098 = vmatmul.mubr.bf16.gmra.mrb[0].mxu0 %v3947
        %v5099 = vpop.f32.mrb[0].mxu0
        %v5100 = vadd.f32 %v3919, %v5099
        %v5101 = vpop.f32.mrb[0].mxu0
        %v5102 = vadd.f32 %v3919, %v5101
        %v5103 = vpop.f32.mrb[0].mxu0
        %v5104 = vadd.f32 %v3924, %v5103
        %v5105 = vpop.f32.mrb[0].mxu0
        %v5106 = vadd.f32 %v3924, %v5105
        %5107 = vmatprep.mubr.bf16.mxu0 0
        %5108 = vmatmul.mubr.bf16.gmra.mrb[0].mxu0 %v3950
        %v5109 = vpop.f32.mrb[0].mxu0
        %v5110 = vadd.f32 %v3929, %v5109
        %v5111 = vpop.f32.mrb[0].mxu0
        %v5112 = vadd.f32 %v3929, %v5111
        %v5113 = vpop.f32.mrb[0].mxu0
        %v5114 = vadd.f32 %v3934, %v5113
        %v5115 = vpop.f32.mrb[0].mxu0
        %v5116 = vadd.f32 %v3934, %v5115
        %5117 = vdwg.mxu0
        %5118 = vmatprep.subr.bf16.mxu0 %v3889
        %5119 = vmatpush1.bf16.msra.mxu0 %v3888
        %5120 = vmatprep.subr.bf16.mxu0 0
        %5121 = vmatpush1.bf16.msra.mxu0 0
        %5122 = vmatprep.subr.bf16.mxu0 0
        %5123 = vmatpush1.bf16.msra.mxu0 0
        %5124 = vmatprep.subr.bf16.mxu0 0
        %5125 = vmatpush1.bf16.msra.mxu0 0
        %5126 = vmatprep.subr.bf16.mxu0 0
        %5127 = vmatpush1.bf16.msra.mxu0 0
        %5128 = vmatprep.subr.bf16.mxu0 0
        %5129 = vmatpush1.bf16.msra.mxu0 0
        %5130 = vmatprep.subr.bf16.mxu0 0
        %5131 = vmatpush1.bf16.msra.mxu0 0
        %5132 = vmatprep.subr.bf16.mxu0 0
        %5133 = vmatpush1.bf16.msra.mxu0 0
        %5134 = vmatprep.subr.bf16.mxu0 0
        %5135 = vmatpush1.bf16.msra.mxu0 0
        %5136 = vmatprep.subr.bf16.mxu0 0
        %5137 = vmatpush1.bf16.msra.mxu0 0
        %5138 = vmatprep.subr.bf16.mxu0 0
        %5139 = vmatpush1.bf16.msra.mxu0 0
        %5140 = vmatprep.subr.bf16.mxu0 0
        %5141 = vmatpush1.bf16.msra.mxu0 0
        %5142 = vmatprep.subr.bf16.mxu0 0
        %5143 = vmatpush1.bf16.msra.mxu0 0
        %5144 = vmatprep.subr.bf16.mxu0 0
        %5145 = vmatpush1.bf16.msra.mxu0 0
        %5146 = vmatprep.subr.bf16.mxu0 0
        %5147 = vmatpush1.bf16.msra.mxu0 0
        %5148 = vmatprep.subr.bf16.mxu0 0
        %5149 = vmatpush1.bf16.msra.mxu0 0
        %5150 = vmatprep.mubr.bf16.mxu0 0
        %5151 = vmatmul.mubr.bf16.gmra.mrb[0].mxu0 %v3947
        %v5152 = vpop.f32.mrb[0].mxu0
        %v5153 = vadd.f32 %v3919, %v5152
        %v5154 = vpop.f32.mrb[0].mxu0
        %v5155 = vadd.f32 %v3919, %v5154
        %v5156 = vpop.f32.mrb[0].mxu0
        %v5157 = vadd.f32 %v3924, %v5156
        %v5158 = vpop.f32.mrb[0].mxu0
        %v5159 = vadd.f32 %v3924, %v5158
        %5160 = vmatprep.mubr.bf16.mxu0 0
        %5161 = vmatmul.mubr.bf16.gmra.mrb[0].mxu0 %v3950
        %v5162 = vpop.f32.mrb[0].mxu0
        %v5163 = vadd.f32 %v3929, %v5162
        %v5164 = vpop.f32.mrb[0].mxu0
        %v5165 = vadd.f32 %v3929, %v5164
        %v5166 = vpop.f32.mrb[0].mxu0
        %v5167 = vadd.f32 %v3934, %v5166
        %v5168 = vpop.f32.mrb[0].mxu0
        %v5169 = vadd.f32 %v3934, %v5168
        %5170 = vdwg.mxu0
        %5171 = vmatprep.subr.bf16.mxu0 %v3891
        %5172 = vmatpush1.bf16.msra.mxu0 %v3890
        %5173 = vmatprep.subr.bf16.mxu0 0
        %5174 = vmatpush1.bf16.msra.mxu0 0
        %5175 = vmatprep.subr.bf16.mxu0 0
        %5176 = vmatpush1.bf16.msra.mxu0 0
        %5177 = vmatprep.subr.bf16.mxu0 0
        %5178 = vmatpush1.bf16.msra.mxu0 0
        %5179 = vmatprep.subr.bf16.mxu0 0
        %5180 = vmatpush1.bf16.msra.mxu0 0
        %5181 = vmatprep.subr.bf16.mxu0 0
        %5182 = vmatpush1.bf16.msra.mxu0 0
        %5183 = vmatprep.subr.bf16.mxu0 0
        %5184 = vmatpush1.bf16.msra.mxu0 0
        %5185 = vmatprep.subr.bf16.mxu0 0
        %5186 = vmatpush1.bf16.msra.mxu0 0
        %5187 = vmatprep.subr.bf16.mxu0 0
        %5188 = vmatpush1.bf16.msra.mxu0 0
        %5189 = vmatprep.subr.bf16.mxu0 0
        %5190 = vmatpush1.bf16.msra.mxu0 0
        %5191 = vmatprep.subr.bf16.mxu0 0
        %5192 = vmatpush1.bf16.msra.mxu0 0
        %5193 = vmatprep.subr.bf16.mxu0 0
        %5194 = vmatpush1.bf16.msra.mxu0 0
        %5195 = vmatprep.subr.bf16.mxu0 0
        %5196 = vmatpush1.bf16.msra.mxu0 0
        %5197 = vmatprep.subr.bf16.mxu0 0
        %5198 = vmatpush1.bf16.msra.mxu0 0
        %5199 = vmatprep.subr.bf16.mxu0 0
        %5200 = vmatpush1.bf16.msra.mxu0 0
        %5201 = vmatprep.subr.bf16.mxu0 0
        %5202 = vmatpush1.bf16.msra.mxu0 0
        %5203 = vmatprep.mubr.bf16.mxu0 0
        %5204 = vmatmul.mubr.bf16.gmra.mrb[0].mxu0 %v3947
        %v5205 = vpop.f32.mrb[0].mxu0
        %v5206 = vadd.f32 %v3919, %v5205
        %v5207 = vpop.f32.mrb[0].mxu0
        %v5208 = vadd.f32 %v3919, %v5207
        %v5209 = vpop.f32.mrb[0].mxu0
        %v5210 = vadd.f32 %v3924, %v5209
        %v5211 = vpop.f32.mrb[0].mxu0
        %v5212 = vadd.f32 %v3924, %v5211
        %5213 = vmatprep.mubr.bf16.mxu0 0
        %5214 = vmatmul.mubr.bf16.gmra.mrb[0].mxu0 %v3950
        %v5215 = vpop.f32.mrb[0].mxu0
        %v5216 = vadd.f32 %v3929, %v5215
        %v5217 = vpop.f32.mrb[0].mxu0
        %v5218 = vadd.f32 %v3929, %v5217
        %v5219 = vpop.f32.mrb[0].mxu0
        %v5220 = vadd.f32 %v3934, %v5219
        %v5221 = vpop.f32.mrb[0].mxu0
        %v5222 = vadd.f32 %v3934, %v5221
        %5223 = vdwg.mxu0
        %5224 = vmatprep.subr.bf16.mxu0 %v3893
        %5225 = vmatpush1.bf16.msra.mxu0 %v3892
        %5226 = vmatprep.subr.bf16.mxu0 0
        %5227 = vmatpush1.bf16.msra.mxu0 0
        %5228 = vmatprep.subr.bf16.mxu0 0
        %5229 = vmatpush1.bf16.msra.mxu0 0
        %5230 = vmatprep.subr.bf16.mxu0 0
        %5231 = vmatpush1.bf16.msra.mxu0 0
        %5232 = vmatprep.subr.bf16.mxu0 0
        %5233 = vmatpush1.bf16.msra.mxu0 0
        %5234 = vmatprep.subr.bf16.mxu0 0
        %5235 = vmatpush1.bf16.msra.mxu0 0
        %5236 = vmatprep.subr.bf16.mxu0 0
        %5237 = vmatpush1.bf16.msra.mxu0 0
        %5238 = vmatprep.subr.bf16.mxu0 0
        %5239 = vmatpush1.bf16.msra.mxu0 0
        %5240 = vmatprep.subr.bf16.mxu0 0
        %5241 = vmatpush1.bf16.msra.mxu0 0
        %5242 = vmatprep.subr.bf16.mxu0 0
        %5243 = vmatpush1.bf16.msra.mxu0 0
        %5244 = vmatprep.subr.bf16.mxu0 0
        %5245 = vmatpush1.bf16.msra.mxu0 0
        %5246 = vmatprep.subr.bf16.mxu0 0
        %5247 = vmatpush1.bf16.msra.mxu0 0
        %5248 = vmatprep.subr.bf16.mxu0 0
        %5249 = vmatpush1.bf16.msra.mxu0 0
        %5250 = vmatprep.subr.bf16.mxu0 0
        %5251 = vmatpush1.bf16.msra.mxu0 0
        %5252 = vmatprep.subr.bf16.mxu0 0
        %5253 = vmatpush1.bf16.msra.mxu0 0
        %5254 = vmatprep.subr.bf16.mxu0 0
        %5255 = vmatpush1.bf16.msra.mxu0 0
        %5256 = vmatprep.mubr.bf16.mxu0 0
        %5257 = vmatmul.mubr.bf16.gmra.mrb[0].mxu0 %v3947
        %v5258 = vpop.f32.mrb[0].mxu0
        %v5259 = vadd.f32 %v3919, %v5258
        %v5260 = vpop.f32.mrb[0].mxu0
        %v5261 = vadd.f32 %v3919, %v5260
        %v5262 = vpop.f32.mrb[0].mxu0
        %v5263 = vadd.f32 %v3924, %v5262
        %v5264 = vpop.f32.mrb[0].mxu0
        %v5265 = vadd.f32 %v3924, %v5264
        %5266 = vmatprep.mubr.bf16.mxu0 0
        %5267 = vmatmul.mubr.bf16.gmra.mrb[0].mxu0 %v3950
        %v5268 = vpop.f32.mrb[0].mxu0
        %v5269 = vadd.f32 %v3929, %v5268
        %v5270 = vpop.f32.mrb[0].mxu0
        %v5271 = vadd.f32 %v3929, %v5270
        %v5272 = vpop.f32.mrb[0].mxu0
        %v5273 = vadd.f32 %v3934, %v5272
        %v5274 = vpop.f32.mrb[0].mxu0
        %v5275 = vadd.f32 %v3934, %v5274
        %5276 = vdwg.mxu0
        %5277 = vmatprep.subr.bf16.mxu0 %v3895
        %5278 = vmatpush1.bf16.msra.mxu0 %v3894
        %5279 = vmatprep.subr.bf16.mxu0 0
        %5280 = vmatpush1.bf16.msra.mxu0 0
        %5281 = vmatprep.subr.bf16.mxu0 0
        %5282 = vmatpush1.bf16.msra.mxu0 0
        %5283 = vmatprep.subr.bf16.mxu0 0
        %5284 = vmatpush1.bf16.msra.mxu0 0
        %5285 = vmatprep.subr.bf16.mxu0 0
        %5286 = vmatpush1.bf16.msra.mxu0 0
        %5287 = vmatprep.subr.bf16.mxu0 0
        %5288 = vmatpush1.bf16.msra.mxu0 0
        %5289 = vmatprep.subr.bf16.mxu0 0
        %5290 = vmatpush1.bf16.msra.mxu0 0
        %5291 = vmatprep.subr.bf16.mxu0 0
        %5292 = vmatpush1.bf16.msra.mxu0 0
        %5293 = vmatprep.subr.bf16.mxu0 0
        %5294 = vmatpush1.bf16.msra.mxu0 0
        %5295 = vmatprep.subr.bf16.mxu0 0
        %5296 = vmatpush1.bf16.msra.mxu0 0
        %5297 = vmatprep.subr.bf16.mxu0 0
        %5298 = vmatpush1.bf16.msra.mxu0 0
        %5299 = vmatprep.subr.bf16.mxu0 0
        %5300 = vmatpush1.bf16.msra.mxu0 0
        %5301 = vmatprep.subr.bf16.mxu0 0
        %5302 = vmatpush1.bf16.msra.mxu0 0
        %5303 = vmatprep.subr.bf16.mxu0 0
        %5304 = vmatpush1.bf16.msra.mxu0 0
        %5305 = vmatprep.subr.bf16.mxu0 0
        %5306 = vmatpush1.bf16.msra.mxu0 0
        %5307 = vmatprep.subr.bf16.mxu0 0
        %5308 = vmatpush1.bf16.msra.mxu0 0
        %5309 = vmatprep.mubr.bf16.mxu0 0
        %5310 = vmatmul.mubr.bf16.gmra.mrb[0].mxu0 %v3947
        %v5311 = vpop.f32.mrb[0].mxu0
        %v5312 = vadd.f32 %v3919, %v5311
        %v5313 = vpop.f32.mrb[0].mxu0
        %v5314 = vadd.f32 %v3919, %v5313
        %v5315 = vpop.f32.mrb[0].mxu0
        %v5316 = vadd.f32 %v3924, %v5315
        %v5317 = vpop.f32.mrb[0].mxu0
        %v5318 = vadd.f32 %v3924, %v5317
        %5319 = vmatprep.mubr.bf16.mxu0 0
        %5320 = vmatmul.mubr.bf16.gmra.mrb[0].mxu0 %v3950
        %v5321 = vpop.f32.mrb[0].mxu0
        %v5322 = vadd.f32 %v3929, %v5321
        %v5323 = vpop.f32.mrb[0].mxu0
        %v5324 = vadd.f32 %v3929, %v5323
        %v5325 = vpop.f32.mrb[0].mxu0
        %v5326 = vadd.f32 %v3934, %v5325
        %v5327 = vpop.f32.mrb[0].mxu0
        %v5328 = vadd.f32 %v3934, %v5327
        %5329 = vdwg.mxu0
        %5330 = vmatprep.subr.bf16.mxu0 %v3897
        %5331 = vmatpush1.bf16.msra.mxu0 %v3896
        %5332 = vmatprep.subr.bf16.mxu0 0
        %5333 = vmatpush1.bf16.msra.mxu0 0
        %5334 = vmatprep.subr.bf16.mxu0 0
        %5335 = vmatpush1.bf16.msra.mxu0 0
        %5336 = vmatprep.subr.bf16.mxu0 0
        %5337 = vmatpush1.bf16.msra.mxu0 0
        %5338 = vmatprep.subr.bf16.mxu0 0
        %5339 = vmatpush1.bf16.msra.mxu0 0
        %5340 = vmatprep.subr.bf16.mxu0 0
        %5341 = vmatpush1.bf16.msra.mxu0 0
        %5342 = vmatprep.subr.bf16.mxu0 0
        %5343 = vmatpush1.bf16.msra.mxu0 0
        %5344 = vmatprep.subr.bf16.mxu0 0
        %5345 = vmatpush1.bf16.msra.mxu0 0
        %5346 = vmatprep.subr.bf16.mxu0 0
        %5347 = vmatpush1.bf16.msra.mxu0 0
        %5348 = vmatprep.subr.bf16.mxu0 0
        %5349 = vmatpush1.bf16.msra.mxu0 0
        %5350 = vmatprep.subr.bf16.mxu0 0
        %5351 = vmatpush1.bf16.msra.mxu0 0
        %5352 = vmatprep.subr.bf16.mxu0 0
        %5353 = vmatpush1.bf16.msra.mxu0 0
        %5354 = vmatprep.subr.bf16.mxu0 0
        %5355 = vmatpush1.bf16.msra.mxu0 0
        %5356 = vmatprep.subr.bf16.mxu0 0
        %5357 = vmatpush1.bf16.msra.mxu0 0
        %5358 = vmatprep.subr.bf16.mxu0 0
        %5359 = vmatpush1.bf16.msra.mxu0 0
        %5360 = vmatprep.subr.bf16.mxu0 0
        %5361 = vmatpush1.bf16.msra.mxu0 0
        %5362 = vmatprep.mubr.bf16.mxu0 0
        %5363 = vmatmul.mubr.bf16.gmra.mrb[0].mxu0 %v3947
        %v5364 = vpop.f32.mrb[0].mxu0
        %v5365 = vadd.f32 %v3919, %v5364
        %v5366 = vpop.f32.mrb[0].mxu0
        %v5367 = vadd.f32 %v3919, %v5366
        %v5368 = vpop.f32.mrb[0].mxu0
        %v5369 = vadd.f32 %v3924, %v5368
        %v5370 = vpop.f32.mrb[0].mxu0
        %v5371 = vadd.f32 %v3924, %v5370
        %5372 = vmatprep.mubr.bf16.mxu0 0
        %5373 = vmatmul.mubr.bf16.gmra.mrb[0].mxu0 %v3950
        %v5374 = vpop.f32.mrb[0].mxu0
        %v5375 = vadd.f32 %v3929, %v5374
        %v5376 = vpop.f32.mrb[0].mxu0
        %v5377 = vadd.f32 %v3929, %v5376
        %v5378 = vpop.f32.mrb[0].mxu0
        %v5379 = vadd.f32 %v3934, %v5378
        %v5380 = vpop.f32.mrb[0].mxu0
        %v5381 = vadd.f32 %v3934, %v5380
        %5382 = vdwg.mxu0
        %5383 = vmatprep.subr.bf16.mxu0 %v3899
        %5384 = vmatpush1.bf16.msra.mxu0 %v3898
        %5385 = vmatprep.subr.bf16.mxu0 0
        %5386 = vmatpush1.bf16.msra.mxu0 0
        %5387 = vmatprep.subr.bf16.mxu0 0
        %5388 = vmatpush1.bf16.msra.mxu0 0
        %5389 = vmatprep.subr.bf16.mxu0 0
        %5390 = vmatpush1.bf16.msra.mxu0 0
        %5391 = vmatprep.subr.bf16.mxu0 0
        %5392 = vmatpush1.bf16.msra.mxu0 0
        %5393 = vmatprep.subr.bf16.mxu0 0
        %5394 = vmatpush1.bf16.msra.mxu0 0
        %5395 = vmatprep.subr.bf16.mxu0 0
        %5396 = vmatpush1.bf16.msra.mxu0 0
        %5397 = vmatprep.subr.bf16.mxu0 0
        %5398 = vmatpush1.bf16.msra.mxu0 0
        %5399 = vmatprep.subr.bf16.mxu0 0
        %5400 = vmatpush1.bf16.msra.mxu0 0
        %5401 = vmatprep.subr.bf16.mxu0 0
        %5402 = vmatpush1.bf16.msra.mxu0 0
        %5403 = vmatprep.subr.bf16.mxu0 0
        %5404 = vmatpush1.bf16.msra.mxu0 0
        %5405 = vmatprep.subr.bf16.mxu0 0
        %5406 = vmatpush1.bf16.msra.mxu0 0
        %5407 = vmatprep.subr.bf16.mxu0 0
        %5408 = vmatpush1.bf16.msra.mxu0 0
        %5409 = vmatprep.subr.bf16.mxu0 0
        %5410 = vmatpush1.bf16.msra.mxu0 0
        %5411 = vmatprep.subr.bf16.mxu0 0
        %5412 = vmatpush1.bf16.msra.mxu0 0
        %5413 = vmatprep.subr.bf16.mxu0 0
        %5414 = vmatpush1.bf16.msra.mxu0 0
        %5415 = vmatprep.mubr.bf16.mxu0 0
        %5416 = vmatmul.mubr.bf16.gmra.mrb[0].mxu0 %v3947
        %v5417 = vpop.f32.mrb[0].mxu0
        %v5418 = vadd.f32 %v3919, %v5417
        %v5419 = vpop.f32.mrb[0].mxu0
        %v5420 = vadd.f32 %v3919, %v5419
        %v5421 = vpop.f32.mrb[0].mxu0
        %v5422 = vadd.f32 %v3924, %v5421
        %v5423 = vpop.f32.mrb[0].mxu0
        %v5424 = vadd.f32 %v3924, %v5423
        %5425 = vmatprep.mubr.bf16.mxu0 0
        %5426 = vmatmul.mubr.bf16.gmra.mrb[0].mxu0 %v3950
        %v5427 = vpop.f32.mrb[0].mxu0
        %v5428 = vadd.f32 %v3929, %v5427
        %v5429 = vpop.f32.mrb[0].mxu0
        %v5430 = vadd.f32 %v3929, %v5429
        %v5431 = vpop.f32.mrb[0].mxu0
        %v5432 = vadd.f32 %v3934, %v5431
        %v5433 = vpop.f32.mrb[0].mxu0
        %v5434 = vadd.f32 %v3934, %v5433
        %5435 = vdwg.mxu0
        %5436 = vmatprep.subr.bf16.mxu0 %v3901
        %5437 = vmatpush1.bf16.msra.mxu0 %v3900
        %5438 = vmatprep.subr.bf16.mxu0 0
        %5439 = vmatpush1.bf16.msra.mxu0 0
        %5440 = vmatprep.subr.bf16.mxu0 0
        %5441 = vmatpush1.bf16.msra.mxu0 0
        %5442 = vmatprep.subr.bf16.mxu0 0
        %5443 = vmatpush1.bf16.msra.mxu0 0
        %5444 = vmatprep.subr.bf16.mxu0 0
        %5445 = vmatpush1.bf16.msra.mxu0 0
        %5446 = vmatprep.subr.bf16.mxu0 0
        %5447 = vmatpush1.bf16.msra.mxu0 0
        %5448 = vmatprep.subr.bf16.mxu0 0
        %5449 = vmatpush1.bf16.msra.mxu0 0
        %5450 = vmatprep.subr.bf16.mxu0 0
        %5451 = vmatpush1.bf16.msra.mxu0 0
        %5452 = vmatprep.subr.bf16.mxu0 0
        %5453 = vmatpush1.bf16.msra.mxu0 0
        %5454 = vmatprep.subr.bf16.mxu0 0
        %5455 = vmatpush1.bf16.msra.mxu0 0
        %5456 = vmatprep.subr.bf16.mxu0 0
        %5457 = vmatpush1.bf16.msra.mxu0 0
        %5458 = vmatprep.subr.bf16.mxu0 0
        %5459 = vmatpush1.bf16.msra.mxu0 0
        %5460 = vmatprep.subr.bf16.mxu0 0
        %5461 = vmatpush1.bf16.msra.mxu0 0
        %5462 = vmatprep.subr.bf16.mxu0 0
        %5463 = vmatpush1.bf16.msra.mxu0 0
        %5464 = vmatprep.subr.bf16.mxu0 0
        %5465 = vmatpush1.bf16.msra.mxu0 0
        %5466 = vmatprep.subr.bf16.mxu0 0
        %5467 = vmatpush1.bf16.msra.mxu0 0
        %5468 = vmatprep.mubr.bf16.mxu0 0
        %5469 = vmatmul.mubr.bf16.gmra.mrb[0].mxu0 %v3947
        %v5470 = vpop.f32.mrb[0].mxu0
        %v5471 = vadd.f32 %v3919, %v5470
        %v5472 = vpop.f32.mrb[0].mxu0
        %v5473 = vadd.f32 %v3919, %v5472
        %v5474 = vpop.f32.mrb[0].mxu0
        %v5475 = vadd.f32 %v3924, %v5474
        %v5476 = vpop.f32.mrb[0].mxu0
        %v5477 = vadd.f32 %v3924, %v5476
        %5478 = vmatprep.mubr.bf16.mxu0 0
        %5479 = vmatmul.mubr.bf16.gmra.mrb[0].mxu0 %v3950
        %v5480 = vpop.f32.mrb[0].mxu0
        %v5481 = vadd.f32 %v3929, %v5480
        %v5482 = vpop.f32.mrb[0].mxu0
        %v5483 = vadd.f32 %v3929, %v5482
        %v5484 = vpop.f32.mrb[0].mxu0
        %v5485 = vadd.f32 %v3934, %v5484
        %v5486 = vpop.f32.mrb[0].mxu0
        %v5487 = vadd.f32 %v3934, %v5486
        %5488 = vdwg.mxu0
        %5489 = vmatprep.subr.bf16.mxu0 %v3903
        %5490 = vmatpush1.bf16.msra.mxu0 %v3902
        %5491 = vmatprep.subr.bf16.mxu0 0
        %5492 = vmatpush1.bf16.msra.mxu0 0
        %5493 = vmatprep.subr.bf16.mxu0 0
        %5494 = vmatpush1.bf16.msra.mxu0 0
        %5495 = vmatprep.subr.bf16.mxu0 0
        %5496 = vmatpush1.bf16.msra.mxu0 0
        %5497 = vmatprep.subr.bf16.mxu0 0
        %5498 = vmatpush1.bf16.msra.mxu0 0
        %5499 = vmatprep.subr.bf16.mxu0 0
        %5500 = vmatpush1.bf16.msra.mxu0 0
        %5501 = vmatprep.subr.bf16.mxu0 0
        %5502 = vmatpush1.bf16.msra.mxu0 0
        %5503 = vmatprep.subr.bf16.mxu0 0
        %5504 = vmatpush1.bf16.msra.mxu0 0
        %5505 = vmatprep.subr.bf16.mxu0 0
        %5506 = vmatpush1.bf16.msra.mxu0 0
        %5507 = vmatprep.subr.bf16.mxu0 0
        %5508 = vmatpush1.bf16.msra.mxu0 0
        %5509 = vmatprep.subr.bf16.mxu0 0
        %5510 = vmatpush1.bf16.msra.mxu0 0
        %5511 = vmatprep.subr.bf16.mxu0 0
        %5512 = vmatpush1.bf16.msra.mxu0 0
        %5513 = vmatprep.subr.bf16.mxu0 0
        %5514 = vmatpush1.bf16.msra.mxu0 0
        %5515 = vmatprep.subr.bf16.mxu0 0
        %5516 = vmatpush1.bf16.msra.mxu0 0
        %5517 = vmatprep.subr.bf16.mxu0 0
        %5518 = vmatpush1.bf16.msra.mxu0 0
        %5519 = vmatprep.subr.bf16.mxu0 0
        %5520 = vmatpush1.bf16.msra.mxu0 0
        %5521 = vmatprep.mubr.bf16.mxu0 0
        %5522 = vmatmul.mubr.bf16.gmra.mrb[0].mxu0 %v3947
        %v5523 = vpop.f32.mrb[0].mxu0
        %v5524 = vadd.f32 %v3919, %v5523
        %v5525 = vpop.f32.mrb[0].mxu0
        %v5526 = vadd.f32 %v3919, %v5525
        %v5527 = vpop.f32.mrb[0].mxu0
        %v5528 = vadd.f32 %v3924, %v5527
        %v5529 = vpop.f32.mrb[0].mxu0
        %v5530 = vadd.f32 %v3924, %v5529
        %5531 = vmatprep.mubr.bf16.mxu0 0
        %5532 = vmatmul.mubr.bf16.gmra.mrb[0].mxu0 %v3950
        %v5533 = vpop.f32.mrb[0].mxu0
        %v5534 = vadd.f32 %v3929, %v5533
        %v5535 = vpop.f32.mrb[0].mxu0
        %v5536 = vadd.f32 %v3929, %v5535
        %v5537 = vpop.f32.mrb[0].mxu0
        %v5538 = vadd.f32 %v3934, %v5537
        %v5539 = vpop.f32.mrb[0].mxu0
        %v5540 = vadd.f32 %v3934, %v5539
        %5541 = vdwg.mxu0
        %5542 = vmatprep.subr.bf16.mxu0 %v3905
        %5543 = vmatpush1.bf16.msra.mxu0 %v3904
        %5544 = vmatprep.subr.bf16.mxu0 0
        %5545 = vmatpush1.bf16.msra.mxu0 0
        %5546 = vmatprep.subr.bf16.mxu0 0
        %5547 = vmatpush1.bf16.msra.mxu0 0
        %5548 = vmatprep.subr.bf16.mxu0 0
        %5549 = vmatpush1.bf16.msra.mxu0 0
        %5550 = vmatprep.subr.bf16.mxu0 0
        %5551 = vmatpush1.bf16.msra.mxu0 0
        %5552 = vmatprep.subr.bf16.mxu0 0
        %5553 = vmatpush1.bf16.msra.mxu0 0
        %5554 = vmatprep.subr.bf16.mxu0 0
        %5555 = vmatpush1.bf16.msra.mxu0 0
        %5556 = vmatprep.subr.bf16.mxu0 0
        %5557 = vmatpush1.bf16.msra.mxu0 0
        %5558 = vmatprep.subr.bf16.mxu0 0
        %5559 = vmatpush1.bf16.msra.mxu0 0
        %5560 = vmatprep.subr.bf16.mxu0 0
        %5561 = vmatpush1.bf16.msra.mxu0 0
        %5562 = vmatprep.subr.bf16.mxu0 0
        %5563 = vmatpush1.bf16.msra.mxu0 0
        %5564 = vmatprep.subr.bf16.mxu0 0
        %5565 = vmatpush1.bf16.msra.mxu0 0
        %5566 = vmatprep.subr.bf16.mxu0 0
        %5567 = vmatpush1.bf16.msra.mxu0 0
        %5568 = vmatprep.subr.bf16.mxu0 0
        %5569 = vmatpush1.bf16.msra.mxu0 0
        %5570 = vmatprep.subr.bf16.mxu0 0
        %5571 = vmatpush1.bf16.msra.mxu0 0
        %5572 = vmatprep.subr.bf16.mxu0 0
        %5573 = vmatpush1.bf16.msra.mxu0 0
        %5574 = vmatprep.mubr.bf16.mxu0 0
        %5575 = vmatmul.mubr.bf16.gmra.mrb[0].mxu0 %v3947
        %v5576 = vpop.f32.mrb[0].mxu0
        %v5577 = vadd.f32 %v3919, %v5576
        %v5578 = vpop.f32.mrb[0].mxu0
        %v5579 = vadd.f32 %v3919, %v5578
        %v5580 = vpop.f32.mrb[0].mxu0
        %v5581 = vadd.f32 %v3924, %v5580
        %v5582 = vpop.f32.mrb[0].mxu0
        %v5583 = vadd.f32 %v3924, %v5582
        %5584 = vmatprep.mubr.bf16.mxu0 0
        %5585 = vmatmul.mubr.bf16.gmra.mrb[0].mxu0 %v3950
        %v5586 = vpop.f32.mrb[0].mxu0
        %v5587 = vadd.f32 %v3929, %v5586
        %v5588 = vpop.f32.mrb[0].mxu0
        %v5589 = vadd.f32 %v3929, %v5588
        %v5590 = vpop.f32.mrb[0].mxu0
        %v5591 = vadd.f32 %v3934, %v5590
        %v5592 = vpop.f32.mrb[0].mxu0
        %v5593 = vadd.f32 %v3934, %v5592
        %5594 = vdwg.mxu0
        %5595 = vmatprep.subr.bf16.mxu0 %v3907
        %5596 = vmatpush1.bf16.msra.mxu0 %v3906
        %5597 = vmatprep.subr.bf16.mxu0 0
        %5598 = vmatpush1.bf16.msra.mxu0 0
        %5599 = vmatprep.subr.bf16.mxu0 0
        %5600 = vmatpush1.bf16.msra.mxu0 0
        %5601 = vmatprep.subr.bf16.mxu0 0
        %5602 = vmatpush1.bf16.msra.mxu0 0
        %5603 = vmatprep.subr.bf16.mxu0 0
        %5604 = vmatpush1.bf16.msra.mxu0 0
        %5605 = vmatprep.subr.bf16.mxu0 0
        %5606 = vmatpush1.bf16.msra.mxu0 0
        %5607 = vmatprep.subr.bf16.mxu0 0
        %5608 = vmatpush1.bf16.msra.mxu0 0
        %5609 = vmatprep.subr.bf16.mxu0 0
        %5610 = vmatpush1.bf16.msra.mxu0 0
        %5611 = vmatprep.subr.bf16.mxu0 0
        %5612 = vmatpush1.bf16.msra.mxu0 0
        %5613 = vmatprep.subr.bf16.mxu0 0
        %5614 = vmatpush1.bf16.msra.mxu0 0
        %5615 = vmatprep.subr.bf16.mxu0 0
        %5616 = vmatpush1.bf16.msra.mxu0 0
        %5617 = vmatprep.subr.bf16.mxu0 0
        %5618 = vmatpush1.bf16.msra.mxu0 0
        %5619 = vmatprep.subr.bf16.mxu0 0
        %5620 = vmatpush1.bf16.msra.mxu0 0
        %5621 = vmatprep.subr.bf16.mxu0 0
        %5622 = vmatpush1.bf16.msra.mxu0 0
        %5623 = vmatprep.subr.bf16.mxu0 0
        %5624 = vmatpush1.bf16.msra.mxu0 0
        %5625 = vmatprep.subr.bf16.mxu0 0
        %5626 = vmatpush1.bf16.msra.mxu0 0
        %5627 = vmatprep.mubr.bf16.mxu0 0
        %5628 = vmatmul.mubr.bf16.gmra.mrb[0].mxu0 %v3947
        %v5629 = vpop.f32.mrb[0].mxu0
        %v5630 = vadd.f32 %v3919, %v5629
        %v5631 = vpop.f32.mrb[0].mxu0
        %v5632 = vadd.f32 %v3919, %v5631
        %v5633 = vpop.f32.mrb[0].mxu0
        %v5634 = vadd.f32 %v3924, %v5633
        %v5635 = vpop.f32.mrb[0].mxu0
        %v5636 = vadd.f32 %v3924, %v5635
        %5637 = vmatprep.mubr.bf16.mxu0 0
        %5638 = vmatmul.mubr.bf16.gmra.mrb[0].mxu0 %v3950
        %v5639 = vpop.f32.mrb[0].mxu0
        %v5640 = vadd.f32 %v3929, %v5639
        %v5641 = vpop.f32.mrb[0].mxu0
        %v5642 = vadd.f32 %v3929, %v5641
        %v5643 = vpop.f32.mrb[0].mxu0
        %v5644 = vadd.f32 %v3934, %v5643
        %v5645 = vpop.f32.mrb[0].mxu0
        %v5646 = vadd.f32 %v3934, %v5645
        %5647 = vdwg.mxu0
        %v5648 = vld [vmem:[%s336] sm:$0x1]
        %vm5649 = vcmp.gt.s32.totalorder %v5648, 0
        %v5650 = vsel %vm5649, 1, 0
        %v5651 = vlaneseq
        %v5652 = vshrl.u32 %v5651, 7
        %v5653 = vsub.s32 0, %v5652
        %v5654 = vrot.slane %v5650, %v5653
        %vm5655 = vcmp.eq.s32.totalorder %v5654, 1
        %v5656 = vsel %vm5655, %v3987, -3e+38
        %v5657 = vsel %vm5655, %v3991, -3e+38
        %v5658 = vsel %vm5655, %v3997, -3e+38
        %v5659 = vsel %vm5655, %v4001, -3e+38
        %vm5660 = vcmp.gt.s32.totalorder %v5648, 1
        %v5661 = vsel %vm5660, 1, 0
        %v5662 = vlaneseq
        %v5663 = vshrl.u32 %v5662, 7
        %v5664 = vsub.s32 0, %v5663
        %v5665 = vrot.slane %v5661, %v5664
        %vm5666 = vcmp.eq.s32.totalorder %v5665, 1
        %v5667 = vsel %vm5666, %v3989, -3e+38
        %v5668 = vsel %vm5666, %v3993, -3e+38
        %v5669 = vsel %vm5666, %v3999, -3e+38
        %v5670 = vsel %vm5666, %v4003, -3e+38
        %vm5671 = vcmp.gt.s32.totalorder %v5648, 2
        %v5672 = vsel %vm5671, 1, 0
        %v5673 = vlaneseq
        %v5674 = vshrl.u32 %v5673, 7
        %v5675 = vsub.s32 0, %v5674
        %v5676 = vrot.slane %v5672, %v5675
        %vm5677 = vcmp.eq.s32.totalorder %v5676, 1
        %v5678 = vsel %vm5677, %v4040, -3e+38
        %v5679 = vsel %vm5677, %v4044, -3e+38
        %v5680 = vsel %vm5677, %v4050, -3e+38
        %v5681 = vsel %vm5677, %v4054, -3e+38
        %vm5682 = vcmp.gt.s32.totalorder %v5648, 3
        %v5683 = vsel %vm5682, 1, 0
        %v5684 = vlaneseq
        %v5685 = vshrl.u32 %v5684, 7
        %v5686 = vsub.s32 0, %v5685
        %v5687 = vrot.slane %v5683, %v5686
        %vm5688 = vcmp.eq.s32.totalorder %v5687, 1
        %v5689 = vsel %vm5688, %v4042, -3e+38
        %v5690 = vsel %vm5688, %v4046, -3e+38
        %v5691 = vsel %vm5688, %v4052, -3e+38
        %v5692 = vsel %vm5688, %v4056, -3e+38
        %vm5693 = vcmp.gt.s32.totalorder %v5648, 4
        %v5694 = vsel %vm5693, 1, 0
        %v5695 = vlaneseq
        %v5696 = vshrl.u32 %v5695, 7
        %v5697 = vsub.s32 0, %v5696
        %v5698 = vrot.slane %v5694, %v5697
        %vm5699 = vcmp.eq.s32.totalorder %v5698, 1
        %v5700 = vsel %vm5699, %v4093, -3e+38
        %v5701 = vsel %vm5699, %v4097, -3e+38
        %v5702 = vsel %vm5699, %v4103, -3e+38
        %v5703 = vsel %vm5699, %v4107, -3e+38
        %vm5704 = vcmp.gt.s32.totalorder %v5648, 5
        %v5705 = vsel %vm5704, 1, 0
        %v5706 = vlaneseq
        %v5707 = vshrl.u32 %v5706, 7
        %v5708 = vsub.s32 0, %v5707
        %v5709 = vrot.slane %v5705, %v5708
        %vm5710 = vcmp.eq.s32.totalorder %v5709, 1
        %v5711 = vsel %vm5710, %v4095, -3e+38
        %v5712 = vsel %vm5710, %v4099, -3e+38
        %v5713 = vsel %vm5710, %v4105, -3e+38
        %v5714 = vsel %vm5710, %v4109, -3e+38
        %vm5715 = vcmp.gt.s32.totalorder %v5648, 6
        %v5716 = vsel %vm5715, 1, 0
        %v5717 = vlaneseq
        %v5718 = vshrl.u32 %v5717, 7
        %v5719 = vsub.s32 0, %v5718
        %v5720 = vrot.slane %v5716, %v5719
        %vm5721 = vcmp.eq.s32.totalorder %v5720, 1
        %v5722 = vsel %vm5721, %v4146, -3e+38
        %v5723 = vsel %vm5721, %v4150, -3e+38
        %v5724 = vsel %vm5721, %v4156, -3e+38
        %v5725 = vsel %vm5721, %v4160, -3e+38
        %vm5726 = vcmp.gt.s32.totalorder %v5648, 7
        %v5727 = vsel %vm5726, 1, 0
        %v5728 = vlaneseq
        %v5729 = vshrl.u32 %v5728, 7
        %v5730 = vsub.s32 0, %v5729
        %v5731 = vrot.slane %v5727, %v5730
        %vm5732 = vcmp.eq.s32.totalorder %v5731, 1
        %v5733 = vsel %vm5732, %v4148, -3e+38
        %v5734 = vsel %vm5732, %v4152, -3e+38
        %v5735 = vsel %vm5732, %v4158, -3e+38
        %v5736 = vsel %vm5732, %v4162, -3e+38
        %vm5737 = vcmp.gt.s32.totalorder %v5648, 8
        %v5738 = vsel %vm5737, 1, 0
        %v5739 = vlaneseq
        %v5740 = vshrl.u32 %v5739, 7
        %v5741 = vsub.s32 0, %v5740
        %v5742 = vrot.slane %v5738, %v5741
        %vm5743 = vcmp.eq.s32.totalorder %v5742, 1
        %v5744 = vsel %vm5743, %v4199, -3e+38
        %v5745 = vsel %vm5743, %v4203, -3e+38
        %v5746 = vsel %vm5743, %v4209, -3e+38
        %v5747 = vsel %vm5743, %v4213, -3e+38
        %vm5748 = vcmp.gt.s32.totalorder %v5648, 9
        %v5749 = vsel %vm5748, 1, 0
        %v5750 = vlaneseq
        %v5751 = vshrl.u32 %v5750, 7
        %v5752 = vsub.s32 0, %v5751
        %v5753 = vrot.slane %v5749, %v5752
        %vm5754 = vcmp.eq.s32.totalorder %v5753, 1
        %v5755 = vsel %vm5754, %v4201, -3e+38
        %v5756 = vsel %vm5754, %v4205, -3e+38
        %v5757 = vsel %vm5754, %v4211, -3e+38
        %v5758 = vsel %vm5754, %v4215, -3e+38
        %vm5759 = vcmp.gt.s32.totalorder %v5648, 10
        %v5760 = vsel %vm5759, 1, 0
        %v5761 = vlaneseq
        %v5762 = vshrl.u32 %v5761, 7
        %v5763 = vsub.s32 0, %v5762
        %v5764 = vrot.slane %v5760, %v5763
        %vm5765 = vcmp.eq.s32.totalorder %v5764, 1
        %v5766 = vsel %vm5765, %v4252, -3e+38
        %v5767 = vsel %vm5765, %v4256, -3e+38
        %v5768 = vsel %vm5765, %v4262, -3e+38
        %v5769 = vsel %vm5765, %v4266, -3e+38
        %vm5770 = vcmp.gt.s32.totalorder %v5648, 11
        %v5771 = vsel %vm5770, 1, 0
        %v5772 = vlaneseq
        %v5773 = vshrl.u32 %v5772, 7
        %v5774 = vsub.s32 0, %v5773
        %v5775 = vrot.slane %v5771, %v5774
        %vm5776 = vcmp.eq.s32.totalorder %v5775, 1
        %v5777 = vsel %vm5776, %v4254, -3e+38
        %v5778 = vsel %vm5776, %v4258, -3e+38
        %v5779 = vsel %vm5776, %v4264, -3e+38
        %v5780 = vsel %vm5776, %v4268, -3e+38
        %vm5781 = vcmp.gt.s32.totalorder %v5648, 12
        %v5782 = vsel %vm5781, 1, 0
        %v5783 = vlaneseq
        %v5784 = vshrl.u32 %v5783, 7
        %v5785 = vsub.s32 0, %v5784
        %v5786 = vrot.slane %v5782, %v5785
        %vm5787 = vcmp.eq.s32.totalorder %v5786, 1
        %v5788 = vsel %vm5787, %v4305, -3e+38
        %v5789 = vsel %vm5787, %v4309, -3e+38
        %v5790 = vsel %vm5787, %v4315, -3e+38
        %v5791 = vsel %vm5787, %v4319, -3e+38
        %vm5792 = vcmp.gt.s32.totalorder %v5648, 13
        %v5793 = vsel %vm5792, 1, 0
        %v5794 = vlaneseq
        %v5795 = vshrl.u32 %v5794, 7
        %v5796 = vsub.s32 0, %v5795
        %v5797 = vrot.slane %v5793, %v5796
        %vm5798 = vcmp.eq.s32.totalorder %v5797, 1
        %v5799 = vsel %vm5798, %v4307, -3e+38
        %v5800 = vsel %vm5798, %v4311, -3e+38
        %v5801 = vsel %vm5798, %v4317, -3e+38
        %v5802 = vsel %vm5798, %v4321, -3e+38
        %vm5803 = vcmp.gt.s32.totalorder %v5648, 14
        %v5804 = vsel %vm5803, 1, 0
        %v5805 = vlaneseq
        %v5806 = vshrl.u32 %v5805, 7
        %v5807 = vsub.s32 0, %v5806
        %v5808 = vrot.slane %v5804, %v5807
        %vm5809 = vcmp.eq.s32.totalorder %v5808, 1
        %v5810 = vsel %vm5809, %v4358, -3e+38
        %v5811 = vsel %vm5809, %v4362, -3e+38
        %v5812 = vsel %vm5809, %v4368, -3e+38
        %v5813 = vsel %vm5809, %v4372, -3e+38
        %vm5814 = vcmp.gt.s32.totalorder %v5648, 15
        %v5815 = vsel %vm5814, 1, 0
        %v5816 = vlaneseq
        %v5817 = vshrl.u32 %v5816, 7
        %v5818 = vsub.s32 0, %v5817
        %v5819 = vrot.slane %v5815, %v5818
        %vm5820 = vcmp.eq.s32.totalorder %v5819, 1
        %v5821 = vsel %vm5820, %v4360, -3e+38
        %v5822 = vsel %vm5820, %v4364, -3e+38
        %v5823 = vsel %vm5820, %v4370, -3e+38
        %v5824 = vsel %vm5820, %v4374, -3e+38
        %vm5825 = vcmp.gt.s32.totalorder %v5648, 16
        %v5826 = vsel %vm5825, 1, 0
        %v5827 = vlaneseq
        %v5828 = vshrl.u32 %v5827, 7
        %v5829 = vsub.s32 0, %v5828
        %v5830 = vrot.slane %v5826, %v5829
        %vm5831 = vcmp.eq.s32.totalorder %v5830, 1
        %v5832 = vsel %vm5831, %v4411, -3e+38
        %v5833 = vsel %vm5831, %v4415, -3e+38
        %v5834 = vsel %vm5831, %v4421, -3e+38
        %v5835 = vsel %vm5831, %v4425, -3e+38
        %vm5836 = vcmp.gt.s32.totalorder %v5648, 17
        %v5837 = vsel %vm5836, 1, 0
        %v5838 = vlaneseq
        %v5839 = vshrl.u32 %v5838, 7
        %v5840 = vsub.s32 0, %v5839
        %v5841 = vrot.slane %v5837, %v5840
        %vm5842 = vcmp.eq.s32.totalorder %v5841, 1
        %v5843 = vsel %vm5842, %v4413, -3e+38
        %v5844 = vsel %vm5842, %v4417, -3e+38
        %v5845 = vsel %vm5842, %v4423, -3e+38
        %v5846 = vsel %vm5842, %v4427, -3e+38
        %vm5847 = vcmp.gt.s32.totalorder %v5648, 18
        %v5848 = vsel %vm5847, 1, 0
        %v5849 = vlaneseq
        %v5850 = vshrl.u32 %v5849, 7
        %v5851 = vsub.s32 0, %v5850
        %v5852 = vrot.slane %v5848, %v5851
        %vm5853 = vcmp.eq.s32.totalorder %v5852, 1
        %v5854 = vsel %vm5853, %v4464, -3e+38
        %v5855 = vsel %vm5853, %v4468, -3e+38
        %v5856 = vsel %vm5853, %v4474, -3e+38
        %v5857 = vsel %vm5853, %v4478, -3e+38
        %vm5858 = vcmp.gt.s32.totalorder %v5648, 19
        %v5859 = vsel %vm5858, 1, 0
        %v5860 = vlaneseq
        %v5861 = vshrl.u32 %v5860, 7
        %v5862 = vsub.s32 0, %v5861
        %v5863 = vrot.slane %v5859, %v5862
        %vm5864 = vcmp.eq.s32.totalorder %v5863, 1
        %v5865 = vsel %vm5864, %v4466, -3e+38
        %v5866 = vsel %vm5864, %v4470, -3e+38
        %v5867 = vsel %vm5864, %v4476, -3e+38
        %v5868 = vsel %vm5864, %v4480, -3e+38
        %vm5869 = vcmp.gt.s32.totalorder %v5648, 20
        %v5870 = vsel %vm5869, 1, 0
        %v5871 = vlaneseq
        %v5872 = vshrl.u32 %v5871, 7
        %v5873 = vsub.s32 0, %v5872
        %v5874 = vrot.slane %v5870, %v5873
        %vm5875 = vcmp.eq.s32.totalorder %v5874, 1
        %v5876 = vsel %vm5875, %v4517, -3e+38
        %v5877 = vsel %vm5875, %v4521, -3e+38
        %v5878 = vsel %vm5875, %v4527, -3e+38
        %v5879 = vsel %vm5875, %v4531, -3e+38
        %vm5880 = vcmp.gt.s32.totalorder %v5648, 21
        %v5881 = vsel %vm5880, 1, 0
        %v5882 = vlaneseq
        %v5883 = vshrl.u32 %v5882, 7
        %v5884 = vsub.s32 0, %v5883
        %v5885 = vrot.slane %v5881, %v5884
        %vm5886 = vcmp.eq.s32.totalorder %v5885, 1
        %v5887 = vsel %vm5886, %v4519, -3e+38
        %v5888 = vsel %vm5886, %v4523, -3e+38
        %v5889 = vsel %vm5886, %v4529, -3e+38
        %v5890 = vsel %vm5886, %v4533, -3e+38
        %vm5891 = vcmp.gt.s32.totalorder %v5648, 22
        %v5892 = vsel %vm5891, 1, 0
        %v5893 = vlaneseq
        %v5894 = vshrl.u32 %v5893, 7
        %v5895 = vsub.s32 0, %v5894
        %v5896 = vrot.slane %v5892, %v5895
        %vm5897 = vcmp.eq.s32.totalorder %v5896, 1
        %v5898 = vsel %vm5897, %v4570, -3e+38
        %v5899 = vsel %vm5897, %v4574, -3e+38
        %v5900 = vsel %vm5897, %v4580, -3e+38
        %v5901 = vsel %vm5897, %v4584, -3e+38
        %vm5902 = vcmp.gt.s32.totalorder %v5648, 23
        %v5903 = vsel %vm5902, 1, 0
        %v5904 = vlaneseq
        %v5905 = vshrl.u32 %v5904, 7
        %v5906 = vsub.s32 0, %v5905
        %v5907 = vrot.slane %v5903, %v5906
        %vm5908 = vcmp.eq.s32.totalorder %v5907, 1
        %v5909 = vsel %vm5908, %v4572, -3e+38
        %v5910 = vsel %vm5908, %v4576, -3e+38
        %v5911 = vsel %vm5908, %v4582, -3e+38
        %v5912 = vsel %vm5908, %v4586, -3e+38
        %vm5913 = vcmp.gt.s32.totalorder %v5648, 24
        %v5914 = vsel %vm5913, 1, 0
        %v5915 = vlaneseq
        %v5916 = vshrl.u32 %v5915, 7
        %v5917 = vsub.s32 0, %v5916
        %v5918 = vrot.slane %v5914, %v5917
        %vm5919 = vcmp.eq.s32.totalorder %v5918, 1
        %v5920 = vsel %vm5919, %v4623, -3e+38
        %v5921 = vsel %vm5919, %v4627, -3e+38
        %v5922 = vsel %vm5919, %v4633, -3e+38
        %v5923 = vsel %vm5919, %v4637, -3e+38
        %vm5924 = vcmp.gt.s32.totalorder %v5648, 25
        %v5925 = vsel %vm5924, 1, 0
        %v5926 = vlaneseq
        %v5927 = vshrl.u32 %v5926, 7
        %v5928 = vsub.s32 0, %v5927
        %v5929 = vrot.slane %v5925, %v5928
        %vm5930 = vcmp.eq.s32.totalorder %v5929, 1
        %v5931 = vsel %vm5930, %v4625, -3e+38
        %v5932 = vsel %vm5930, %v4629, -3e+38
        %v5933 = vsel %vm5930, %v4635, -3e+38
        %v5934 = vsel %vm5930, %v4639, -3e+38
        %vm5935 = vcmp.gt.s32.totalorder %v5648, 26
        %v5936 = vsel %vm5935, 1, 0
        %v5937 = vlaneseq
        %v5938 = vshrl.u32 %v5937, 7
        %v5939 = vsub.s32 0, %v5938
        %v5940 = vrot.slane %v5936, %v5939
        %vm5941 = vcmp.eq.s32.totalorder %v5940, 1
        %v5942 = vsel %vm5941, %v4676, -3e+38
        %v5943 = vsel %vm5941, %v4680, -3e+38
        %v5944 = vsel %vm5941, %v4686, -3e+38
        %v5945 = vsel %vm5941, %v4690, -3e+38
        %vm5946 = vcmp.gt.s32.totalorder %v5648, 27
        %v5947 = vsel %vm5946, 1, 0
        %v5948 = vlaneseq
        %v5949 = vshrl.u32 %v5948, 7
        %v5950 = vsub.s32 0, %v5949
        %v5951 = vrot.slane %v5947, %v5950
        %vm5952 = vcmp.eq.s32.totalorder %v5951, 1
        %v5953 = vsel %vm5952, %v4678, -3e+38
        %v5954 = vsel %vm5952, %v4682, -3e+38
        %v5955 = vsel %vm5952, %v4688, -3e+38
        %v5956 = vsel %vm5952, %v4692, -3e+38
        %vm5957 = vcmp.gt.s32.totalorder %v5648, 28
        %v5958 = vsel %vm5957, 1, 0
        %v5959 = vlaneseq
        %v5960 = vshrl.u32 %v5959, 7
        %v5961 = vsub.s32 0, %v5960
        %v5962 = vrot.slane %v5958, %v5961
        %vm5963 = vcmp.eq.s32.totalorder %v5962, 1
        %v5964 = vsel %vm5963, %v4729, -3e+38
        %v5965 = vsel %vm5963, %v4733, -3e+38
        %v5966 = vsel %vm5963, %v4739, -3e+38
        %v5967 = vsel %vm5963, %v4743, -3e+38
        %vm5968 = vcmp.gt.s32.totalorder %v5648, 29
        %v5969 = vsel %vm5968, 1, 0
        %v5970 = vlaneseq
        %v5971 = vshrl.u32 %v5970, 7
        %v5972 = vsub.s32 0, %v5971
        %v5973 = vrot.slane %v5969, %v5972
        %vm5974 = vcmp.eq.s32.totalorder %v5973, 1
        %v5975 = vsel %vm5974, %v4731, -3e+38
        %v5976 = vsel %vm5974, %v4735, -3e+38
        %v5977 = vsel %vm5974, %v4741, -3e+38
        %v5978 = vsel %vm5974, %v4745, -3e+38
        %vm5979 = vcmp.gt.s32.totalorder %v5648, 30
        %v5980 = vsel %vm5979, 1, 0
        %v5981 = vlaneseq
        %v5982 = vshrl.u32 %v5981, 7
        %v5983 = vsub.s32 0, %v5982
        %v5984 = vrot.slane %v5980, %v5983
        %vm5985 = vcmp.eq.s32.totalorder %v5984, 1
        %v5986 = vsel %vm5985, %v4782, -3e+38
        %v5987 = vsel %vm5985, %v4786, -3e+38
        %v5988 = vsel %vm5985, %v4792, -3e+38
        %v5989 = vsel %vm5985, %v4796, -3e+38
        %vm5990 = vcmp.gt.s32.totalorder %v5648, 31
        %v5991 = vsel %vm5990, 1, 0
        %v5992 = vlaneseq
        %v5993 = vshrl.u32 %v5992, 7
        %v5994 = vsub.s32 0, %v5993
        %v5995 = vrot.slane %v5991, %v5994
        %vm5996 = vcmp.eq.s32.totalorder %v5995, 1
        %v5997 = vsel %vm5996, %v4784, -3e+38
        %v5998 = vsel %vm5996, %v4788, -3e+38
        %v5999 = vsel %vm5996, %v4794, -3e+38
        %v6000 = vsel %vm5996, %v4798, -3e+38
        %vm6001 = vcmp.gt.s32.totalorder %v5648, 32
        %v6002 = vsel %vm6001, 1, 0
        %v6003 = vlaneseq
        %v6004 = vshrl.u32 %v6003, 7
        %v6005 = vsub.s32 0, %v6004
        %v6006 = vrot.slane %v6002, %v6005
        %vm6007 = vcmp.eq.s32.totalorder %v6006, 1
        %v6008 = vsel %vm6007, %v4835, -3e+38
        %v6009 = vsel %vm6007, %v4839, -3e+38
        %v6010 = vsel %vm6007, %v4845, -3e+38
        %v6011 = vsel %vm6007, %v4849, -3e+38
        %vm6012 = vcmp.gt.s32.totalorder %v5648, 33
        %v6013 = vsel %vm6012, 1, 0
        %v6014 = vlaneseq
        %v6015 = vshrl.u32 %v6014, 7
        %v6016 = vsub.s32 0, %v6015
        %v6017 = vrot.slane %v6013, %v6016
        %vm6018 = vcmp.eq.s32.totalorder %v6017, 1
        %v6019 = vsel %vm6018, %v4837, -3e+38
        %v6020 = vsel %vm6018, %v4841, -3e+38
        %v6021 = vsel %vm6018, %v4847, -3e+38
        %v6022 = vsel %vm6018, %v4851, -3e+38
        %vm6023 = vcmp.gt.s32.totalorder %v5648, 34
        %v6024 = vsel %vm6023, 1, 0
        %v6025 = vlaneseq
        %v6026 = vshrl.u32 %v6025, 7
        %v6027 = vsub.s32 0, %v6026
        %v6028 = vrot.slane %v6024, %v6027
        %vm6029 = vcmp.eq.s32.totalorder %v6028, 1
        %v6030 = vsel %vm6029, %v4888, -3e+38
        %v6031 = vsel %vm6029, %v4892, -3e+38
        %v6032 = vsel %vm6029, %v4898, -3e+38
        %v6033 = vsel %vm6029, %v4902, -3e+38
        %vm6034 = vcmp.gt.s32.totalorder %v5648, 35
        %v6035 = vsel %vm6034, 1, 0
        %v6036 = vlaneseq
        %v6037 = vshrl.u32 %v6036, 7
        %v6038 = vsub.s32 0, %v6037
        %v6039 = vrot.slane %v6035, %v6038
        %vm6040 = vcmp.eq.s32.totalorder %v6039, 1
        %v6041 = vsel %vm6040, %v4890, -3e+38
        %v6042 = vsel %vm6040, %v4894, -3e+38
        %v6043 = vsel %vm6040, %v4900, -3e+38
        %v6044 = vsel %vm6040, %v4904, -3e+38
        %vm6045 = vcmp.gt.s32.totalorder %v5648, 36
        %v6046 = vsel %vm6045, 1, 0
        %v6047 = vlaneseq
        %v6048 = vshrl.u32 %v6047, 7
        %v6049 = vsub.s32 0, %v6048
        %v6050 = vrot.slane %v6046, %v6049
        %vm6051 = vcmp.eq.s32.totalorder %v6050, 1
        %v6052 = vsel %vm6051, %v4941, -3e+38
        %v6053 = vsel %vm6051, %v4945, -3e+38
        %v6054 = vsel %vm6051, %v4951, -3e+38
        %v6055 = vsel %vm6051, %v4955, -3e+38
        %vm6056 = vcmp.gt.s32.totalorder %v5648, 37
        %v6057 = vsel %vm6056, 1, 0
        %v6058 = vlaneseq
        %v6059 = vshrl.u32 %v6058, 7
        %v6060 = vsub.s32 0, %v6059
        %v6061 = vrot.slane %v6057, %v6060
        %vm6062 = vcmp.eq.s32.totalorder %v6061, 1
        %v6063 = vsel %vm6062, %v4943, -3e+38
        %v6064 = vsel %vm6062, %v4947, -3e+38
        %v6065 = vsel %vm6062, %v4953, -3e+38
        %v6066 = vsel %vm6062, %v4957, -3e+38
        %vm6067 = vcmp.gt.s32.totalorder %v5648, 38
        %v6068 = vsel %vm6067, 1, 0
        %v6069 = vlaneseq
        %v6070 = vshrl.u32 %v6069, 7
        %v6071 = vsub.s32 0, %v6070
        %v6072 = vrot.slane %v6068, %v6071
        %vm6073 = vcmp.eq.s32.totalorder %v6072, 1
        %v6074 = vsel %vm6073, %v4994, -3e+38
        %v6075 = vsel %vm6073, %v4998, -3e+38
        %v6076 = vsel %vm6073, %v5004, -3e+38
        %v6077 = vsel %vm6073, %v5008, -3e+38
        %vm6078 = vcmp.gt.s32.totalorder %v5648, 39
        %v6079 = vsel %vm6078, 1, 0
        %v6080 = vlaneseq
        %v6081 = vshrl.u32 %v6080, 7
        %v6082 = vsub.s32 0, %v6081
        %v6083 = vrot.slane %v6079, %v6082
        %vm6084 = vcmp.eq.s32.totalorder %v6083, 1
        %v6085 = vsel %vm6084, %v4996, -3e+38
        %v6086 = vsel %vm6084, %v5000, -3e+38
        %v6087 = vsel %vm6084, %v5006, -3e+38
        %v6088 = vsel %vm6084, %v5010, -3e+38
        %vm6089 = vcmp.gt.s32.totalorder %v5648, 40
        %v6090 = vsel %vm6089, 1, 0
        %v6091 = vlaneseq
        %v6092 = vshrl.u32 %v6091, 7
        %v6093 = vsub.s32 0, %v6092
        %v6094 = vrot.slane %v6090, %v6093
        %vm6095 = vcmp.eq.s32.totalorder %v6094, 1
        %v6096 = vsel %vm6095, %v5047, -3e+38
        %v6097 = vsel %vm6095, %v5051, -3e+38
        %v6098 = vsel %vm6095, %v5057, -3e+38
        %v6099 = vsel %vm6095, %v5061, -3e+38
        %vm6100 = vcmp.gt.s32.totalorder %v5648, 41
        %v6101 = vsel %vm6100, 1, 0
        %v6102 = vlaneseq
        %v6103 = vshrl.u32 %v6102, 7
        %v6104 = vsub.s32 0, %v6103
        %v6105 = vrot.slane %v6101, %v6104
        %vm6106 = vcmp.eq.s32.totalorder %v6105, 1
        %v6107 = vsel %vm6106, %v5049, -3e+38
        %v6108 = vsel %vm6106, %v5053, -3e+38
        %v6109 = vsel %vm6106, %v5059, -3e+38
        %v6110 = vsel %vm6106, %v5063, -3e+38
        %vm6111 = vcmp.gt.s32.totalorder %v5648, 42
        %v6112 = vsel %vm6111, 1, 0
        %v6113 = vlaneseq
        %v6114 = vshrl.u32 %v6113, 7
        %v6115 = vsub.s32 0, %v6114
        %v6116 = vrot.slane %v6112, %v6115
        %vm6117 = vcmp.eq.s32.totalorder %v6116, 1
        %v6118 = vsel %vm6117, %v5100, -3e+38
        %v6119 = vsel %vm6117, %v5104, -3e+38
        %v6120 = vsel %vm6117, %v5110, -3e+38
        %v6121 = vsel %vm6117, %v5114, -3e+38
        %vm6122 = vcmp.gt.s32.totalorder %v5648, 43
        %v6123 = vsel %vm6122, 1, 0
        %v6124 = vlaneseq
        %v6125 = vshrl.u32 %v6124, 7
        %v6126 = vsub.s32 0, %v6125
        %v6127 = vrot.slane %v6123, %v6126
        %vm6128 = vcmp.eq.s32.totalorder %v6127, 1
        %v6129 = vsel %vm6128, %v5102, -3e+38
        %v6130 = vsel %vm6128, %v5106, -3e+38
        %v6131 = vsel %vm6128, %v5112, -3e+38
        %v6132 = vsel %vm6128, %v5116, -3e+38
        %vm6133 = vcmp.gt.s32.totalorder %v5648, 44
        %v6134 = vsel %vm6133, 1, 0
        %v6135 = vlaneseq
        %v6136 = vshrl.u32 %v6135, 7
        %v6137 = vsub.s32 0, %v6136
        %v6138 = vrot.slane %v6134, %v6137
        %vm6139 = vcmp.eq.s32.totalorder %v6138, 1
        %v6140 = vsel %vm6139, %v5153, -3e+38
        %v6141 = vsel %vm6139, %v5157, -3e+38
        %v6142 = vsel %vm6139, %v5163, -3e+38
        %v6143 = vsel %vm6139, %v5167, -3e+38
        %vm6144 = vcmp.gt.s32.totalorder %v5648, 45
        %v6145 = vsel %vm6144, 1, 0
        %v6146 = vlaneseq
        %v6147 = vshrl.u32 %v6146, 7
        %v6148 = vsub.s32 0, %v6147
        %v6149 = vrot.slane %v6145, %v6148
        %vm6150 = vcmp.eq.s32.totalorder %v6149, 1
        %v6151 = vsel %vm6150, %v5155, -3e+38
        %v6152 = vsel %vm6150, %v5159, -3e+38
        %v6153 = vsel %vm6150, %v5165, -3e+38
        %v6154 = vsel %vm6150, %v5169, -3e+38
        %vm6155 = vcmp.gt.s32.totalorder %v5648, 46
        %v6156 = vsel %vm6155, 1, 0
        %v6157 = vlaneseq
        %v6158 = vshrl.u32 %v6157, 7
        %v6159 = vsub.s32 0, %v6158
        %v6160 = vrot.slane %v6156, %v6159
        %vm6161 = vcmp.eq.s32.totalorder %v6160, 1
        %v6162 = vsel %vm6161, %v5206, -3e+38
        %v6163 = vsel %vm6161, %v5210, -3e+38
        %v6164 = vsel %vm6161, %v5216, -3e+38
        %v6165 = vsel %vm6161, %v5220, -3e+38
        %vm6166 = vcmp.gt.s32.totalorder %v5648, 47
        %v6167 = vsel %vm6166, 1, 0
        %v6168 = vlaneseq
        %v6169 = vshrl.u32 %v6168, 7
        %v6170 = vsub.s32 0, %v6169
        %v6171 = vrot.slane %v6167, %v6170
        %vm6172 = vcmp.eq.s32.totalorder %v6171, 1
        %v6173 = vsel %vm6172, %v5208, -3e+38
        %v6174 = vsel %vm6172, %v5212, -3e+38
        %v6175 = vsel %vm6172, %v5218, -3e+38
        %v6176 = vsel %vm6172, %v5222, -3e+38
        %vm6177 = vcmp.gt.s32.totalorder %v5648, 48
        %v6178 = vsel %vm6177, 1, 0
        %v6179 = vlaneseq
        %v6180 = vshrl.u32 %v6179, 7
        %v6181 = vsub.s32 0, %v6180
        %v6182 = vrot.slane %v6178, %v6181
        %vm6183 = vcmp.eq.s32.totalorder %v6182, 1
        %v6184 = vsel %vm6183, %v5259, -3e+38
        %v6185 = vsel %vm6183, %v5263, -3e+38
        %v6186 = vsel %vm6183, %v5269, -3e+38
        %v6187 = vsel %vm6183, %v5273, -3e+38
        %vm6188 = vcmp.gt.s32.totalorder %v5648, 49
        %v6189 = vsel %vm6188, 1, 0
        %v6190 = vlaneseq
        %v6191 = vshrl.u32 %v6190, 7
        %v6192 = vsub.s32 0, %v6191
        %v6193 = vrot.slane %v6189, %v6192
        %vm6194 = vcmp.eq.s32.totalorder %v6193, 1
        %v6195 = vsel %vm6194, %v5261, -3e+38
        %v6196 = vsel %vm6194, %v5265, -3e+38
        %v6197 = vsel %vm6194, %v5271, -3e+38
        %v6198 = vsel %vm6194, %v5275, -3e+38
        %vm6199 = vcmp.gt.s32.totalorder %v5648, 50
        %v6200 = vsel %vm6199, 1, 0
        %v6201 = vlaneseq
        %v6202 = vshrl.u32 %v6201, 7
        %v6203 = vsub.s32 0, %v6202
        %v6204 = vrot.slane %v6200, %v6203
        %vm6205 = vcmp.eq.s32.totalorder %v6204, 1
        %v6206 = vsel %vm6205, %v5312, -3e+38
        %v6207 = vsel %vm6205, %v5316, -3e+38
        %v6208 = vsel %vm6205, %v5322, -3e+38
        %v6209 = vsel %vm6205, %v5326, -3e+38
        %vm6210 = vcmp.gt.s32.totalorder %v5648, 51
        %v6211 = vsel %vm6210, 1, 0
        %v6212 = vlaneseq
        %v6213 = vshrl.u32 %v6212, 7
        %v6214 = vsub.s32 0, %v6213
        %v6215 = vrot.slane %v6211, %v6214
        %vm6216 = vcmp.eq.s32.totalorder %v6215, 1
        %v6217 = vsel %vm6216, %v5314, -3e+38
        %v6218 = vsel %vm6216, %v5318, -3e+38
        %v6219 = vsel %vm6216, %v5324, -3e+38
        %v6220 = vsel %vm6216, %v5328, -3e+38
        %vm6221 = vcmp.gt.s32.totalorder %v5648, 52
        %v6222 = vsel %vm6221, 1, 0
        %v6223 = vlaneseq
        %v6224 = vshrl.u32 %v6223, 7
        %v6225 = vsub.s32 0, %v6224
        %v6226 = vrot.slane %v6222, %v6225
        %vm6227 = vcmp.eq.s32.totalorder %v6226, 1
        %v6228 = vsel %vm6227, %v5365, -3e+38
        %v6229 = vsel %vm6227, %v5369, -3e+38
        %v6230 = vsel %vm6227, %v5375, -3e+38
        %v6231 = vsel %vm6227, %v5379, -3e+38
        %vm6232 = vcmp.gt.s32.totalorder %v5648, 53
        %v6233 = vsel %vm6232, 1, 0
        %v6234 = vlaneseq
        %v6235 = vshrl.u32 %v6234, 7
        %v6236 = vsub.s32 0, %v6235
        %v6237 = vrot.slane %v6233, %v6236
        %vm6238 = vcmp.eq.s32.totalorder %v6237, 1
        %v6239 = vsel %vm6238, %v5367, -3e+38
        %v6240 = vsel %vm6238, %v5371, -3e+38
        %v6241 = vsel %vm6238, %v5377, -3e+38
        %v6242 = vsel %vm6238, %v5381, -3e+38
        %vm6243 = vcmp.gt.s32.totalorder %v5648, 54
        %v6244 = vsel %vm6243, 1, 0
        %v6245 = vlaneseq
        %v6246 = vshrl.u32 %v6245, 7
        %v6247 = vsub.s32 0, %v6246
        %v6248 = vrot.slane %v6244, %v6247
        %vm6249 = vcmp.eq.s32.totalorder %v6248, 1
        %v6250 = vsel %vm6249, %v5418, -3e+38
        %v6251 = vsel %vm6249, %v5422, -3e+38
        %v6252 = vsel %vm6249, %v5428, -3e+38
        %v6253 = vsel %vm6249, %v5432, -3e+38
        %vm6254 = vcmp.gt.s32.totalorder %v5648, 55
        %v6255 = vsel %vm6254, 1, 0
        %v6256 = vlaneseq
        %v6257 = vshrl.u32 %v6256, 7
        %v6258 = vsub.s32 0, %v6257
        %v6259 = vrot.slane %v6255, %v6258
        %vm6260 = vcmp.eq.s32.totalorder %v6259, 1
        %v6261 = vsel %vm6260, %v5420, -3e+38
        %v6262 = vsel %vm6260, %v5424, -3e+38
        %v6263 = vsel %vm6260, %v5430, -3e+38
        %v6264 = vsel %vm6260, %v5434, -3e+38
        %vm6265 = vcmp.gt.s32.totalorder %v5648, 56
        %v6266 = vsel %vm6265, 1, 0
        %v6267 = vlaneseq
        %v6268 = vshrl.u32 %v6267, 7
        %v6269 = vsub.s32 0, %v6268
        %v6270 = vrot.slane %v6266, %v6269
        %vm6271 = vcmp.eq.s32.totalorder %v6270, 1
        %v6272 = vsel %vm6271, %v5471, -3e+38
        %v6273 = vsel %vm6271, %v5475, -3e+38
        %v6274 = vsel %vm6271, %v5481, -3e+38
        %v6275 = vsel %vm6271, %v5485, -3e+38
        %vm6276 = vcmp.gt.s32.totalorder %v5648, 57
        %v6277 = vsel %vm6276, 1, 0
        %v6278 = vlaneseq
        %v6279 = vshrl.u32 %v6278, 7
        %v6280 = vsub.s32 0, %v6279
        %v6281 = vrot.slane %v6277, %v6280
        %vm6282 = vcmp.eq.s32.totalorder %v6281, 1
        %v6283 = vsel %vm6282, %v5473, -3e+38
        %v6284 = vsel %vm6282, %v5477, -3e+38
        %v6285 = vsel %vm6282, %v5483, -3e+38
        %v6286 = vsel %vm6282, %v5487, -3e+38
        %vm6287 = vcmp.gt.s32.totalorder %v5648, 58
        %v6288 = vsel %vm6287, 1, 0
        %v6289 = vlaneseq
        %v6290 = vshrl.u32 %v6289, 7
        %v6291 = vsub.s32 0, %v6290
        %v6292 = vrot.slane %v6288, %v6291
        %vm6293 = vcmp.eq.s32.totalorder %v6292, 1
        %v6294 = vsel %vm6293, %v5524, -3e+38
        %v6295 = vsel %vm6293, %v5528, -3e+38
        %v6296 = vsel %vm6293, %v5534, -3e+38
        %v6297 = vsel %vm6293, %v5538, -3e+38
        %vm6298 = vcmp.gt.s32.totalorder %v5648, 59
        %v6299 = vsel %vm6298, 1, 0
        %v6300 = vlaneseq
        %v6301 = vshrl.u32 %v6300, 7
        %v6302 = vsub.s32 0, %v6301
        %v6303 = vrot.slane %v6299, %v6302
        %vm6304 = vcmp.eq.s32.totalorder %v6303, 1
        %v6305 = vsel %vm6304, %v5526, -3e+38
        %v6306 = vsel %vm6304, %v5530, -3e+38
        %v6307 = vsel %vm6304, %v5536, -3e+38
        %v6308 = vsel %vm6304, %v5540, -3e+38
        %vm6309 = vcmp.gt.s32.totalorder %v5648, 60
        %v6310 = vsel %vm6309, 1, 0
        %v6311 = vlaneseq
        %v6312 = vshrl.u32 %v6311, 7
        %v6313 = vsub.s32 0, %v6312
        %v6314 = vrot.slane %v6310, %v6313
        %vm6315 = vcmp.eq.s32.totalorder %v6314, 1
        %v6316 = vsel %vm6315, %v5577, -3e+38
        %v6317 = vsel %vm6315, %v5581, -3e+38
        %v6318 = vsel %vm6315, %v5587, -3e+38
        %v6319 = vsel %vm6315, %v5591, -3e+38
        %vm6320 = vcmp.gt.s32.totalorder %v5648, 61
        %v6321 = vsel %vm6320, 1, 0
        %v6322 = vlaneseq
        %v6323 = vshrl.u32 %v6322, 7
        %v6324 = vsub.s32 0, %v6323
        %v6325 = vrot.slane %v6321, %v6324
        %vm6326 = vcmp.eq.s32.totalorder %v6325, 1
        %v6327 = vsel %vm6326, %v5579, -3e+38
        %v6328 = vsel %vm6326, %v5583, -3e+38
        %v6329 = vsel %vm6326, %v5589, -3e+38
        %v6330 = vsel %vm6326, %v5593, -3e+38
        %vm6331 = vcmp.gt.s32.totalorder %v5648, 62
        %v6332 = vsel %vm6331, 1, 0
        %v6333 = vlaneseq
        %v6334 = vshrl.u32 %v6333, 7
        %v6335 = vsub.s32 0, %v6334
        %v6336 = vrot.slane %v6332, %v6335
        %vm6337 = vcmp.eq.s32.totalorder %v6336, 1
        %v6338 = vsel %vm6337, %v5630, -3e+38
        %v6339 = vsel %vm6337, %v5634, -3e+38
        %v6340 = vsel %vm6337, %v5640, -3e+38
        %v6341 = vsel %vm6337, %v5644, -3e+38
        %vm6342 = vcmp.gt.s32.totalorder %v5648, 63
        %v6343 = vsel %vm6342, 1, 0
        %v6344 = vlaneseq
        %v6345 = vshrl.u32 %v6344, 7
        %v6346 = vsub.s32 0, %v6345
        %v6347 = vrot.slane %v6343, %v6346
        %vm6348 = vcmp.eq.s32.totalorder %v6347, 1
        %v6349 = vsel %vm6348, %v5632, -3e+38
        %v6350 = vsel %vm6348, %v5636, -3e+38
        %v6351 = vsel %vm6348, %v5642, -3e+38
        %v6352 = vsel %vm6348, %v5646, -3e+38
        %v6353 = vmax.f32 %v5656, %v5667
        %v6354 = vmax.f32 %v5657, %v5668
        %v6355 = vmax.f32 %v5658, %v5669
        %v6356 = vmax.f32 %v5659, %v5670
        %v6357 = vmax.f32 %v5678, %v5689
        %v6358 = vmax.f32 %v5679, %v5690
        %v6359 = vmax.f32 %v5680, %v5691
        %v6360 = vmax.f32 %v5681, %v5692
        %v6361 = vmax.f32 %v5700, %v5711
        %v6362 = vmax.f32 %v5701, %v5712
        %v6363 = vmax.f32 %v5702, %v5713
        %v6364 = vmax.f32 %v5703, %v5714
        %v6365 = vmax.f32 %v5722, %v5733
        %v6366 = vmax.f32 %v5723, %v5734
        %v6367 = vmax.f32 %v5724, %v5735
        %v6368 = vmax.f32 %v5725, %v5736
        %v6369 = vmax.f32 %v5744, %v5755
        %v6370 = vmax.f32 %v5745, %v5756
        %v6371 = vmax.f32 %v5746, %v5757
        %v6372 = vmax.f32 %v5747, %v5758
        %v6373 = vmax.f32 %v5766, %v5777
        %v6374 = vmax.f32 %v5767, %v5778
        %v6375 = vmax.f32 %v5768, %v5779
        %v6376 = vmax.f32 %v5769, %v5780
        %v6377 = vmax.f32 %v5788, %v5799
        %v6378 = vmax.f32 %v5789, %v5800
        %v6379 = vmax.f32 %v5790, %v5801
        %v6380 = vmax.f32 %v5791, %v5802
        %v6381 = vmax.f32 %v5810, %v5821
        %v6382 = vmax.f32 %v5811, %v5822
        %v6383 = vmax.f32 %v5812, %v5823
        %v6384 = vmax.f32 %v5813, %v5824
        %v6385 = vmax.f32 %v5832, %v5843
        %v6386 = vmax.f32 %v5833, %v5844
        %v6387 = vmax.f32 %v5834, %v5845
        %v6388 = vmax.f32 %v5835, %v5846
        %v6389 = vmax.f32 %v5854, %v5865
        %v6390 = vmax.f32 %v5855, %v5866
        %v6391 = vmax.f32 %v5856, %v5867
        %v6392 = vmax.f32 %v5857, %v5868
        %v6393 = vmax.f32 %v5876, %v5887
        %v6394 = vmax.f32 %v5877, %v5888
        %v6395 = vmax.f32 %v5878, %v5889
        %v6396 = vmax.f32 %v5879, %v5890
        %v6397 = vmax.f32 %v5898, %v5909
        %v6398 = vmax.f32 %v5899, %v5910
        %v6399 = vmax.f32 %v5900, %v5911
        %v6400 = vmax.f32 %v5901, %v5912
        %v6401 = vmax.f32 %v5920, %v5931
        %v6402 = vmax.f32 %v5921, %v5932
        %v6403 = vmax.f32 %v5922, %v5933
        %v6404 = vmax.f32 %v5923, %v5934
        %v6405 = vmax.f32 %v5942, %v5953
        %v6406 = vmax.f32 %v5943, %v5954
        %v6407 = vmax.f32 %v5944, %v5955
        %v6408 = vmax.f32 %v5945, %v5956
        %v6409 = vmax.f32 %v5964, %v5975
        %v6410 = vmax.f32 %v5965, %v5976
        %v6411 = vmax.f32 %v5966, %v5977
        %v6412 = vmax.f32 %v5967, %v5978
        %v6413 = vmax.f32 %v5986, %v5997
        %v6414 = vmax.f32 %v5987, %v5998
        %v6415 = vmax.f32 %v5988, %v5999
        %v6416 = vmax.f32 %v5989, %v6000
        %v6417 = vmax.f32 %v6008, %v6019
        %v6418 = vmax.f32 %v6009, %v6020
        %v6419 = vmax.f32 %v6010, %v6021
        %v6420 = vmax.f32 %v6011, %v6022
        %v6421 = vmax.f32 %v6030, %v6041
        %v6422 = vmax.f32 %v6031, %v6042
        %v6423 = vmax.f32 %v6032, %v6043
        %v6424 = vmax.f32 %v6033, %v6044
        %v6425 = vmax.f32 %v6052, %v6063
        %v6426 = vmax.f32 %v6053, %v6064
        %v6427 = vmax.f32 %v6054, %v6065
        %v6428 = vmax.f32 %v6055, %v6066
        %v6429 = vmax.f32 %v6074, %v6085
        %v6430 = vmax.f32 %v6075, %v6086
        %v6431 = vmax.f32 %v6076, %v6087
        %v6432 = vmax.f32 %v6077, %v6088
        %v6433 = vmax.f32 %v6096, %v6107
        %v6434 = vmax.f32 %v6097, %v6108
        %v6435 = vmax.f32 %v6098, %v6109
        %v6436 = vmax.f32 %v6099, %v6110
        %v6437 = vmax.f32 %v6118, %v6129
        %v6438 = vmax.f32 %v6119, %v6130
        %v6439 = vmax.f32 %v6120, %v6131
        %v6440 = vmax.f32 %v6121, %v6132
        %v6441 = vmax.f32 %v6140, %v6151
        %v6442 = vmax.f32 %v6141, %v6152
        %v6443 = vmax.f32 %v6142, %v6153
        %v6444 = vmax.f32 %v6143, %v6154
        %v6445 = vmax.f32 %v6162, %v6173
        %v6446 = vmax.f32 %v6163, %v6174
        %v6447 = vmax.f32 %v6164, %v6175
        %v6448 = vmax.f32 %v6165, %v6176
        %v6449 = vmax.f32 %v6184, %v6195
        %v6450 = vmax.f32 %v6185, %v6196
        %v6451 = vmax.f32 %v6186, %v6197
        %v6452 = vmax.f32 %v6187, %v6198
        %v6453 = vmax.f32 %v6206, %v6217
        %v6454 = vmax.f32 %v6207, %v6218
        %v6455 = vmax.f32 %v6208, %v6219
        %v6456 = vmax.f32 %v6209, %v6220
        %v6457 = vmax.f32 %v6228, %v6239
        %v6458 = vmax.f32 %v6229, %v6240
        %v6459 = vmax.f32 %v6230, %v6241
        %v6460 = vmax.f32 %v6231, %v6242
        %v6461 = vmax.f32 %v6250, %v6261
        %v6462 = vmax.f32 %v6251, %v6262
        %v6463 = vmax.f32 %v6252, %v6263
        %v6464 = vmax.f32 %v6253, %v6264
        %v6465 = vmax.f32 %v6272, %v6283
        %v6466 = vmax.f32 %v6273, %v6284
        %v6467 = vmax.f32 %v6274, %v6285
        %v6468 = vmax.f32 %v6275, %v6286
        %v6469 = vmax.f32 %v6294, %v6305
        %v6470 = vmax.f32 %v6295, %v6306
        %v6471 = vmax.f32 %v6296, %v6307
        %v6472 = vmax.f32 %v6297, %v6308
        %v6473 = vmax.f32 %v6316, %v6327
        %v6474 = vmax.f32 %v6317, %v6328
        %v6475 = vmax.f32 %v6318, %v6329
        %v6476 = vmax.f32 %v6319, %v6330
        %v6477 = vmax.f32 %v6338, %v6349
        %v6478 = vmax.f32 %v6339, %v6350
        %v6479 = vmax.f32 %v6340, %v6351
        %v6480 = vmax.f32 %v6341, %v6352
        %v6481 = vmax.f32 %v6353, %v6357
        %v6482 = vmax.f32 %v6354, %v6358
        %v6483 = vmax.f32 %v6355, %v6359
        %v6484 = vmax.f32 %v6356, %v6360
        %v6485 = vmax.f32 %v6361, %v6365
        %v6486 = vmax.f32 %v6362, %v6366
        %v6487 = vmax.f32 %v6363, %v6367
        %v6488 = vmax.f32 %v6364, %v6368
        %v6489 = vmax.f32 %v6369, %v6373
        %v6490 = vmax.f32 %v6370, %v6374
        %v6491 = vmax.f32 %v6371, %v6375
        %v6492 = vmax.f32 %v6372, %v6376
        %v6493 = vmax.f32 %v6377, %v6381
        %v6494 = vmax.f32 %v6378, %v6382
        %v6495 = vmax.f32 %v6379, %v6383
        %v6496 = vmax.f32 %v6380, %v6384
        %v6497 = vmax.f32 %v6385, %v6389
        %v6498 = vmax.f32 %v6386, %v6390
        %v6499 = vmax.f32 %v6387, %v6391
        %v6500 = vmax.f32 %v6388, %v6392
        %v6501 = vmax.f32 %v6393, %v6397
        %v6502 = vmax.f32 %v6394, %v6398
        %v6503 = vmax.f32 %v6395, %v6399
        %v6504 = vmax.f32 %v6396, %v6400
        %v6505 = vmax.f32 %v6401, %v6405
        %v6506 = vmax.f32 %v6402, %v6406
        %v6507 = vmax.f32 %v6403, %v6407
        %v6508 = vmax.f32 %v6404, %v6408
        %v6509 = vmax.f32 %v6409, %v6413
        %v6510 = vmax.f32 %v6410, %v6414
        %v6511 = vmax.f32 %v6411, %v6415
        %v6512 = vmax.f32 %v6412, %v6416
        %v6513 = vmax.f32 %v6417, %v6421
        %v6514 = vmax.f32 %v6418, %v6422
        %v6515 = vmax.f32 %v6419, %v6423
        %v6516 = vmax.f32 %v6420, %v6424
        %v6517 = vmax.f32 %v6425, %v6429
        %v6518 = vmax.f32 %v6426, %v6430
        %v6519 = vmax.f32 %v6427, %v6431
        %v6520 = vmax.f32 %v6428, %v6432
        %v6521 = vmax.f32 %v6433, %v6437
        %v6522 = vmax.f32 %v6434, %v6438
        %v6523 = vmax.f32 %v6435, %v6439
        %v6524 = vmax.f32 %v6436, %v6440
        %v6525 = vmax.f32 %v6441, %v6445
        %v6526 = vmax.f32 %v6442, %v6446
        %v6527 = vmax.f32 %v6443, %v6447
        %v6528 = vmax.f32 %v6444, %v6448
        %v6529 = vmax.f32 %v6449, %v6453
        %v6530 = vmax.f32 %v6450, %v6454
        %v6531 = vmax.f32 %v6451, %v6455
        %v6532 = vmax.f32 %v6452, %v6456
        %v6533 = vmax.f32 %v6457, %v6461
        %v6534 = vmax.f32 %v6458, %v6462
        %v6535 = vmax.f32 %v6459, %v6463
        %v6536 = vmax.f32 %v6460, %v6464
        %v6537 = vmax.f32 %v6465, %v6469
        %v6538 = vmax.f32 %v6466, %v6470
        %v6539 = vmax.f32 %v6467, %v6471
        %v6540 = vmax.f32 %v6468, %v6472
        %v6541 = vmax.f32 %v6473, %v6477
        %v6542 = vmax.f32 %v6474, %v6478
        %v6543 = vmax.f32 %v6475, %v6479
        %v6544 = vmax.f32 %v6476, %v6480
        %v6545 = vmax.f32 %v6481, %v6485
        %v6546 = vmax.f32 %v6482, %v6486
        %v6547 = vmax.f32 %v6483, %v6487
        %v6548 = vmax.f32 %v6484, %v6488
        %v6549 = vmax.f32 %v6489, %v6493
        %v6550 = vmax.f32 %v6490, %v6494
        %v6551 = vmax.f32 %v6491, %v6495
        %v6552 = vmax.f32 %v6492, %v6496
        %v6553 = vmax.f32 %v6497, %v6501
        %v6554 = vmax.f32 %v6498, %v6502
        %v6555 = vmax.f32 %v6499, %v6503
        %v6556 = vmax.f32 %v6500, %v6504
        %v6557 = vmax.f32 %v6505, %v6509
        %v6558 = vmax.f32 %v6506, %v6510
        %v6559 = vmax.f32 %v6507, %v6511
        %v6560 = vmax.f32 %v6508, %v6512
        %v6561 = vmax.f32 %v6513, %v6517
        %v6562 = vmax.f32 %v6514, %v6518
        %v6563 = vmax.f32 %v6515, %v6519
        %v6564 = vmax.f32 %v6516, %v6520
        %v6565 = vmax.f32 %v6521, %v6525
        %v6566 = vmax.f32 %v6522, %v6526
        %v6567 = vmax.f32 %v6523, %v6527
        %v6568 = vmax.f32 %v6524, %v6528
        %v6569 = vmax.f32 %v6529, %v6533
        %v6570 = vmax.f32 %v6530, %v6534
        %v6571 = vmax.f32 %v6531, %v6535
        %v6572 = vmax.f32 %v6532, %v6536
        %v6573 = vmax.f32 %v6537, %v6541
        %v6574 = vmax.f32 %v6538, %v6542
        %v6575 = vmax.f32 %v6539, %v6543
        %v6576 = vmax.f32 %v6540, %v6544
        %v6577 = vmax.f32 %v6545, %v6549
        %v6578 = vmax.f32 %v6546, %v6550
        %v6579 = vmax.f32 %v6547, %v6551
        %v6580 = vmax.f32 %v6548, %v6552
        %v6581 = vmax.f32 %v6553, %v6557
        %v6582 = vmax.f32 %v6554, %v6558
        %v6583 = vmax.f32 %v6555, %v6559
        %v6584 = vmax.f32 %v6556, %v6560
        %v6585 = vmax.f32 %v6561, %v6565
        %v6586 = vmax.f32 %v6562, %v6566
        %v6587 = vmax.f32 %v6563, %v6567
        %v6588 = vmax.f32 %v6564, %v6568
        %v6589 = vmax.f32 %v6569, %v6573
        %v6590 = vmax.f32 %v6570, %v6574
        %v6591 = vmax.f32 %v6571, %v6575
        %v6592 = vmax.f32 %v6572, %v6576
        %v6593 = vmax.f32 %v6577, %v6581
        %v6594 = vmax.f32 %v6578, %v6582
        %v6595 = vmax.f32 %v6579, %v6583
        %v6596 = vmax.f32 %v6580, %v6584
        %v6597 = vmax.f32 %v6585, %v6589
        %v6598 = vmax.f32 %v6586, %v6590
        %v6599 = vmax.f32 %v6587, %v6591
        %v6600 = vmax.f32 %v6588, %v6592
        %v6601 = vmax.f32 %v6593, %v6597
        %v6602 = vmax.f32 %v6594, %v6598
        %v6603 = vmax.f32 %v6595, %v6599
        %v6604 = vmax.f32 %v6596, %v6600
        %v6605 = vsel %vm5655, %v6601, 0.0
        %v6606 = vsel %vm5655, %v6602, 0.0
        %v6607 = vsel %vm5655, %v6603, 0.0
        %v6608 = vsel %vm5655, %v6604, 0.0
        %6609 = vst [vmem:[%s332] sm:$0xff] %v6605
        %6610 = vst [vmem:[%s332 + $0x8] sm:$0xff] %v6606
        %6611 = vst [vmem:[%s332 + $0x10] sm:$0xff] %v6607
        %6612 = vst [vmem:[%s332 + $0x18] sm:$0xff] %v6608
        %s6613 = sand.u32 %s211, 1
        %s6614 = scalar_lea.sflag [#allocation4], %s6613
        %s6615 = sand.u32 %s211, 1
        %s6616 = smul.addr %s6615, 32
        %s6617 = scalar_lea.vmem [#allocation5], %s6616
        // Predicated region
        $region57: #{tpu_custom_call.1} parent=51 // pred_check
          %p6618 = pneg %p221
        $region58: #{tpu_custom_call.1} parent=51 // pred_check_branch
          %6620 = sbr.rel (%p6618) target = $region60
        $region59: #{tpu_custom_call.1} parent=51 // pred_region
          %s6622 = ssub.s32 512, 512
          %6623 = vsyncadd %s6614, %s6622
          %s6624 = smul.addr %s25, 128
          %s6625 = scalar_lea.hbm %s8, %s6624
          %s6626 = sshll.u32 %s6617, 4
          %s6627 = int_to_ptr.vmem [resolvable:$true] %s6626
          %6632 = dma.vmem_to_hbm [thread:$0]  %s6627, 512, %s6625, %s6614, 128, 256, 8
        $region60: #{tpu_custom_call.1} parent=51 // pred_fallthru
          _
      $region52: #{tpu_custom_call.1} parent=5 // pred_fallthru
        _
      %p6633 = scmp.le.s32.totalorder 2, %s20
      // Predicated region
      $region61: #{tpu_custom_call.1} parent=5 // pred_check
        %p6634 = pneg %p6633
      $region62: #{tpu_custom_call.1} parent=5 // pred_check_branch
        %6636 = sbr.rel (%p6634) target = $region64
      $region63: #{tpu_custom_call.1} parent=5 // pred_region
        %s6637 = ssub.s32 %s20, 2
        // Predicated region
        $region65: #{tpu_custom_call.1} parent=63 // pred_check
          %p6638 = pneg %p227
        $region66: #{tpu_custom_call.1} parent=63 // pred_check_branch
          %6640 = sbr.rel (%p6638) target = $region68
        $region67: #{tpu_custom_call.1} parent=63 // pred_region
          %s6641 = sand.u32 %s212, 1
          %s6642 = scalar_lea.sflag [#allocation4], %s6641
          %s6643 = sand.u32 %s212, 1
          %s6644 = smul.addr %s6643, 32
          %s6645 = scalar_lea.vmem [#allocation5], %s6644
          %6646 = dma.done %s6642, 512
        $region68: #{tpu_custom_call.1} parent=63 // pred_fallthru
          _
      $region64: #{tpu_custom_call.1} parent=5 // pred_fallthru
        _
    $region6: #{tpu_custom_call.1} parent=1 // loop_footer
      %s24 = sadd.s32 1, %s20
    $region7: #{tpu_custom_call.1} parent=1 // loop_footer_branch
      %19 = sbr.rel target = $region3
    $region8: #{tpu_custom_call.1} parent=1 // loop_exit
      _
    %6647 = vsyncpa [#allocation3], 1
    %s6648 = scalar_lea.sflag [#allocation3], 1
    %6649 = vsyncpa %s6648, 1
    %6650 = vsyncpa [#allocation4], 1
    %s6651 = scalar_lea.sflag [#allocation4], 1
    %6652 = vsyncpa %s6651, 1

</llo_original>
